<compile_context>
chip_gen: v6e
topology: v6e:2x2x1
jax: 0.10.0
libtpu: 0.0.40
codegen_flags: <defaults>
</compile_context>

<pallas_src>
import functools
import math

import numpy as np
import jax
import jax.numpy as jnp
from jax.experimental import pallas as pl
from jax.experimental.pallas import tpu as pltpu


# ----------------------------------------------------------------------------
# In-kernel helpers
# ----------------------------------------------------------------------------
def _silu(v):
    # v * sigmoid(v); exp -> EUP, approx reciprocal -> EUP (keeps VALU free).
    return v * pl.reciprocal(1.0 + jnp.exp(-v), approx=True)


def _layernorm(v, gamma, beta, eps=1e-5):
    mu = jnp.mean(v, axis=-1, keepdims=True)
    d = v - mu
    var = jnp.mean(d * d, axis=-1, keepdims=True)
    return d * jax.lax.rsqrt(var + eps) * gamma + beta


def _mm(a, w):
    """Activation (cast to bf16) x pre-cast bf16 weight, f32 MXU accumulation."""
    return jnp.dot(a.astype(jnp.bfloat16), w, preferred_element_type=jnp.float32)


# ----------------------------------------------------------------------------
# Pallas kernels
# ----------------------------------------------------------------------------
def fused_pointwise_kernel(x_ref, w_ref, s_ref, o_ref):
    """cv1 + cv2 fused into ONE matmul: SiLU(x @ [W1|W2] + [s1|s2]).
       x:(TT,C1)  w:(C1,2c_) bf16  s:(1,2c_)  o:(TT,2c_)."""
    o_ref[...] = _silu(_mm(x_ref[...], w_ref[...]) + s_ref[...]).astype(o_ref.dtype)


def concat_pointwise_kernel(a_ref, b_ref, wa_ref, wb_ref, s_ref, o_ref):
    """cv3 on cat(y1, y2) without materializing the concat:
       SiLU([y1|y2] @ W + s) == SiLU(y1 @ Wa + y2 @ Wb + s)."""
    acc = _mm(a_ref[...], wa_ref[...]) + _mm(b_ref[...], wb_ref[...]) + s_ref[...]
    o_ref[...] = _silu(acc).astype(o_ref.dtype)


def ln_mlp_kernel(sc_ref, at_ref, g1_ref, be1_ref, w1_ref, b1_ref,
                  w2_ref, b2_ref, g2_ref, be2_ref, o_ref):
    """Swin-v2 post-norm tail, fused:
       x = shortcut + LN1(attn); out = x + LN2(SiLU(x@W1+b1)@W2+b2)."""
    x = sc_ref[...] + _layernorm(at_ref[...], g1_ref[...], be1_ref[...])
    h = _silu(_mm(x, w1_ref[...]) + b1_ref[...])
    y = _mm(h, w2_ref[...]) + b2_ref[...]
    o_ref[...] = (x + _layernorm(y, g2_ref[...], be2_ref[...])).astype(o_ref.dtype)


def window_attention_kernel(x_ref, wqkv_ref, bqkv_ref, scale_ref, rpb_ref,
                            mask_ref, wproj_ref, bproj_ref, o_ref, *, num_heads):
    """Swin-v2 window attention, Wb windows per grid step, fully fused:
       qkv proj -> cosine attention * logit_scale + rel-pos bias (+ mask)
       -> softmax -> @v -> output proj.
       x:(Wb,Np,C)  wqkv:(C,3C) bf16  bqkv:(1,3C)  scale:(nh,) in SMEM
       rpb:(nh,Np,Np)  mask:(1 or Wb,Np,Np)  wproj:(C,C) bf16  bproj:(1,C)."""
    Wb, Np, C = x_ref.shape
    hd = C // num_heads
    # Np % 8 == 0  ->  this reshape is a sublane-aligned view (no relayout).
    xf = x_ref[...].reshape(Wb * Np, C)
    qkv = _mm(xf, wqkv_ref[...]) + bqkv_ref[...]              # (Wb*Np, 3C) f32
    mask = mask_ref[...]                                      # bcast over Wb/heads
    heads = []
    for h in range(num_heads):            # num_heads = C//32 is tiny (1-4); static
        q = qkv[:, h * hd:(h + 1) * hd].reshape(Wb, Np, hd)
        k = qkv[:, C + h * hd:C + (h + 1) * hd].reshape(Wb, Np, hd)
        v = qkv[:, 2 * C + h * hd:2 * C + (h + 1) * hd].reshape(Wb, Np, hd)
        qn = q * jax.lax.rsqrt(jnp.sum(q * q, -1, keepdims=True) + 1e-12)
        kn = k * jax.lax.rsqrt(jnp.sum(k * k, -1, keepdims=True) + 1e-12)
        qn = qn * scale_ref[h]            # fold logit_scale into q (NxHd multiply)
        attn = jnp.einsum("bnd,bmd->bnm",
                          qn.astype(jnp.bfloat16), kn.astype(jnp.bfloat16),
                          preferred_element_type=jnp.float32)  # cosine similarity
        attn = attn + rpb_ref[h] + mask
        attn = attn - jnp.max(attn, -1, keepdims=True)
        p = jnp.exp(attn)
        p = p * pl.reciprocal(jnp.sum(p, -1, keepdims=True), approx=True)
        heads.append(jnp.einsum("bnm,bmd->bnd",
                                p.astype(jnp.bfloat16), v.astype(jnp.bfloat16),
                                preferred_element_type=jnp.float32))
    ctx = heads[0] if num_heads == 1 else jnp.concatenate(heads, axis=-1)
    y = _mm(ctx.reshape(Wb * Np, C), wproj_ref[...]) + bproj_ref[...]
    o_ref[...] = y.reshape(Wb, Np, C).astype(o_ref.dtype)


# ----------------------------------------------------------------------------
# pallas_call wrappers
# ----------------------------------------------------------------------------
def _rowwise_call(kernel, token_inputs, param_inputs, out_channels, *, tile=512):
    """Run `kernel` over row tiles of token-major (T, Ci) arrays.
       token_inputs are tiled along rows; 2-D param_inputs are passed whole
       (constant index map -> resident across grid steps)."""
    T = token_inputs[0].shape[0]
    nt = max(1, -(-T // tile))
    Tp = nt * tile
    if Tp != T:
        token_inputs = [jnp.pad(a, ((0, Tp - T), (0, 0))) for a in token_inputs]
    in_specs = [pl.BlockSpec((tile, a.shape[1]), lambda i: (i, 0))
                for a in token_inputs]
    in_specs += [pl.BlockSpec(p.shape, lambda i: (0, 0)) for p in param_inputs]
    out_shapes = tuple(jax.ShapeDtypeStruct((Tp, c), jnp.float32)
                       for c in out_channels)
    out_specs = tuple(pl.BlockSpec((tile, c), lambda i: (i, 0))
                      for c in out_channels)
    single = len(out_channels) == 1
    outs = pl.pallas_call(
        kernel,
        out_shape=out_shapes[0] if single else out_shapes,
        grid=(nt,),
        in_specs=in_specs,
        out_specs=out_specs[0] if single else out_specs,
        compiler_params=pltpu.CompilerParams(
            dimension_semantics=("parallel",)),
    )(*token_inputs, *param_inputs)
    if single:
        outs = (outs,)
    return tuple(o[:T] for o in outs)


def window_attention(xwp, p, rpb, mask, num_heads, wb):
    """xwp: (B_, Np, C) padded windows; rpb: (nh, Np, Np); mask: (1 or nW, Np, Np).
       Grid over batches of `wb` windows."""
    B_, Np, C = xwp.shape
    nm = mask.shape[0]
    scale = jnp.exp(jnp.minimum(p["logit_scale"], math.log(100.0)))   # (nh,)
    if nm == 1:
        mask_spec = pl.BlockSpec((1, Np, Np), lambda b: (0, 0, 0))
    else:
        per = nm // wb    # wb divides nW by construction
        mask_spec = pl.BlockSpec((wb, Np, Np), lambda b: (b % per, 0, 0))
    kernel = functools.partial(window_attention_kernel, num_heads=num_heads)
    return pl.pallas_call(
        kernel,
        out_shape=jax.ShapeDtypeStruct((B_, Np, C), jnp.float32),
        grid=(B_ // wb,),
        in_specs=[
            pl.BlockSpec((wb, Np, C), lambda b: (b, 0, 0)),
            pl.BlockSpec((C, 3 * C), lambda b: (0, 0)),
            pl.BlockSpec((1, 3 * C), lambda b: (0, 0)),
            pl.BlockSpec(memory_space=pltpu.MemorySpace.SMEM),   # logit scale (nh,)
            pl.BlockSpec((num_heads, Np, Np), lambda b: (0, 0, 0)),
            mask_spec,
            pl.BlockSpec((C, C), lambda b: (0, 0)),
            pl.BlockSpec((1, C), lambda b: (0, 0)),
        ],
        out_specs=pl.BlockSpec((wb, Np, C), lambda b: (b, 0, 0)),
        compiler_params=pltpu.CompilerParams(
            dimension_semantics=("parallel",)),
    )(xwp, p["wqkv"], p["bqkv"], scale, rpb, mask, p["wproj"], p["bproj"])


# ----------------------------------------------------------------------------
# Static tables (numpy, trace-time) and parameter-only JAX glue
# ----------------------------------------------------------------------------
def _relative_coords_table(ws):
    r = np.arange(-(ws - 1), ws, dtype=np.float32)
    gh, gw = np.meshgrid(r, r, indexing="ij")
    t = np.stack([gh, gw], axis=-1) / (ws - 1) * 8.0
    t = np.sign(t) * np.log2(np.abs(t) + 1.0) / np.log2(8.0)
    return t.reshape(-1, 2)                                  # ((2ws-1)^2, 2)


def _relative_position_index(ws):
    coords = np.stack(np.meshgrid(np.arange(ws), np.arange(ws), indexing="ij"))
    cf = coords.reshape(2, -1)
    rel = (cf[:, :, None] - cf[:, None, :]).transpose(1, 2, 0).astype(np.int64)
    rel[..., 0] += ws - 1
    rel[..., 1] += ws - 1
    rel[..., 0] *= 2 * ws - 1
    return rel.sum(-1).astype(np.int32)                      # (N, N)


def _shift_attn_mask(H, W, ws, shift):
    img = np.zeros((H, W), np.float32)
    cnt = 0
    for hs in (slice(0, -ws), slice(-ws, -shift), slice(-shift, None)):
        for wsl in (slice(0, -ws), slice(-ws, -shift), slice(-shift, None)):
            img[hs, wsl] = cnt
            cnt += 1
    mw = img.reshape(H // ws, ws, W // ws, ws).transpose(0, 2, 1, 3)
    mw = mw.reshape(-1, ws * ws)
    am = mw[:, None, :] - mw[:, :, None]
    return np.where(am != 0, -100.0, 0.0).astype(np.float32)  # (nW, N, N)


def _relative_position_bias(p, ws, num_heads):
    """cpb_mlp(rel-coords) -> gather -> 16*sigmoid. Parameter-only (plain JAX)."""
    table = jnp.asarray(_relative_coords_table(ws))
    idx = _relative_position_index(ws).reshape(-1)
    h = jnp.maximum(table @ p["cpb_w1"] + p["cpb_b1"], 0.0)
    tbl = h @ p["cpb_w2"]                                    # (M, nh)
    N = ws * ws
    rpb = jnp.transpose(tbl[idx].reshape(N, N, num_heads), (2, 0, 1))
    return 16.0 * jax.nn.sigmoid(rpb)                        # (nh, N, N)


def _pad_window_mask(mask, N, Np):
    """(M, N, N) -> (M, Np, Np); padded KEY columns get -1e9 so no real token
       attends to them (padded query rows are sliced off after the layer)."""
    if Np == N:
        return mask
    m = jnp.pad(mask, ((0, 0), (0, Np - N), (0, Np - N)))
    col_pad = jnp.where(jnp.arange(Np) >= N, -1e9, 0.0).astype(jnp.float32)
    return m + col_pad[None, None, :]


def _largest_divisor_leq(n, cap):
    for d in range(min(cap, n), 0, -1):
        if n % d == 0:
            return d
    return 1


def _pick_window_batch(B_, nW, shifted):
    """Windows per attention grid step. Must divide B_ (and nW when shifted so
       the per-window mask blocks line up). Prefer >=2 grid steps (v7x 2 TCs)
       but never drop below a batch of 4 windows just to split the grid."""
    base = nW if shifted else B_
    wb = _largest_divisor_leq(base, 16)
    if B_ // wb < 2:
        smaller = _largest_divisor_leq(base, max(1, wb // 2))
        if smaller >= 4:
            wb = smaller
    return wb


# ----------------------------------------------------------------------------
# SwinTransformerLayer_v2 / ST2CSPA forward
# ----------------------------------------------------------------------------
def swin_layer_v2(x_img, p, num_heads, window_size, shift_size):
    B, H0, W0, C = x_img.shape
    ws = window_size
    pad_b = (ws - H0 % ws) % ws
    pad_r = (ws - W0 % ws) % ws
    if pad_b or pad_r:
        x_img = jnp.pad(x_img, ((0, 0), (0, pad_b), (0, pad_r), (0, 0)))
    H, W = H0 + pad_b, W0 + pad_r
    N = ws * ws
    Np = -(-N // 8) * 8                      # pad window tokens to sublane multiple

    if shift_size > 0:
        shifted = jnp.roll(x_img, (-shift_size, -shift_size), axis=(1, 2))
        base_mask = jnp.asarray(_shift_attn_mask(H, W, ws, shift_size))  # (nW,N,N)
    else:
        shifted = x_img
        base_mask = jnp.zeros((1, N, N), jnp.float32)

    nWh, nWw = H // ws, W // ws
    nW = nWh * nWw
    B_ = B * nW

    # window partition (layout plumbing) + token padding to Np
    xw = shifted.reshape(B, nWh, ws, nWw, ws, C).transpose(0, 1, 3, 2, 4, 5)
    xw = xw.reshape(B_, N, C)
    xwp = jnp.pad(xw, ((0, 0), (0, Np - N), (0, 0))) if Np != N else xw

    mask = _pad_window_mask(base_mask, N, Np)
    rpb = _relative_position_bias(p, ws, num_heads)                      # (nh,N,N)
    if Np != N:
        rpb = jnp.pad(rpb, ((0, 0), (0, Np - N), (0, Np - N)))

    wb = _pick_window_batch(B_, nW, shift_size > 0)
    awp = window_attention(xwp, p, rpb, mask, num_heads, wb)             # (B_,Np,C)

    # Residual + LN1 + MLP + LN2 + residual on tokens still in (shifted) window
    # order: the shortcut in that order IS the attention input xwp, so the
    # window-reverse / roll-back happens only once, below.
    out_flat, = _rowwise_call(
        ln_mlp_kernel,
        [xwp.reshape(B_ * Np, C), awp.reshape(B_ * Np, C)],
        [p["ln1_g"], p["ln1_b"], p["mlp_w1"], p["mlp_b1"],
         p["mlp_w2"], p["mlp_b2"], p["ln2_g"], p["ln2_b"]],
        [C])
    out_w = out_flat.reshape(B_, Np, C)[:, :N, :]

    # window reverse (+ un-shift) once, then crop spatial padding
    out = out_w.reshape(B, nWh, nWw, ws, ws, C).transpose(0, 1, 3, 2, 4, 5)
    out = out.reshape(B, H, W, C)
    if shift_size > 0:
        out = jnp.roll(out, (shift_size, shift_size), axis=(1, 2))
    if pad_b or pad_r:
        out = out[:, :H0, :W0, :]
    return out


def st2cspa_forward(x_nchw, params, *, window_size=7):
    """ST2CSPA.forward: cv3(cat(SwinBlock(cv1(x)), cv2(x)))."""
    B, C1, H, W = x_nchw.shape
    c_ = params["cv12_w"].shape[1] // 2
    c2 = params["cv3_s"].shape[1]
    num_heads = params["swin"][0]["logit_scale"].shape[0]

    x = jnp.transpose(x_nchw, (0, 2, 3, 1)).astype(jnp.float32)         # NHWC
    xt = x.reshape(B * H * W, C1)

    # cv1 + cv2 as ONE matmul on concatenated weights (lane-dense output)
    y12, = _rowwise_call(fused_pointwise_kernel, [xt],
                         [params["cv12_w"], params["cv12_s"]], [2 * c_])
    y1t, y2t = y12[:, :c_], y12[:, c_:]

    # SwinTransformer2Block(c_, c_): conv is None, just the layer stack
    y1 = y1t.reshape(B, H, W, c_)
    for i in range(len(params["swin"])):
        shift = 0 if i % 2 == 0 else window_size // 2
        y1 = swin_layer_v2(y1, params["swin"][i], num_heads, window_size, shift)
    y1t = y1.reshape(B * H * W, c_)

    # cv3 on cat(y1, y2) -- concat folded into split-weight matmuls
    out_t, = _rowwise_call(concat_pointwise_kernel, [y1t, y2t],
                           [params["cv3_wa"], params["cv3_wb"], params["cv3_s"]],
                           [c2])
    out = out_t.reshape(B, H, W, c2)
    return jnp.transpose(out, (0, 3, 1, 2))                              # NCHW


# ----------------------------------------------------------------------------
# Deterministic synthetic parameters (BN folded, matmul weights pre-cast bf16)
# ----------------------------------------------------------------------------
def _fold_conv_bn(key, cin, cout):
    """1x1 Conv(bias=False) + BatchNorm2d -> (W * scale, shift), inference form."""
    kw, kg, kb, km, kv = jax.random.split(key, 5)
    w = jax.random.normal(kw, (cin, cout), jnp.float32) * math.sqrt(2.0 / cin)
    gamma = 1.0 + 0.1 * jax.random.normal(kg, (cout,), jnp.float32)
    beta = 0.1 * jax.random.normal(kb, (cout,), jnp.float32)
    mean = 0.1 * jax.random.normal(km, (cout,), jnp.float32)
    var = jax.random.uniform(kv, (cout,), jnp.float32, minval=0.5, maxval=1.5)
    scale = gamma / jnp.sqrt(var + 1e-5)
    return w * scale[None, :], (beta - mean * scale).reshape(1, cout)


def _make_swin_layer_params(key, dim, num_heads, mlp_ratio=4.0):
    ks = jax.random.split(key, 12)
    hidden = int(dim * mlp_ratio)
    std = 0.02
    bf16 = jnp.bfloat16
    qb = std * jax.random.normal(ks[0], (dim,), jnp.float32)
    vb = std * jax.random.normal(ks[1], (dim,), jnp.float32)
    return {
        "wqkv": (std * jax.random.normal(ks[2], (dim, 3 * dim), jnp.float32)).astype(bf16),
        "bqkv": jnp.concatenate([qb, jnp.zeros((dim,), jnp.float32), vb]
                                ).reshape(1, 3 * dim),
        "logit_scale": jnp.full((num_heads,), math.log(10.0), jnp.float32),
        "cpb_w1": std * jax.random.normal(ks[3], (2, 512), jnp.float32),
        "cpb_b1": std * jax.random.normal(ks[4], (512,), jnp.float32),
        "cpb_w2": std * jax.random.normal(ks[5], (512, num_heads), jnp.float32),
        "wproj": (std * jax.random.normal(ks[6], (dim, dim), jnp.float32)).astype(bf16),
        "bproj": (std * jax.random.normal(ks[7], (dim,), jnp.float32)).reshape(1, dim),
        "ln1_g": jnp.ones((1, dim), jnp.float32),
        "ln1_b": jnp.zeros((1, dim), jnp.float32),
        "ln2_g": jnp.ones((1, dim), jnp.float32),
        "ln2_b": jnp.zeros((1, dim), jnp.float32),
        "mlp_w1": (std * jax.random.normal(ks[8], (dim, hidden), jnp.float32)).astype(bf16),
        "mlp_b1": std * jax.random.normal(ks[9], (1, hidden), jnp.float32),
        "mlp_w2": (std * jax.random.normal(ks[10], (hidden, dim), jnp.float32)).astype(bf16),
        "mlp_b2": std * jax.random.normal(ks[11], (1, dim), jnp.float32),
    }


def make_params(key, c1, c2, n=1, e=0.5):
    c_ = int(c2 * e)
    num_heads = c_ // 32
    assert num_heads >= 1, "ST2CSPA requires c2*e >= 32 (num_heads = c_//32)"
    k1, k2, k3, ksw = jax.random.split(key, 4)
    cv1_w, cv1_s = _fold_conv_bn(k1, c1, c_)
    cv2_w, cv2_s = _fold_conv_bn(k2, c1, c_)
    cv3_w, cv3_s = _fold_conv_bn(k3, 2 * c_, c2)
    bf16 = jnp.bfloat16
    swin_keys = jax.random.split(ksw, n)
    return {
        # cv1 | cv2 fused into one weight -> single MXU op, lane-dense output
        "cv12_w": jnp.concatenate([cv1_w, cv2_w], axis=1).astype(bf16),
        "cv12_s": jnp.concatenate([cv1_s, cv2_s], axis=1),
        "cv3_wa": cv3_w[:c_].astype(bf16),
        "cv3_wb": cv3_w[c_:].astype(bf16),
        "cv3_s": cv3_s,
        "swin": [_make_swin_layer_params(k, c_, num_heads) for k in swin_keys],
    }


if __name__ == "__main__":
    key = jax.random.PRNGKey(0)
    kp, kx = jax.random.split(key)

    # Small but module-consistent shapes: c2*e must be >= 32 so num_heads >= 1;
    # spatial = 14 divides window_size = 7 (the spatial-padding path is also
    # supported); window length 49 exercises the 49 -> 56 token padding.
    batch, c1, c2, spatial, n_layers, ws = 2, 32, 64, 14, 1, 7
    x = jax.random.normal(kx, (batch, c1, spatial, spatial), jnp.float32)
    params = make_params(kp, c1, c2, n=n_layers, e=0.5)

    fwd = jax.jit(functools.partial(st2cspa_forward, window_size=ws))
    y = fwd(x, params)
    jax.block_until_ready(y)
    assert y.shape == (batch, c2, spatial, spatial), y.shape
    assert bool(jnp.all(jnp.isfinite(y)))
    print("KERNEL_OK")
</pallas_src>

<mosaic_0001>
module attributes {stable_mosaic.version = 11 : i64} {
  func.func @fused_pointwise_kernel(%arg0: i32, %arg1: memref<512x32xf32, #tpu.memory_space<vmem>>, %arg2: memref<32x64xbf16, #tpu.memory_space<vmem>>, %arg3: memref<1x64xf32, #tpu.memory_space<vmem>>, %arg4: memref<512x64xf32, #tpu.memory_space<vmem>>) attributes {dimension_semantics = [#tpu.dimension_semantics<parallel>], iteration_bounds = array<i64: 1>, scalar_prefetch = 0 : i64, scratch_operands = 0 : i64, tpu.core_type = #tpu.core_type<tc>, window_params = [{transform_indices = @transform_0, window_bounds = array<i64: 512, 32>}, {pipeline_mode = #tpu.pipeline_mode<synchronous>, transform_indices = @transform_1, window_bounds = array<i64: 32, 64>}, {pipeline_mode = #tpu.pipeline_mode<synchronous>, transform_indices = @transform_2, window_bounds = array<i64: 1, 64>}, {transform_indices = @transform_3, window_bounds = array<i64: 512, 64>}]} {
    %c0 = arith.constant 0 : index
    %c0_0 = arith.constant 0 : index
    %0 = vector.load %arg1[%c0, %c0_0] : memref<512x32xf32, #tpu.memory_space<vmem>>, vector<512x32xf32>
    %c0_1 = arith.constant 0 : index
    %c0_2 = arith.constant 0 : index
    %1 = vector.load %arg2[%c0_1, %c0_2] : memref<32x64xbf16, #tpu.memory_space<vmem>>, vector<32x64xbf16>
    %2 = arith.truncf %0 : vector<512x32xf32> to vector<512x32xbf16>
    %cst = arith.constant dense<0.000000e+00> : vector<512x64xf32>
    %3 = tpu.matmul %2, %1, %cst {dimension_numbers = #tpu.dot_dimension_numbers<[1], [0], [0], [1], [0, 0, 1, 1], [], []>} : vector<512x32xbf16>, vector<32x64xbf16>, vector<512x64xf32> -> vector<512x64xf32>
    %c0_3 = arith.constant 0 : index
    %c0_4 = arith.constant 0 : index
    %4 = vector.load %arg3[%c0_3, %c0_4] : memref<1x64xf32, #tpu.memory_space<vmem>>, vector<1x64xf32>
    %5 = vector.broadcast %4 : vector<1x64xf32> to vector<512x64xf32>
    %6 = arith.addf %3, %5 : vector<512x64xf32>
    %cst_5 = arith.constant 0.000000e+00 : f32
    %7 = vector.broadcast %cst_5 : f32 to vector<512x64xf32>
    %8 = arith.subf %7, %6 : vector<512x64xf32>
    %9 = math.exp %8 : vector<512x64xf32>
    %cst_6 = arith.constant 1.000000e+00 : f32
    %10 = vector.broadcast %cst_6 : f32 to vector<512x64xf32>
    %11 = arith.addf %10, %9 : vector<512x64xf32>
    %12 = tpu.reciprocal %11 {approx = true} : vector<512x64xf32> -> vector<512x64xf32>
    %13 = arith.mulf %6, %12 : vector<512x64xf32>
    %c0_7 = arith.constant 0 : index
    %c0_8 = arith.constant 0 : index
    %14 = vector.load %arg4[%c0_7, %c0_8] : memref<512x64xf32, #tpu.memory_space<vmem>>, vector<512x64xf32>
    tpu.vector_store %arg4[%c0_7, %c0_8], %13 {strides = array<i32>} : memref<512x64xf32, #tpu.memory_space<vmem>>, vector<512x64xf32>,
    return
  }
  func.func @transform_0(%arg0: i32) -> (i32, i32) {
    %c0_i32 = arith.constant 0 : i32
    %c0_i32_0 = arith.constant 0 : i32
    return %arg0, %c0_i32 : i32, i32
  }
  func.func @transform_1(%arg0: i32) -> (i32, i32) {
    %c0_i32 = arith.constant 0 : i32
    %c0_i32_0 = arith.constant 0 : i32
    %c0_i32_1 = arith.constant 0 : i32
    return %c0_i32, %c0_i32_0 : i32, i32
  }
  func.func @transform_2(%arg0: i32) -> (i32, i32) {
    %c0_i32 = arith.constant 0 : i32
    %c0_i32_0 = arith.constant 0 : i32
    %c0_i32_1 = arith.constant 0 : i32
    return %c0_i32, %c0_i32_0 : i32, i32
  }
  func.func @transform_3(%arg0: i32) -> (i32, i32) {
    %c0_i32 = arith.constant 0 : i32
    %c0_i32_0 = arith.constant 0 : i32
    return %arg0, %c0_i32 : i32, i32
  }
}

module attributes {stable_mosaic.version = 11 : i64} {
  func.func @window_attention_kernel(%arg0: i32, %arg1: memref<4x56x32xf32, #tpu.memory_space<vmem>>, %arg2: memref<32x96xbf16, #tpu.memory_space<vmem>>, %arg3: memref<1x96xf32, #tpu.memory_space<vmem>>, %arg4: memref<1xf32, #tpu.memory_space<smem>>, %arg5: memref<1x56x56xf32, #tpu.memory_space<vmem>>, %arg6: memref<1x56x56xf32, #tpu.memory_space<vmem>>, %arg7: memref<32x32xbf16, #tpu.memory_space<vmem>>, %arg8: memref<1x32xf32, #tpu.memory_space<vmem>>, %arg9: memref<4x56x32xf32, #tpu.memory_space<vmem>>) attributes {dimension_semantics = [#tpu.dimension_semantics<parallel>], iteration_bounds = array<i64: 2>, scalar_prefetch = 0 : i64, scratch_operands = 0 : i64, tpu.core_type = #tpu.core_type<tc>, window_params = [{transform_indices = @transform_0, window_bounds = array<i64: 4, 56, 32>}, {pipeline_mode = #tpu.pipeline_mode<synchronous>, transform_indices = @transform_1, window_bounds = array<i64: 32, 96>}, {pipeline_mode = #tpu.pipeline_mode<synchronous>, transform_indices = @transform_2, window_bounds = array<i64: 1, 96>}, {transform_indices = @transform_3, window_bounds = array<i64: 1>}, {pipeline_mode = #tpu.pipeline_mode<synchronous>, transform_indices = @transform_4, window_bounds = array<i64: 1, 56, 56>}, {pipeline_mode = #tpu.pipeline_mode<synchronous>, transform_indices = @transform_5, window_bounds = array<i64: 1, 56, 56>}, {pipeline_mode = #tpu.pipeline_mode<synchronous>, transform_indices = @transform_6, window_bounds = array<i64: 32, 32>}, {pipeline_mode = #tpu.pipeline_mode<synchronous>, transform_indices = @transform_7, window_bounds = array<i64: 1, 32>}, {transform_indices = @transform_8, window_bounds = array<i64: 4, 56, 32>}]} {
    %c0 = arith.constant 0 : index
    %c0_0 = arith.constant 0 : index
    %c0_1 = arith.constant 0 : index
    %0 = vector.load %arg1[%c0, %c0_0, %c0_1] : memref<4x56x32xf32, #tpu.memory_space<vmem>>, vector<4x56x32xf32>
    %1 = vector.shape_cast %0 : vector<4x56x32xf32> to vector<224x32xf32>
    %c0_2 = arith.constant 0 : index
    %c0_3 = arith.constant 0 : index
    %2 = vector.load %arg2[%c0_2, %c0_3] : memref<32x96xbf16, #tpu.memory_space<vmem>>, vector<32x96xbf16>
    %3 = arith.truncf %1 : vector<224x32xf32> to vector<224x32xbf16>
    %cst = arith.constant dense<0.000000e+00> : vector<224x96xf32>
    %4 = tpu.matmul %3, %2, %cst {dimension_numbers = #tpu.dot_dimension_numbers<[1], [0], [0], [1], [0, 0, 1, 1], [], []>} : vector<224x32xbf16>, vector<32x96xbf16>, vector<224x96xf32> -> vector<224x96xf32>
    %c0_4 = arith.constant 0 : index
    %c0_5 = arith.constant 0 : index
    %5 = vector.load %arg3[%c0_4, %c0_5] : memref<1x96xf32, #tpu.memory_space<vmem>>, vector<1x96xf32>
    %6 = vector.broadcast %5 : vector<1x96xf32> to vector<224x96xf32>
    %7 = arith.addf %4, %6 : vector<224x96xf32>
    %c0_6 = arith.constant 0 : index
    %c0_7 = arith.constant 0 : index
    %c0_8 = arith.constant 0 : index
    %8 = vector.load %arg6[%c0_6, %c0_7, %c0_8] : memref<1x56x56xf32, #tpu.memory_space<vmem>>, vector<1x56x56xf32>
    %9 = vector.extract_strided_slice %7 {offsets = [0, 0], sizes = [224, 32], strides = [1, 1]} : vector<224x96xf32> to vector<224x32xf32>
    %10 = vector.shape_cast %9 : vector<224x32xf32> to vector<4x56x32xf32>
    %11 = vector.extract_strided_slice %7 {offsets = [0, 32], sizes = [224, 32], strides = [1, 1]} : vector<224x96xf32> to vector<224x32xf32>
    %12 = vector.shape_cast %11 : vector<224x32xf32> to vector<4x56x32xf32>
    %13 = vector.extract_strided_slice %7 {offsets = [0, 64], sizes = [224, 32], strides = [1, 1]} : vector<224x96xf32> to vector<224x32xf32>
    %14 = vector.shape_cast %13 : vector<224x32xf32> to vector<4x56x32xf32>
    %15 = arith.mulf %10, %10 : vector<4x56x32xf32>
    %cst_9 = arith.constant dense<0.000000e+00> : vector<4x56xf32>
    %16 = vector.multi_reduction <add>, %15, %cst_9 [2] : vector<4x56x32xf32> to vector<4x56xf32>
    %17 = vector.shape_cast %16 : vector<4x56xf32> to vector<4x56x1xf32>
    %cst_10 = arith.constant 9.99999996E-13 : f32
    %18 = vector.broadcast %cst_10 : f32 to vector<4x56x1xf32>
    %19 = arith.addf %17, %18 : vector<4x56x1xf32>
    %20 = math.rsqrt %19 : vector<4x56x1xf32>
    %21 = vector.broadcast %20 : vector<4x56x1xf32> to vector<4x56x32xf32>
    %22 = arith.mulf %10, %21 : vector<4x56x32xf32>
    %23 = arith.mulf %12, %12 : vector<4x56x32xf32>
    %cst_11 = arith.constant dense<0.000000e+00> : vector<4x56xf32>
    %24 = vector.multi_reduction <add>, %23, %cst_11 [2] : vector<4x56x32xf32> to vector<4x56xf32>
    %25 = vector.shape_cast %24 : vector<4x56xf32> to vector<4x56x1xf32>
    %cst_12 = arith.constant 9.99999996E-13 : f32
    %26 = vector.broadcast %cst_12 : f32 to vector<4x56x1xf32>
    %27 = arith.addf %25, %26 : vector<4x56x1xf32>
    %28 = math.rsqrt %27 : vector<4x56x1xf32>
    %29 = vector.broadcast %28 : vector<4x56x1xf32> to vector<4x56x32xf32>
    %30 = arith.mulf %12, %29 : vector<4x56x32xf32>
    %c0_13 = arith.constant 0 : index
    %31 = memref.load %arg4[%c0_13] : memref<1xf32, #tpu.memory_space<smem>>
    %32 = vector.broadcast %31 : f32 to vector<4x56x32xf32>
    %33 = arith.mulf %22, %32 : vector<4x56x32xf32>
    %34 = arith.truncf %33 : vector<4x56x32xf32> to vector<4x56x32xbf16>
    %35 = arith.truncf %30 : vector<4x56x32xf32> to vector<4x56x32xbf16>
    "tpu.trace_start"() <{level = 10 : i32, message = "bnd,bmd->bnm"}> : () -> ()
    %cst_14 = arith.constant dense<0.000000e+00> : vector<4x56x56xf32>
    %36 = tpu.matmul %34, %35, %cst_14 {dimension_numbers = #tpu.dot_dimension_numbers<[2], [2], [1], [1], [0, 0, 0, 1, 1, 1], [0], [0]>} : vector<4x56x32xbf16>, vector<4x56x32xbf16>, vector<4x56x56xf32> -> vector<4x56x56xf32>
    "tpu.trace_stop"() : () -> ()
    %c0_15 = arith.constant 0 : index
    %c0_16 = arith.constant 0 : index
    %c0_17 = arith.constant 0 : index
    %37 = vector.load %arg5[%c0_15, %c0_16, %c0_17] : memref<1x56x56xf32, #tpu.memory_space<vmem>>, vector<1x56x56xf32>
    %38 = vector.shape_cast %37 : vector<1x56x56xf32> to vector<56x56xf32>
    %39 = vector.shape_cast %38 : vector<56x56xf32> to vector<1x56x56xf32>
    %40 = vector.broadcast %39 : vector<1x56x56xf32> to vector<4x56x56xf32>
    %41 = arith.addf %36, %40 : vector<4x56x56xf32>
    %42 = vector.broadcast %8 : vector<1x56x56xf32> to vector<4x56x56xf32>
    %43 = arith.addf %41, %42 : vector<4x56x56xf32>
    %cst_18 = arith.constant dense<0xFF800000> : vector<4x56xf32>
    %44 = vector.multi_reduction <maximumf>, %43, %cst_18 [2] : vector<4x56x56xf32> to vector<4x56xf32>
    %45 = vector.shape_cast %44 : vector<4x56xf32> to vector<4x56x1xf32>
    %46 = vector.broadcast %45 : vector<4x56x1xf32> to vector<4x56x56xf32>
    %47 = arith.subf %43, %46 : vector<4x56x56xf32>
    %48 = math.exp %47 : vector<4x56x56xf32>
    %cst_19 = arith.constant dense<0.000000e+00> : vector<4x56xf32>
    %49 = vector.multi_reduction <add>, %48, %cst_19 [2] : vector<4x56x56xf32> to vector<4x56xf32>
    %50 = vector.shape_cast %49 : vector<4x56xf32> to vector<4x56x1xf32>
    %51 = tpu.reciprocal %50 {approx = true} : vector<4x56x1xf32> -> vector<4x56x1xf32>
    %52 = vector.broadcast %51 : vector<4x56x1xf32> to vector<4x56x56xf32>
    %53 = arith.mulf %48, %52 : vector<4x56x56xf32>
    %54 = arith.truncf %53 : vector<4x56x56xf32> to vector<4x56x56xbf16>
    %55 = arith.truncf %14 : vector<4x56x32xf32> to vector<4x56x32xbf16>
    "tpu.trace_start"() <{level = 10 : i32, message = "bnm,bmd->bnd"}> : () -> ()
    %cst_20 = arith.constant dense<0.000000e+00> : vector<4x56x32xf32>
    %56 = tpu.matmul %54, %55, %cst_20 {dimension_numbers = #tpu.dot_dimension_numbers<[2], [1], [1], [2], [0, 0, 0, 1, 1, 2], [0], [0]>} : vector<4x56x56xbf16>, vector<4x56x32xbf16>, vector<4x56x32xf32> -> vector<4x56x32xf32>
    "tpu.trace_stop"() : () -> ()
    %57 = vector.shape_cast %56 : vector<4x56x32xf32> to vector<224x32xf32>
    %c0_21 = arith.constant 0 : index
    %c0_22 = arith.constant 0 : index
    %58 = vector.load %arg7[%c0_21, %c0_22] : memref<32x32xbf16, #tpu.memory_space<vmem>>, vector<32x32xbf16>
    %59 = arith.truncf %57 : vector<224x32xf32> to vector<224x32xbf16>
    %cst_23 = arith.constant dense<0.000000e+00> : vector<224x32xf32>
    %60 = tpu.matmul %59, %58, %cst_23 {dimension_numbers = #tpu.dot_dimension_numbers<[1], [0], [0], [1], [0, 0, 1, 1], [], []>} : vector<224x32xbf16>, vector<32x32xbf16>, vector<224x32xf32> -> vector<224x32xf32>
    %c0_24 = arith.constant 0 : index
    %c0_25 = arith.constant 0 : index
    %61 = vector.load %arg8[%c0_24, %c0_25] : memref<1x32xf32, #tpu.memory_space<vmem>>, vector<1x32xf32>
    %62 = vector.broadcast %61 : vector<1x32xf32> to vector<224x32xf32>
    %63 = arith.addf %60, %62 : vector<224x32xf32>
    %64 = vector.shape_cast %63 : vector<224x32xf32> to vector<4x56x32xf32>
    %c0_26 = arith.constant 0 : index
    %c0_27 = arith.constant 0 : index
    %c0_28 = arith.constant 0 : index
    %65 = vector.load %arg9[%c0_26, %c0_27, %c0_28] : memref<4x56x32xf32, #tpu.memory_space<vmem>>, vector<4x56x32xf32>
    tpu.vector_store %arg9[%c0_26, %c0_27, %c0_28], %64 {strides = array<i32>} : memref<4x56x32xf32, #tpu.memory_space<vmem>>, vector<4x56x32xf32>,
    return
  }
  func.func @transform_0(%arg0: i32) -> (i32, i32, i32) {
    %c0_i32 = arith.constant 0 : i32
    %c0_i32_0 = arith.constant 0 : i32
    %c0_i32_1 = arith.constant 0 : i32
    return %arg0, %c0_i32, %c0_i32_0 : i32, i32, i32
  }
  func.func @transform_1(%arg0: i32) -> (i32, i32) {
    %c0_i32 = arith.constant 0 : i32
    %c0_i32_0 = arith.constant 0 : i32
    %c0_i32_1 = arith.constant 0 : i32
    return %c0_i32, %c0_i32_0 : i32, i32
  }
  func.func @transform_2(%arg0: i32) -> (i32, i32) {
    %c0_i32 = arith.constant 0 : i32
    %c0_i32_0 = arith.constant 0 : i32
    %c0_i32_1 = arith.constant 0 : i32
    return %c0_i32, %c0_i32_0 : i32, i32
  }
  func.func @transform_3(%arg0: i32) -> i32 {
    %c0_i32 = arith.constant 0 : i32
    %c0_i32_0 = arith.constant 0 : i32
    return %c0_i32 : i32
  }
  func.func @transform_4(%arg0: i32) -> (i32, i32, i32) {
    %c0_i32 = arith.constant 0 : i32
    %c0_i32_0 = arith.constant 0 : i32
    %c0_i32_1 = arith.constant 0 : i32
    %c0_i32_2 = arith.constant 0 : i32
    return %c0_i32, %c0_i32_0, %c0_i32_1 : i32, i32, i32
  }
  func.func @transform_5(%arg0: i32) -> (i32, i32, i32) {
    %c0_i32 = arith.constant 0 : i32
    %c0_i32_0 = arith.constant 0 : i32
    %c0_i32_1 = arith.constant 0 : i32
    %c0_i32_2 = arith.constant 0 : i32
    return %c0_i32, %c0_i32_0, %c0_i32_1 : i32, i32, i32
  }
  func.func @transform_6(%arg0: i32) -> (i32, i32) {
    %c0_i32 = arith.constant 0 : i32
    %c0_i32_0 = arith.constant 0 : i32
    %c0_i32_1 = arith.constant 0 : i32
    return %c0_i32, %c0_i32_0 : i32, i32
  }
  func.func @transform_7(%arg0: i32) -> (i32, i32) {
    %c0_i32 = arith.constant 0 : i32
    %c0_i32_0 = arith.constant 0 : i32
    %c0_i32_1 = arith.constant 0 : i32
    return %c0_i32, %c0_i32_0 : i32, i32
  }
  func.func @transform_8(%arg0: i32) -> (i32, i32, i32) {
    %c0_i32 = arith.constant 0 : i32
    %c0_i32_0 = arith.constant 0 : i32
    %c0_i32_1 = arith.constant 0 : i32
    return %arg0, %c0_i32, %c0_i32_0 : i32, i32, i32
  }
}

module attributes {stable_mosaic.version = 11 : i64} {
  func.func @ln_mlp_kernel(%arg0: i32, %arg1: memref<512x32xf32, #tpu.memory_space<vmem>>, %arg2: memref<512x32xf32, #tpu.memory_space<vmem>>, %arg3: memref<1x32xf32, #tpu.memory_space<vmem>>, %arg4: memref<1x32xf32, #tpu.memory_space<vmem>>, %arg5: memref<32x128xbf16, #tpu.memory_space<vmem>>, %arg6: memref<1x128xf32, #tpu.memory_space<vmem>>, %arg7: memref<128x32xbf16, #tpu.memory_space<vmem>>, %arg8: memref<1x32xf32, #tpu.memory_space<vmem>>, %arg9: memref<1x32xf32, #tpu.memory_space<vmem>>, %arg10: memref<1x32xf32, #tpu.memory_space<vmem>>, %arg11: memref<512x32xf32, #tpu.memory_space<vmem>>) attributes {dimension_semantics = [#tpu.dimension_semantics<parallel>], iteration_bounds = array<i64: 1>, scalar_prefetch = 0 : i64, scratch_operands = 0 : i64, tpu.core_type = #tpu.core_type<tc>, window_params = [{transform_indices = @transform_0, window_bounds = array<i64: 512, 32>}, {transform_indices = @transform_1, window_bounds = array<i64: 512, 32>}, {pipeline_mode = #tpu.pipeline_mode<synchronous>, transform_indices = @transform_2, window_bounds = array<i64: 1, 32>}, {pipeline_mode = #tpu.pipeline_mode<synchronous>, transform_indices = @transform_3, window_bounds = array<i64: 1, 32>}, {pipeline_mode = #tpu.pipeline_mode<synchronous>, transform_indices = @transform_4, window_bounds = array<i64: 32, 128>}, {pipeline_mode = #tpu.pipeline_mode<synchronous>, transform_indices = @transform_5, window_bounds = array<i64: 1, 128>}, {pipeline_mode = #tpu.pipeline_mode<synchronous>, transform_indices = @transform_6, window_bounds = array<i64: 128, 32>}, {pipeline_mode = #tpu.pipeline_mode<synchronous>, transform_indices = @transform_7, window_bounds = array<i64: 1, 32>}, {pipeline_mode = #tpu.pipeline_mode<synchronous>, transform_indices = @transform_8, window_bounds = array<i64: 1, 32>}, {pipeline_mode = #tpu.pipeline_mode<synchronous>, transform_indices = @transform_9, window_bounds = array<i64: 1, 32>}, {transform_indices = @transform_10, window_bounds = array<i64: 512, 32>}]} {
    %c0 = arith.constant 0 : index
    %c0_0 = arith.constant 0 : index
    %0 = vector.load %arg1[%c0, %c0_0] : memref<512x32xf32, #tpu.memory_space<vmem>>, vector<512x32xf32>
    %c0_1 = arith.constant 0 : index
    %c0_2 = arith.constant 0 : index
    %1 = vector.load %arg2[%c0_1, %c0_2] : memref<512x32xf32, #tpu.memory_space<vmem>>, vector<512x32xf32>
    %c0_3 = arith.constant 0 : index
    %c0_4 = arith.constant 0 : index
    %2 = vector.load %arg3[%c0_3, %c0_4] : memref<1x32xf32, #tpu.memory_space<vmem>>, vector<1x32xf32>
    %c0_5 = arith.constant 0 : index
    %c0_6 = arith.constant 0 : index
    %3 = vector.load %arg4[%c0_5, %c0_6] : memref<1x32xf32, #tpu.memory_space<vmem>>, vector<1x32xf32>
    %cst = arith.constant dense<0.000000e+00> : vector<512xf32>
    %4 = vector.multi_reduction <add>, %1, %cst [1] : vector<512x32xf32> to vector<512xf32>
    %5 = vector.shape_cast %4 : vector<512xf32> to vector<512x1xf32>
    %cst_7 = arith.constant 3.200000e+01 : f32
    %6 = vector.broadcast %cst_7 : f32 to vector<512x1xf32>
    %7 = arith.divf %5, %6 : vector<512x1xf32>
    %8 = vector.broadcast %7 : vector<512x1xf32> to vector<512x32xf32>
    %9 = arith.subf %1, %8 : vector<512x32xf32>
    %10 = arith.mulf %9, %9 : vector<512x32xf32>
    %cst_8 = arith.constant dense<0.000000e+00> : vector<512xf32>
    %11 = vector.multi_reduction <add>, %10, %cst_8 [1] : vector<512x32xf32> to vector<512xf32>
    %12 = vector.shape_cast %11 : vector<512xf32> to vector<512x1xf32>
    %cst_9 = arith.constant 3.200000e+01 : f32
    %13 = vector.broadcast %cst_9 : f32 to vector<512x1xf32>
    %14 = arith.divf %12, %13 : vector<512x1xf32>
    %cst_10 = arith.constant 9.99999974E-6 : f32
    %15 = vector.broadcast %cst_10 : f32 to vector<512x1xf32>
    %16 = arith.addf %14, %15 : vector<512x1xf32>
    %17 = math.rsqrt %16 : vector<512x1xf32>
    %18 = vector.broadcast %17 : vector<512x1xf32> to vector<512x32xf32>
    %19 = arith.mulf %9, %18 : vector<512x32xf32>
    %20 = vector.broadcast %2 : vector<1x32xf32> to vector<512x32xf32>
    %21 = arith.mulf %19, %20 : vector<512x32xf32>
    %22 = vector.broadcast %3 : vector<1x32xf32> to vector<512x32xf32>
    %23 = arith.addf %21, %22 : vector<512x32xf32>
    %24 = arith.addf %0, %23 : vector<512x32xf32>
    %c0_11 = arith.constant 0 : index
    %c0_12 = arith.constant 0 : index
    %25 = vector.load %arg5[%c0_11, %c0_12] : memref<32x128xbf16, #tpu.memory_space<vmem>>, vector<32x128xbf16>
    %26 = arith.truncf %24 : vector<512x32xf32> to vector<512x32xbf16>
    %cst_13 = arith.constant dense<0.000000e+00> : vector<512x128xf32>
    %27 = tpu.matmul %26, %25, %cst_13 {dimension_numbers = #tpu.dot_dimension_numbers<[1], [0], [0], [1], [0, 0, 1, 1], [], []>} : vector<512x32xbf16>, vector<32x128xbf16>, vector<512x128xf32> -> vector<512x128xf32>
    %c0_14 = arith.constant 0 : index
    %c0_15 = arith.constant 0 : index
    %28 = vector.load %arg6[%c0_14, %c0_15] : memref<1x128xf32, #tpu.memory_space<vmem>>, vector<1x128xf32>
    %29 = vector.broadcast %28 : vector<1x128xf32> to vector<512x128xf32>
    %30 = arith.addf %27, %29 : vector<512x128xf32>
    %cst_16 = arith.constant 0.000000e+00 : f32
    %31 = vector.broadcast %cst_16 : f32 to vector<512x128xf32>
    %32 = arith.subf %31, %30 : vector<512x128xf32>
    %33 = math.exp %32 : vector<512x128xf32>
    %cst_17 = arith.constant 1.000000e+00 : f32
    %34 = vector.broadcast %cst_17 : f32 to vector<512x128xf32>
    %35 = arith.addf %34, %33 : vector<512x128xf32>
    %36 = tpu.reciprocal %35 {approx = true} : vector<512x128xf32> -> vector<512x128xf32>
    %37 = arith.mulf %30, %36 : vector<512x128xf32>
    %c0_18 = arith.constant 0 : index
    %c0_19 = arith.constant 0 : index
    %38 = vector.load %arg7[%c0_18, %c0_19] : memref<128x32xbf16, #tpu.memory_space<vmem>>, vector<128x32xbf16>
    %39 = arith.truncf %37 : vector<512x128xf32> to vector<512x128xbf16>
    %cst_20 = arith.constant dense<0.000000e+00> : vector<512x32xf32>
    %40 = tpu.matmul %39, %38, %cst_20 {dimension_numbers = #tpu.dot_dimension_numbers<[1], [0], [0], [1], [0, 0, 1, 1], [], []>} : vector<512x128xbf16>, vector<128x32xbf16>, vector<512x32xf32> -> vector<512x32xf32>
    %c0_21 = arith.constant 0 : index
    %c0_22 = arith.constant 0 : index
    %41 = vector.load %arg8[%c0_21, %c0_22] : memref<1x32xf32, #tpu.memory_space<vmem>>, vector<1x32xf32>
    %42 = vector.broadcast %41 : vector<1x32xf32> to vector<512x32xf32>
    %43 = arith.addf %40, %42 : vector<512x32xf32>
    %c0_23 = arith.constant 0 : index
    %c0_24 = arith.constant 0 : index
    %44 = vector.load %arg9[%c0_23, %c0_24] : memref<1x32xf32, #tpu.memory_space<vmem>>, vector<1x32xf32>
    %c0_25 = arith.constant 0 : index
    %c0_26 = arith.constant 0 : index
    %45 = vector.load %arg10[%c0_25, %c0_26] : memref<1x32xf32, #tpu.memory_space<vmem>>, vector<1x32xf32>
    %cst_27 = arith.constant dense<0.000000e+00> : vector<512xf32>
    %46 = vector.multi_reduction <add>, %43, %cst_27 [1] : vector<512x32xf32> to vector<512xf32>
    %47 = vector.shape_cast %46 : vector<512xf32> to vector<512x1xf32>
    %cst_28 = arith.constant 3.200000e+01 : f32
    %48 = vector.broadcast %cst_28 : f32 to vector<512x1xf32>
    %49 = arith.divf %47, %48 : vector<512x1xf32>
    %50 = vector.broadcast %49 : vector<512x1xf32> to vector<512x32xf32>
    %51 = arith.subf %43, %50 : vector<512x32xf32>
    %52 = arith.mulf %51, %51 : vector<512x32xf32>
    %cst_29 = arith.constant dense<0.000000e+00> : vector<512xf32>
    %53 = vector.multi_reduction <add>, %52, %cst_29 [1] : vector<512x32xf32> to vector<512xf32>
    %54 = vector.shape_cast %53 : vector<512xf32> to vector<512x1xf32>
    %cst_30 = arith.constant 3.200000e+01 : f32
    %55 = vector.broadcast %cst_30 : f32 to vector<512x1xf32>
    %56 = arith.divf %54, %55 : vector<512x1xf32>
    %cst_31 = arith.constant 9.99999974E-6 : f32
    %57 = vector.broadcast %cst_31 : f32 to vector<512x1xf32>
    %58 = arith.addf %56, %57 : vector<512x1xf32>
    %59 = math.rsqrt %58 : vector<512x1xf32>
    %60 = vector.broadcast %59 : vector<512x1xf32> to vector<512x32xf32>
    %61 = arith.mulf %51, %60 : vector<512x32xf32>
    %62 = vector.broadcast %44 : vector<1x32xf32> to vector<512x32xf32>
    %63 = arith.mulf %61, %62 : vector<512x32xf32>
    %64 = vector.broadcast %45 : vector<1x32xf32> to vector<512x32xf32>
    %65 = arith.addf %63, %64 : vector<512x32xf32>
    %66 = arith.addf %24, %65 : vector<512x32xf32>
    %c0_32 = arith.constant 0 : index
    %c0_33 = arith.constant 0 : index
    %67 = vector.load %arg11[%c0_32, %c0_33] : memref<512x32xf32, #tpu.memory_space<vmem>>, vector<512x32xf32>
    tpu.vector_store %arg11[%c0_32, %c0_33], %66 {strides = array<i32>} : memref<512x32xf32, #tpu.memory_space<vmem>>, vector<512x32xf32>,
    return
  }
  func.func @transform_0(%arg0: i32) -> (i32, i32) {
    %c0_i32 = arith.constant 0 : i32
    %c0_i32_0 = arith.constant 0 : i32
    return %arg0, %c0_i32 : i32, i32
  }
  func.func @transform_1(%arg0: i32) -> (i32, i32) {
    %c0_i32 = arith.constant 0 : i32
    %c0_i32_0 = arith.constant 0 : i32
    return %arg0, %c0_i32 : i32, i32
  }
  func.func @transform_2(%arg0: i32) -> (i32, i32) {
    %c0_i32 = arith.constant 0 : i32
    %c0_i32_0 = arith.constant 0 : i32
    %c0_i32_1 = arith.constant 0 : i32
    return %c0_i32, %c0_i32_0 : i32, i32
  }
  func.func @transform_3(%arg0: i32) -> (i32, i32) {
    %c0_i32 = arith.constant 0 : i32
    %c0_i32_0 = arith.constant 0 : i32
    %c0_i32_1 = arith.constant 0 : i32
    return %c0_i32, %c0_i32_0 : i32, i32
  }
  func.func @transform_4(%arg0: i32) -> (i32, i32) {
    %c0_i32 = arith.constant 0 : i32
    %c0_i32_0 = arith.constant 0 : i32
    %c0_i32_1 = arith.constant 0 : i32
    return %c0_i32, %c0_i32_0 : i32, i32
  }
  func.func @transform_5(%arg0: i32) -> (i32, i32) {
    %c0_i32 = arith.constant 0 : i32
    %c0_i32_0 = arith.constant 0 : i32
    %c0_i32_1 = arith.constant 0 : i32
    return %c0_i32, %c0_i32_0 : i32, i32
  }
  func.func @transform_6(%arg0: i32) -> (i32, i32) {
    %c0_i32 = arith.constant 0 : i32
    %c0_i32_0 = arith.constant 0 : i32
    %c0_i32_1 = arith.constant 0 : i32
    return %c0_i32, %c0_i32_0 : i32, i32
  }
  func.func @transform_7(%arg0: i32) -> (i32, i32) {
    %c0_i32 = arith.constant 0 : i32
    %c0_i32_0 = arith.constant 0 : i32
    %c0_i32_1 = arith.constant 0 : i32
    return %c0_i32, %c0_i32_0 : i32, i32
  }
  func.func @transform_8(%arg0: i32) -> (i32, i32) {
    %c0_i32 = arith.constant 0 : i32
    %c0_i32_0 = arith.constant 0 : i32
    %c0_i32_1 = arith.constant 0 : i32
    return %c0_i32, %c0_i32_0 : i32, i32
  }
  func.func @transform_9(%arg0: i32) -> (i32, i32) {
    %c0_i32 = arith.constant 0 : i32
    %c0_i32_0 = arith.constant 0 : i32
    %c0_i32_1 = arith.constant 0 : i32
    return %c0_i32, %c0_i32_0 : i32, i32
  }
  func.func @transform_10(%arg0: i32) -> (i32, i32) {
    %c0_i32 = arith.constant 0 : i32
    %c0_i32_0 = arith.constant 0 : i32
    return %arg0, %c0_i32 : i32, i32
  }
}

module attributes {stable_mosaic.version = 11 : i64} {
  func.func @concat_pointwise_kernel(%arg0: i32, %arg1: memref<512x32xf32, #tpu.memory_space<vmem>>, %arg2: memref<512x32xf32, #tpu.memory_space<vmem>>, %arg3: memref<32x64xbf16, #tpu.memory_space<vmem>>, %arg4: memref<32x64xbf16, #tpu.memory_space<vmem>>, %arg5: memref<1x64xf32, #tpu.memory_space<vmem>>, %arg6: memref<512x64xf32, #tpu.memory_space<vmem>>) attributes {dimension_semantics = [#tpu.dimension_semantics<parallel>], iteration_bounds = array<i64: 1>, scalar_prefetch = 0 : i64, scratch_operands = 0 : i64, tpu.core_type = #tpu.core_type<tc>, window_params = [{transform_indices = @transform_0, window_bounds = array<i64: 512, 32>}, {transform_indices = @transform_1, window_bounds = array<i64: 512, 32>}, {pipeline_mode = #tpu.pipeline_mode<synchronous>, transform_indices = @transform_2, window_bounds = array<i64: 32, 64>}, {pipeline_mode = #tpu.pipeline_mode<synchronous>, transform_indices = @transform_3, window_bounds = array<i64: 32, 64>}, {pipeline_mode = #tpu.pipeline_mode<synchronous>, transform_indices = @transform_4, window_bounds = array<i64: 1, 64>}, {transform_indices = @transform_5, window_bounds = array<i64: 512, 64>}]} {
    %c0 = arith.constant 0 : index
    %c0_0 = arith.constant 0 : index
    %0 = vector.load %arg1[%c0, %c0_0] : memref<512x32xf32, #tpu.memory_space<vmem>>, vector<512x32xf32>
    %c0_1 = arith.constant 0 : index
    %c0_2 = arith.constant 0 : index
    %1 = vector.load %arg3[%c0_1, %c0_2] : memref<32x64xbf16, #tpu.memory_space<vmem>>, vector<32x64xbf16>
    %2 = arith.truncf %0 : vector<512x32xf32> to vector<512x32xbf16>
    %cst = arith.constant dense<0.000000e+00> : vector<512x64xf32>
    %3 = tpu.matmul %2, %1, %cst {dimension_numbers = #tpu.dot_dimension_numbers<[1], [0], [0], [1], [0, 0, 1, 1], [], []>} : vector<512x32xbf16>, vector<32x64xbf16>, vector<512x64xf32> -> vector<512x64xf32>
    %c0_3 = arith.constant 0 : index
    %c0_4 = arith.constant 0 : index
    %4 = vector.load %arg2[%c0_3, %c0_4] : memref<512x32xf32, #tpu.memory_space<vmem>>, vector<512x32xf32>
    %c0_5 = arith.constant 0 : index
    %c0_6 = arith.constant 0 : index
    %5 = vector.load %arg4[%c0_5, %c0_6] : memref<32x64xbf16, #tpu.memory_space<vmem>>, vector<32x64xbf16>
    %6 = arith.truncf %4 : vector<512x32xf32> to vector<512x32xbf16>
    %cst_7 = arith.constant dense<0.000000e+00> : vector<512x64xf32>
    %7 = tpu.matmul %6, %5, %cst_7 {dimension_numbers = #tpu.dot_dimension_numbers<[1], [0], [0], [1], [0, 0, 1, 1], [], []>} : vector<512x32xbf16>, vector<32x64xbf16>, vector<512x64xf32> -> vector<512x64xf32>
    %8 = arith.addf %3, %7 : vector<512x64xf32>
    %c0_8 = arith.constant 0 : index
    %c0_9 = arith.constant 0 : index
    %9 = vector.load %arg5[%c0_8, %c0_9] : memref<1x64xf32, #tpu.memory_space<vmem>>, vector<1x64xf32>
    %10 = vector.broadcast %9 : vector<1x64xf32> to vector<512x64xf32>
    %11 = arith.addf %8, %10 : vector<512x64xf32>
    %cst_10 = arith.constant 0.000000e+00 : f32
    %12 = vector.broadcast %cst_10 : f32 to vector<512x64xf32>
    %13 = arith.subf %12, %11 : vector<512x64xf32>
    %14 = math.exp %13 : vector<512x64xf32>
    %cst_11 = arith.constant 1.000000e+00 : f32
    %15 = vector.broadcast %cst_11 : f32 to vector<512x64xf32>
    %16 = arith.addf %15, %14 : vector<512x64xf32>
    %17 = tpu.reciprocal %16 {approx = true} : vector<512x64xf32> -> vector<512x64xf32>
    %18 = arith.mulf %11, %17 : vector<512x64xf32>
    %c0_12 = arith.constant 0 : index
    %c0_13 = arith.constant 0 : index
    %19 = vector.load %arg6[%c0_12, %c0_13] : memref<512x64xf32, #tpu.memory_space<vmem>>, vector<512x64xf32>
    tpu.vector_store %arg6[%c0_12, %c0_13], %18 {strides = array<i32>} : memref<512x64xf32, #tpu.memory_space<vmem>>, vector<512x64xf32>,
    return
  }
  func.func @transform_0(%arg0: i32) -> (i32, i32) {
    %c0_i32 = arith.constant 0 : i32
    %c0_i32_0 = arith.constant 0 : i32
    return %arg0, %c0_i32 : i32, i32
  }
  func.func @transform_1(%arg0: i32) -> (i32, i32) {
    %c0_i32 = arith.constant 0 : i32
    %c0_i32_0 = arith.constant 0 : i32
    return %arg0, %c0_i32 : i32, i32
  }
  func.func @transform_2(%arg0: i32) -> (i32, i32) {
    %c0_i32 = arith.constant 0 : i32
    %c0_i32_0 = arith.constant 0 : i32
    %c0_i32_1 = arith.constant 0 : i32
    return %c0_i32, %c0_i32_0 : i32, i32
  }
  func.func @transform_3(%arg0: i32) -> (i32, i32) {
    %c0_i32 = arith.constant 0 : i32
    %c0_i32_0 = arith.constant 0 : i32
    %c0_i32_1 = arith.constant 0 : i32
    return %c0_i32, %c0_i32_0 : i32, i32
  }
  func.func @transform_4(%arg0: i32) -> (i32, i32) {
    %c0_i32 = arith.constant 0 : i32
    %c0_i32_0 = arith.constant 0 : i32
    %c0_i32_1 = arith.constant 0 : i32
    return %c0_i32, %c0_i32_0 : i32, i32
  }
  func.func @transform_5(%arg0: i32) -> (i32, i32) {
    %c0_i32 = arith.constant 0 : i32
    %c0_i32_0 = arith.constant 0 : i32
    return %arg0, %c0_i32 : i32, i32
  }
}

</mosaic_0001>

<llo_original>
// kernel: st2cspa_forward.4
$region0: #{st2cspa_forward.4}
  #allocation0 [shape = 'u32[]', space=smem, size = 0x4, offset = 0x4, fixed_abs, tag = 'smem constant byte address 0x4 - core index']
  #allocation1 [shape = 'u32[144,128]{1,0:T(1,128)}', space=vmem, size = 0x12000, scoped, tag = 'internal scratch']
  %s0 = inlined_call_operand.vmem [shape: f32[512,32], index: 0, kind: input, shape index: {}]
  %s1 = inlined_call_operand.vmem [shape: bf16[32,64], index: 1, kind: input, shape index: {}]
  %s2 = inlined_call_operand.vmem [shape: f32[1,64], index: 2, kind: input, shape index: {}]
  %s3 = inlined_call_operand.vmem [shape: f32[512,64], index: 3, kind: output, shape index: {}]
  %s4 = sld [smem:[#allocation0]]
  $region22: #{st2cspa_forward.4} parent=0
    _
  %s6 = ssub.s32 1, %s4
  %s7 = scalar_select 0, %s6, %s4
  // Predicated region
  $region2: #{st2cspa_forward.4} parent=0 // pred_check
    _
  $region3: #{st2cspa_forward.4} parent=0 // pred_check_branch
    %9 = sbr.rel (0) target = $region5
  $region4: #{st2cspa_forward.4} parent=0 // pred_region
    _
  $region5: #{st2cspa_forward.4} parent=0 // pred_fallthru
    _
  // Predicated region
  $region6: #{st2cspa_forward.4} parent=0 // pred_check
    _
  $region7: #{st2cspa_forward.4} parent=0 // pred_check_branch
    %11 = sbr.rel (0) target = $region9
  $region8: #{st2cspa_forward.4} parent=0 // pred_region
    _
  $region9: #{st2cspa_forward.4} parent=0 // pred_fallthru
    _
  // Predicated region
  $region10: #{st2cspa_forward.4} parent=0 // pred_check
    _
  $region11: #{st2cspa_forward.4} parent=0 // pred_check_branch
    %13 = sbr.rel (0) target = $region13
  $region12: #{st2cspa_forward.4} parent=0 // pred_region
    _
  $region13: #{st2cspa_forward.4} parent=0 // pred_fallthru
    _
  %v15 = vld [vmem:[%s0] sm:$0xff]
  %v16 = vld [vmem:[%s0 + $0x8] sm:$0xff]
  %v17 = vld [vmem:[%s0 + $0x10] sm:$0xff]
  %v18 = vld [vmem:[%s0 + $0x18] sm:$0xff]
  %v19 = vld [vmem:[%s0 + $0x20] sm:$0xff]
  %v20 = vld [vmem:[%s0 + $0x28] sm:$0xff]
  %v21 = vld [vmem:[%s0 + $0x30] sm:$0xff]
  %v22 = vld [vmem:[%s0 + $0x38] sm:$0xff]
  %v23 = vld [vmem:[%s0 + $0x40] sm:$0xff]
  %v24 = vld [vmem:[%s0 + $0x48] sm:$0xff]
  %v25 = vld [vmem:[%s0 + $0x50] sm:$0xff]
  %v26 = vld [vmem:[%s0 + $0x58] sm:$0xff]
  %v27 = vld [vmem:[%s0 + $0x60] sm:$0xff]
  %v28 = vld [vmem:[%s0 + $0x68] sm:$0xff]
  %v29 = vld [vmem:[%s0 + $0x70] sm:$0xff]
  %v30 = vld [vmem:[%s0 + $0x78] sm:$0xff]
  %v31 = vld [vmem:[%s0 + $0x80] sm:$0xff]
  %v32 = vld [vmem:[%s0 + $0x88] sm:$0xff]
  %v33 = vld [vmem:[%s0 + $0x90] sm:$0xff]
  %v34 = vld [vmem:[%s0 + $0x98] sm:$0xff]
  %v35 = vld [vmem:[%s0 + $0xa0] sm:$0xff]
  %v36 = vld [vmem:[%s0 + $0xa8] sm:$0xff]
  %v37 = vld [vmem:[%s0 + $0xb0] sm:$0xff]
  %v38 = vld [vmem:[%s0 + $0xb8] sm:$0xff]
  %v39 = vld [vmem:[%s0 + $0xc0] sm:$0xff]
  %v40 = vld [vmem:[%s0 + $0xc8] sm:$0xff]
  %v41 = vld [vmem:[%s0 + $0xd0] sm:$0xff]
  %v42 = vld [vmem:[%s0 + $0xd8] sm:$0xff]
  %v43 = vld [vmem:[%s0 + $0xe0] sm:$0xff]
  %v44 = vld [vmem:[%s0 + $0xe8] sm:$0xff]
  %v45 = vld [vmem:[%s0 + $0xf0] sm:$0xff]
  %v46 = vld [vmem:[%s0 + $0xf8] sm:$0xff]
  %v47 = vld [vmem:[%s0 + $0x100] sm:$0xff]
  %v48 = vld [vmem:[%s0 + $0x108] sm:$0xff]
  %v49 = vld [vmem:[%s0 + $0x110] sm:$0xff]
  %v50 = vld [vmem:[%s0 + $0x118] sm:$0xff]
  %v51 = vld [vmem:[%s0 + $0x120] sm:$0xff]
  %v52 = vld [vmem:[%s0 + $0x128] sm:$0xff]
  %v53 = vld [vmem:[%s0 + $0x130] sm:$0xff]
  %v54 = vld [vmem:[%s0 + $0x138] sm:$0xff]
  %v55 = vld [vmem:[%s0 + $0x140] sm:$0xff]
  %v56 = vld [vmem:[%s0 + $0x148] sm:$0xff]
  %v57 = vld [vmem:[%s0 + $0x150] sm:$0xff]
  %v58 = vld [vmem:[%s0 + $0x158] sm:$0xff]
  %v59 = vld [vmem:[%s0 + $0x160] sm:$0xff]
  %v60 = vld [vmem:[%s0 + $0x168] sm:$0xff]
  %v61 = vld [vmem:[%s0 + $0x170] sm:$0xff]
  %v62 = vld [vmem:[%s0 + $0x178] sm:$0xff]
  %v63 = vld [vmem:[%s0 + $0x180] sm:$0xff]
  %v64 = vld [vmem:[%s0 + $0x188] sm:$0xff]
  %v65 = vld [vmem:[%s0 + $0x190] sm:$0xff]
  %v66 = vld [vmem:[%s0 + $0x198] sm:$0xff]
  %v67 = vld [vmem:[%s0 + $0x1a0] sm:$0xff]
  %v68 = vld [vmem:[%s0 + $0x1a8] sm:$0xff]
  %v69 = vld [vmem:[%s0 + $0x1b0] sm:$0xff]
  %v70 = vld [vmem:[%s0 + $0x1b8] sm:$0xff]
  %v71 = vld [vmem:[%s0 + $0x1c0] sm:$0xff]
  %v72 = vld [vmem:[%s0 + $0x1c8] sm:$0xff]
  %v73 = vld [vmem:[%s0 + $0x1d0] sm:$0xff]
  %v74 = vld [vmem:[%s0 + $0x1d8] sm:$0xff]
  %v75 = vld [vmem:[%s0 + $0x1e0] sm:$0xff]
  %v76 = vld [vmem:[%s0 + $0x1e8] sm:$0xff]
  %v77 = vld [vmem:[%s0 + $0x1f0] sm:$0xff]
  %v78 = vld [vmem:[%s0 + $0x1f8] sm:$0xff]
  %v79 = vld [vmem:[%s1] sm:$0xf]
  %v80 = vld [vmem:[%s1 + $0x4] sm:$0xf]
  %v81 = vld [vmem:[%s1 + $0x8] sm:$0xf]
  %v82 = vld [vmem:[%s1 + $0xc] sm:$0xf]
  %v83 = vpack.c.bf16 %v16, %v15
  %v84 = vpack.c.bf16 %v18, %v17
  %v85 = vpack.c.bf16 %v20, %v19
  %v86 = vpack.c.bf16 %v22, %v21
  %v87 = vpack.c.bf16 %v24, %v23
  %v88 = vpack.c.bf16 %v26, %v25
  %v89 = vpack.c.bf16 %v28, %v27
  %v90 = vpack.c.bf16 %v30, %v29
  %v91 = vpack.c.bf16 %v32, %v31
  %v92 = vpack.c.bf16 %v34, %v33
  %v93 = vpack.c.bf16 %v36, %v35
  %v94 = vpack.c.bf16 %v38, %v37
  %v95 = vpack.c.bf16 %v40, %v39
  %v96 = vpack.c.bf16 %v42, %v41
  %v97 = vpack.c.bf16 %v44, %v43
  %v98 = vpack.c.bf16 %v46, %v45
  %v99 = vpack.c.bf16 %v48, %v47
  %v100 = vpack.c.bf16 %v50, %v49
  %v101 = vpack.c.bf16 %v52, %v51
  %v102 = vpack.c.bf16 %v54, %v53
  %v103 = vpack.c.bf16 %v56, %v55
  %v104 = vpack.c.bf16 %v58, %v57
  %v105 = vpack.c.bf16 %v60, %v59
  %v106 = vpack.c.bf16 %v62, %v61
  %v107 = vpack.c.bf16 %v64, %v63
  %v108 = vpack.c.bf16 %v66, %v65
  %v109 = vpack.c.bf16 %v68, %v67
  %v110 = vpack.c.bf16 %v70, %v69
  %v111 = vpack.c.bf16 %v72, %v71
  %v112 = vpack.c.bf16 %v74, %v73
  %v113 = vpack.c.bf16 %v76, %v75
  %v114 = vpack.c.bf16 %v78, %v77
  %v115 = vld [vmem:[%s2] sm:$0x1]
  %v117 = vlaneseq
  %v118 = vshrl.u32 %v117, 7
  %v119 = vsub.s32 0, %v118
  %v120 = vrot.slane %v115, %v119
  %v126 = vunpack.c.l.b16 %v79
  %v127 = vunpack.c.l.b16 %v80
  %v128 = vunpack.c.l.b16 %v81
  %v129 = vunpack.c.l.b16 %v82
  %v130 = vpack.c.b16 %v127, %v126
  %v131 = vpack.c.b16 %v129, %v128
  %vm134 = vcmask 261120
  %v136 = vsel %vm134, %v83, 0
  %v139 = vsel %vm134, %v84, 0
  %v142 = vsel %vm134, %v85, 0
  %v145 = vsel %vm134, %v86, 0
  %v148 = vsel %vm134, %v87, 0
  %v151 = vsel %vm134, %v88, 0
  %v154 = vsel %vm134, %v89, 0
  %v157 = vsel %vm134, %v90, 0
  %v160 = vsel %vm134, %v91, 0
  %v163 = vsel %vm134, %v92, 0
  %v166 = vsel %vm134, %v93, 0
  %v169 = vsel %vm134, %v94, 0
  %v172 = vsel %vm134, %v95, 0
  %v175 = vsel %vm134, %v96, 0
  %v178 = vsel %vm134, %v97, 0
  %v181 = vsel %vm134, %v98, 0
  %v184 = vsel %vm134, %v99, 0
  %v187 = vsel %vm134, %v100, 0
  %v190 = vsel %vm134, %v101, 0
  %v193 = vsel %vm134, %v102, 0
  %v196 = vsel %vm134, %v103, 0
  %v199 = vsel %vm134, %v104, 0
  %v202 = vsel %vm134, %v105, 0
  %v205 = vsel %vm134, %v106, 0
  %v208 = vsel %vm134, %v107, 0
  %v211 = vsel %vm134, %v108, 0
  %v214 = vsel %vm134, %v109, 0
  %v217 = vsel %vm134, %v110, 0
  %v220 = vsel %vm134, %v111, 0
  %v223 = vsel %vm134, %v112, 0
  %v226 = vsel %vm134, %v113, 0
  %v229 = vsel %vm134, %v114, 0
  %231 = vmatprep.subr.bf16.mxu0 0
  %232 = vmatpush1.bf16.msra.mxu0 0
  %233 = vmatprep.subr.bf16.mxu0 0
  %234 = vmatpush1.bf16.msra.mxu0 0
  %235 = vmatprep.subr.bf16.mxu0 0
  %236 = vmatpush1.bf16.msra.mxu0 0
  %237 = vmatprep.subr.bf16.mxu0 0
  %238 = vmatpush1.bf16.msra.mxu0 0
  %239 = vmatprep.subr.bf16.mxu0 0
  %240 = vmatpush1.bf16.msra.mxu0 0
  %241 = vmatprep.subr.bf16.mxu0 0
  %242 = vmatpush1.bf16.msra.mxu0 0
  %243 = vmatprep.subr.bf16.mxu0 0
  %244 = vmatpush1.bf16.msra.mxu0 %v131
  %245 = vmatprep.subr.bf16.mxu0 0
  %246 = vmatpush1.bf16.msra.mxu0 %v130
  %247 = vmatprep.subr.bf16.mxu0 0
  %248 = vmatpush2.bf16.msra.mxu0 0
  %249 = vmatprep.subr.bf16.mxu0 0
  %250 = vmatpush2.bf16.msra.mxu0 0
  %251 = vmatprep.subr.bf16.mxu0 0
  %252 = vmatpush2.bf16.msra.mxu0 0
  %253 = vmatprep.subr.bf16.mxu0 0
  %254 = vmatpush2.bf16.msra.mxu0 0
  %255 = vmatprep.subr.bf16.mxu0 0
  %256 = vmatpush2.bf16.msra.mxu0 0
  %257 = vmatprep.subr.bf16.mxu0 0
  %258 = vmatpush2.bf16.msra.mxu0 0
  %259 = vmatprep.subr.bf16.mxu0 0
  %260 = vmatpush2.bf16.msra.mxu0 0
  %261 = vmatprep.subr.bf16.mxu0 0
  %262 = vmatpush2.bf16.msra.mxu0 0
  %263 = vmatprep.mubr.bf16.mxu0 0
  %264 = vmatmul.mubr.bf16.gmra.mxu0 %v136
  %v265 = vpop.f32.mrf.mxu0
  %v266 = vadd.f32 %v120, %v265
  %v267 = vpop.f32.mrf.mxu0
  %v268 = vpop.f32.mrf.mxu0
  %v269 = vadd.f32 %v120, %v268
  %v270 = vpop.f32.mrf.mxu0
  %271 = vmatprep.mubr.bf16.mxu0 0
  %272 = vmatmul.mubr.bf16.gmra.mxu0 %v139
  %v273 = vpop.f32.mrf.mxu0
  %v274 = vadd.f32 %v120, %v273
  %v275 = vpop.f32.mrf.mxu0
  %v276 = vpop.f32.mrf.mxu0
  %v277 = vadd.f32 %v120, %v276
  %v278 = vpop.f32.mrf.mxu0
  %279 = vmatprep.mubr.bf16.mxu0 0
  %280 = vmatmul.mubr.bf16.gmra.mxu0 %v142
  %v281 = vpop.f32.mrf.mxu0
  %v282 = vadd.f32 %v120, %v281
  %v283 = vpop.f32.mrf.mxu0
  %v284 = vpop.f32.mrf.mxu0
  %v285 = vadd.f32 %v120, %v284
  %v286 = vpop.f32.mrf.mxu0
  %287 = vmatprep.mubr.bf16.mxu0 0
  %288 = vmatmul.mubr.bf16.gmra.mxu0 %v145
  %v289 = vpop.f32.mrf.mxu0
  %v290 = vadd.f32 %v120, %v289
  %v291 = vpop.f32.mrf.mxu0
  %v292 = vpop.f32.mrf.mxu0
  %v293 = vadd.f32 %v120, %v292
  %v294 = vpop.f32.mrf.mxu0
  %295 = vmatprep.mubr.bf16.mxu0 0
  %296 = vmatmul.mubr.bf16.gmra.mxu0 %v148
  %v297 = vpop.f32.mrf.mxu0
  %v298 = vadd.f32 %v120, %v297
  %v299 = vpop.f32.mrf.mxu0
  %v300 = vpop.f32.mrf.mxu0
  %v301 = vadd.f32 %v120, %v300
  %v302 = vpop.f32.mrf.mxu0
  %303 = vmatprep.mubr.bf16.mxu0 0
  %304 = vmatmul.mubr.bf16.gmra.mxu0 %v151
  %v305 = vpop.f32.mrf.mxu0
  %v306 = vadd.f32 %v120, %v305
  %v307 = vpop.f32.mrf.mxu0
  %v308 = vpop.f32.mrf.mxu0
  %v309 = vadd.f32 %v120, %v308
  %v310 = vpop.f32.mrf.mxu0
  %311 = vmatprep.mubr.bf16.mxu0 0
  %312 = vmatmul.mubr.bf16.gmra.mxu0 %v154
  %v313 = vpop.f32.mrf.mxu0
  %v314 = vadd.f32 %v120, %v313
  %v315 = vpop.f32.mrf.mxu0
  %v316 = vpop.f32.mrf.mxu0
  %v317 = vadd.f32 %v120, %v316
  %v318 = vpop.f32.mrf.mxu0
  %319 = vmatprep.mubr.bf16.mxu0 0
  %320 = vmatmul.mubr.bf16.gmra.mxu0 %v157
  %v321 = vpop.f32.mrf.mxu0
  %v322 = vadd.f32 %v120, %v321
  %v323 = vpop.f32.mrf.mxu0
  %v324 = vpop.f32.mrf.mxu0
  %v325 = vadd.f32 %v120, %v324
  %v326 = vpop.f32.mrf.mxu0
  %327 = vmatprep.mubr.bf16.mxu0 0
  %328 = vmatmul.mubr.bf16.gmra.mxu0 %v160
  %v329 = vpop.f32.mrf.mxu0
  %v330 = vadd.f32 %v120, %v329
  %v331 = vpop.f32.mrf.mxu0
  %v332 = vpop.f32.mrf.mxu0
  %v333 = vadd.f32 %v120, %v332
  %v334 = vpop.f32.mrf.mxu0
  %335 = vmatprep.mubr.bf16.mxu0 0
  %336 = vmatmul.mubr.bf16.gmra.mxu0 %v163
  %v337 = vpop.f32.mrf.mxu0
  %v338 = vadd.f32 %v120, %v337
  %v339 = vpop.f32.mrf.mxu0
  %v340 = vpop.f32.mrf.mxu0
  %v341 = vadd.f32 %v120, %v340
  %v342 = vpop.f32.mrf.mxu0
  %343 = vmatprep.mubr.bf16.mxu0 0
  %344 = vmatmul.mubr.bf16.gmra.mxu0 %v166
  %v345 = vpop.f32.mrf.mxu0
  %v346 = vadd.f32 %v120, %v345
  %v347 = vpop.f32.mrf.mxu0
  %v348 = vpop.f32.mrf.mxu0
  %v349 = vadd.f32 %v120, %v348
  %v350 = vpop.f32.mrf.mxu0
  %351 = vmatprep.mubr.bf16.mxu0 0
  %352 = vmatmul.mubr.bf16.gmra.mxu0 %v169
  %v353 = vpop.f32.mrf.mxu0
  %v354 = vadd.f32 %v120, %v353
  %v355 = vpop.f32.mrf.mxu0
  %v356 = vpop.f32.mrf.mxu0
  %v357 = vadd.f32 %v120, %v356
  %v358 = vpop.f32.mrf.mxu0
  %359 = vmatprep.mubr.bf16.mxu0 0
  %360 = vmatmul.mubr.bf16.gmra.mxu0 %v172
  %v361 = vpop.f32.mrf.mxu0
  %v362 = vadd.f32 %v120, %v361
  %v363 = vpop.f32.mrf.mxu0
  %v364 = vpop.f32.mrf.mxu0
  %v365 = vadd.f32 %v120, %v364
  %v366 = vpop.f32.mrf.mxu0
  %367 = vmatprep.mubr.bf16.mxu0 0
  %368 = vmatmul.mubr.bf16.gmra.mxu0 %v175
  %v369 = vpop.f32.mrf.mxu0
  %v370 = vadd.f32 %v120, %v369
  %v371 = vpop.f32.mrf.mxu0
  %v372 = vpop.f32.mrf.mxu0
  %v373 = vadd.f32 %v120, %v372
  %v374 = vpop.f32.mrf.mxu0
  %375 = vmatprep.mubr.bf16.mxu0 0
  %376 = vmatmul.mubr.bf16.gmra.mxu0 %v178
  %v377 = vpop.f32.mrf.mxu0
  %v378 = vadd.f32 %v120, %v377
  %v379 = vpop.f32.mrf.mxu0
  %v380 = vpop.f32.mrf.mxu0
  %v381 = vadd.f32 %v120, %v380
  %v382 = vpop.f32.mrf.mxu0
  %383 = vmatprep.mubr.bf16.mxu0 0
  %384 = vmatmul.mubr.bf16.gmra.mxu0 %v181
  %v385 = vpop.f32.mrf.mxu0
  %v386 = vadd.f32 %v120, %v385
  %v387 = vpop.f32.mrf.mxu0
  %v388 = vpop.f32.mrf.mxu0
  %v389 = vadd.f32 %v120, %v388
  %v390 = vpop.f32.mrf.mxu0
  %391 = vmatprep.mubr.bf16.mxu0 0
  %392 = vmatmul.mubr.bf16.gmra.mxu0 %v184
  %v393 = vpop.f32.mrf.mxu0
  %v394 = vadd.f32 %v120, %v393
  %v395 = vpop.f32.mrf.mxu0
  %v396 = vpop.f32.mrf.mxu0
  %v397 = vadd.f32 %v120, %v396
  %v398 = vpop.f32.mrf.mxu0
  %399 = vmatprep.mubr.bf16.mxu0 0
  %400 = vmatmul.mubr.bf16.gmra.mxu0 %v187
  %v401 = vpop.f32.mrf.mxu0
  %v402 = vadd.f32 %v120, %v401
  %v403 = vpop.f32.mrf.mxu0
  %v404 = vpop.f32.mrf.mxu0
  %v405 = vadd.f32 %v120, %v404
  %v406 = vpop.f32.mrf.mxu0
  %407 = vmatprep.mubr.bf16.mxu0 0
  %408 = vmatmul.mubr.bf16.gmra.mxu0 %v190
  %v409 = vpop.f32.mrf.mxu0
  %v410 = vadd.f32 %v120, %v409
  %v411 = vpop.f32.mrf.mxu0
  %v412 = vpop.f32.mrf.mxu0
  %v413 = vadd.f32 %v120, %v412
  %v414 = vpop.f32.mrf.mxu0
  %415 = vmatprep.mubr.bf16.mxu0 0
  %416 = vmatmul.mubr.bf16.gmra.mxu0 %v193
  %v417 = vpop.f32.mrf.mxu0
  %v418 = vadd.f32 %v120, %v417
  %v419 = vpop.f32.mrf.mxu0
  %v420 = vpop.f32.mrf.mxu0
  %v421 = vadd.f32 %v120, %v420
  %v422 = vpop.f32.mrf.mxu0
  %423 = vmatprep.mubr.bf16.mxu0 0
  %424 = vmatmul.mubr.bf16.gmra.mxu0 %v196
  %v425 = vpop.f32.mrf.mxu0
  %v426 = vadd.f32 %v120, %v425
  %v427 = vpop.f32.mrf.mxu0
  %v428 = vpop.f32.mrf.mxu0
  %v429 = vadd.f32 %v120, %v428
  %v430 = vpop.f32.mrf.mxu0
  %431 = vmatprep.mubr.bf16.mxu0 0
  %432 = vmatmul.mubr.bf16.gmra.mxu0 %v199
  %v433 = vpop.f32.mrf.mxu0
  %v434 = vadd.f32 %v120, %v433
  %v435 = vpop.f32.mrf.mxu0
  %v436 = vpop.f32.mrf.mxu0
  %v437 = vadd.f32 %v120, %v436
  %v438 = vpop.f32.mrf.mxu0
  %439 = vmatprep.mubr.bf16.mxu0 0
  %440 = vmatmul.mubr.bf16.gmra.mxu0 %v202
  %v441 = vpop.f32.mrf.mxu0
  %v442 = vadd.f32 %v120, %v441
  %v443 = vpop.f32.mrf.mxu0
  %v444 = vpop.f32.mrf.mxu0
  %v445 = vadd.f32 %v120, %v444
  %v446 = vpop.f32.mrf.mxu0
  %447 = vmatprep.mubr.bf16.mxu0 0
  %448 = vmatmul.mubr.bf16.gmra.mxu0 %v205
  %v449 = vpop.f32.mrf.mxu0
  %v450 = vadd.f32 %v120, %v449
  %v451 = vpop.f32.mrf.mxu0
  %v452 = vpop.f32.mrf.mxu0
  %v453 = vadd.f32 %v120, %v452
  %v454 = vpop.f32.mrf.mxu0
  %455 = vmatprep.mubr.bf16.mxu0 0
  %456 = vmatmul.mubr.bf16.gmra.mxu0 %v208
  %v457 = vpop.f32.mrf.mxu0
  %v458 = vadd.f32 %v120, %v457
  %v459 = vpop.f32.mrf.mxu0
  %v460 = vpop.f32.mrf.mxu0
  %v461 = vadd.f32 %v120, %v460
  %v462 = vpop.f32.mrf.mxu0
  %463 = vmatprep.mubr.bf16.mxu0 0
  %464 = vmatmul.mubr.bf16.gmra.mxu0 %v211
  %v465 = vpop.f32.mrf.mxu0
  %v466 = vadd.f32 %v120, %v465
  %v467 = vpop.f32.mrf.mxu0
  %v468 = vpop.f32.mrf.mxu0
  %v469 = vadd.f32 %v120, %v468
  %v470 = vpop.f32.mrf.mxu0
  %471 = vmatprep.mubr.bf16.mxu0 0
  %472 = vmatmul.mubr.bf16.gmra.mxu0 %v214
  %v473 = vpop.f32.mrf.mxu0
  %v474 = vadd.f32 %v120, %v473
  %v475 = vpop.f32.mrf.mxu0
  %v476 = vpop.f32.mrf.mxu0
  %v477 = vadd.f32 %v120, %v476
  %v478 = vpop.f32.mrf.mxu0
  %479 = vmatprep.mubr.bf16.mxu0 0
  %480 = vmatmul.mubr.bf16.gmra.mxu0 %v217
  %v481 = vpop.f32.mrf.mxu0
  %v482 = vadd.f32 %v120, %v481
  %v483 = vpop.f32.mrf.mxu0
  %v484 = vpop.f32.mrf.mxu0
  %v485 = vadd.f32 %v120, %v484
  %v486 = vpop.f32.mrf.mxu0
  %487 = vmatprep.mubr.bf16.mxu0 0
  %488 = vmatmul.mubr.bf16.gmra.mxu0 %v220
  %v489 = vpop.f32.mrf.mxu0
  %v490 = vadd.f32 %v120, %v489
  %v491 = vpop.f32.mrf.mxu0
  %v492 = vpop.f32.mrf.mxu0
  %v493 = vadd.f32 %v120, %v492
  %v494 = vpop.f32.mrf.mxu0
  %495 = vmatprep.mubr.bf16.mxu0 0
  %496 = vmatmul.mubr.bf16.gmra.mxu0 %v223
  %v497 = vpop.f32.mrf.mxu0
  %v498 = vadd.f32 %v120, %v497
  %v499 = vpop.f32.mrf.mxu0
  %v500 = vpop.f32.mrf.mxu0
  %v501 = vadd.f32 %v120, %v500
  %v502 = vpop.f32.mrf.mxu0
  %503 = vmatprep.mubr.bf16.mxu0 0
  %504 = vmatmul.mubr.bf16.gmra.mxu0 %v226
  %v505 = vpop.f32.mrf.mxu0
  %v506 = vadd.f32 %v120, %v505
  %v507 = vpop.f32.mrf.mxu0
  %v508 = vpop.f32.mrf.mxu0
  %v509 = vadd.f32 %v120, %v508
  %v510 = vpop.f32.mrf.mxu0
  %511 = vmatprep.mubr.bf16.mxu0 0
  %512 = vmatmul.mubr.bf16.gmra.mxu0 %v229
  %v513 = vpop.f32.mrf.mxu0
  %v514 = vadd.f32 %v120, %v513
  %v515 = vpop.f32.mrf.mxu0
  %v516 = vpop.f32.mrf.mxu0
  %v517 = vadd.f32 %v120, %v516
  %v518 = vpop.f32.mrf.mxu0
  %519 = vdwg.mxu0
  %v520 = vsub.f32 0.0, %v266
  %v521 = vsub.f32 0.0, %v269
  %v522 = vsub.f32 0.0, %v274
  %v523 = vsub.f32 0.0, %v277
  %v524 = vsub.f32 0.0, %v282
  %v525 = vsub.f32 0.0, %v285
  %v526 = vsub.f32 0.0, %v290
  %v527 = vsub.f32 0.0, %v293
  %v528 = vsub.f32 0.0, %v298
  %v529 = vsub.f32 0.0, %v301
  %v530 = vsub.f32 0.0, %v306
  %v531 = vsub.f32 0.0, %v309
  %v532 = vsub.f32 0.0, %v314
  %v533 = vsub.f32 0.0, %v317
  %v534 = vsub.f32 0.0, %v322
  %v535 = vsub.f32 0.0, %v325
  %v536 = vsub.f32 0.0, %v330
  %v537 = vsub.f32 0.0, %v333
  %v538 = vsub.f32 0.0, %v338
  %v539 = vsub.f32 0.0, %v341
  %v540 = vsub.f32 0.0, %v346
  %v541 = vsub.f32 0.0, %v349
  %v542 = vsub.f32 0.0, %v354
  %v543 = vsub.f32 0.0, %v357
  %v544 = vsub.f32 0.0, %v362
  %v545 = vsub.f32 0.0, %v365
  %v546 = vsub.f32 0.0, %v370
  %v547 = vsub.f32 0.0, %v373
  %v548 = vsub.f32 0.0, %v378
  %v549 = vsub.f32 0.0, %v381
  %v550 = vsub.f32 0.0, %v386
  %v551 = vsub.f32 0.0, %v389
  %v552 = vsub.f32 0.0, %v394
  %v553 = vsub.f32 0.0, %v397
  %v554 = vsub.f32 0.0, %v402
  %v555 = vsub.f32 0.0, %v405
  %v556 = vsub.f32 0.0, %v410
  %v557 = vsub.f32 0.0, %v413
  %v558 = vsub.f32 0.0, %v418
  %v559 = vsub.f32 0.0, %v421
  %v560 = vsub.f32 0.0, %v426
  %v561 = vsub.f32 0.0, %v429
  %v562 = vsub.f32 0.0, %v434
  %v563 = vsub.f32 0.0, %v437
  %v564 = vsub.f32 0.0, %v442
  %v565 = vsub.f32 0.0, %v445
  %v566 = vsub.f32 0.0, %v450
  %v567 = vsub.f32 0.0, %v453
  %v568 = vsub.f32 0.0, %v458
  %v569 = vsub.f32 0.0, %v461
  %v570 = vsub.f32 0.0, %v466
  %v571 = vsub.f32 0.0, %v469
  %v572 = vsub.f32 0.0, %v474
  %v573 = vsub.f32 0.0, %v477
  %v574 = vsub.f32 0.0, %v482
  %v575 = vsub.f32 0.0, %v485
  %v576 = vsub.f32 0.0, %v490
  %v577 = vsub.f32 0.0, %v493
  %v578 = vsub.f32 0.0, %v498
  %v579 = vsub.f32 0.0, %v501
  %v580 = vsub.f32 0.0, %v506
  %v581 = vsub.f32 0.0, %v509
  %v582 = vsub.f32 0.0, %v514
  %v583 = vsub.f32 0.0, %v517
  %v584 = vmul.f32 %v520, 1.442695
  %v585 = vpow.pop %v584
  %v586 = vmul.f32 %v521, 1.442695
  %v587 = vpow.pop %v586
  %v588 = vmul.f32 %v522, 1.442695
  %v589 = vpow.pop %v588
  %v590 = vmul.f32 %v523, 1.442695
  %v591 = vpow.pop %v590
  %v592 = vmul.f32 %v524, 1.442695
  %v593 = vpow.pop %v592
  %v594 = vmul.f32 %v525, 1.442695
  %v595 = vpow.pop %v594
  %v596 = vmul.f32 %v526, 1.442695
  %v597 = vpow.pop %v596
  %v598 = vmul.f32 %v527, 1.442695
  %v599 = vpow.pop %v598
  %v600 = vmul.f32 %v528, 1.442695
  %v601 = vpow.pop %v600
  %v602 = vmul.f32 %v529, 1.442695
  %v603 = vpow.pop %v602
  %v604 = vmul.f32 %v530, 1.442695
  %v605 = vpow.pop %v604
  %v606 = vmul.f32 %v531, 1.442695
  %v607 = vpow.pop %v606
  %v608 = vmul.f32 %v532, 1.442695
  %v609 = vpow.pop %v608
  %v610 = vmul.f32 %v533, 1.442695
  %v611 = vpow.pop %v610
  %v612 = vmul.f32 %v534, 1.442695
  %v613 = vpow.pop %v612
  %v614 = vmul.f32 %v535, 1.442695
  %v615 = vpow.pop %v614
  %v616 = vmul.f32 %v536, 1.442695
  %v617 = vpow.pop %v616
  %v618 = vmul.f32 %v537, 1.442695
  %v619 = vpow.pop %v618
  %v620 = vmul.f32 %v538, 1.442695
  %v621 = vpow.pop %v620
  %v622 = vmul.f32 %v539, 1.442695
  %v623 = vpow.pop %v622
  %v624 = vmul.f32 %v540, 1.442695
  %v625 = vpow.pop %v624
  %v626 = vmul.f32 %v541, 1.442695
  %v627 = vpow.pop %v626
  %v628 = vmul.f32 %v542, 1.442695
  %v629 = vpow.pop %v628
  %v630 = vmul.f32 %v543, 1.442695
  %v631 = vpow.pop %v630
  %v632 = vmul.f32 %v544, 1.442695
  %v633 = vpow.pop %v632
  %v634 = vmul.f32 %v545, 1.442695
  %v635 = vpow.pop %v634
  %v636 = vmul.f32 %v546, 1.442695
  %v637 = vpow.pop %v636
  %v638 = vmul.f32 %v547, 1.442695
  %v639 = vpow.pop %v638
  %v640 = vmul.f32 %v548, 1.442695
  %v641 = vpow.pop %v640
  %v642 = vmul.f32 %v549, 1.442695
  %v643 = vpow.pop %v642
  %v644 = vmul.f32 %v550, 1.442695
  %v645 = vpow.pop %v644
  %v646 = vmul.f32 %v551, 1.442695
  %v647 = vpow.pop %v646
  %v648 = vmul.f32 %v552, 1.442695
  %v649 = vpow.pop %v648
  %v650 = vmul.f32 %v553, 1.442695
  %v651 = vpow.pop %v650
  %v652 = vmul.f32 %v554, 1.442695
  %v653 = vpow.pop %v652
  %v654 = vmul.f32 %v555, 1.442695
  %v655 = vpow.pop %v654
  %v656 = vmul.f32 %v556, 1.442695
  %v657 = vpow.pop %v656
  %v658 = vmul.f32 %v557, 1.442695
  %v659 = vpow.pop %v658
  %v660 = vmul.f32 %v558, 1.442695
  %v661 = vpow.pop %v660
  %v662 = vmul.f32 %v559, 1.442695
  %v663 = vpow.pop %v662
  %v664 = vmul.f32 %v560, 1.442695
  %v665 = vpow.pop %v664
  %v666 = vmul.f32 %v561, 1.442695
  %v667 = vpow.pop %v666
  %v668 = vmul.f32 %v562, 1.442695
  %v669 = vpow.pop %v668
  %v670 = vmul.f32 %v563, 1.442695
  %v671 = vpow.pop %v670
  %v672 = vmul.f32 %v564, 1.442695
  %v673 = vpow.pop %v672
  %v674 = vmul.f32 %v565, 1.442695
  %v675 = vpow.pop %v674
  %v676 = vmul.f32 %v566, 1.442695
  %v677 = vpow.pop %v676
  %v678 = vmul.f32 %v567, 1.442695
  %v679 = vpow.pop %v678
  %v680 = vmul.f32 %v568, 1.442695
  %v681 = vpow.pop %v680
  %v682 = vmul.f32 %v569, 1.442695
  %v683 = vpow.pop %v682
  %v684 = vmul.f32 %v570, 1.442695
  %v685 = vpow.pop %v684
  %v686 = vmul.f32 %v571, 1.442695
  %v687 = vpow.pop %v686
  %v688 = vmul.f32 %v572, 1.442695
  %v689 = vpow.pop %v688
  %v690 = vmul.f32 %v573, 1.442695
  %v691 = vpow.pop %v690
  %v692 = vmul.f32 %v574, 1.442695
  %v693 = vpow.pop %v692
  %v694 = vmul.f32 %v575, 1.442695
  %v695 = vpow.pop %v694
  %v696 = vmul.f32 %v576, 1.442695
  %v697 = vpow.pop %v696
  %v698 = vmul.f32 %v577, 1.442695
  %v699 = vpow.pop %v698
  %v700 = vmul.f32 %v578, 1.442695
  %v701 = vpow.pop %v700
  %v702 = vmul.f32 %v579, 1.442695
  %v703 = vpow.pop %v702
  %v704 = vmul.f32 %v580, 1.442695
  %v705 = vpow.pop %v704
  %v706 = vmul.f32 %v581, 1.442695
  %v707 = vpow.pop %v706
  %v708 = vmul.f32 %v582, 1.442695
  %v709 = vpow.pop %v708
  %v710 = vmul.f32 %v583, 1.442695
  %v711 = vpow.pop %v710
  %v712 = vadd.f32 %v585, 1.0
  %v713 = vadd.f32 %v587, 1.0
  %v714 = vadd.f32 %v589, 1.0
  %v715 = vadd.f32 %v591, 1.0
  %v716 = vadd.f32 %v593, 1.0
  %v717 = vadd.f32 %v595, 1.0
  %v718 = vadd.f32 %v597, 1.0
  %v719 = vadd.f32 %v599, 1.0
  %v720 = vadd.f32 %v601, 1.0
  %v721 = vadd.f32 %v603, 1.0
  %v722 = vadd.f32 %v605, 1.0
  %v723 = vadd.f32 %v607, 1.0
  %v724 = vadd.f32 %v609, 1.0
  %v725 = vadd.f32 %v611, 1.0
  %v726 = vadd.f32 %v613, 1.0
  %v727 = vadd.f32 %v615, 1.0
  %v728 = vadd.f32 %v617, 1.0
  %v729 = vadd.f32 %v619, 1.0
  %v730 = vadd.f32 %v621, 1.0
  %v731 = vadd.f32 %v623, 1.0
  %v732 = vadd.f32 %v625, 1.0
  %v733 = vadd.f32 %v627, 1.0
  %v734 = vadd.f32 %v629, 1.0
  %v735 = vadd.f32 %v631, 1.0
  %v736 = vadd.f32 %v633, 1.0
  %v737 = vadd.f32 %v635, 1.0
  %v738 = vadd.f32 %v637, 1.0
  %v739 = vadd.f32 %v639, 1.0
  %v740 = vadd.f32 %v641, 1.0
  %v741 = vadd.f32 %v643, 1.0
  %v742 = vadd.f32 %v645, 1.0
  %v743 = vadd.f32 %v647, 1.0
  %v744 = vadd.f32 %v649, 1.0
  %v745 = vadd.f32 %v651, 1.0
  %v746 = vadd.f32 %v653, 1.0
  %v747 = vadd.f32 %v655, 1.0
  %v748 = vadd.f32 %v657, 1.0
  %v749 = vadd.f32 %v659, 1.0
  %v750 = vadd.f32 %v661, 1.0
  %v751 = vadd.f32 %v663, 1.0
  %v752 = vadd.f32 %v665, 1.0
  %v753 = vadd.f32 %v667, 1.0
  %v754 = vadd.f32 %v669, 1.0
  %v755 = vadd.f32 %v671, 1.0
  %v756 = vadd.f32 %v673, 1.0
  %v757 = vadd.f32 %v675, 1.0
  %v758 = vadd.f32 %v677, 1.0
  %v759 = vadd.f32 %v679, 1.0
  %v760 = vadd.f32 %v681, 1.0
  %v761 = vadd.f32 %v683, 1.0
  %v762 = vadd.f32 %v685, 1.0
  %v763 = vadd.f32 %v687, 1.0
  %v764 = vadd.f32 %v689, 1.0
  %v765 = vadd.f32 %v691, 1.0
  %v766 = vadd.f32 %v693, 1.0
  %v767 = vadd.f32 %v695, 1.0
  %v768 = vadd.f32 %v697, 1.0
  %v769 = vadd.f32 %v699, 1.0
  %v770 = vadd.f32 %v701, 1.0
  %v771 = vadd.f32 %v703, 1.0
  %v772 = vadd.f32 %v705, 1.0
  %v773 = vadd.f32 %v707, 1.0
  %v774 = vadd.f32 %v709, 1.0
  %v775 = vadd.f32 %v711, 1.0
  %v776 = vrcp.pop %v712
  %v777 = vrcp.pop %v713
  %v778 = vrcp.pop %v714
  %v779 = vrcp.pop %v715
  %v780 = vrcp.pop %v716
  %v781 = vrcp.pop %v717
  %v782 = vrcp.pop %v718
  %v783 = vrcp.pop %v719
  %v784 = vrcp.pop %v720
  %v785 = vrcp.pop %v721
  %v786 = vrcp.pop %v722
  %v787 = vrcp.pop %v723
  %v788 = vrcp.pop %v724
  %v789 = vrcp.pop %v725
  %v790 = vrcp.pop %v726
  %v791 = vrcp.pop %v727
  %v792 = vrcp.pop %v728
  %v793 = vrcp.pop %v729
  %v794 = vrcp.pop %v730
  %v795 = vrcp.pop %v731
  %v796 = vrcp.pop %v732
  %v797 = vrcp.pop %v733
  %v798 = vrcp.pop %v734
  %v799 = vrcp.pop %v735
  %v800 = vrcp.pop %v736
  %v801 = vrcp.pop %v737
  %v802 = vrcp.pop %v738
  %v803 = vrcp.pop %v739
  %v804 = vrcp.pop %v740
  %v805 = vrcp.pop %v741
  %v806 = vrcp.pop %v742
  %v807 = vrcp.pop %v743
  %v808 = vrcp.pop %v744
  %v809 = vrcp.pop %v745
  %v810 = vrcp.pop %v746
  %v811 = vrcp.pop %v747
  %v812 = vrcp.pop %v748
  %v813 = vrcp.pop %v749
  %v814 = vrcp.pop %v750
  %v815 = vrcp.pop %v751
  %v816 = vrcp.pop %v752
  %v817 = vrcp.pop %v753
  %v818 = vrcp.pop %v754
  %v819 = vrcp.pop %v755
  %v820 = vrcp.pop %v756
  %v821 = vrcp.pop %v757
  %v822 = vrcp.pop %v758
  %v823 = vrcp.pop %v759
  %v824 = vrcp.pop %v760
  %v825 = vrcp.pop %v761
  %v826 = vrcp.pop %v762
  %v827 = vrcp.pop %v763
  %v828 = vrcp.pop %v764
  %v829 = vrcp.pop %v765
  %v830 = vrcp.pop %v766
  %v831 = vrcp.pop %v767
  %v832 = vrcp.pop %v768
  %v833 = vrcp.pop %v769
  %v834 = vrcp.pop %v770
  %v835 = vrcp.pop %v771
  %v836 = vrcp.pop %v772
  %v837 = vrcp.pop %v773
  %v838 = vrcp.pop %v774
  %v839 = vrcp.pop %v775
  %v840 = vmul.f32 %v266, %v776
  %v841 = vmul.f32 %v269, %v777
  %v842 = vmul.f32 %v274, %v778
  %v843 = vmul.f32 %v277, %v779
  %v844 = vmul.f32 %v282, %v780
  %v845 = vmul.f32 %v285, %v781
  %v846 = vmul.f32 %v290, %v782
  %v847 = vmul.f32 %v293, %v783
  %v848 = vmul.f32 %v298, %v784
  %v849 = vmul.f32 %v301, %v785
  %v850 = vmul.f32 %v306, %v786
  %v851 = vmul.f32 %v309, %v787
  %v852 = vmul.f32 %v314, %v788
  %v853 = vmul.f32 %v317, %v789
  %v854 = vmul.f32 %v322, %v790
  %v855 = vmul.f32 %v325, %v791
  %v856 = vmul.f32 %v330, %v792
  %v857 = vmul.f32 %v333, %v793
  %v858 = vmul.f32 %v338, %v794
  %v859 = vmul.f32 %v341, %v795
  %v860 = vmul.f32 %v346, %v796
  %v861 = vmul.f32 %v349, %v797
  %v862 = vmul.f32 %v354, %v798
  %v863 = vmul.f32 %v357, %v799
  %v864 = vmul.f32 %v362, %v800
  %v865 = vmul.f32 %v365, %v801
  %v866 = vmul.f32 %v370, %v802
  %v867 = vmul.f32 %v373, %v803
  %v868 = vmul.f32 %v378, %v804
  %v869 = vmul.f32 %v381, %v805
  %v870 = vmul.f32 %v386, %v806
  %v871 = vmul.f32 %v389, %v807
  %v872 = vmul.f32 %v394, %v808
  %v873 = vmul.f32 %v397, %v809
  %v874 = vmul.f32 %v402, %v810
  %v875 = vmul.f32 %v405, %v811
  %v876 = vmul.f32 %v410, %v812
  %v877 = vmul.f32 %v413, %v813
  %v878 = vmul.f32 %v418, %v814
  %v879 = vmul.f32 %v421, %v815
  %v880 = vmul.f32 %v426, %v816
  %v881 = vmul.f32 %v429, %v817
  %v882 = vmul.f32 %v434, %v818
  %v883 = vmul.f32 %v437, %v819
  %v884 = vmul.f32 %v442, %v820
  %v885 = vmul.f32 %v445, %v821
  %v886 = vmul.f32 %v450, %v822
  %v887 = vmul.f32 %v453, %v823
  %v888 = vmul.f32 %v458, %v824
  %v889 = vmul.f32 %v461, %v825
  %v890 = vmul.f32 %v466, %v826
  %v891 = vmul.f32 %v469, %v827
  %v892 = vmul.f32 %v474, %v828
  %v893 = vmul.f32 %v477, %v829
  %v894 = vmul.f32 %v482, %v830
  %v895 = vmul.f32 %v485, %v831
  %v896 = vmul.f32 %v490, %v832
  %v897 = vmul.f32 %v493, %v833
  %v898 = vmul.f32 %v498, %v834
  %v899 = vmul.f32 %v501, %v835
  %v900 = vmul.f32 %v506, %v836
  %v901 = vmul.f32 %v509, %v837
  %v902 = vmul.f32 %v514, %v838
  %v903 = vmul.f32 %v517, %v839
  %vm904 = vcmask 523264
  %905 = vst.msk [vmem:[%s3] sm:$0xff] %vm904, %v840
  %906 = vst.msk [vmem:[%s3 + $0x8] sm:$0xff] %vm904, %v841
  %907 = vst.msk [vmem:[%s3 + $0x10] sm:$0xff] %vm904, %v842
  %908 = vst.msk [vmem:[%s3 + $0x18] sm:$0xff] %vm904, %v843
  %909 = vst.msk [vmem:[%s3 + $0x20] sm:$0xff] %vm904, %v844
  %910 = vst.msk [vmem:[%s3 + $0x28] sm:$0xff] %vm904, %v845
  %911 = vst.msk [vmem:[%s3 + $0x30] sm:$0xff] %vm904, %v846
  %912 = vst.msk [vmem:[%s3 + $0x38] sm:$0xff] %vm904, %v847
  %913 = vst.msk [vmem:[%s3 + $0x40] sm:$0xff] %vm904, %v848
  %914 = vst.msk [vmem:[%s3 + $0x48] sm:$0xff] %vm904, %v849
  %915 = vst.msk [vmem:[%s3 + $0x50] sm:$0xff] %vm904, %v850
  %916 = vst.msk [vmem:[%s3 + $0x58] sm:$0xff] %vm904, %v851
  %917 = vst.msk [vmem:[%s3 + $0x60] sm:$0xff] %vm904, %v852
  %918 = vst.msk [vmem:[%s3 + $0x68] sm:$0xff] %vm904, %v853
  %919 = vst.msk [vmem:[%s3 + $0x70] sm:$0xff] %vm904, %v854
  %920 = vst.msk [vmem:[%s3 + $0x78] sm:$0xff] %vm904, %v855
  %921 = vst.msk [vmem:[%s3 + $0x80] sm:$0xff] %vm904, %v856
  %922 = vst.msk [vmem:[%s3 + $0x88] sm:$0xff] %vm904, %v857
  %923 = vst.msk [vmem:[%s3 + $0x90] sm:$0xff] %vm904, %v858
  %924 = vst.msk [vmem:[%s3 + $0x98] sm:$0xff] %vm904, %v859
  %925 = vst.msk [vmem:[%s3 + $0xa0] sm:$0xff] %vm904, %v860
  %926 = vst.msk [vmem:[%s3 + $0xa8] sm:$0xff] %vm904, %v861
  %927 = vst.msk [vmem:[%s3 + $0xb0] sm:$0xff] %vm904, %v862
  %928 = vst.msk [vmem:[%s3 + $0xb8] sm:$0xff] %vm904, %v863
  %929 = vst.msk [vmem:[%s3 + $0xc0] sm:$0xff] %vm904, %v864
  %930 = vst.msk [vmem:[%s3 + $0xc8] sm:$0xff] %vm904, %v865
  %931 = vst.msk [vmem:[%s3 + $0xd0] sm:$0xff] %vm904, %v866
  %932 = vst.msk [vmem:[%s3 + $0xd8] sm:$0xff] %vm904, %v867
  %933 = vst.msk [vmem:[%s3 + $0xe0] sm:$0xff] %vm904, %v868
  %934 = vst.msk [vmem:[%s3 + $0xe8] sm:$0xff] %vm904, %v869
  %935 = vst.msk [vmem:[%s3 + $0xf0] sm:$0xff] %vm904, %v870
  %936 = vst.msk [vmem:[%s3 + $0xf8] sm:$0xff] %vm904, %v871
  %937 = vst.msk [vmem:[%s3 + $0x100] sm:$0xff] %vm904, %v872
  %938 = vst.msk [vmem:[%s3 + $0x108] sm:$0xff] %vm904, %v873
  %939 = vst.msk [vmem:[%s3 + $0x110] sm:$0xff] %vm904, %v874
  %940 = vst.msk [vmem:[%s3 + $0x118] sm:$0xff] %vm904, %v875
  %941 = vst.msk [vmem:[%s3 + $0x120] sm:$0xff] %vm904, %v876
  %942 = vst.msk [vmem:[%s3 + $0x128] sm:$0xff] %vm904, %v877
  %943 = vst.msk [vmem:[%s3 + $0x130] sm:$0xff] %vm904, %v878
  %944 = vst.msk [vmem:[%s3 + $0x138] sm:$0xff] %vm904, %v879
  %945 = vst.msk [vmem:[%s3 + $0x140] sm:$0xff] %vm904, %v880
  %946 = vst.msk [vmem:[%s3 + $0x148] sm:$0xff] %vm904, %v881
  %947 = vst.msk [vmem:[%s3 + $0x150] sm:$0xff] %vm904, %v882
  %948 = vst.msk [vmem:[%s3 + $0x158] sm:$0xff] %vm904, %v883
  %949 = vst.msk [vmem:[%s3 + $0x160] sm:$0xff] %vm904, %v884
  %950 = vst.msk [vmem:[%s3 + $0x168] sm:$0xff] %vm904, %v885
  %951 = vst.msk [vmem:[%s3 + $0x170] sm:$0xff] %vm904, %v886
  %952 = vst.msk [vmem:[%s3 + $0x178] sm:$0xff] %vm904, %v887
  %953 = vst.msk [vmem:[%s3 + $0x180] sm:$0xff] %vm904, %v888
  %954 = vst.msk [vmem:[%s3 + $0x188] sm:$0xff] %vm904, %v889
  %955 = vst.msk [vmem:[%s3 + $0x190] sm:$0xff] %vm904, %v890
  %956 = vst.msk [vmem:[%s3 + $0x198] sm:$0xff] %vm904, %v891
  %957 = vst.msk [vmem:[%s3 + $0x1a0] sm:$0xff] %vm904, %v892
  %958 = vst.msk [vmem:[%s3 + $0x1a8] sm:$0xff] %vm904, %v893
  %959 = vst.msk [vmem:[%s3 + $0x1b0] sm:$0xff] %vm904, %v894
  %960 = vst.msk [vmem:[%s3 + $0x1b8] sm:$0xff] %vm904, %v895
  %961 = vst.msk [vmem:[%s3 + $0x1c0] sm:$0xff] %vm904, %v896
  %962 = vst.msk [vmem:[%s3 + $0x1c8] sm:$0xff] %vm904, %v897
  %963 = vst.msk [vmem:[%s3 + $0x1d0] sm:$0xff] %vm904, %v898
  %964 = vst.msk [vmem:[%s3 + $0x1d8] sm:$0xff] %vm904, %v899
  %965 = vst.msk [vmem:[%s3 + $0x1e0] sm:$0xff] %vm904, %v900
  %966 = vst.msk [vmem:[%s3 + $0x1e8] sm:$0xff] %vm904, %v901
  %967 = vst.msk [vmem:[%s3 + $0x1f0] sm:$0xff] %vm904, %v902
  %968 = vst.msk [vmem:[%s3 + $0x1f8] sm:$0xff] %vm904, %v903
  // Predicated region
  $region14: #{st2cspa_forward.4} parent=0 // pred_check
    _
  $region15: #{st2cspa_forward.4} parent=0 // pred_check_branch
    %970 = sbr.rel (0) target = $region17
  $region16: #{st2cspa_forward.4} parent=0 // pred_region
    _
  $region17: #{st2cspa_forward.4} parent=0 // pred_fallthru
    _
  // Predicated region
  $region18: #{st2cspa_forward.4} parent=0 // pred_check
    _
  $region19: #{st2cspa_forward.4} parent=0 // pred_check_branch
    %972 = sbr.rel (0) target = $region21
  $region20: #{st2cspa_forward.4} parent=0 // pred_region
    _
  $region21: #{st2cspa_forward.4} parent=0 // pred_fallthru
    _

// kernel: st2cspa_forward.5
$region0: #{st2cspa_forward.5}
  #allocation0 [shape = 'u32[]', space=smem, size = 0x4, offset = 0x4, fixed_abs, tag = 'smem constant byte address 0x4 - core index']
  #allocation1 [shape = 'u32[144,128]{1,0:T(1,128)}', space=vmem, size = 0x12000, scoped, tag = 'internal scratch']
  #allocation2 [shape = 'f32[1]{0:T(128)S(6)}', space=smem, size = 0x200, scoped, tag = 'scoped memory for st2cspa_forward.5']
  %s0 = inlined_call_operand.vmem [shape: f32[8,56,32], index: 0, kind: input, shape index: {}]
  %s1 = inlined_call_operand.vmem [shape: bf16[32,96], index: 1, kind: input, shape index: {}]
  %s2 = inlined_call_operand.vmem [shape: f32[1,96], index: 2, kind: input, shape index: {}]
  %s3 = inlined_call_operand.<no memory space> [shape: f32[1], index: 3, kind: input, shape index: {}]
  %s4 = inlined_call_operand.vmem [shape: f32[1,56,56], index: 4, kind: input, shape index: {}]
  %s5 = inlined_call_operand.vmem [shape: f32[1,56,56], index: 5, kind: input, shape index: {}]
  %s6 = inlined_call_operand.vmem [shape: bf16[32,32], index: 6, kind: input, shape index: {}]
  %s7 = inlined_call_operand.vmem [shape: f32[1,32], index: 7, kind: input, shape index: {}]
  %s8 = inlined_call_operand.vmem [shape: f32[8,56,32], index: 8, kind: output, shape index: {}]
  %s9 = sld [smem:[#allocation0]]
  $region65: #{st2cspa_forward.5} parent=0
    _
  %s11 = ssub.s32 1, %s9
  %s12 = scalar_select 0, %s11, %s9
  %13 = sst [smem:[#allocation2]] %s3
  loop: start=0, step=1, limit=4
  $region2: #{st2cspa_forward.5} parent=0 // loop_pre_header
    _
  $region3: #{st2cspa_forward.5} parent=0 // loop_header
    %s15 = sphi 0, %s19
    %p16 = scmp.ge.s32.totalorder %s15, 4
    %s25 = sphi 0, %s27
    %s28 = sphi 0, %s25
    %s29 = sphi 0, %s28
    %s45 = sphi 0, %s29
    %s49 = sphi 0, %s49
    %s51 = sphi 0, %s49
    %s52 = sphi 0, %s51
    %s66 = sphi 0, %s52
    %s70 = sphi 0, %s70
    %s72 = sphi 0, %s70
    %s73 = sphi 0, %s72
    %s87 = sphi 0, %s73
    %s91 = sphi 0, %s91
    %s93 = sphi 0, %s91
    %s94 = sphi 0, %s93
    %s108 = sphi 0, %s94
    %s112 = sphi 0, %s112
    %s114 = sphi 0, %s112
    %s115 = sphi 0, %s114
    %s129 = sphi 0, %s115
    %s133 = sphi 0, %s133
    %s135 = sphi 0, %s133
    %s136 = sphi 0, %s135
    %s150 = sphi 0, %s136
    %s154 = sphi 0, %s154
    %s156 = sphi 0, %s154
    %s157 = sphi 0, %s156
    %s171 = sphi 0, %s157
    %s175 = sphi 0, %s175
    %s177 = sphi 0, %s175
    %s178 = sphi 0, %s177
    %s192 = sphi 0, %s178
    %s198 = sphi 0, %s200
    %s201 = sphi 0, %s198
    %s202 = sphi 0, %s201
    %s218 = sphi 0, %s202
  $region4: #{st2cspa_forward.5} parent=0 // loop_header_branch
    %18 = sbr.rel (%p16) target = $region8
  $region5: #{st2cspa_forward.5} parent=0 // loop_body
    %s20 = ssub.s32 %s15, 1
    %s21 = ssub.s32 %s15, 2
    %s22 = sadd.s32 %s15, 1
    %s23 = ssub.s32 %s15, %s22
    %p24 = scmp.eq.s32.totalorder %s23, 0
    %s26 = sadd.s32 %s25, 1
    %s27 = scalar_select %p24, %s25, %s26
    %p30 = pneg %p24
    %p31 = scmp.eq.s32.totalorder %s15, 1
    %p32 = por %p30, %p31
    %p33 = scmp.ne.s32.totalorder %s25, %s28
    %p34 = scmp.eq.s32.totalorder %s15, 0
    %p35 = por %p33, %p34
    %p36 = scmp.ne.s32.totalorder %s25, %s28
    %p37 = scmp.eq.s32.totalorder %s20, 1
    %p38 = por %p36, %p37
    %p39 = scmp.ne.s32.totalorder %s28, %s29
    %p40 = scmp.eq.s32.totalorder %s20, 0
    %p41 = por %p39, %p40
    %p42 = scmp.ne.s32.totalorder %s28, %s29
    %p43 = scmp.eq.s32.totalorder %s21, 1
    %p44 = por %p42, %p43
    %p46 = scmp.ne.s32.totalorder %s29, %s45
    %p47 = scmp.eq.s32.totalorder %s21, 0
    %p48 = por %p46, %p47
    %s50 = sadd.s32 %s49, 1
    %p53 = scmp.eq.s32.totalorder %s15, 1
    %p54 = scmp.ne.s32.totalorder %s49, %s51
    %p55 = scmp.eq.s32.totalorder %s15, 0
    %p56 = por %p54, %p55
    %p57 = scmp.ne.s32.totalorder %s49, %s51
    %p58 = scmp.eq.s32.totalorder %s20, 1
    %p59 = por %p57, %p58
    %p60 = scmp.ne.s32.totalorder %s51, %s52
    %p61 = scmp.eq.s32.totalorder %s20, 0
    %p62 = por %p60, %p61
    %p63 = scmp.ne.s32.totalorder %s51, %s52
    %p64 = scmp.eq.s32.totalorder %s21, 1
    %p65 = por %p63, %p64
    %p67 = scmp.ne.s32.totalorder %s52, %s66
    %p68 = scmp.eq.s32.totalorder %s21, 0
    %p69 = por %p67, %p68
    %s71 = sadd.s32 %s70, 1
    %p74 = scmp.eq.s32.totalorder %s15, 1
    %p75 = scmp.ne.s32.totalorder %s70, %s72
    %p76 = scmp.eq.s32.totalorder %s15, 0
    %p77 = por %p75, %p76
    %p78 = scmp.ne.s32.totalorder %s70, %s72
    %p79 = scmp.eq.s32.totalorder %s20, 1
    %p80 = por %p78, %p79
    %p81 = scmp.ne.s32.totalorder %s72, %s73
    %p82 = scmp.eq.s32.totalorder %s20, 0
    %p83 = por %p81, %p82
    %p84 = scmp.ne.s32.totalorder %s72, %s73
    %p85 = scmp.eq.s32.totalorder %s21, 1
    %p86 = por %p84, %p85
    %p88 = scmp.ne.s32.totalorder %s73, %s87
    %p89 = scmp.eq.s32.totalorder %s21, 0
    %p90 = por %p88, %p89
    %s92 = sadd.s32 %s91, 1
    %p95 = scmp.eq.s32.totalorder %s15, 1
    %p96 = scmp.ne.s32.totalorder %s91, %s93
    %p97 = scmp.eq.s32.totalorder %s15, 0
    %p98 = por %p96, %p97
    %p99 = scmp.ne.s32.totalorder %s91, %s93
    %p100 = scmp.eq.s32.totalorder %s20, 1
    %p101 = por %p99, %p100
    %p102 = scmp.ne.s32.totalorder %s93, %s94
    %p103 = scmp.eq.s32.totalorder %s20, 0
    %p104 = por %p102, %p103
    %p105 = scmp.ne.s32.totalorder %s93, %s94
    %p106 = scmp.eq.s32.totalorder %s21, 1
    %p107 = por %p105, %p106
    %p109 = scmp.ne.s32.totalorder %s94, %s108
    %p110 = scmp.eq.s32.totalorder %s21, 0
    %p111 = por %p109, %p110
    %s113 = sadd.s32 %s112, 1
    %p116 = scmp.eq.s32.totalorder %s15, 1
    %p117 = scmp.ne.s32.totalorder %s112, %s114
    %p118 = scmp.eq.s32.totalorder %s15, 0
    %p119 = por %p117, %p118
    %p120 = scmp.ne.s32.totalorder %s112, %s114
    %p121 = scmp.eq.s32.totalorder %s20, 1
    %p122 = por %p120, %p121
    %p123 = scmp.ne.s32.totalorder %s114, %s115
    %p124 = scmp.eq.s32.totalorder %s20, 0
    %p125 = por %p123, %p124
    %p126 = scmp.ne.s32.totalorder %s114, %s115
    %p127 = scmp.eq.s32.totalorder %s21, 1
    %p128 = por %p126, %p127
    %p130 = scmp.ne.s32.totalorder %s115, %s129
    %p131 = scmp.eq.s32.totalorder %s21, 0
    %p132 = por %p130, %p131
    %s134 = sadd.s32 %s133, 1
    %p137 = scmp.eq.s32.totalorder %s15, 1
    %p138 = scmp.ne.s32.totalorder %s133, %s135
    %p139 = scmp.eq.s32.totalorder %s15, 0
    %p140 = por %p138, %p139
    %p141 = scmp.ne.s32.totalorder %s133, %s135
    %p142 = scmp.eq.s32.totalorder %s20, 1
    %p143 = por %p141, %p142
    %p144 = scmp.ne.s32.totalorder %s135, %s136
    %p145 = scmp.eq.s32.totalorder %s20, 0
    %p146 = por %p144, %p145
    %p147 = scmp.ne.s32.totalorder %s135, %s136
    %p148 = scmp.eq.s32.totalorder %s21, 1
    %p149 = por %p147, %p148
    %p151 = scmp.ne.s32.totalorder %s136, %s150
    %p152 = scmp.eq.s32.totalorder %s21, 0
    %p153 = por %p151, %p152
    %s155 = sadd.s32 %s154, 1
    %p158 = scmp.eq.s32.totalorder %s15, 1
    %p159 = scmp.ne.s32.totalorder %s154, %s156
    %p160 = scmp.eq.s32.totalorder %s15, 0
    %p161 = por %p159, %p160
    %p162 = scmp.ne.s32.totalorder %s154, %s156
    %p163 = scmp.eq.s32.totalorder %s20, 1
    %p164 = por %p162, %p163
    %p165 = scmp.ne.s32.totalorder %s156, %s157
    %p166 = scmp.eq.s32.totalorder %s20, 0
    %p167 = por %p165, %p166
    %p168 = scmp.ne.s32.totalorder %s156, %s157
    %p169 = scmp.eq.s32.totalorder %s21, 1
    %p170 = por %p168, %p169
    %p172 = scmp.ne.s32.totalorder %s157, %s171
    %p173 = scmp.eq.s32.totalorder %s21, 0
    %p174 = por %p172, %p173
    %s176 = sadd.s32 %s175, 1
    %p179 = scmp.eq.s32.totalorder %s15, 1
    %p180 = scmp.ne.s32.totalorder %s175, %s177
    %p181 = scmp.eq.s32.totalorder %s15, 0
    %p182 = por %p180, %p181
    %p183 = scmp.ne.s32.totalorder %s175, %s177
    %p184 = scmp.eq.s32.totalorder %s20, 1
    %p185 = por %p183, %p184
    %p186 = scmp.ne.s32.totalorder %s177, %s178
    %p187 = scmp.eq.s32.totalorder %s20, 0
    %p188 = por %p186, %p187
    %p189 = scmp.ne.s32.totalorder %s177, %s178
    %p190 = scmp.eq.s32.totalorder %s21, 1
    %p191 = por %p189, %p190
    %p193 = scmp.ne.s32.totalorder %s178, %s192
    %p194 = scmp.eq.s32.totalorder %s21, 0
    %p195 = por %p193, %p194
    %s196 = ssub.s32 %s15, %s22
    %p197 = scmp.eq.s32.totalorder %s196, 0
    %s199 = sadd.s32 %s198, 1
    %s200 = scalar_select %p197, %s198, %s199
    %p203 = pneg %p197
    %p204 = scmp.eq.s32.totalorder %s15, 1
    %p205 = por %p203, %p204
    %p206 = scmp.ne.s32.totalorder %s198, %s201
    %p207 = scmp.eq.s32.totalorder %s15, 0
    %p208 = por %p206, %p207
    %p209 = scmp.ne.s32.totalorder %s198, %s201
    %p210 = scmp.eq.s32.totalorder %s20, 1
    %p211 = por %p209, %p210
    %p212 = scmp.ne.s32.totalorder %s201, %s202
    %p213 = scmp.eq.s32.totalorder %s20, 0
    %p214 = por %p212, %p213
    %p215 = scmp.ne.s32.totalorder %s201, %s202
    %p216 = scmp.eq.s32.totalorder %s21, 1
    %p217 = por %p215, %p216
    %p219 = scmp.ne.s32.totalorder %s202, %s218
    %p220 = scmp.eq.s32.totalorder %s21, 0
    %p221 = por %p219, %p220
    %p222 = scmp.le.s32.totalorder 1, %s15
    %p223 = scmp.lt.s32.totalorder %s15, 3
    %p224 = pnand %p222, %p223
    %p225 = pneg %p224
    // Predicated region
    $region9: #{st2cspa_forward.5} parent=5 // pred_check
      _
    $region10: #{st2cspa_forward.5} parent=5 // pred_check_branch
      %227 = sbr.rel (%p224) target = $region12
    $region11: #{st2cspa_forward.5} parent=5 // pred_region
      %s228 = ssub.s32 %s15, 1
      // Predicated region
      $region13: #{st2cspa_forward.5} parent=11 // pred_check
        %p229 = pneg %p62
      $region14: #{st2cspa_forward.5} parent=11 // pred_check_branch
        %231 = sbr.rel (%p229) target = $region16
      $region15: #{st2cspa_forward.5} parent=11 // pred_region
        _
      $region16: #{st2cspa_forward.5} parent=11 // pred_fallthru
        _
      // Predicated region
      $region17: #{st2cspa_forward.5} parent=11 // pred_check
        %p232 = pneg %p83
      $region18: #{st2cspa_forward.5} parent=11 // pred_check_branch
        %234 = sbr.rel (%p232) target = $region20
      $region19: #{st2cspa_forward.5} parent=11 // pred_region
        _
      $region20: #{st2cspa_forward.5} parent=11 // pred_fallthru
        _
      // Predicated region
      $region21: #{st2cspa_forward.5} parent=11 // pred_check
        %p235 = pneg %p104
      $region22: #{st2cspa_forward.5} parent=11 // pred_check_branch
        %237 = sbr.rel (%p235) target = $region24
      $region23: #{st2cspa_forward.5} parent=11 // pred_region
        _
      $region24: #{st2cspa_forward.5} parent=11 // pred_fallthru
        _
      // Predicated region
      $region25: #{st2cspa_forward.5} parent=11 // pred_check
        %p238 = pneg %p125
      $region26: #{st2cspa_forward.5} parent=11 // pred_check_branch
        %240 = sbr.rel (%p238) target = $region28
      $region27: #{st2cspa_forward.5} parent=11 // pred_region
        _
      $region28: #{st2cspa_forward.5} parent=11 // pred_fallthru
        _
      // Predicated region
      $region29: #{st2cspa_forward.5} parent=11 // pred_check
        %p241 = pneg %p146
      $region30: #{st2cspa_forward.5} parent=11 // pred_check_branch
        %243 = sbr.rel (%p241) target = $region32
      $region31: #{st2cspa_forward.5} parent=11 // pred_region
        _
      $region32: #{st2cspa_forward.5} parent=11 // pred_fallthru
        _
      // Predicated region
      $region33: #{st2cspa_forward.5} parent=11 // pred_check
        %p244 = pneg %p167
      $region34: #{st2cspa_forward.5} parent=11 // pred_check_branch
        %246 = sbr.rel (%p244) target = $region36
      $region35: #{st2cspa_forward.5} parent=11 // pred_region
        _
      $region36: #{st2cspa_forward.5} parent=11 // pred_fallthru
        _
      // Predicated region
      $region37: #{st2cspa_forward.5} parent=11 // pred_check
        %p247 = pneg %p188
      $region38: #{st2cspa_forward.5} parent=11 // pred_check_branch
        %249 = sbr.rel (%p247) target = $region40
      $region39: #{st2cspa_forward.5} parent=11 // pred_region
        _
      $region40: #{st2cspa_forward.5} parent=11 // pred_fallthru
        _
    $region12: #{st2cspa_forward.5} parent=5 // pred_fallthru
      _
    %p250 = scmp.lt.s32.totalorder %s15, 2
    // Predicated region
    $region41: #{st2cspa_forward.5} parent=5 // pred_check
      %p251 = pneg %p250
    $region42: #{st2cspa_forward.5} parent=5 // pred_check_branch
      %253 = sbr.rel (%p251) target = $region44
    $region43: #{st2cspa_forward.5} parent=5 // pred_region
      // Predicated region
      $region45: #{st2cspa_forward.5} parent=43 // pred_check
        %p254 = pneg %p35
      $region46: #{st2cspa_forward.5} parent=43 // pred_check_branch
        %256 = sbr.rel (%p254) target = $region48
      $region47: #{st2cspa_forward.5} parent=43 // pred_region
        %s257 = smul.u32 4, %s15
        %p258 = scmp.lt.s32.totalorder %s257, 7
        %s259 = scalar_select %p258, %s257, 7
        %s260 = smul.addr %s259, 7
        %s261 = smul.addr %s260, 8
        %s262 = scalar_lea.vmem %s0, %s261
        %s263 = smul.u32 4, %s15
      $region48: #{st2cspa_forward.5} parent=43 // pred_fallthru
        _
    $region44: #{st2cspa_forward.5} parent=5 // pred_fallthru
      _
    %p264 = scmp.le.s32.totalorder 1, %s15
    %p265 = scmp.lt.s32.totalorder %s15, 3
    %p266 = pnand %p264, %p265
    %p267 = pneg %p266
    // Predicated region
    $region49: #{st2cspa_forward.5} parent=5 // pred_check
      _
    $region50: #{st2cspa_forward.5} parent=5 // pred_check_branch
      %269 = sbr.rel (%p266) target = $region52
    $region51: #{st2cspa_forward.5} parent=5 // pred_region
      %s270 = ssub.s32 %s15, 1
      %s271 = smul.u32 4, %s20
      %p272 = scmp.lt.s32.totalorder %s271, 7
      %s273 = scalar_select %p272, %s271, 7
      %s274 = smul.addr %s273, 7
      %s275 = smul.addr %s274, 8
      %s276 = scalar_lea.vmem %s0, %s275
      %p277 = pneg %p41
      %p278 = pneg %p38
      %p279 = pneg %p62
      %p280 = pneg %p59
      %p281 = pneg %p83
      %p282 = pneg %p80
      %p283 = pneg %p104
      %p284 = pneg %p101
      %p285 = pneg %p125
      %p286 = pneg %p122
      %p287 = pneg %p146
      %p288 = pneg %p143
      %p289 = pneg %p167
      %p290 = pneg %p164
      %p291 = pneg %p188
      %p292 = pneg %p185
      %p293 = pneg %p214
      %p294 = pneg %p211
      %s295 = smul.u32 4, %s20
      %p296 = scmp.lt.s32.totalorder %s295, 7
      %s297 = scalar_select %p296, %s295, 7
      %s298 = smul.addr %s297, 7
      %s299 = smul.addr %s298, 8
      %s300 = scalar_lea.vmem %s8, %s299
      %s301 = smul.u32 4, %s20
      %p302 = scmp.lt.s32.totalorder %s301, 7
      %s303 = scalar_select %p302, %s301, 7
      %s304 = smul.addr %s303, 7
      %s305 = smul.addr %s304, 8
      %s306 = scalar_lea.vmem %s0, %s305
      %s307 = smul.u32 4, %s20
      %s308 = smul.u32 4, %s20
      %p309 = scmp.lt.s32.totalorder %s308, 7
      %s310 = scalar_select %p309, %s308, 7
      %s311 = smul.addr %s310, 7
      %s312 = smul.addr %s311, 8
      %s313 = scalar_lea.vmem %s8, %s312
      %s314 = smul.u32 4, %s20
      %v316 = vld [vmem:[%s306] sm:$0xff]
      %v317 = vld [vmem:[%s306 + $0x8] sm:$0xff]
      %v318 = vld [vmem:[%s306 + $0x10] sm:$0xff]
      %v319 = vld [vmem:[%s306 + $0x18] sm:$0xff]
      %v320 = vld [vmem:[%s306 + $0x20] sm:$0xff]
      %v321 = vld [vmem:[%s306 + $0x28] sm:$0xff]
      %v322 = vld [vmem:[%s306 + $0x30] sm:$0xff]
      %v323 = vld [vmem:[%s306 + $0x38] sm:$0xff]
      %v324 = vld [vmem:[%s306 + $0x40] sm:$0xff]
      %v325 = vld [vmem:[%s306 + $0x48] sm:$0xff]
      %v326 = vld [vmem:[%s306 + $0x50] sm:$0xff]
      %v327 = vld [vmem:[%s306 + $0x58] sm:$0xff]
      %v328 = vld [vmem:[%s306 + $0x60] sm:$0xff]
      %v329 = vld [vmem:[%s306 + $0x68] sm:$0xff]
      %v330 = vld [vmem:[%s306 + $0x70] sm:$0xff]
      %v331 = vld [vmem:[%s306 + $0x78] sm:$0xff]
      %v332 = vld [vmem:[%s306 + $0x80] sm:$0xff]
      %v333 = vld [vmem:[%s306 + $0x88] sm:$0xff]
      %v334 = vld [vmem:[%s306 + $0x90] sm:$0xff]
      %v335 = vld [vmem:[%s306 + $0x98] sm:$0xff]
      %v336 = vld [vmem:[%s306 + $0xa0] sm:$0xff]
      %v337 = vld [vmem:[%s306 + $0xa8] sm:$0xff]
      %v338 = vld [vmem:[%s306 + $0xb0] sm:$0xff]
      %v339 = vld [vmem:[%s306 + $0xb8] sm:$0xff]
      %v340 = vld [vmem:[%s306 + $0xc0] sm:$0xff]
      %v341 = vld [vmem:[%s306 + $0xc8] sm:$0xff]
      %v342 = vld [vmem:[%s306 + $0xd0] sm:$0xff]
      %v343 = vld [vmem:[%s306 + $0xd8] sm:$0xff]
      %v344 = vld [vmem:[%s1] sm:$0xf]
      %v345 = vld [vmem:[%s1 + $0x4] sm:$0xf]
      %v346 = vld [vmem:[%s1 + $0x8] sm:$0xf]
      %v347 = vld [vmem:[%s1 + $0xc] sm:$0xf]
      %v348 = vpack.c.bf16 %v317, %v316
      %v349 = vpack.c.bf16 %v319, %v318
      %v350 = vpack.c.bf16 %v321, %v320
      %v351 = vpack.c.bf16 %v323, %v322
      %v352 = vpack.c.bf16 %v325, %v324
      %v353 = vpack.c.bf16 %v327, %v326
      %v354 = vpack.c.bf16 %v329, %v328
      %v355 = vpack.c.bf16 %v331, %v330
      %v356 = vpack.c.bf16 %v333, %v332
      %v357 = vpack.c.bf16 %v335, %v334
      %v358 = vpack.c.bf16 %v337, %v336
      %v359 = vpack.c.bf16 %v339, %v338
      %v360 = vpack.c.bf16 %v341, %v340
      %v361 = vpack.c.bf16 %v343, %v342
      %v362 = vld [vmem:[%s2] sm:$0x1]
      %v364 = vlaneseq
      %v365 = vshrl.u32 %v364, 7
      %v366 = vsub.s32 0, %v365
      %v367 = vrot.slane %v362, %v366
      %v373 = vunpack.c.l.b16 %v344
      %v374 = vunpack.c.l.b16 %v345
      %v375 = vunpack.c.l.b16 %v346
      %v376 = vunpack.c.l.b16 %v347
      %v377 = vpack.c.b16 %v374, %v373
      %v378 = vpack.c.b16 %v376, %v375
      %vm381 = vcmask 261120
      %v383 = vsel %vm381, %v348, 0
      %v386 = vsel %vm381, %v349, 0
      %v389 = vsel %vm381, %v350, 0
      %v392 = vsel %vm381, %v351, 0
      %v395 = vsel %vm381, %v352, 0
      %v398 = vsel %vm381, %v353, 0
      %v401 = vsel %vm381, %v354, 0
      %v404 = vsel %vm381, %v355, 0
      %v407 = vsel %vm381, %v356, 0
      %v410 = vsel %vm381, %v357, 0
      %v413 = vsel %vm381, %v358, 0
      %v416 = vsel %vm381, %v359, 0
      %v419 = vsel %vm381, %v360, 0
      %v422 = vsel %vm381, %v361, 0
      %424 = vmatprep.subr.bf16.mxu0 0
      %425 = vmatpush1.bf16.msra.mxu0 0
      %426 = vmatprep.subr.bf16.mxu0 0
      %427 = vmatpush1.bf16.msra.mxu0 0
      %428 = vmatprep.subr.bf16.mxu0 0
      %429 = vmatpush1.bf16.msra.mxu0 0
      %430 = vmatprep.subr.bf16.mxu0 0
      %431 = vmatpush1.bf16.msra.mxu0 0
      %432 = vmatprep.subr.bf16.mxu0 0
      %433 = vmatpush1.bf16.msra.mxu0 0
      %434 = vmatprep.subr.bf16.mxu0 0
      %435 = vmatpush1.bf16.msra.mxu0 0
      %436 = vmatprep.subr.bf16.mxu0 0
      %437 = vmatpush1.bf16.msra.mxu0 %v378
      %438 = vmatprep.subr.bf16.mxu0 0
      %439 = vmatpush1.bf16.msra.mxu0 %v377
      %440 = vmatprep.subr.bf16.mxu0 0
      %441 = vmatpush2.bf16.msra.mxu0 0
      %442 = vmatprep.subr.bf16.mxu0 0
      %443 = vmatpush2.bf16.msra.mxu0 0
      %444 = vmatprep.subr.bf16.mxu0 0
      %445 = vmatpush2.bf16.msra.mxu0 0
      %446 = vmatprep.subr.bf16.mxu0 0
      %447 = vmatpush2.bf16.msra.mxu0 0
      %448 = vmatprep.subr.bf16.mxu0 0
      %449 = vmatpush2.bf16.msra.mxu0 0
      %450 = vmatprep.subr.bf16.mxu0 0
      %451 = vmatpush2.bf16.msra.mxu0 0
      %452 = vmatprep.subr.bf16.mxu0 0
      %453 = vmatpush2.bf16.msra.mxu0 0
      %454 = vmatprep.subr.bf16.mxu0 0
      %455 = vmatpush2.bf16.msra.mxu0 0
      %456 = vmatprep.mubr.bf16.mxu0 0
      %457 = vmatmul.mubr.bf16.gmra.mxu0 %v383
      %v458 = vpop.f32.mrf.mxu0
      %v459 = vadd.f32 %v367, %v458
      %v460 = vpop.f32.mrf.mxu0
      %v461 = vpop.f32.mrf.mxu0
      %v462 = vadd.f32 %v367, %v461
      %v463 = vpop.f32.mrf.mxu0
      %464 = vmatprep.mubr.bf16.mxu0 0
      %465 = vmatmul.mubr.bf16.gmra.mxu0 %v386
      %v466 = vpop.f32.mrf.mxu0
      %v467 = vadd.f32 %v367, %v466
      %v468 = vpop.f32.mrf.mxu0
      %v469 = vpop.f32.mrf.mxu0
      %v470 = vadd.f32 %v367, %v469
      %v471 = vpop.f32.mrf.mxu0
      %472 = vmatprep.mubr.bf16.mxu0 0
      %473 = vmatmul.mubr.bf16.gmra.mxu0 %v389
      %v474 = vpop.f32.mrf.mxu0
      %v475 = vadd.f32 %v367, %v474
      %v476 = vpop.f32.mrf.mxu0
      %v477 = vpop.f32.mrf.mxu0
      %v478 = vadd.f32 %v367, %v477
      %v479 = vpop.f32.mrf.mxu0
      %480 = vmatprep.mubr.bf16.mxu0 0
      %481 = vmatmul.mubr.bf16.gmra.mxu0 %v392
      %v482 = vpop.f32.mrf.mxu0
      %v483 = vadd.f32 %v367, %v482
      %v484 = vpop.f32.mrf.mxu0
      %v485 = vpop.f32.mrf.mxu0
      %v486 = vadd.f32 %v367, %v485
      %v487 = vpop.f32.mrf.mxu0
      %488 = vmatprep.mubr.bf16.mxu0 0
      %489 = vmatmul.mubr.bf16.gmra.mxu0 %v395
      %v490 = vpop.f32.mrf.mxu0
      %v491 = vadd.f32 %v367, %v490
      %v492 = vpop.f32.mrf.mxu0
      %v493 = vpop.f32.mrf.mxu0
      %v494 = vadd.f32 %v367, %v493
      %v495 = vpop.f32.mrf.mxu0
      %496 = vmatprep.mubr.bf16.mxu0 0
      %497 = vmatmul.mubr.bf16.gmra.mxu0 %v398
      %v498 = vpop.f32.mrf.mxu0
      %v499 = vadd.f32 %v367, %v498
      %v500 = vpop.f32.mrf.mxu0
      %v501 = vpop.f32.mrf.mxu0
      %v502 = vadd.f32 %v367, %v501
      %v503 = vpop.f32.mrf.mxu0
      %504 = vmatprep.mubr.bf16.mxu0 0
      %505 = vmatmul.mubr.bf16.gmra.mxu0 %v401
      %v506 = vpop.f32.mrf.mxu0
      %v507 = vadd.f32 %v367, %v506
      %v508 = vpop.f32.mrf.mxu0
      %v509 = vpop.f32.mrf.mxu0
      %v510 = vadd.f32 %v367, %v509
      %v511 = vpop.f32.mrf.mxu0
      %512 = vmatprep.mubr.bf16.mxu0 0
      %513 = vmatmul.mubr.bf16.gmra.mxu0 %v404
      %v514 = vpop.f32.mrf.mxu0
      %v515 = vadd.f32 %v367, %v514
      %v516 = vpop.f32.mrf.mxu0
      %v517 = vpop.f32.mrf.mxu0
      %v518 = vadd.f32 %v367, %v517
      %v519 = vpop.f32.mrf.mxu0
      %520 = vmatprep.mubr.bf16.mxu0 0
      %521 = vmatmul.mubr.bf16.gmra.mxu0 %v407
      %v522 = vpop.f32.mrf.mxu0
      %v523 = vadd.f32 %v367, %v522
      %v524 = vpop.f32.mrf.mxu0
      %v525 = vpop.f32.mrf.mxu0
      %v526 = vadd.f32 %v367, %v525
      %v527 = vpop.f32.mrf.mxu0
      %528 = vmatprep.mubr.bf16.mxu0 0
      %529 = vmatmul.mubr.bf16.gmra.mxu0 %v410
      %v530 = vpop.f32.mrf.mxu0
      %v531 = vadd.f32 %v367, %v530
      %v532 = vpop.f32.mrf.mxu0
      %v533 = vpop.f32.mrf.mxu0
      %v534 = vadd.f32 %v367, %v533
      %v535 = vpop.f32.mrf.mxu0
      %536 = vmatprep.mubr.bf16.mxu0 0
      %537 = vmatmul.mubr.bf16.gmra.mxu0 %v413
      %v538 = vpop.f32.mrf.mxu0
      %v539 = vadd.f32 %v367, %v538
      %v540 = vpop.f32.mrf.mxu0
      %v541 = vpop.f32.mrf.mxu0
      %v542 = vadd.f32 %v367, %v541
      %v543 = vpop.f32.mrf.mxu0
      %544 = vmatprep.mubr.bf16.mxu0 0
      %545 = vmatmul.mubr.bf16.gmra.mxu0 %v416
      %v546 = vpop.f32.mrf.mxu0
      %v547 = vadd.f32 %v367, %v546
      %v548 = vpop.f32.mrf.mxu0
      %v549 = vpop.f32.mrf.mxu0
      %v550 = vadd.f32 %v367, %v549
      %v551 = vpop.f32.mrf.mxu0
      %552 = vmatprep.mubr.bf16.mxu0 0
      %553 = vmatmul.mubr.bf16.gmra.mxu0 %v419
      %v554 = vpop.f32.mrf.mxu0
      %v555 = vadd.f32 %v367, %v554
      %v556 = vpop.f32.mrf.mxu0
      %v557 = vpop.f32.mrf.mxu0
      %v558 = vadd.f32 %v367, %v557
      %v559 = vpop.f32.mrf.mxu0
      %560 = vmatprep.mubr.bf16.mxu0 0
      %561 = vmatmul.mubr.bf16.gmra.mxu0 %v422
      %v562 = vpop.f32.mrf.mxu0
      %v563 = vadd.f32 %v367, %v562
      %v564 = vpop.f32.mrf.mxu0
      %v565 = vpop.f32.mrf.mxu0
      %v566 = vadd.f32 %v367, %v565
      %v567 = vpop.f32.mrf.mxu0
      %568 = vdwg.mxu0
      %v569 = vld [vmem:[%s5] sm:$0xff]
      %v570 = vld [vmem:[%s5 + $0x8] sm:$0xff]
      %v571 = vld [vmem:[%s5 + $0x10] sm:$0xff]
      %v572 = vld [vmem:[%s5 + $0x18] sm:$0xff]
      %v573 = vld [vmem:[%s5 + $0x20] sm:$0xff]
      %v574 = vld [vmem:[%s5 + $0x28] sm:$0xff]
      %v575 = vld [vmem:[%s5 + $0x30] sm:$0xff]
      %v576 = vmul.f32 %v459, %v459
      %v577 = vmul.f32 %v462, %v462
      %v578 = vmul.f32 %v467, %v467
      %v579 = vmul.f32 %v470, %v470
      %v580 = vmul.f32 %v475, %v475
      %v581 = vmul.f32 %v478, %v478
      %v582 = vmul.f32 %v483, %v483
      %v583 = vmul.f32 %v486, %v486
      %v584 = vmul.f32 %v491, %v491
      %v585 = vmul.f32 %v494, %v494
      %v586 = vmul.f32 %v499, %v499
      %v587 = vmul.f32 %v502, %v502
      %v588 = vmul.f32 %v507, %v507
      %v589 = vmul.f32 %v510, %v510
      %v590 = vmul.f32 %v515, %v515
      %v591 = vmul.f32 %v518, %v518
      %v592 = vmul.f32 %v523, %v523
      %v593 = vmul.f32 %v526, %v526
      %v594 = vmul.f32 %v531, %v531
      %v595 = vmul.f32 %v534, %v534
      %v596 = vmul.f32 %v539, %v539
      %v597 = vmul.f32 %v542, %v542
      %v598 = vmul.f32 %v547, %v547
      %v599 = vmul.f32 %v550, %v550
      %v600 = vmul.f32 %v555, %v555
      %v601 = vmul.f32 %v558, %v558
      %v602 = vmul.f32 %v563, %v563
      %v603 = vmul.f32 %v566, %v566
      %v604 = vsel %vm381, %v576, 0.0
      %605 = vadd.xlane.f32.xlu0 %v604
      %v606 = vpop.xlane.xlu0 %605
      %v607 = vsel %vm381, %v577, 0.0
      %608 = vadd.xlane.f32.xlu0 %v607
      %v609 = vpop.xlane.xlu0 %608
      %v610 = vsel %vm381, %v578, 0.0
      %611 = vadd.xlane.f32.xlu0 %v610
      %v612 = vpop.xlane.xlu0 %611
      %v613 = vsel %vm381, %v579, 0.0
      %614 = vadd.xlane.f32.xlu0 %v613
      %v615 = vpop.xlane.xlu0 %614
      %v616 = vsel %vm381, %v580, 0.0
      %617 = vadd.xlane.f32.xlu0 %v616
      %v618 = vpop.xlane.xlu0 %617
      %v619 = vsel %vm381, %v581, 0.0
      %620 = vadd.xlane.f32.xlu0 %v619
      %v621 = vpop.xlane.xlu0 %620
      %v622 = vsel %vm381, %v582, 0.0
      %623 = vadd.xlane.f32.xlu0 %v622
      %v624 = vpop.xlane.xlu0 %623
      %v625 = vsel %vm381, %v583, 0.0
      %626 = vadd.xlane.f32.xlu0 %v625
      %v627 = vpop.xlane.xlu0 %626
      %v628 = vsel %vm381, %v584, 0.0
      %629 = vadd.xlane.f32.xlu0 %v628
      %v630 = vpop.xlane.xlu0 %629
      %v631 = vsel %vm381, %v585, 0.0
      %632 = vadd.xlane.f32.xlu0 %v631
      %v633 = vpop.xlane.xlu0 %632
      %v634 = vsel %vm381, %v586, 0.0
      %635 = vadd.xlane.f32.xlu0 %v634
      %v636 = vpop.xlane.xlu0 %635
      %v637 = vsel %vm381, %v587, 0.0
      %638 = vadd.xlane.f32.xlu0 %v637
      %v639 = vpop.xlane.xlu0 %638
      %v640 = vsel %vm381, %v588, 0.0
      %641 = vadd.xlane.f32.xlu0 %v640
      %v642 = vpop.xlane.xlu0 %641
      %v643 = vsel %vm381, %v589, 0.0
      %644 = vadd.xlane.f32.xlu0 %v643
      %v645 = vpop.xlane.xlu0 %644
      %v646 = vsel %vm381, %v590, 0.0
      %647 = vadd.xlane.f32.xlu0 %v646
      %v648 = vpop.xlane.xlu0 %647
      %v649 = vsel %vm381, %v591, 0.0
      %650 = vadd.xlane.f32.xlu0 %v649
      %v651 = vpop.xlane.xlu0 %650
      %v652 = vsel %vm381, %v592, 0.0
      %653 = vadd.xlane.f32.xlu0 %v652
      %v654 = vpop.xlane.xlu0 %653
      %v655 = vsel %vm381, %v593, 0.0
      %656 = vadd.xlane.f32.xlu0 %v655
      %v657 = vpop.xlane.xlu0 %656
      %v658 = vsel %vm381, %v594, 0.0
      %659 = vadd.xlane.f32.xlu0 %v658
      %v660 = vpop.xlane.xlu0 %659
      %v661 = vsel %vm381, %v595, 0.0
      %662 = vadd.xlane.f32.xlu0 %v661
      %v663 = vpop.xlane.xlu0 %662
      %v664 = vsel %vm381, %v596, 0.0
      %665 = vadd.xlane.f32.xlu0 %v664
      %v666 = vpop.xlane.xlu0 %665
      %v667 = vsel %vm381, %v597, 0.0
      %668 = vadd.xlane.f32.xlu0 %v667
      %v669 = vpop.xlane.xlu0 %668
      %v670 = vsel %vm381, %v598, 0.0
      %671 = vadd.xlane.f32.xlu0 %v670
      %v672 = vpop.xlane.xlu0 %671
      %v673 = vsel %vm381, %v599, 0.0
      %674 = vadd.xlane.f32.xlu0 %v673
      %v675 = vpop.xlane.xlu0 %674
      %v676 = vsel %vm381, %v600, 0.0
      %677 = vadd.xlane.f32.xlu0 %v676
      %v678 = vpop.xlane.xlu0 %677
      %v679 = vsel %vm381, %v601, 0.0
      %680 = vadd.xlane.f32.xlu0 %v679
      %v681 = vpop.xlane.xlu0 %680
      %v682 = vsel %vm381, %v602, 0.0
      %683 = vadd.xlane.f32.xlu0 %v682
      %v684 = vpop.xlane.xlu0 %683
      %v685 = vsel %vm381, %v603, 0.0
      %686 = vadd.xlane.f32.xlu0 %v685
      %v687 = vpop.xlane.xlu0 %686
      %v688 = vadd.f32 %v606, 1e-12
      %v689 = vadd.f32 %v609, 1e-12
      %v690 = vadd.f32 %v612, 1e-12
      %v691 = vadd.f32 %v615, 1e-12
      %v692 = vadd.f32 %v618, 1e-12
      %v693 = vadd.f32 %v621, 1e-12
      %v694 = vadd.f32 %v624, 1e-12
      %v695 = vadd.f32 %v627, 1e-12
      %v696 = vadd.f32 %v630, 1e-12
      %v697 = vadd.f32 %v633, 1e-12
      %v698 = vadd.f32 %v636, 1e-12
      %v699 = vadd.f32 %v639, 1e-12
      %v700 = vadd.f32 %v642, 1e-12
      %v701 = vadd.f32 %v645, 1e-12
      %v702 = vadd.f32 %v648, 1e-12
      %v703 = vadd.f32 %v651, 1e-12
      %v704 = vadd.f32 %v654, 1e-12
      %v705 = vadd.f32 %v657, 1e-12
      %v706 = vadd.f32 %v660, 1e-12
      %v707 = vadd.f32 %v663, 1e-12
      %v708 = vadd.f32 %v666, 1e-12
      %v709 = vadd.f32 %v669, 1e-12
      %v710 = vadd.f32 %v672, 1e-12
      %v711 = vadd.f32 %v675, 1e-12
      %v712 = vadd.f32 %v678, 1e-12
      %v713 = vadd.f32 %v681, 1e-12
      %v714 = vadd.f32 %v684, 1e-12
      %v715 = vadd.f32 %v687, 1e-12
      %v716 = vrsqrt.pop %v688
      %v717 = vrsqrt.pop %v689
      %v718 = vrsqrt.pop %v690
      %v719 = vrsqrt.pop %v691
      %v720 = vrsqrt.pop %v692
      %v721 = vrsqrt.pop %v693
      %v722 = vrsqrt.pop %v694
      %v723 = vrsqrt.pop %v695
      %v724 = vrsqrt.pop %v696
      %v725 = vrsqrt.pop %v697
      %v726 = vrsqrt.pop %v698
      %v727 = vrsqrt.pop %v699
      %v728 = vrsqrt.pop %v700
      %v729 = vrsqrt.pop %v701
      %v730 = vrsqrt.pop %v702
      %v731 = vrsqrt.pop %v703
      %v732 = vrsqrt.pop %v704
      %v733 = vrsqrt.pop %v705
      %v734 = vrsqrt.pop %v706
      %v735 = vrsqrt.pop %v707
      %v736 = vrsqrt.pop %v708
      %v737 = vrsqrt.pop %v709
      %v738 = vrsqrt.pop %v710
      %v739 = vrsqrt.pop %v711
      %v740 = vrsqrt.pop %v712
      %v741 = vrsqrt.pop %v713
      %v742 = vrsqrt.pop %v714
      %v743 = vrsqrt.pop %v715
      %v744 = vmul.f32 %v459, %v716
      %v745 = vmul.f32 %v462, %v717
      %v746 = vmul.f32 %v467, %v718
      %v747 = vmul.f32 %v470, %v719
      %v748 = vmul.f32 %v475, %v720
      %v749 = vmul.f32 %v478, %v721
      %v750 = vmul.f32 %v483, %v722
      %v751 = vmul.f32 %v486, %v723
      %v752 = vmul.f32 %v491, %v724
      %v753 = vmul.f32 %v494, %v725
      %v754 = vmul.f32 %v499, %v726
      %v755 = vmul.f32 %v502, %v727
      %v756 = vmul.f32 %v507, %v728
      %v757 = vmul.f32 %v510, %v729
      %v758 = vmul.f32 %v515, %v730
      %v759 = vmul.f32 %v518, %v731
      %v760 = vmul.f32 %v523, %v732
      %v761 = vmul.f32 %v526, %v733
      %v762 = vmul.f32 %v531, %v734
      %v763 = vmul.f32 %v534, %v735
      %v764 = vmul.f32 %v539, %v736
      %v765 = vmul.f32 %v542, %v737
      %v766 = vmul.f32 %v547, %v738
      %v767 = vmul.f32 %v550, %v739
      %v768 = vmul.f32 %v555, %v740
      %v769 = vmul.f32 %v558, %v741
      %v770 = vmul.f32 %v563, %v742
      %v771 = vmul.f32 %v566, %v743
      %800 = vrot.lane.b32.xlu0 %v576, 96
      %v801 = vpop.permute.xlu0 %800
      %802 = vrot.lane.b32.xlu0 %v577, 96
      %v803 = vpop.permute.xlu0 %802
      %804 = vrot.lane.b32.xlu0 %v578, 96
      %v805 = vpop.permute.xlu0 %804
      %806 = vrot.lane.b32.xlu0 %v579, 96
      %v807 = vpop.permute.xlu0 %806
      %808 = vrot.lane.b32.xlu0 %v580, 96
      %v809 = vpop.permute.xlu0 %808
      %810 = vrot.lane.b32.xlu0 %v581, 96
      %v811 = vpop.permute.xlu0 %810
      %812 = vrot.lane.b32.xlu0 %v582, 96
      %v813 = vpop.permute.xlu0 %812
      %814 = vrot.lane.b32.xlu0 %v583, 96
      %v815 = vpop.permute.xlu0 %814
      %816 = vrot.lane.b32.xlu0 %v584, 96
      %v817 = vpop.permute.xlu0 %816
      %818 = vrot.lane.b32.xlu0 %v585, 96
      %v819 = vpop.permute.xlu0 %818
      %820 = vrot.lane.b32.xlu0 %v586, 96
      %v821 = vpop.permute.xlu0 %820
      %822 = vrot.lane.b32.xlu0 %v587, 96
      %v823 = vpop.permute.xlu0 %822
      %824 = vrot.lane.b32.xlu0 %v588, 96
      %v825 = vpop.permute.xlu0 %824
      %826 = vrot.lane.b32.xlu0 %v589, 96
      %v827 = vpop.permute.xlu0 %826
      %828 = vrot.lane.b32.xlu0 %v590, 96
      %v829 = vpop.permute.xlu0 %828
      %830 = vrot.lane.b32.xlu0 %v591, 96
      %v831 = vpop.permute.xlu0 %830
      %832 = vrot.lane.b32.xlu0 %v592, 96
      %v833 = vpop.permute.xlu0 %832
      %834 = vrot.lane.b32.xlu0 %v593, 96
      %v835 = vpop.permute.xlu0 %834
      %836 = vrot.lane.b32.xlu0 %v594, 96
      %v837 = vpop.permute.xlu0 %836
      %838 = vrot.lane.b32.xlu0 %v595, 96
      %v839 = vpop.permute.xlu0 %838
      %840 = vrot.lane.b32.xlu0 %v596, 96
      %v841 = vpop.permute.xlu0 %840
      %842 = vrot.lane.b32.xlu0 %v597, 96
      %v843 = vpop.permute.xlu0 %842
      %844 = vrot.lane.b32.xlu0 %v598, 96
      %v845 = vpop.permute.xlu0 %844
      %846 = vrot.lane.b32.xlu0 %v599, 96
      %v847 = vpop.permute.xlu0 %846
      %848 = vrot.lane.b32.xlu0 %v600, 96
      %v849 = vpop.permute.xlu0 %848
      %850 = vrot.lane.b32.xlu0 %v601, 96
      %v851 = vpop.permute.xlu0 %850
      %852 = vrot.lane.b32.xlu0 %v602, 96
      %v853 = vpop.permute.xlu0 %852
      %854 = vrot.lane.b32.xlu0 %v603, 96
      %v855 = vpop.permute.xlu0 %854
      %v884 = vsel %vm381, %v801, 0.0
      %885 = vadd.xlane.f32.xlu0 %v884
      %v886 = vpop.xlane.xlu0 %885
      %v887 = vsel %vm381, %v803, 0.0
      %888 = vadd.xlane.f32.xlu0 %v887
      %v889 = vpop.xlane.xlu0 %888
      %v890 = vsel %vm381, %v805, 0.0
      %891 = vadd.xlane.f32.xlu0 %v890
      %v892 = vpop.xlane.xlu0 %891
      %v893 = vsel %vm381, %v807, 0.0
      %894 = vadd.xlane.f32.xlu0 %v893
      %v895 = vpop.xlane.xlu0 %894
      %v896 = vsel %vm381, %v809, 0.0
      %897 = vadd.xlane.f32.xlu0 %v896
      %v898 = vpop.xlane.xlu0 %897
      %v899 = vsel %vm381, %v811, 0.0
      %900 = vadd.xlane.f32.xlu0 %v899
      %v901 = vpop.xlane.xlu0 %900
      %v902 = vsel %vm381, %v813, 0.0
      %903 = vadd.xlane.f32.xlu0 %v902
      %v904 = vpop.xlane.xlu0 %903
      %v905 = vsel %vm381, %v815, 0.0
      %906 = vadd.xlane.f32.xlu0 %v905
      %v907 = vpop.xlane.xlu0 %906
      %v908 = vsel %vm381, %v817, 0.0
      %909 = vadd.xlane.f32.xlu0 %v908
      %v910 = vpop.xlane.xlu0 %909
      %v911 = vsel %vm381, %v819, 0.0
      %912 = vadd.xlane.f32.xlu0 %v911
      %v913 = vpop.xlane.xlu0 %912
      %v914 = vsel %vm381, %v821, 0.0
      %915 = vadd.xlane.f32.xlu0 %v914
      %v916 = vpop.xlane.xlu0 %915
      %v917 = vsel %vm381, %v823, 0.0
      %918 = vadd.xlane.f32.xlu0 %v917
      %v919 = vpop.xlane.xlu0 %918
      %v920 = vsel %vm381, %v825, 0.0
      %921 = vadd.xlane.f32.xlu0 %v920
      %v922 = vpop.xlane.xlu0 %921
      %v923 = vsel %vm381, %v827, 0.0
      %924 = vadd.xlane.f32.xlu0 %v923
      %v925 = vpop.xlane.xlu0 %924
      %v926 = vsel %vm381, %v829, 0.0
      %927 = vadd.xlane.f32.xlu0 %v926
      %v928 = vpop.xlane.xlu0 %927
      %v929 = vsel %vm381, %v831, 0.0
      %930 = vadd.xlane.f32.xlu0 %v929
      %v931 = vpop.xlane.xlu0 %930
      %v932 = vsel %vm381, %v833, 0.0
      %933 = vadd.xlane.f32.xlu0 %v932
      %v934 = vpop.xlane.xlu0 %933
      %v935 = vsel %vm381, %v835, 0.0
      %936 = vadd.xlane.f32.xlu0 %v935
      %v937 = vpop.xlane.xlu0 %936
      %v938 = vsel %vm381, %v837, 0.0
      %939 = vadd.xlane.f32.xlu0 %v938
      %v940 = vpop.xlane.xlu0 %939
      %v941 = vsel %vm381, %v839, 0.0
      %942 = vadd.xlane.f32.xlu0 %v941
      %v943 = vpop.xlane.xlu0 %942
      %v944 = vsel %vm381, %v841, 0.0
      %945 = vadd.xlane.f32.xlu0 %v944
      %v946 = vpop.xlane.xlu0 %945
      %v947 = vsel %vm381, %v843, 0.0
      %948 = vadd.xlane.f32.xlu0 %v947
      %v949 = vpop.xlane.xlu0 %948
      %v950 = vsel %vm381, %v845, 0.0
      %951 = vadd.xlane.f32.xlu0 %v950
      %v952 = vpop.xlane.xlu0 %951
      %v953 = vsel %vm381, %v847, 0.0
      %954 = vadd.xlane.f32.xlu0 %v953
      %v955 = vpop.xlane.xlu0 %954
      %v956 = vsel %vm381, %v849, 0.0
      %957 = vadd.xlane.f32.xlu0 %v956
      %v958 = vpop.xlane.xlu0 %957
      %v959 = vsel %vm381, %v851, 0.0
      %960 = vadd.xlane.f32.xlu0 %v959
      %v961 = vpop.xlane.xlu0 %960
      %v962 = vsel %vm381, %v853, 0.0
      %963 = vadd.xlane.f32.xlu0 %v962
      %v964 = vpop.xlane.xlu0 %963
      %v965 = vsel %vm381, %v855, 0.0
      %966 = vadd.xlane.f32.xlu0 %v965
      %v967 = vpop.xlane.xlu0 %966
      %v968 = vadd.f32 %v886, 1e-12
      %v969 = vadd.f32 %v889, 1e-12
      %v970 = vadd.f32 %v892, 1e-12
      %v971 = vadd.f32 %v895, 1e-12
      %v972 = vadd.f32 %v898, 1e-12
      %v973 = vadd.f32 %v901, 1e-12
      %v974 = vadd.f32 %v904, 1e-12
      %v975 = vadd.f32 %v907, 1e-12
      %v976 = vadd.f32 %v910, 1e-12
      %v977 = vadd.f32 %v913, 1e-12
      %v978 = vadd.f32 %v916, 1e-12
      %v979 = vadd.f32 %v919, 1e-12
      %v980 = vadd.f32 %v922, 1e-12
      %v981 = vadd.f32 %v925, 1e-12
      %v982 = vadd.f32 %v928, 1e-12
      %v983 = vadd.f32 %v931, 1e-12
      %v984 = vadd.f32 %v934, 1e-12
      %v985 = vadd.f32 %v937, 1e-12
      %v986 = vadd.f32 %v940, 1e-12
      %v987 = vadd.f32 %v943, 1e-12
      %v988 = vadd.f32 %v946, 1e-12
      %v989 = vadd.f32 %v949, 1e-12
      %v990 = vadd.f32 %v952, 1e-12
      %v991 = vadd.f32 %v955, 1e-12
      %v992 = vadd.f32 %v958, 1e-12
      %v993 = vadd.f32 %v961, 1e-12
      %v994 = vadd.f32 %v964, 1e-12
      %v995 = vadd.f32 %v967, 1e-12
      %v996 = vrsqrt.pop %v968
      %v997 = vrsqrt.pop %v969
      %v998 = vrsqrt.pop %v970
      %v999 = vrsqrt.pop %v971
      %v1000 = vrsqrt.pop %v972
      %v1001 = vrsqrt.pop %v973
      %v1002 = vrsqrt.pop %v974
      %v1003 = vrsqrt.pop %v975
      %v1004 = vrsqrt.pop %v976
      %v1005 = vrsqrt.pop %v977
      %v1006 = vrsqrt.pop %v978
      %v1007 = vrsqrt.pop %v979
      %v1008 = vrsqrt.pop %v980
      %v1009 = vrsqrt.pop %v981
      %v1010 = vrsqrt.pop %v982
      %v1011 = vrsqrt.pop %v983
      %v1012 = vrsqrt.pop %v984
      %v1013 = vrsqrt.pop %v985
      %v1014 = vrsqrt.pop %v986
      %v1015 = vrsqrt.pop %v987
      %v1016 = vrsqrt.pop %v988
      %v1017 = vrsqrt.pop %v989
      %v1018 = vrsqrt.pop %v990
      %v1019 = vrsqrt.pop %v991
      %v1020 = vrsqrt.pop %v992
      %v1021 = vrsqrt.pop %v993
      %v1022 = vrsqrt.pop %v994
      %v1023 = vrsqrt.pop %v995
      %v1024 = vmul.f32 %v459, %v996
      %v1025 = vmul.f32 %v462, %v997
      %v1026 = vmul.f32 %v467, %v998
      %v1027 = vmul.f32 %v470, %v999
      %v1028 = vmul.f32 %v475, %v1000
      %v1029 = vmul.f32 %v478, %v1001
      %v1030 = vmul.f32 %v483, %v1002
      %v1031 = vmul.f32 %v486, %v1003
      %v1032 = vmul.f32 %v491, %v1004
      %v1033 = vmul.f32 %v494, %v1005
      %v1034 = vmul.f32 %v499, %v1006
      %v1035 = vmul.f32 %v502, %v1007
      %v1036 = vmul.f32 %v507, %v1008
      %v1037 = vmul.f32 %v510, %v1009
      %v1038 = vmul.f32 %v515, %v1010
      %v1039 = vmul.f32 %v518, %v1011
      %v1040 = vmul.f32 %v523, %v1012
      %v1041 = vmul.f32 %v526, %v1013
      %v1042 = vmul.f32 %v531, %v1014
      %v1043 = vmul.f32 %v534, %v1015
      %v1044 = vmul.f32 %v539, %v1016
      %v1045 = vmul.f32 %v542, %v1017
      %v1046 = vmul.f32 %v547, %v1018
      %v1047 = vmul.f32 %v550, %v1019
      %v1048 = vmul.f32 %v555, %v1020
      %v1049 = vmul.f32 %v558, %v1021
      %v1050 = vmul.f32 %v563, %v1022
      %v1051 = vmul.f32 %v566, %v1023
      %s1052 = sld [smem:[#allocation2]]
      %v1053 = vstv %s1052
      %v1054 = vmul.f32 %v744, %v1053
      %v1055 = vmul.f32 %v745, %v1053
      %v1056 = vmul.f32 %v746, %v1053
      %v1057 = vmul.f32 %v747, %v1053
      %v1058 = vmul.f32 %v748, %v1053
      %v1059 = vmul.f32 %v749, %v1053
      %v1060 = vmul.f32 %v750, %v1053
      %v1061 = vmul.f32 %v751, %v1053
      %v1062 = vmul.f32 %v752, %v1053
      %v1063 = vmul.f32 %v753, %v1053
      %v1064 = vmul.f32 %v754, %v1053
      %v1065 = vmul.f32 %v755, %v1053
      %v1066 = vmul.f32 %v756, %v1053
      %v1067 = vmul.f32 %v757, %v1053
      %v1068 = vmul.f32 %v758, %v1053
      %v1069 = vmul.f32 %v759, %v1053
      %v1070 = vmul.f32 %v760, %v1053
      %v1071 = vmul.f32 %v761, %v1053
      %v1072 = vmul.f32 %v762, %v1053
      %v1073 = vmul.f32 %v763, %v1053
      %v1074 = vmul.f32 %v764, %v1053
      %v1075 = vmul.f32 %v765, %v1053
      %v1076 = vmul.f32 %v766, %v1053
      %v1077 = vmul.f32 %v767, %v1053
      %v1078 = vmul.f32 %v768, %v1053
      %v1079 = vmul.f32 %v769, %v1053
      %v1080 = vmul.f32 %v770, %v1053
      %v1081 = vmul.f32 %v771, %v1053
      %v1082 = vpack.c.bf16 %v1055, %v1054
      %v1083 = vpack.c.bf16 %v1057, %v1056
      %v1084 = vpack.c.bf16 %v1059, %v1058
      %v1085 = vpack.c.bf16 %v1060, %v1060
      %v1086 = vpack.c.bf16 %v1062, %v1061
      %v1087 = vpack.c.bf16 %v1064, %v1063
      %v1088 = vpack.c.bf16 %v1066, %v1065
      %v1089 = vpack.c.bf16 %v1067, %v1067
      %v1090 = vpack.c.bf16 %v1069, %v1068
      %v1091 = vpack.c.bf16 %v1071, %v1070
      %v1092 = vpack.c.bf16 %v1073, %v1072
      %v1093 = vpack.c.bf16 %v1074, %v1074
      %v1094 = vpack.c.bf16 %v1076, %v1075
      %v1095 = vpack.c.bf16 %v1078, %v1077
      %v1096 = vpack.c.bf16 %v1080, %v1079
      %v1097 = vpack.c.bf16 %v1081, %v1081
      %v1098 = vpack.c.bf16 %v1025, %v1024
      %v1099 = vpack.c.bf16 %v1027, %v1026
      %v1100 = vpack.c.bf16 %v1029, %v1028
      %v1101 = vpack.c.bf16 %v1030, %v1030
      %v1102 = vpack.c.bf16 %v1032, %v1031
      %v1103 = vpack.c.bf16 %v1034, %v1033
      %v1104 = vpack.c.bf16 %v1036, %v1035
      %v1105 = vpack.c.bf16 %v1037, %v1037
      %v1106 = vpack.c.bf16 %v1039, %v1038
      %v1107 = vpack.c.bf16 %v1041, %v1040
      %v1108 = vpack.c.bf16 %v1043, %v1042
      %v1109 = vpack.c.bf16 %v1044, %v1044
      %v1110 = vpack.c.bf16 %v1046, %v1045
      %v1111 = vpack.c.bf16 %v1048, %v1047
      %v1112 = vpack.c.bf16 %v1050, %v1049
      %v1113 = vpack.c.bf16 %v1051, %v1051
      %v1114 = vld [vmem:[%s4] sm:$0xff]
      %v1115 = vld [vmem:[%s4 + $0x8] sm:$0xff]
      %v1116 = vld [vmem:[%s4 + $0x10] sm:$0xff]
      %v1117 = vld [vmem:[%s4 + $0x18] sm:$0xff]
      %v1118 = vld [vmem:[%s4 + $0x20] sm:$0xff]
      %v1119 = vld [vmem:[%s4 + $0x28] sm:$0xff]
      %v1120 = vld [vmem:[%s4 + $0x30] sm:$0xff]
      %1125 = vrot.lane.b32.xlu0 %v1098, 96
      %v1126 = vpop.permute.xlu0 %1125
      %1127 = vrot.lane.b32.xlu0 %v1099, 96
      %v1128 = vpop.permute.xlu0 %1127
      %1129 = vrot.lane.b32.xlu0 %v1100, 96
      %v1130 = vpop.permute.xlu0 %1129
      %1131 = vrot.lane.b32.xlu0 %v1101, 96
      %v1132 = vpop.permute.xlu0 %1131
      %v1134 = vsel %vm381, %v1082, 0
      %v1137 = vsel %vm381, %v1083, 0
      %v1140 = vsel %vm381, %v1084, 0
      %v1143 = vsel %vm381, %v1085, 0
      %v1146 = vsel %vm381, %v1126, 0
      %v1149 = vsel %vm381, %v1128, 0
      %v1152 = vsel %vm381, %v1130, 0
      %v1155 = vsel %vm381, %v1132, 0
      %1157 = vmatprep.subr.bf16.mxu0 0
      %1158 = vmatpush1.bf16.xpose.msra.mxu0 0
      %1159 = vmatprep.subr.bf16.mxu0 0
      %1160 = vmatpush1.bf16.xpose.msra.mxu0 0
      %1161 = vmatprep.subr.bf16.mxu0 0
      %1162 = vmatpush1.bf16.xpose.msra.mxu0 0
      %1163 = vmatprep.subr.bf16.mxu0 0
      %1164 = vmatpush1.bf16.xpose.msra.mxu0 0
      %1165 = vmatprep.subr.bf16.mxu0 0
      %1166 = vmatpush1.bf16.xpose.msra.mxu0 %v1155
      %1167 = vmatprep.subr.bf16.mxu0 0
      %1168 = vmatpush1.bf16.xpose.msra.mxu0 %v1152
      %1169 = vmatprep.subr.bf16.mxu0 0
      %1170 = vmatpush1.bf16.xpose.msra.mxu0 %v1149
      %1171 = vmatprep.subr.bf16.mxu0 0
      %1172 = vmatpush1.bf16.xpose.msra.mxu0 %v1146
      %1173 = vmatprep.subr.bf16.mxu0 0
      %1174 = vmatpush2.bf16.xpose.msra.mxu0 0
      %1175 = vmatprep.subr.bf16.mxu0 0
      %1176 = vmatpush2.bf16.xpose.msra.mxu0 0
      %1177 = vmatprep.subr.bf16.mxu0 0
      %1178 = vmatpush2.bf16.xpose.msra.mxu0 0
      %1179 = vmatprep.subr.bf16.mxu0 0
      %1180 = vmatpush2.bf16.xpose.msra.mxu0 0
      %1181 = vmatprep.subr.bf16.mxu0 0
      %1182 = vmatpush2.bf16.xpose.msra.mxu0 0
      %1183 = vmatprep.subr.bf16.mxu0 0
      %1184 = vmatpush2.bf16.xpose.msra.mxu0 0
      %1185 = vmatprep.subr.bf16.mxu0 0
      %1186 = vmatpush2.bf16.xpose.msra.mxu0 0
      %1187 = vmatprep.subr.bf16.mxu0 0
      %1188 = vmatpush2.bf16.xpose.msra.mxu0 0
      %1189 = vmatprep.mubr.bf16.mxu0 0
      %1190 = vmatmul.mubr.bf16.gmra.mxu0 %v1134
      %v1191 = vpop.f32.mrf.mxu0
      %v1192 = vadd.f32 %v1114, %v1191
      %v1193 = vpop.f32.mrf.mxu0
      %v1194 = vpop.f32.mrf.mxu0
      %v1195 = vadd.f32 %v1115, %v1194
      %v1196 = vpop.f32.mrf.mxu0
      %1197 = vmatprep.mubr.bf16.mxu0 0
      %1198 = vmatmul.mubr.bf16.gmra.mxu0 %v1137
      %v1199 = vpop.f32.mrf.mxu0
      %v1200 = vadd.f32 %v1116, %v1199
      %v1201 = vpop.f32.mrf.mxu0
      %v1202 = vpop.f32.mrf.mxu0
      %v1203 = vadd.f32 %v1117, %v1202
      %v1204 = vpop.f32.mrf.mxu0
      %1205 = vmatprep.mubr.bf16.mxu0 0
      %1206 = vmatmul.mubr.bf16.gmra.mxu0 %v1140
      %v1207 = vpop.f32.mrf.mxu0
      %v1208 = vadd.f32 %v1118, %v1207
      %v1209 = vpop.f32.mrf.mxu0
      %v1210 = vpop.f32.mrf.mxu0
      %v1211 = vadd.f32 %v1119, %v1210
      %v1212 = vpop.f32.mrf.mxu0
      %1213 = vmatprep.mubr.bf16.mxu0 0
      %1214 = vmatmul.mubr.bf16.gmra.mxu0 %v1143
      %v1215 = vpop.f32.mrf.mxu0
      %v1216 = vadd.f32 %v1120, %v1215
      %v1217 = vpop.f32.mrf.mxu0
      %v1218 = vpop.f32.mrf.mxu0
      %v1219 = vpop.f32.mrf.mxu0
      %1220 = vdwg.mxu0
      %1225 = vrot.lane.b32.xlu0 %v1102, 96
      %v1226 = vpop.permute.xlu0 %1225
      %1227 = vrot.lane.b32.xlu0 %v1103, 96
      %v1228 = vpop.permute.xlu0 %1227
      %1229 = vrot.lane.b32.xlu0 %v1104, 96
      %v1230 = vpop.permute.xlu0 %1229
      %1231 = vrot.lane.b32.xlu0 %v1105, 96
      %v1232 = vpop.permute.xlu0 %1231
      %v1234 = vsel %vm381, %v1086, 0
      %v1237 = vsel %vm381, %v1087, 0
      %v1240 = vsel %vm381, %v1088, 0
      %v1243 = vsel %vm381, %v1089, 0
      %v1246 = vsel %vm381, %v1226, 0
      %v1249 = vsel %vm381, %v1228, 0
      %v1252 = vsel %vm381, %v1230, 0
      %v1255 = vsel %vm381, %v1232, 0
      %1257 = vmatprep.subr.bf16.mxu0 0
      %1258 = vmatpush1.bf16.xpose.msra.mxu0 0
      %1259 = vmatprep.subr.bf16.mxu0 0
      %1260 = vmatpush1.bf16.xpose.msra.mxu0 0
      %1261 = vmatprep.subr.bf16.mxu0 0
      %1262 = vmatpush1.bf16.xpose.msra.mxu0 0
      %1263 = vmatprep.subr.bf16.mxu0 0
      %1264 = vmatpush1.bf16.xpose.msra.mxu0 0
      %1265 = vmatprep.subr.bf16.mxu0 0
      %1266 = vmatpush1.bf16.xpose.msra.mxu0 %v1255
      %1267 = vmatprep.subr.bf16.mxu0 0
      %1268 = vmatpush1.bf16.xpose.msra.mxu0 %v1252
      %1269 = vmatprep.subr.bf16.mxu0 0
      %1270 = vmatpush1.bf16.xpose.msra.mxu0 %v1249
      %1271 = vmatprep.subr.bf16.mxu0 0
      %1272 = vmatpush1.bf16.xpose.msra.mxu0 %v1246
      %1273 = vmatprep.subr.bf16.mxu0 0
      %1274 = vmatpush2.bf16.xpose.msra.mxu0 0
      %1275 = vmatprep.subr.bf16.mxu0 0
      %1276 = vmatpush2.bf16.xpose.msra.mxu0 0
      %1277 = vmatprep.subr.bf16.mxu0 0
      %1278 = vmatpush2.bf16.xpose.msra.mxu0 0
      %1279 = vmatprep.subr.bf16.mxu0 0
      %1280 = vmatpush2.bf16.xpose.msra.mxu0 0
      %1281 = vmatprep.subr.bf16.mxu0 0
      %1282 = vmatpush2.bf16.xpose.msra.mxu0 0
      %1283 = vmatprep.subr.bf16.mxu0 0
      %1284 = vmatpush2.bf16.xpose.msra.mxu0 0
      %1285 = vmatprep.subr.bf16.mxu0 0
      %1286 = vmatpush2.bf16.xpose.msra.mxu0 0
      %1287 = vmatprep.subr.bf16.mxu0 0
      %1288 = vmatpush2.bf16.xpose.msra.mxu0 0
      %1289 = vmatprep.mubr.bf16.mxu0 0
      %1290 = vmatmul.mubr.bf16.gmra.mxu0 %v1234
      %v1291 = vpop.f32.mrf.mxu0
      %v1292 = vadd.f32 %v1114, %v1291
      %v1293 = vpop.f32.mrf.mxu0
      %v1294 = vpop.f32.mrf.mxu0
      %v1295 = vadd.f32 %v1115, %v1294
      %v1296 = vpop.f32.mrf.mxu0
      %1297 = vmatprep.mubr.bf16.mxu0 0
      %1298 = vmatmul.mubr.bf16.gmra.mxu0 %v1237
      %v1299 = vpop.f32.mrf.mxu0
      %v1300 = vadd.f32 %v1116, %v1299
      %v1301 = vpop.f32.mrf.mxu0
      %v1302 = vpop.f32.mrf.mxu0
      %v1303 = vadd.f32 %v1117, %v1302
      %v1304 = vpop.f32.mrf.mxu0
      %1305 = vmatprep.mubr.bf16.mxu0 0
      %1306 = vmatmul.mubr.bf16.gmra.mxu0 %v1240
      %v1307 = vpop.f32.mrf.mxu0
      %v1308 = vadd.f32 %v1118, %v1307
      %v1309 = vpop.f32.mrf.mxu0
      %v1310 = vpop.f32.mrf.mxu0
      %v1311 = vadd.f32 %v1119, %v1310
      %v1312 = vpop.f32.mrf.mxu0
      %1313 = vmatprep.mubr.bf16.mxu0 0
      %1314 = vmatmul.mubr.bf16.gmra.mxu0 %v1243
      %v1315 = vpop.f32.mrf.mxu0
      %v1316 = vadd.f32 %v1120, %v1315
      %v1317 = vpop.f32.mrf.mxu0
      %v1318 = vpop.f32.mrf.mxu0
      %v1319 = vpop.f32.mrf.mxu0
      %1320 = vdwg.mxu0
      %1325 = vrot.lane.b32.xlu0 %v1106, 96
      %v1326 = vpop.permute.xlu0 %1325
      %1327 = vrot.lane.b32.xlu0 %v1107, 96
      %v1328 = vpop.permute.xlu0 %1327
      %1329 = vrot.lane.b32.xlu0 %v1108, 96
      %v1330 = vpop.permute.xlu0 %1329
      %1331 = vrot.lane.b32.xlu0 %v1109, 96
      %v1332 = vpop.permute.xlu0 %1331
      %v1334 = vsel %vm381, %v1090, 0
      %v1337 = vsel %vm381, %v1091, 0
      %v1340 = vsel %vm381, %v1092, 0
      %v1343 = vsel %vm381, %v1093, 0
      %v1346 = vsel %vm381, %v1326, 0
      %v1349 = vsel %vm381, %v1328, 0
      %v1352 = vsel %vm381, %v1330, 0
      %v1355 = vsel %vm381, %v1332, 0
      %1357 = vmatprep.subr.bf16.mxu0 0
      %1358 = vmatpush1.bf16.xpose.msra.mxu0 0
      %1359 = vmatprep.subr.bf16.mxu0 0
      %1360 = vmatpush1.bf16.xpose.msra.mxu0 0
      %1361 = vmatprep.subr.bf16.mxu0 0
      %1362 = vmatpush1.bf16.xpose.msra.mxu0 0
      %1363 = vmatprep.subr.bf16.mxu0 0
      %1364 = vmatpush1.bf16.xpose.msra.mxu0 0
      %1365 = vmatprep.subr.bf16.mxu0 0
      %1366 = vmatpush1.bf16.xpose.msra.mxu0 %v1355
      %1367 = vmatprep.subr.bf16.mxu0 0
      %1368 = vmatpush1.bf16.xpose.msra.mxu0 %v1352
      %1369 = vmatprep.subr.bf16.mxu0 0
      %1370 = vmatpush1.bf16.xpose.msra.mxu0 %v1349
      %1371 = vmatprep.subr.bf16.mxu0 0
      %1372 = vmatpush1.bf16.xpose.msra.mxu0 %v1346
      %1373 = vmatprep.subr.bf16.mxu0 0
      %1374 = vmatpush2.bf16.xpose.msra.mxu0 0
      %1375 = vmatprep.subr.bf16.mxu0 0
      %1376 = vmatpush2.bf16.xpose.msra.mxu0 0
      %1377 = vmatprep.subr.bf16.mxu0 0
      %1378 = vmatpush2.bf16.xpose.msra.mxu0 0
      %1379 = vmatprep.subr.bf16.mxu0 0
      %1380 = vmatpush2.bf16.xpose.msra.mxu0 0
      %1381 = vmatprep.subr.bf16.mxu0 0
      %1382 = vmatpush2.bf16.xpose.msra.mxu0 0
      %1383 = vmatprep.subr.bf16.mxu0 0
      %1384 = vmatpush2.bf16.xpose.msra.mxu0 0
      %1385 = vmatprep.subr.bf16.mxu0 0
      %1386 = vmatpush2.bf16.xpose.msra.mxu0 0
      %1387 = vmatprep.subr.bf16.mxu0 0
      %1388 = vmatpush2.bf16.xpose.msra.mxu0 0
      %1389 = vmatprep.mubr.bf16.mxu0 0
      %1390 = vmatmul.mubr.bf16.gmra.mxu0 %v1334
      %v1391 = vpop.f32.mrf.mxu0
      %v1392 = vadd.f32 %v1114, %v1391
      %v1393 = vpop.f32.mrf.mxu0
      %v1394 = vpop.f32.mrf.mxu0
      %v1395 = vadd.f32 %v1115, %v1394
      %v1396 = vpop.f32.mrf.mxu0
      %1397 = vmatprep.mubr.bf16.mxu0 0
      %1398 = vmatmul.mubr.bf16.gmra.mxu0 %v1337
      %v1399 = vpop.f32.mrf.mxu0
      %v1400 = vadd.f32 %v1116, %v1399
      %v1401 = vpop.f32.mrf.mxu0
      %v1402 = vpop.f32.mrf.mxu0
      %v1403 = vadd.f32 %v1117, %v1402
      %v1404 = vpop.f32.mrf.mxu0
      %1405 = vmatprep.mubr.bf16.mxu0 0
      %1406 = vmatmul.mubr.bf16.gmra.mxu0 %v1340
      %v1407 = vpop.f32.mrf.mxu0
      %v1408 = vadd.f32 %v1118, %v1407
      %v1409 = vpop.f32.mrf.mxu0
      %v1410 = vpop.f32.mrf.mxu0
      %v1411 = vadd.f32 %v1119, %v1410
      %v1412 = vpop.f32.mrf.mxu0
      %1413 = vmatprep.mubr.bf16.mxu0 0
      %1414 = vmatmul.mubr.bf16.gmra.mxu0 %v1343
      %v1415 = vpop.f32.mrf.mxu0
      %v1416 = vadd.f32 %v1120, %v1415
      %v1417 = vpop.f32.mrf.mxu0
      %v1418 = vpop.f32.mrf.mxu0
      %v1419 = vpop.f32.mrf.mxu0
      %1420 = vdwg.mxu0
      %1425 = vrot.lane.b32.xlu0 %v1110, 96
      %v1426 = vpop.permute.xlu0 %1425
      %1427 = vrot.lane.b32.xlu0 %v1111, 96
      %v1428 = vpop.permute.xlu0 %1427
      %1429 = vrot.lane.b32.xlu0 %v1112, 96
      %v1430 = vpop.permute.xlu0 %1429
      %1431 = vrot.lane.b32.xlu0 %v1113, 96
      %v1432 = vpop.permute.xlu0 %1431
      %v1434 = vsel %vm381, %v1094, 0
      %v1437 = vsel %vm381, %v1095, 0
      %v1440 = vsel %vm381, %v1096, 0
      %v1443 = vsel %vm381, %v1097, 0
      %v1446 = vsel %vm381, %v1426, 0
      %v1449 = vsel %vm381, %v1428, 0
      %v1452 = vsel %vm381, %v1430, 0
      %v1455 = vsel %vm381, %v1432, 0
      %1457 = vmatprep.subr.bf16.mxu0 0
      %1458 = vmatpush1.bf16.xpose.msra.mxu0 0
      %1459 = vmatprep.subr.bf16.mxu0 0
      %1460 = vmatpush1.bf16.xpose.msra.mxu0 0
      %1461 = vmatprep.subr.bf16.mxu0 0
      %1462 = vmatpush1.bf16.xpose.msra.mxu0 0
      %1463 = vmatprep.subr.bf16.mxu0 0
      %1464 = vmatpush1.bf16.xpose.msra.mxu0 0
      %1465 = vmatprep.subr.bf16.mxu0 0
      %1466 = vmatpush1.bf16.xpose.msra.mxu0 %v1455
      %1467 = vmatprep.subr.bf16.mxu0 0
      %1468 = vmatpush1.bf16.xpose.msra.mxu0 %v1452
      %1469 = vmatprep.subr.bf16.mxu0 0
      %1470 = vmatpush1.bf16.xpose.msra.mxu0 %v1449
      %1471 = vmatprep.subr.bf16.mxu0 0
      %1472 = vmatpush1.bf16.xpose.msra.mxu0 %v1446
      %1473 = vmatprep.subr.bf16.mxu0 0
      %1474 = vmatpush2.bf16.xpose.msra.mxu0 0
      %1475 = vmatprep.subr.bf16.mxu0 0
      %1476 = vmatpush2.bf16.xpose.msra.mxu0 0
      %1477 = vmatprep.subr.bf16.mxu0 0
      %1478 = vmatpush2.bf16.xpose.msra.mxu0 0
      %1479 = vmatprep.subr.bf16.mxu0 0
      %1480 = vmatpush2.bf16.xpose.msra.mxu0 0
      %1481 = vmatprep.subr.bf16.mxu0 0
      %1482 = vmatpush2.bf16.xpose.msra.mxu0 0
      %1483 = vmatprep.subr.bf16.mxu0 0
      %1484 = vmatpush2.bf16.xpose.msra.mxu0 0
      %1485 = vmatprep.subr.bf16.mxu0 0
      %1486 = vmatpush2.bf16.xpose.msra.mxu0 0
      %1487 = vmatprep.subr.bf16.mxu0 0
      %1488 = vmatpush2.bf16.xpose.msra.mxu0 0
      %1489 = vmatprep.mubr.bf16.mxu0 0
      %1490 = vmatmul.mubr.bf16.gmra.mxu0 %v1434
      %v1491 = vpop.f32.mrf.mxu0
      %v1492 = vadd.f32 %v1114, %v1491
      %v1493 = vpop.f32.mrf.mxu0
      %v1494 = vpop.f32.mrf.mxu0
      %v1495 = vadd.f32 %v1115, %v1494
      %v1496 = vpop.f32.mrf.mxu0
      %1497 = vmatprep.mubr.bf16.mxu0 0
      %1498 = vmatmul.mubr.bf16.gmra.mxu0 %v1437
      %v1499 = vpop.f32.mrf.mxu0
      %v1500 = vadd.f32 %v1116, %v1499
      %v1501 = vpop.f32.mrf.mxu0
      %v1502 = vpop.f32.mrf.mxu0
      %v1503 = vadd.f32 %v1117, %v1502
      %v1504 = vpop.f32.mrf.mxu0
      %1505 = vmatprep.mubr.bf16.mxu0 0
      %1506 = vmatmul.mubr.bf16.gmra.mxu0 %v1440
      %v1507 = vpop.f32.mrf.mxu0
      %v1508 = vadd.f32 %v1118, %v1507
      %v1509 = vpop.f32.mrf.mxu0
      %v1510 = vpop.f32.mrf.mxu0
      %v1511 = vadd.f32 %v1119, %v1510
      %v1512 = vpop.f32.mrf.mxu0
      %1513 = vmatprep.mubr.bf16.mxu0 0
      %1514 = vmatmul.mubr.bf16.gmra.mxu0 %v1443
      %v1515 = vpop.f32.mrf.mxu0
      %v1516 = vadd.f32 %v1120, %v1515
      %v1517 = vpop.f32.mrf.mxu0
      %v1518 = vpop.f32.mrf.mxu0
      %v1519 = vpop.f32.mrf.mxu0
      %1520 = vdwg.mxu0
      %v1521 = vadd.f32 %v1192, %v569
      %v1522 = vadd.f32 %v1195, %v570
      %v1523 = vadd.f32 %v1200, %v571
      %v1524 = vadd.f32 %v1203, %v572
      %v1525 = vadd.f32 %v1208, %v573
      %v1526 = vadd.f32 %v1211, %v574
      %v1527 = vadd.f32 %v1216, %v575
      %v1528 = vadd.f32 %v1292, %v569
      %v1529 = vadd.f32 %v1295, %v570
      %v1530 = vadd.f32 %v1300, %v571
      %v1531 = vadd.f32 %v1303, %v572
      %v1532 = vadd.f32 %v1308, %v573
      %v1533 = vadd.f32 %v1311, %v574
      %v1534 = vadd.f32 %v1316, %v575
      %v1535 = vadd.f32 %v1392, %v569
      %v1536 = vadd.f32 %v1395, %v570
      %v1537 = vadd.f32 %v1400, %v571
      %v1538 = vadd.f32 %v1403, %v572
      %v1539 = vadd.f32 %v1408, %v573
      %v1540 = vadd.f32 %v1411, %v574
      %v1541 = vadd.f32 %v1416, %v575
      %v1542 = vadd.f32 %v1492, %v569
      %v1543 = vadd.f32 %v1495, %v570
      %v1544 = vadd.f32 %v1500, %v571
      %v1545 = vadd.f32 %v1503, %v572
      %v1546 = vadd.f32 %v1508, %v573
      %v1547 = vadd.f32 %v1511, %v574
      %v1548 = vadd.f32 %v1516, %v575
      %vm1549 = vcmask 457728
      %v1550 = vsel %vm1549, %v1521, -inf
      %1551 = vmax.xlane.f32.xlu0 %v1550
      %v1552 = vpop.xlane.xlu0 %1551
      %v1553 = vsel %vm1549, %v1522, -inf
      %1554 = vmax.xlane.f32.xlu0 %v1553
      %v1555 = vpop.xlane.xlu0 %1554
      %v1556 = vsel %vm1549, %v1523, -inf
      %1557 = vmax.xlane.f32.xlu0 %v1556
      %v1558 = vpop.xlane.xlu0 %1557
      %v1559 = vsel %vm1549, %v1524, -inf
      %1560 = vmax.xlane.f32.xlu0 %v1559
      %v1561 = vpop.xlane.xlu0 %1560
      %v1562 = vsel %vm1549, %v1525, -inf
      %1563 = vmax.xlane.f32.xlu0 %v1562
      %v1564 = vpop.xlane.xlu0 %1563
      %v1565 = vsel %vm1549, %v1526, -inf
      %1566 = vmax.xlane.f32.xlu0 %v1565
      %v1567 = vpop.xlane.xlu0 %1566
      %v1568 = vsel %vm1549, %v1527, -inf
      %1569 = vmax.xlane.f32.xlu0 %v1568
      %v1570 = vpop.xlane.xlu0 %1569
      %v1571 = vsel %vm1549, %v1528, -inf
      %1572 = vmax.xlane.f32.xlu0 %v1571
      %v1573 = vpop.xlane.xlu0 %1572
      %v1574 = vsel %vm1549, %v1529, -inf
      %1575 = vmax.xlane.f32.xlu0 %v1574
      %v1576 = vpop.xlane.xlu0 %1575
      %v1577 = vsel %vm1549, %v1530, -inf
      %1578 = vmax.xlane.f32.xlu0 %v1577
      %v1579 = vpop.xlane.xlu0 %1578
      %v1580 = vsel %vm1549, %v1531, -inf
      %1581 = vmax.xlane.f32.xlu0 %v1580
      %v1582 = vpop.xlane.xlu0 %1581
      %v1583 = vsel %vm1549, %v1532, -inf
      %1584 = vmax.xlane.f32.xlu0 %v1583
      %v1585 = vpop.xlane.xlu0 %1584
      %v1586 = vsel %vm1549, %v1533, -inf
      %1587 = vmax.xlane.f32.xlu0 %v1586
      %v1588 = vpop.xlane.xlu0 %1587
      %v1589 = vsel %vm1549, %v1534, -inf
      %1590 = vmax.xlane.f32.xlu0 %v1589
      %v1591 = vpop.xlane.xlu0 %1590
      %v1592 = vsel %vm1549, %v1535, -inf
      %1593 = vmax.xlane.f32.xlu0 %v1592
      %v1594 = vpop.xlane.xlu0 %1593
      %v1595 = vsel %vm1549, %v1536, -inf
      %1596 = vmax.xlane.f32.xlu0 %v1595
      %v1597 = vpop.xlane.xlu0 %1596
      %v1598 = vsel %vm1549, %v1537, -inf
      %1599 = vmax.xlane.f32.xlu0 %v1598
      %v1600 = vpop.xlane.xlu0 %1599
      %v1601 = vsel %vm1549, %v1538, -inf
      %1602 = vmax.xlane.f32.xlu0 %v1601
      %v1603 = vpop.xlane.xlu0 %1602
      %v1604 = vsel %vm1549, %v1539, -inf
      %1605 = vmax.xlane.f32.xlu0 %v1604
      %v1606 = vpop.xlane.xlu0 %1605
      %v1607 = vsel %vm1549, %v1540, -inf
      %1608 = vmax.xlane.f32.xlu0 %v1607
      %v1609 = vpop.xlane.xlu0 %1608
      %v1610 = vsel %vm1549, %v1541, -inf
      %1611 = vmax.xlane.f32.xlu0 %v1610
      %v1612 = vpop.xlane.xlu0 %1611
      %v1613 = vsel %vm1549, %v1542, -inf
      %1614 = vmax.xlane.f32.xlu0 %v1613
      %v1615 = vpop.xlane.xlu0 %1614
      %v1616 = vsel %vm1549, %v1543, -inf
      %1617 = vmax.xlane.f32.xlu0 %v1616
      %v1618 = vpop.xlane.xlu0 %1617
      %v1619 = vsel %vm1549, %v1544, -inf
      %1620 = vmax.xlane.f32.xlu0 %v1619
      %v1621 = vpop.xlane.xlu0 %1620
      %v1622 = vsel %vm1549, %v1545, -inf
      %1623 = vmax.xlane.f32.xlu0 %v1622
      %v1624 = vpop.xlane.xlu0 %1623
      %v1625 = vsel %vm1549, %v1546, -inf
      %1626 = vmax.xlane.f32.xlu0 %v1625
      %v1627 = vpop.xlane.xlu0 %1626
      %v1628 = vsel %vm1549, %v1547, -inf
      %1629 = vmax.xlane.f32.xlu0 %v1628
      %v1630 = vpop.xlane.xlu0 %1629
      %v1631 = vsel %vm1549, %v1548, -inf
      %1632 = vmax.xlane.f32.xlu0 %v1631
      %v1633 = vpop.xlane.xlu0 %1632
      %v1634 = vsub.f32 %v1521, %v1552
      %v1635 = vsub.f32 %v1522, %v1555
      %v1636 = vsub.f32 %v1523, %v1558
      %v1637 = vsub.f32 %v1524, %v1561
      %v1638 = vsub.f32 %v1525, %v1564
      %v1639 = vsub.f32 %v1526, %v1567
      %v1640 = vsub.f32 %v1527, %v1570
      %v1641 = vsub.f32 %v1528, %v1573
      %v1642 = vsub.f32 %v1529, %v1576
      %v1643 = vsub.f32 %v1530, %v1579
      %v1644 = vsub.f32 %v1531, %v1582
      %v1645 = vsub.f32 %v1532, %v1585
      %v1646 = vsub.f32 %v1533, %v1588
      %v1647 = vsub.f32 %v1534, %v1591
      %v1648 = vsub.f32 %v1535, %v1594
      %v1649 = vsub.f32 %v1536, %v1597
      %v1650 = vsub.f32 %v1537, %v1600
      %v1651 = vsub.f32 %v1538, %v1603
      %v1652 = vsub.f32 %v1539, %v1606
      %v1653 = vsub.f32 %v1540, %v1609
      %v1654 = vsub.f32 %v1541, %v1612
      %v1655 = vsub.f32 %v1542, %v1615
      %v1656 = vsub.f32 %v1543, %v1618
      %v1657 = vsub.f32 %v1544, %v1621
      %v1658 = vsub.f32 %v1545, %v1624
      %v1659 = vsub.f32 %v1546, %v1627
      %v1660 = vsub.f32 %v1547, %v1630
      %v1661 = vsub.f32 %v1548, %v1633
      %v1662 = vmul.f32 %v1634, 1.442695
      %v1663 = vpow.pop %v1662
      %v1664 = vmul.f32 %v1635, 1.442695
      %v1665 = vpow.pop %v1664
      %v1666 = vmul.f32 %v1636, 1.442695
      %v1667 = vpow.pop %v1666
      %v1668 = vmul.f32 %v1637, 1.442695
      %v1669 = vpow.pop %v1668
      %v1670 = vmul.f32 %v1638, 1.442695
      %v1671 = vpow.pop %v1670
      %v1672 = vmul.f32 %v1639, 1.442695
      %v1673 = vpow.pop %v1672
      %v1674 = vmul.f32 %v1640, 1.442695
      %v1675 = vpow.pop %v1674
      %v1676 = vmul.f32 %v1641, 1.442695
      %v1677 = vpow.pop %v1676
      %v1678 = vmul.f32 %v1642, 1.442695
      %v1679 = vpow.pop %v1678
      %v1680 = vmul.f32 %v1643, 1.442695
      %v1681 = vpow.pop %v1680
      %v1682 = vmul.f32 %v1644, 1.442695
      %v1683 = vpow.pop %v1682
      %v1684 = vmul.f32 %v1645, 1.442695
      %v1685 = vpow.pop %v1684
      %v1686 = vmul.f32 %v1646, 1.442695
      %v1687 = vpow.pop %v1686
      %v1688 = vmul.f32 %v1647, 1.442695
      %v1689 = vpow.pop %v1688
      %v1690 = vmul.f32 %v1648, 1.442695
      %v1691 = vpow.pop %v1690
      %v1692 = vmul.f32 %v1649, 1.442695
      %v1693 = vpow.pop %v1692
      %v1694 = vmul.f32 %v1650, 1.442695
      %v1695 = vpow.pop %v1694
      %v1696 = vmul.f32 %v1651, 1.442695
      %v1697 = vpow.pop %v1696
      %v1698 = vmul.f32 %v1652, 1.442695
      %v1699 = vpow.pop %v1698
      %v1700 = vmul.f32 %v1653, 1.442695
      %v1701 = vpow.pop %v1700
      %v1702 = vmul.f32 %v1654, 1.442695
      %v1703 = vpow.pop %v1702
      %v1704 = vmul.f32 %v1655, 1.442695
      %v1705 = vpow.pop %v1704
      %v1706 = vmul.f32 %v1656, 1.442695
      %v1707 = vpow.pop %v1706
      %v1708 = vmul.f32 %v1657, 1.442695
      %v1709 = vpow.pop %v1708
      %v1710 = vmul.f32 %v1658, 1.442695
      %v1711 = vpow.pop %v1710
      %v1712 = vmul.f32 %v1659, 1.442695
      %v1713 = vpow.pop %v1712
      %v1714 = vmul.f32 %v1660, 1.442695
      %v1715 = vpow.pop %v1714
      %v1716 = vmul.f32 %v1661, 1.442695
      %v1717 = vpow.pop %v1716
      %v1718 = vsel %vm1549, %v1663, 0.0
      %1719 = vadd.xlane.f32.xlu0 %v1718
      %v1720 = vpop.xlane.xlu0 %1719
      %v1721 = vsel %vm1549, %v1665, 0.0
      %1722 = vadd.xlane.f32.xlu0 %v1721
      %v1723 = vpop.xlane.xlu0 %1722
      %v1724 = vsel %vm1549, %v1667, 0.0
      %1725 = vadd.xlane.f32.xlu0 %v1724
      %v1726 = vpop.xlane.xlu0 %1725
      %v1727 = vsel %vm1549, %v1669, 0.0
      %1728 = vadd.xlane.f32.xlu0 %v1727
      %v1729 = vpop.xlane.xlu0 %1728
      %v1730 = vsel %vm1549, %v1671, 0.0
      %1731 = vadd.xlane.f32.xlu0 %v1730
      %v1732 = vpop.xlane.xlu0 %1731
      %v1733 = vsel %vm1549, %v1673, 0.0
      %1734 = vadd.xlane.f32.xlu0 %v1733
      %v1735 = vpop.xlane.xlu0 %1734
      %v1736 = vsel %vm1549, %v1675, 0.0
      %1737 = vadd.xlane.f32.xlu0 %v1736
      %v1738 = vpop.xlane.xlu0 %1737
      %v1739 = vsel %vm1549, %v1677, 0.0
      %1740 = vadd.xlane.f32.xlu0 %v1739
      %v1741 = vpop.xlane.xlu0 %1740
      %v1742 = vsel %vm1549, %v1679, 0.0
      %1743 = vadd.xlane.f32.xlu0 %v1742
      %v1744 = vpop.xlane.xlu0 %1743
      %v1745 = vsel %vm1549, %v1681, 0.0
      %1746 = vadd.xlane.f32.xlu0 %v1745
      %v1747 = vpop.xlane.xlu0 %1746
      %v1748 = vsel %vm1549, %v1683, 0.0
      %1749 = vadd.xlane.f32.xlu0 %v1748
      %v1750 = vpop.xlane.xlu0 %1749
      %v1751 = vsel %vm1549, %v1685, 0.0
      %1752 = vadd.xlane.f32.xlu0 %v1751
      %v1753 = vpop.xlane.xlu0 %1752
      %v1754 = vsel %vm1549, %v1687, 0.0
      %1755 = vadd.xlane.f32.xlu0 %v1754
      %v1756 = vpop.xlane.xlu0 %1755
      %v1757 = vsel %vm1549, %v1689, 0.0
      %1758 = vadd.xlane.f32.xlu0 %v1757
      %v1759 = vpop.xlane.xlu0 %1758
      %v1760 = vsel %vm1549, %v1691, 0.0
      %1761 = vadd.xlane.f32.xlu0 %v1760
      %v1762 = vpop.xlane.xlu0 %1761
      %v1763 = vsel %vm1549, %v1693, 0.0
      %1764 = vadd.xlane.f32.xlu0 %v1763
      %v1765 = vpop.xlane.xlu0 %1764
      %v1766 = vsel %vm1549, %v1695, 0.0
      %1767 = vadd.xlane.f32.xlu0 %v1766
      %v1768 = vpop.xlane.xlu0 %1767
      %v1769 = vsel %vm1549, %v1697, 0.0
      %1770 = vadd.xlane.f32.xlu0 %v1769
      %v1771 = vpop.xlane.xlu0 %1770
      %v1772 = vsel %vm1549, %v1699, 0.0
      %1773 = vadd.xlane.f32.xlu0 %v1772
      %v1774 = vpop.xlane.xlu0 %1773
      %v1775 = vsel %vm1549, %v1701, 0.0
      %1776 = vadd.xlane.f32.xlu0 %v1775
      %v1777 = vpop.xlane.xlu0 %1776
      %v1778 = vsel %vm1549, %v1703, 0.0
      %1779 = vadd.xlane.f32.xlu0 %v1778
      %v1780 = vpop.xlane.xlu0 %1779
      %v1781 = vsel %vm1549, %v1705, 0.0
      %1782 = vadd.xlane.f32.xlu0 %v1781
      %v1783 = vpop.xlane.xlu0 %1782
      %v1784 = vsel %vm1549, %v1707, 0.0
      %1785 = vadd.xlane.f32.xlu0 %v1784
      %v1786 = vpop.xlane.xlu0 %1785
      %v1787 = vsel %vm1549, %v1709, 0.0
      %1788 = vadd.xlane.f32.xlu0 %v1787
      %v1789 = vpop.xlane.xlu0 %1788
      %v1790 = vsel %vm1549, %v1711, 0.0
      %1791 = vadd.xlane.f32.xlu0 %v1790
      %v1792 = vpop.xlane.xlu0 %1791
      %v1793 = vsel %vm1549, %v1713, 0.0
      %1794 = vadd.xlane.f32.xlu0 %v1793
      %v1795 = vpop.xlane.xlu0 %1794
      %v1796 = vsel %vm1549, %v1715, 0.0
      %1797 = vadd.xlane.f32.xlu0 %v1796
      %v1798 = vpop.xlane.xlu0 %1797
      %v1799 = vsel %vm1549, %v1717, 0.0
      %1800 = vadd.xlane.f32.xlu0 %v1799
      %v1801 = vpop.xlane.xlu0 %1800
      %v1802 = vrcp.pop %v1720
      %v1803 = vrcp.pop %v1723
      %v1804 = vrcp.pop %v1726
      %v1805 = vrcp.pop %v1729
      %v1806 = vrcp.pop %v1732
      %v1807 = vrcp.pop %v1735
      %v1808 = vrcp.pop %v1738
      %v1809 = vrcp.pop %v1741
      %v1810 = vrcp.pop %v1744
      %v1811 = vrcp.pop %v1747
      %v1812 = vrcp.pop %v1750
      %v1813 = vrcp.pop %v1753
      %v1814 = vrcp.pop %v1756
      %v1815 = vrcp.pop %v1759
      %v1816 = vrcp.pop %v1762
      %v1817 = vrcp.pop %v1765
      %v1818 = vrcp.pop %v1768
      %v1819 = vrcp.pop %v1771
      %v1820 = vrcp.pop %v1774
      %v1821 = vrcp.pop %v1777
      %v1822 = vrcp.pop %v1780
      %v1823 = vrcp.pop %v1783
      %v1824 = vrcp.pop %v1786
      %v1825 = vrcp.pop %v1789
      %v1826 = vrcp.pop %v1792
      %v1827 = vrcp.pop %v1795
      %v1828 = vrcp.pop %v1798
      %v1829 = vrcp.pop %v1801
      %v1830 = vmul.f32 %v1663, %v1802
      %v1831 = vmul.f32 %v1665, %v1803
      %v1832 = vmul.f32 %v1667, %v1804
      %v1833 = vmul.f32 %v1669, %v1805
      %v1834 = vmul.f32 %v1671, %v1806
      %v1835 = vmul.f32 %v1673, %v1807
      %v1836 = vmul.f32 %v1675, %v1808
      %v1837 = vmul.f32 %v1677, %v1809
      %v1838 = vmul.f32 %v1679, %v1810
      %v1839 = vmul.f32 %v1681, %v1811
      %v1840 = vmul.f32 %v1683, %v1812
      %v1841 = vmul.f32 %v1685, %v1813
      %v1842 = vmul.f32 %v1687, %v1814
      %v1843 = vmul.f32 %v1689, %v1815
      %v1844 = vmul.f32 %v1691, %v1816
      %v1845 = vmul.f32 %v1693, %v1817
      %v1846 = vmul.f32 %v1695, %v1818
      %v1847 = vmul.f32 %v1697, %v1819
      %v1848 = vmul.f32 %v1699, %v1820
      %v1849 = vmul.f32 %v1701, %v1821
      %v1850 = vmul.f32 %v1703, %v1822
      %v1851 = vmul.f32 %v1705, %v1823
      %v1852 = vmul.f32 %v1707, %v1824
      %v1853 = vmul.f32 %v1709, %v1825
      %v1854 = vmul.f32 %v1711, %v1826
      %v1855 = vmul.f32 %v1713, %v1827
      %v1856 = vmul.f32 %v1715, %v1828
      %v1857 = vmul.f32 %v1717, %v1829
      %v1858 = vpack.c.bf16 %v1831, %v1830
      %v1859 = vpack.c.bf16 %v1833, %v1832
      %v1860 = vpack.c.bf16 %v1835, %v1834
      %v1861 = vpack.c.bf16 %v1836, %v1836
      %v1862 = vpack.c.bf16 %v1838, %v1837
      %v1863 = vpack.c.bf16 %v1840, %v1839
      %v1864 = vpack.c.bf16 %v1842, %v1841
      %v1865 = vpack.c.bf16 %v1843, %v1843
      %v1866 = vpack.c.bf16 %v1845, %v1844
      %v1867 = vpack.c.bf16 %v1847, %v1846
      %v1868 = vpack.c.bf16 %v1849, %v1848
      %v1869 = vpack.c.bf16 %v1850, %v1850
      %v1870 = vpack.c.bf16 %v1852, %v1851
      %v1871 = vpack.c.bf16 %v1854, %v1853
      %v1872 = vpack.c.bf16 %v1856, %v1855
      %v1873 = vpack.c.bf16 %v1857, %v1857
      %v1874 = vpack.c.bf16 %v462, %v459
      %v1875 = vpack.c.bf16 %v470, %v467
      %v1876 = vpack.c.bf16 %v478, %v475
      %v1877 = vpack.c.bf16 %v483, %v483
      %v1878 = vpack.c.bf16 %v491, %v486
      %v1879 = vpack.c.bf16 %v499, %v494
      %v1880 = vpack.c.bf16 %v507, %v502
      %v1881 = vpack.c.bf16 %v510, %v510
      %v1882 = vpack.c.bf16 %v518, %v515
      %v1883 = vpack.c.bf16 %v526, %v523
      %v1884 = vpack.c.bf16 %v534, %v531
      %v1885 = vpack.c.bf16 %v539, %v539
      %v1886 = vpack.c.bf16 %v547, %v542
      %v1887 = vpack.c.bf16 %v555, %v550
      %v1888 = vpack.c.bf16 %v563, %v558
      %v1889 = vpack.c.bf16 %v566, %v566
      %1894 = vrot.lane.b32.xlu0 %v1874, 64
      %v1895 = vpop.permute.xlu0 %1894
      %1896 = vrot.lane.b32.xlu0 %v1875, 64
      %v1897 = vpop.permute.xlu0 %1896
      %1898 = vrot.lane.b32.xlu0 %v1876, 64
      %v1899 = vpop.permute.xlu0 %1898
      %1900 = vrot.lane.b32.xlu0 %v1877, 64
      %v1901 = vpop.permute.xlu0 %1900
      %v1906 = vsel %vm1549, %v1858, 0
      %v1909 = vsel %vm1549, %v1859, 0
      %v1912 = vsel %vm1549, %v1860, 0
      %v1915 = vsel %vm1549, %v1861, 0
      %vm1917 = vcmask 1043456
      %v1919 = vsel %vm1917, %v1901, 0
      %1921 = vmatprep.subr.bf16.mxu0 0
      %1922 = vmatpush1.bf16.msra.mxu0 0
      %1923 = vmatprep.subr.bf16.mxu0 0
      %1924 = vmatpush1.bf16.msra.mxu0 0
      %1925 = vmatprep.subr.bf16.mxu0 0
      %1926 = vmatpush1.bf16.msra.mxu0 0
      %1927 = vmatprep.subr.bf16.mxu0 0
      %1928 = vmatpush1.bf16.msra.mxu0 0
      %1929 = vmatprep.subr.bf16.mxu0 0
      %1930 = vmatpush1.bf16.msra.mxu0 %v1919
      %1931 = vmatprep.subr.bf16.mxu0 0
      %1932 = vmatpush1.bf16.msra.mxu0 %v1899
      %1933 = vmatprep.subr.bf16.mxu0 0
      %1934 = vmatpush1.bf16.msra.mxu0 %v1897
      %1935 = vmatprep.subr.bf16.mxu0 0
      %1936 = vmatpush1.bf16.msra.mxu0 %v1895
      %1937 = vmatprep.subr.bf16.mxu0 0
      %1938 = vmatpush2.bf16.msra.mxu0 0
      %1939 = vmatprep.subr.bf16.mxu0 0
      %1940 = vmatpush2.bf16.msra.mxu0 0
      %1941 = vmatprep.subr.bf16.mxu0 0
      %1942 = vmatpush2.bf16.msra.mxu0 0
      %1943 = vmatprep.subr.bf16.mxu0 0
      %1944 = vmatpush2.bf16.msra.mxu0 0
      %1945 = vmatprep.subr.bf16.mxu0 0
      %1946 = vmatpush2.bf16.msra.mxu0 0
      %1947 = vmatprep.subr.bf16.mxu0 0
      %1948 = vmatpush2.bf16.msra.mxu0 0
      %1949 = vmatprep.subr.bf16.mxu0 0
      %1950 = vmatpush2.bf16.msra.mxu0 0
      %1951 = vmatprep.subr.bf16.mxu0 0
      %1952 = vmatpush2.bf16.msra.mxu0 0
      %1953 = vmatprep.mubr.bf16.mxu0 0
      %1954 = vmatmul.mubr.bf16.gmra.mxu0 %v1906
      %v1955 = vpop.f32.mrf.mxu0
      %v1956 = vadd.f32 0.0, %v1955
      %v1957 = vpop.f32.mrf.mxu0
      %v1958 = vpop.f32.mrf.mxu0
      %v1959 = vadd.f32 0.0, %v1958
      %v1960 = vpop.f32.mrf.mxu0
      %1961 = vmatprep.mubr.bf16.mxu0 0
      %1962 = vmatmul.mubr.bf16.gmra.mxu0 %v1909
      %v1963 = vpop.f32.mrf.mxu0
      %v1964 = vadd.f32 0.0, %v1963
      %v1965 = vpop.f32.mrf.mxu0
      %v1966 = vpop.f32.mrf.mxu0
      %v1967 = vadd.f32 0.0, %v1966
      %v1968 = vpop.f32.mrf.mxu0
      %1969 = vmatprep.mubr.bf16.mxu0 0
      %1970 = vmatmul.mubr.bf16.gmra.mxu0 %v1912
      %v1971 = vpop.f32.mrf.mxu0
      %v1972 = vadd.f32 0.0, %v1971
      %v1973 = vpop.f32.mrf.mxu0
      %v1974 = vpop.f32.mrf.mxu0
      %v1975 = vadd.f32 0.0, %v1974
      %v1976 = vpop.f32.mrf.mxu0
      %1977 = vmatprep.mubr.bf16.mxu0 0
      %1978 = vmatmul.mubr.bf16.gmra.mxu0 %v1915
      %v1979 = vpop.f32.mrf.mxu0
      %v1980 = vadd.f32 0.0, %v1979
      %v1981 = vpop.f32.mrf.mxu0
      %v1982 = vpop.f32.mrf.mxu0
      %v1983 = vpop.f32.mrf.mxu0
      %1984 = vdwg.mxu0
      %1989 = vrot.lane.b32.xlu0 %v1878, 64
      %v1990 = vpop.permute.xlu0 %1989
      %1991 = vrot.lane.b32.xlu0 %v1879, 64
      %v1992 = vpop.permute.xlu0 %1991
      %1993 = vrot.lane.b32.xlu0 %v1880, 64
      %v1994 = vpop.permute.xlu0 %1993
      %1995 = vrot.lane.b32.xlu0 %v1881, 64
      %v1996 = vpop.permute.xlu0 %1995
      %v2001 = vsel %vm1549, %v1862, 0
      %v2004 = vsel %vm1549, %v1863, 0
      %v2007 = vsel %vm1549, %v1864, 0
      %v2010 = vsel %vm1549, %v1865, 0
      %v2013 = vsel %vm1917, %v1996, 0
      %2015 = vmatprep.subr.bf16.mxu0 0
      %2016 = vmatpush1.bf16.msra.mxu0 0
      %2017 = vmatprep.subr.bf16.mxu0 0
      %2018 = vmatpush1.bf16.msra.mxu0 0
      %2019 = vmatprep.subr.bf16.mxu0 0
      %2020 = vmatpush1.bf16.msra.mxu0 0
      %2021 = vmatprep.subr.bf16.mxu0 0
      %2022 = vmatpush1.bf16.msra.mxu0 0
      %2023 = vmatprep.subr.bf16.mxu0 0
      %2024 = vmatpush1.bf16.msra.mxu0 %v2013
      %2025 = vmatprep.subr.bf16.mxu0 0
      %2026 = vmatpush1.bf16.msra.mxu0 %v1994
      %2027 = vmatprep.subr.bf16.mxu0 0
      %2028 = vmatpush1.bf16.msra.mxu0 %v1992
      %2029 = vmatprep.subr.bf16.mxu0 0
      %2030 = vmatpush1.bf16.msra.mxu0 %v1990
      %2031 = vmatprep.subr.bf16.mxu0 0
      %2032 = vmatpush2.bf16.msra.mxu0 0
      %2033 = vmatprep.subr.bf16.mxu0 0
      %2034 = vmatpush2.bf16.msra.mxu0 0
      %2035 = vmatprep.subr.bf16.mxu0 0
      %2036 = vmatpush2.bf16.msra.mxu0 0
      %2037 = vmatprep.subr.bf16.mxu0 0
      %2038 = vmatpush2.bf16.msra.mxu0 0
      %2039 = vmatprep.subr.bf16.mxu0 0
      %2040 = vmatpush2.bf16.msra.mxu0 0
      %2041 = vmatprep.subr.bf16.mxu0 0
      %2042 = vmatpush2.bf16.msra.mxu0 0
      %2043 = vmatprep.subr.bf16.mxu0 0
      %2044 = vmatpush2.bf16.msra.mxu0 0
      %2045 = vmatprep.subr.bf16.mxu0 0
      %2046 = vmatpush2.bf16.msra.mxu0 0
      %2047 = vmatprep.mubr.bf16.mxu0 0
      %2048 = vmatmul.mubr.bf16.gmra.mxu0 %v2001
      %v2049 = vpop.f32.mrf.mxu0
      %v2050 = vadd.f32 0.0, %v2049
      %v2051 = vpop.f32.mrf.mxu0
      %v2052 = vpop.f32.mrf.mxu0
      %v2053 = vadd.f32 0.0, %v2052
      %v2054 = vpop.f32.mrf.mxu0
      %2055 = vmatprep.mubr.bf16.mxu0 0
      %2056 = vmatmul.mubr.bf16.gmra.mxu0 %v2004
      %v2057 = vpop.f32.mrf.mxu0
      %v2058 = vadd.f32 0.0, %v2057
      %v2059 = vpop.f32.mrf.mxu0
      %v2060 = vpop.f32.mrf.mxu0
      %v2061 = vadd.f32 0.0, %v2060
      %v2062 = vpop.f32.mrf.mxu0
      %2063 = vmatprep.mubr.bf16.mxu0 0
      %2064 = vmatmul.mubr.bf16.gmra.mxu0 %v2007
      %v2065 = vpop.f32.mrf.mxu0
      %v2066 = vadd.f32 0.0, %v2065
      %v2067 = vpop.f32.mrf.mxu0
      %v2068 = vpop.f32.mrf.mxu0
      %v2069 = vadd.f32 0.0, %v2068
      %v2070 = vpop.f32.mrf.mxu0
      %2071 = vmatprep.mubr.bf16.mxu0 0
      %2072 = vmatmul.mubr.bf16.gmra.mxu0 %v2010
      %v2073 = vpop.f32.mrf.mxu0
      %v2074 = vadd.f32 0.0, %v2073
      %v2075 = vpop.f32.mrf.mxu0
      %v2076 = vpop.f32.mrf.mxu0
      %v2077 = vpop.f32.mrf.mxu0
      %2078 = vdwg.mxu0
      %2083 = vrot.lane.b32.xlu0 %v1882, 64
      %v2084 = vpop.permute.xlu0 %2083
      %2085 = vrot.lane.b32.xlu0 %v1883, 64
      %v2086 = vpop.permute.xlu0 %2085
      %2087 = vrot.lane.b32.xlu0 %v1884, 64
      %v2088 = vpop.permute.xlu0 %2087
      %2089 = vrot.lane.b32.xlu0 %v1885, 64
      %v2090 = vpop.permute.xlu0 %2089
      %v2095 = vsel %vm1549, %v1866, 0
      %v2098 = vsel %vm1549, %v1867, 0
      %v2101 = vsel %vm1549, %v1868, 0
      %v2104 = vsel %vm1549, %v1869, 0
      %v2107 = vsel %vm1917, %v2090, 0
      %2109 = vmatprep.subr.bf16.mxu0 0
      %2110 = vmatpush1.bf16.msra.mxu0 0
      %2111 = vmatprep.subr.bf16.mxu0 0
      %2112 = vmatpush1.bf16.msra.mxu0 0
      %2113 = vmatprep.subr.bf16.mxu0 0
      %2114 = vmatpush1.bf16.msra.mxu0 0
      %2115 = vmatprep.subr.bf16.mxu0 0
      %2116 = vmatpush1.bf16.msra.mxu0 0
      %2117 = vmatprep.subr.bf16.mxu0 0
      %2118 = vmatpush1.bf16.msra.mxu0 %v2107
      %2119 = vmatprep.subr.bf16.mxu0 0
      %2120 = vmatpush1.bf16.msra.mxu0 %v2088
      %2121 = vmatprep.subr.bf16.mxu0 0
      %2122 = vmatpush1.bf16.msra.mxu0 %v2086
      %2123 = vmatprep.subr.bf16.mxu0 0
      %2124 = vmatpush1.bf16.msra.mxu0 %v2084
      %2125 = vmatprep.subr.bf16.mxu0 0
      %2126 = vmatpush2.bf16.msra.mxu0 0
      %2127 = vmatprep.subr.bf16.mxu0 0
      %2128 = vmatpush2.bf16.msra.mxu0 0
      %2129 = vmatprep.subr.bf16.mxu0 0
      %2130 = vmatpush2.bf16.msra.mxu0 0
      %2131 = vmatprep.subr.bf16.mxu0 0
      %2132 = vmatpush2.bf16.msra.mxu0 0
      %2133 = vmatprep.subr.bf16.mxu0 0
      %2134 = vmatpush2.bf16.msra.mxu0 0
      %2135 = vmatprep.subr.bf16.mxu0 0
      %2136 = vmatpush2.bf16.msra.mxu0 0
      %2137 = vmatprep.subr.bf16.mxu0 0
      %2138 = vmatpush2.bf16.msra.mxu0 0
      %2139 = vmatprep.subr.bf16.mxu0 0
      %2140 = vmatpush2.bf16.msra.mxu0 0
      %2141 = vmatprep.mubr.bf16.mxu0 0
      %2142 = vmatmul.mubr.bf16.gmra.mxu0 %v2095
      %v2143 = vpop.f32.mrf.mxu0
      %v2144 = vadd.f32 0.0, %v2143
      %v2145 = vpop.f32.mrf.mxu0
      %v2146 = vpop.f32.mrf.mxu0
      %v2147 = vadd.f32 0.0, %v2146
      %v2148 = vpop.f32.mrf.mxu0
      %2149 = vmatprep.mubr.bf16.mxu0 0
      %2150 = vmatmul.mubr.bf16.gmra.mxu0 %v2098
      %v2151 = vpop.f32.mrf.mxu0
      %v2152 = vadd.f32 0.0, %v2151
      %v2153 = vpop.f32.mrf.mxu0
      %v2154 = vpop.f32.mrf.mxu0
      %v2155 = vadd.f32 0.0, %v2154
      %v2156 = vpop.f32.mrf.mxu0
      %2157 = vmatprep.mubr.bf16.mxu0 0
      %2158 = vmatmul.mubr.bf16.gmra.mxu0 %v2101
      %v2159 = vpop.f32.mrf.mxu0
      %v2160 = vadd.f32 0.0, %v2159
      %v2161 = vpop.f32.mrf.mxu0
      %v2162 = vpop.f32.mrf.mxu0
      %v2163 = vadd.f32 0.0, %v2162
      %v2164 = vpop.f32.mrf.mxu0
      %2165 = vmatprep.mubr.bf16.mxu0 0
      %2166 = vmatmul.mubr.bf16.gmra.mxu0 %v2104
      %v2167 = vpop.f32.mrf.mxu0
      %v2168 = vadd.f32 0.0, %v2167
      %v2169 = vpop.f32.mrf.mxu0
      %v2170 = vpop.f32.mrf.mxu0
      %v2171 = vpop.f32.mrf.mxu0
      %2172 = vdwg.mxu0
      %2177 = vrot.lane.b32.xlu0 %v1886, 64
      %v2178 = vpop.permute.xlu0 %2177
      %2179 = vrot.lane.b32.xlu0 %v1887, 64
      %v2180 = vpop.permute.xlu0 %2179
      %2181 = vrot.lane.b32.xlu0 %v1888, 64
      %v2182 = vpop.permute.xlu0 %2181
      %2183 = vrot.lane.b32.xlu0 %v1889, 64
      %v2184 = vpop.permute.xlu0 %2183
      %v2189 = vsel %vm1549, %v1870, 0
      %v2192 = vsel %vm1549, %v1871, 0
      %v2195 = vsel %vm1549, %v1872, 0
      %v2198 = vsel %vm1549, %v1873, 0
      %v2201 = vsel %vm1917, %v2184, 0
      %2203 = vmatprep.subr.bf16.mxu0 0
      %2204 = vmatpush1.bf16.msra.mxu0 0
      %2205 = vmatprep.subr.bf16.mxu0 0
      %2206 = vmatpush1.bf16.msra.mxu0 0
      %2207 = vmatprep.subr.bf16.mxu0 0
      %2208 = vmatpush1.bf16.msra.mxu0 0
      %2209 = vmatprep.subr.bf16.mxu0 0
      %2210 = vmatpush1.bf16.msra.mxu0 0
      %2211 = vmatprep.subr.bf16.mxu0 0
      %2212 = vmatpush1.bf16.msra.mxu0 %v2201
      %2213 = vmatprep.subr.bf16.mxu0 0
      %2214 = vmatpush1.bf16.msra.mxu0 %v2182
      %2215 = vmatprep.subr.bf16.mxu0 0
      %2216 = vmatpush1.bf16.msra.mxu0 %v2180
      %2217 = vmatprep.subr.bf16.mxu0 0
      %2218 = vmatpush1.bf16.msra.mxu0 %v2178
      %2219 = vmatprep.subr.bf16.mxu0 0
      %2220 = vmatpush2.bf16.msra.mxu0 0
      %2221 = vmatprep.subr.bf16.mxu0 0
      %2222 = vmatpush2.bf16.msra.mxu0 0
      %2223 = vmatprep.subr.bf16.mxu0 0
      %2224 = vmatpush2.bf16.msra.mxu0 0
      %2225 = vmatprep.subr.bf16.mxu0 0
      %2226 = vmatpush2.bf16.msra.mxu0 0
      %2227 = vmatprep.subr.bf16.mxu0 0
      %2228 = vmatpush2.bf16.msra.mxu0 0
      %2229 = vmatprep.subr.bf16.mxu0 0
      %2230 = vmatpush2.bf16.msra.mxu0 0
      %2231 = vmatprep.subr.bf16.mxu0 0
      %2232 = vmatpush2.bf16.msra.mxu0 0
      %2233 = vmatprep.subr.bf16.mxu0 0
      %2234 = vmatpush2.bf16.msra.mxu0 0
      %2235 = vmatprep.mubr.bf16.mxu0 0
      %2236 = vmatmul.mubr.bf16.gmra.mxu0 %v2189
      %v2237 = vpop.f32.mrf.mxu0
      %v2238 = vadd.f32 0.0, %v2237
      %v2239 = vpop.f32.mrf.mxu0
      %v2240 = vpop.f32.mrf.mxu0
      %v2241 = vadd.f32 0.0, %v2240
      %v2242 = vpop.f32.mrf.mxu0
      %2243 = vmatprep.mubr.bf16.mxu0 0
      %2244 = vmatmul.mubr.bf16.gmra.mxu0 %v2192
      %v2245 = vpop.f32.mrf.mxu0
      %v2246 = vadd.f32 0.0, %v2245
      %v2247 = vpop.f32.mrf.mxu0
      %v2248 = vpop.f32.mrf.mxu0
      %v2249 = vadd.f32 0.0, %v2248
      %v2250 = vpop.f32.mrf.mxu0
      %2251 = vmatprep.mubr.bf16.mxu0 0
      %2252 = vmatmul.mubr.bf16.gmra.mxu0 %v2195
      %v2253 = vpop.f32.mrf.mxu0
      %v2254 = vadd.f32 0.0, %v2253
      %v2255 = vpop.f32.mrf.mxu0
      %v2256 = vpop.f32.mrf.mxu0
      %v2257 = vadd.f32 0.0, %v2256
      %v2258 = vpop.f32.mrf.mxu0
      %2259 = vmatprep.mubr.bf16.mxu0 0
      %2260 = vmatmul.mubr.bf16.gmra.mxu0 %v2198
      %v2261 = vpop.f32.mrf.mxu0
      %v2262 = vadd.f32 0.0, %v2261
      %v2263 = vpop.f32.mrf.mxu0
      %v2264 = vpop.f32.mrf.mxu0
      %v2265 = vpop.f32.mrf.mxu0
      %2266 = vdwg.mxu0
      %v2267 = vld [vmem:[%s6] sm:$0xf]
      %v2268 = vld [vmem:[%s6 + $0x4] sm:$0xf]
      %v2269 = vld [vmem:[%s6 + $0x8] sm:$0xf]
      %v2270 = vld [vmem:[%s6 + $0xc] sm:$0xf]
      %v2271 = vpack.c.bf16 %v1959, %v1956
      %v2272 = vpack.c.bf16 %v1967, %v1964
      %v2273 = vpack.c.bf16 %v1975, %v1972
      %v2274 = vpack.c.bf16 %v2050, %v1980
      %v2275 = vpack.c.bf16 %v2058, %v2053
      %v2276 = vpack.c.bf16 %v2066, %v2061
      %v2277 = vpack.c.bf16 %v2074, %v2069
      %v2278 = vpack.c.bf16 %v2147, %v2144
      %v2279 = vpack.c.bf16 %v2155, %v2152
      %v2280 = vpack.c.bf16 %v2163, %v2160
      %v2281 = vpack.c.bf16 %v2238, %v2168
      %v2282 = vpack.c.bf16 %v2246, %v2241
      %v2283 = vpack.c.bf16 %v2254, %v2249
      %v2284 = vpack.c.bf16 %v2262, %v2257
      %v2285 = vld [vmem:[%s7] sm:$0x1]
      %v2287 = vlaneseq
      %v2288 = vshrl.u32 %v2287, 7
      %v2289 = vsub.s32 0, %v2288
      %v2290 = vrot.slane %v2285, %v2289
      %v2296 = vunpack.c.l.b16 %v2267
      %v2297 = vunpack.c.l.b16 %v2268
      %v2298 = vunpack.c.l.b16 %v2269
      %v2299 = vunpack.c.l.b16 %v2270
      %v2300 = vpack.c.b16 %v2297, %v2296
      %v2301 = vpack.c.b16 %v2299, %v2298
      %v2305 = vsel %vm381, %v2271, 0
      %v2308 = vsel %vm381, %v2272, 0
      %v2311 = vsel %vm381, %v2273, 0
      %v2314 = vsel %vm381, %v2274, 0
      %v2317 = vsel %vm381, %v2275, 0
      %v2320 = vsel %vm381, %v2276, 0
      %v2323 = vsel %vm381, %v2277, 0
      %v2326 = vsel %vm381, %v2278, 0
      %v2329 = vsel %vm381, %v2279, 0
      %v2332 = vsel %vm381, %v2280, 0
      %v2335 = vsel %vm381, %v2281, 0
      %v2338 = vsel %vm381, %v2282, 0
      %v2341 = vsel %vm381, %v2283, 0
      %v2344 = vsel %vm381, %v2284, 0
      %2346 = vmatprep.subr.bf16.mxu0 0
      %2347 = vmatpush1.bf16.msra.mxu0 0
      %2348 = vmatprep.subr.bf16.mxu0 0
      %2349 = vmatpush1.bf16.msra.mxu0 0
      %2350 = vmatprep.subr.bf16.mxu0 0
      %2351 = vmatpush1.bf16.msra.mxu0 0
      %2352 = vmatprep.subr.bf16.mxu0 0
      %2353 = vmatpush1.bf16.msra.mxu0 0
      %2354 = vmatprep.subr.bf16.mxu0 0
      %2355 = vmatpush1.bf16.msra.mxu0 0
      %2356 = vmatprep.subr.bf16.mxu0 0
      %2357 = vmatpush1.bf16.msra.mxu0 0
      %2358 = vmatprep.subr.bf16.mxu0 0
      %2359 = vmatpush1.bf16.msra.mxu0 %v2301
      %2360 = vmatprep.subr.bf16.mxu0 0
      %2361 = vmatpush1.bf16.msra.mxu0 %v2300
      %2362 = vmatprep.subr.bf16.mxu0 0
      %2363 = vmatpush2.bf16.msra.mxu0 0
      %2364 = vmatprep.subr.bf16.mxu0 0
      %2365 = vmatpush2.bf16.msra.mxu0 0
      %2366 = vmatprep.subr.bf16.mxu0 0
      %2367 = vmatpush2.bf16.msra.mxu0 0
      %2368 = vmatprep.subr.bf16.mxu0 0
      %2369 = vmatpush2.bf16.msra.mxu0 0
      %2370 = vmatprep.subr.bf16.mxu0 0
      %2371 = vmatpush2.bf16.msra.mxu0 0
      %2372 = vmatprep.subr.bf16.mxu0 0
      %2373 = vmatpush2.bf16.msra.mxu0 0
      %2374 = vmatprep.subr.bf16.mxu0 0
      %2375 = vmatpush2.bf16.msra.mxu0 0
      %2376 = vmatprep.subr.bf16.mxu0 0
      %2377 = vmatpush2.bf16.msra.mxu0 0
      %2378 = vmatprep.mubr.bf16.mxu0 0
      %2379 = vmatmul.mubr.bf16.gmra.mxu0 %v2305
      %v2380 = vpop.f32.mrf.mxu0
      %v2381 = vadd.f32 %v2290, %v2380
      %v2382 = vpop.f32.mrf.mxu0
      %v2383 = vpop.f32.mrf.mxu0
      %v2384 = vadd.f32 %v2290, %v2383
      %v2385 = vpop.f32.mrf.mxu0
      %2386 = vmatprep.mubr.bf16.mxu0 0
      %2387 = vmatmul.mubr.bf16.gmra.mxu0 %v2308
      %v2388 = vpop.f32.mrf.mxu0
      %v2389 = vadd.f32 %v2290, %v2388
      %v2390 = vpop.f32.mrf.mxu0
      %v2391 = vpop.f32.mrf.mxu0
      %v2392 = vadd.f32 %v2290, %v2391
      %v2393 = vpop.f32.mrf.mxu0
      %2394 = vmatprep.mubr.bf16.mxu0 0
      %2395 = vmatmul.mubr.bf16.gmra.mxu0 %v2311
      %v2396 = vpop.f32.mrf.mxu0
      %v2397 = vadd.f32 %v2290, %v2396
      %v2398 = vpop.f32.mrf.mxu0
      %v2399 = vpop.f32.mrf.mxu0
      %v2400 = vadd.f32 %v2290, %v2399
      %v2401 = vpop.f32.mrf.mxu0
      %2402 = vmatprep.mubr.bf16.mxu0 0
      %2403 = vmatmul.mubr.bf16.gmra.mxu0 %v2314
      %v2404 = vpop.f32.mrf.mxu0
      %v2405 = vadd.f32 %v2290, %v2404
      %v2406 = vpop.f32.mrf.mxu0
      %v2407 = vpop.f32.mrf.mxu0
      %v2408 = vadd.f32 %v2290, %v2407
      %v2409 = vpop.f32.mrf.mxu0
      %2410 = vmatprep.mubr.bf16.mxu0 0
      %2411 = vmatmul.mubr.bf16.gmra.mxu0 %v2317
      %v2412 = vpop.f32.mrf.mxu0
      %v2413 = vadd.f32 %v2290, %v2412
      %v2414 = vpop.f32.mrf.mxu0
      %v2415 = vpop.f32.mrf.mxu0
      %v2416 = vadd.f32 %v2290, %v2415
      %v2417 = vpop.f32.mrf.mxu0
      %2418 = vmatprep.mubr.bf16.mxu0 0
      %2419 = vmatmul.mubr.bf16.gmra.mxu0 %v2320
      %v2420 = vpop.f32.mrf.mxu0
      %v2421 = vadd.f32 %v2290, %v2420
      %v2422 = vpop.f32.mrf.mxu0
      %v2423 = vpop.f32.mrf.mxu0
      %v2424 = vadd.f32 %v2290, %v2423
      %v2425 = vpop.f32.mrf.mxu0
      %2426 = vmatprep.mubr.bf16.mxu0 0
      %2427 = vmatmul.mubr.bf16.gmra.mxu0 %v2323
      %v2428 = vpop.f32.mrf.mxu0
      %v2429 = vadd.f32 %v2290, %v2428
      %v2430 = vpop.f32.mrf.mxu0
      %v2431 = vpop.f32.mrf.mxu0
      %v2432 = vadd.f32 %v2290, %v2431
      %v2433 = vpop.f32.mrf.mxu0
      %2434 = vmatprep.mubr.bf16.mxu0 0
      %2435 = vmatmul.mubr.bf16.gmra.mxu0 %v2326
      %v2436 = vpop.f32.mrf.mxu0
      %v2437 = vadd.f32 %v2290, %v2436
      %v2438 = vpop.f32.mrf.mxu0
      %v2439 = vpop.f32.mrf.mxu0
      %v2440 = vadd.f32 %v2290, %v2439
      %v2441 = vpop.f32.mrf.mxu0
      %2442 = vmatprep.mubr.bf16.mxu0 0
      %2443 = vmatmul.mubr.bf16.gmra.mxu0 %v2329
      %v2444 = vpop.f32.mrf.mxu0
      %v2445 = vadd.f32 %v2290, %v2444
      %v2446 = vpop.f32.mrf.mxu0
      %v2447 = vpop.f32.mrf.mxu0
      %v2448 = vadd.f32 %v2290, %v2447
      %v2449 = vpop.f32.mrf.mxu0
      %2450 = vmatprep.mubr.bf16.mxu0 0
      %2451 = vmatmul.mubr.bf16.gmra.mxu0 %v2332
      %v2452 = vpop.f32.mrf.mxu0
      %v2453 = vadd.f32 %v2290, %v2452
      %v2454 = vpop.f32.mrf.mxu0
      %v2455 = vpop.f32.mrf.mxu0
      %v2456 = vadd.f32 %v2290, %v2455
      %v2457 = vpop.f32.mrf.mxu0
      %2458 = vmatprep.mubr.bf16.mxu0 0
      %2459 = vmatmul.mubr.bf16.gmra.mxu0 %v2335
      %v2460 = vpop.f32.mrf.mxu0
      %v2461 = vadd.f32 %v2290, %v2460
      %v2462 = vpop.f32.mrf.mxu0
      %v2463 = vpop.f32.mrf.mxu0
      %v2464 = vadd.f32 %v2290, %v2463
      %v2465 = vpop.f32.mrf.mxu0
      %2466 = vmatprep.mubr.bf16.mxu0 0
      %2467 = vmatmul.mubr.bf16.gmra.mxu0 %v2338
      %v2468 = vpop.f32.mrf.mxu0
      %v2469 = vadd.f32 %v2290, %v2468
      %v2470 = vpop.f32.mrf.mxu0
      %v2471 = vpop.f32.mrf.mxu0
      %v2472 = vadd.f32 %v2290, %v2471
      %v2473 = vpop.f32.mrf.mxu0
      %2474 = vmatprep.mubr.bf16.mxu0 0
      %2475 = vmatmul.mubr.bf16.gmra.mxu0 %v2341
      %v2476 = vpop.f32.mrf.mxu0
      %v2477 = vadd.f32 %v2290, %v2476
      %v2478 = vpop.f32.mrf.mxu0
      %v2479 = vpop.f32.mrf.mxu0
      %v2480 = vadd.f32 %v2290, %v2479
      %v2481 = vpop.f32.mrf.mxu0
      %2482 = vmatprep.mubr.bf16.mxu0 0
      %2483 = vmatmul.mubr.bf16.gmra.mxu0 %v2344
      %v2484 = vpop.f32.mrf.mxu0
      %v2485 = vadd.f32 %v2290, %v2484
      %v2486 = vpop.f32.mrf.mxu0
      %v2487 = vpop.f32.mrf.mxu0
      %v2488 = vadd.f32 %v2290, %v2487
      %v2489 = vpop.f32.mrf.mxu0
      %2490 = vdwg.mxu0
      %2491 = vst.msk [vmem:[%s313] sm:$0xff] %vm381, %v2381
      %2492 = vst.msk [vmem:[%s313 + $0x8] sm:$0xff] %vm381, %v2384
      %2493 = vst.msk [vmem:[%s313 + $0x10] sm:$0xff] %vm381, %v2389
      %2494 = vst.msk [vmem:[%s313 + $0x18] sm:$0xff] %vm381, %v2392
      %2495 = vst.msk [vmem:[%s313 + $0x20] sm:$0xff] %vm381, %v2397
      %2496 = vst.msk [vmem:[%s313 + $0x28] sm:$0xff] %vm381, %v2400
      %2497 = vst.msk [vmem:[%s313 + $0x30] sm:$0xff] %vm381, %v2405
      %2498 = vst.msk [vmem:[%s313 + $0x38] sm:$0xff] %vm381, %v2408
      %2499 = vst.msk [vmem:[%s313 + $0x40] sm:$0xff] %vm381, %v2413
      %2500 = vst.msk [vmem:[%s313 + $0x48] sm:$0xff] %vm381, %v2416
      %2501 = vst.msk [vmem:[%s313 + $0x50] sm:$0xff] %vm381, %v2421
      %2502 = vst.msk [vmem:[%s313 + $0x58] sm:$0xff] %vm381, %v2424
      %2503 = vst.msk [vmem:[%s313 + $0x60] sm:$0xff] %vm381, %v2429
      %2504 = vst.msk [vmem:[%s313 + $0x68] sm:$0xff] %vm381, %v2432
      %2505 = vst.msk [vmem:[%s313 + $0x70] sm:$0xff] %vm381, %v2437
      %2506 = vst.msk [vmem:[%s313 + $0x78] sm:$0xff] %vm381, %v2440
      %2507 = vst.msk [vmem:[%s313 + $0x80] sm:$0xff] %vm381, %v2445
      %2508 = vst.msk [vmem:[%s313 + $0x88] sm:$0xff] %vm381, %v2448
      %2509 = vst.msk [vmem:[%s313 + $0x90] sm:$0xff] %vm381, %v2453
      %2510 = vst.msk [vmem:[%s313 + $0x98] sm:$0xff] %vm381, %v2456
      %2511 = vst.msk [vmem:[%s313 + $0xa0] sm:$0xff] %vm381, %v2461
      %2512 = vst.msk [vmem:[%s313 + $0xa8] sm:$0xff] %vm381, %v2464
      %2513 = vst.msk [vmem:[%s313 + $0xb0] sm:$0xff] %vm381, %v2469
      %2514 = vst.msk [vmem:[%s313 + $0xb8] sm:$0xff] %vm381, %v2472
      %2515 = vst.msk [vmem:[%s313 + $0xc0] sm:$0xff] %vm381, %v2477
      %2516 = vst.msk [vmem:[%s313 + $0xc8] sm:$0xff] %vm381, %v2480
      %2517 = vst.msk [vmem:[%s313 + $0xd0] sm:$0xff] %vm381, %v2485
      %2518 = vst.msk [vmem:[%s313 + $0xd8] sm:$0xff] %vm381, %v2488
      %s2519 = smul.u32 4, %s20
      %p2520 = scmp.lt.s32.totalorder %s2519, 7
      %s2521 = scalar_select %p2520, %s2519, 7
      %s2522 = smul.addr %s2521, 7
      %s2523 = smul.addr %s2522, 8
      %s2524 = scalar_lea.vmem %s8, %s2523
      // Predicated region
      $region53: #{st2cspa_forward.5} parent=51 // pred_check
        %p2525 = pneg %p211
      $region54: #{st2cspa_forward.5} parent=51 // pred_check_branch
        %2527 = sbr.rel (%p2525) target = $region56
      $region55: #{st2cspa_forward.5} parent=51 // pred_region
        %s2528 = smul.u32 4, %s20
      $region56: #{st2cspa_forward.5} parent=51 // pred_fallthru
        _
    $region52: #{st2cspa_forward.5} parent=5 // pred_fallthru
      _
    %p2529 = scmp.le.s32.totalorder 2, %s15
    // Predicated region
    $region57: #{st2cspa_forward.5} parent=5 // pred_check
      %p2530 = pneg %p2529
    $region58: #{st2cspa_forward.5} parent=5 // pred_check_branch
      %2532 = sbr.rel (%p2530) target = $region60
    $region59: #{st2cspa_forward.5} parent=5 // pred_region
      %s2533 = ssub.s32 %s15, 2
      // Predicated region
      $region61: #{st2cspa_forward.5} parent=59 // pred_check
        %p2534 = pneg %p217
      $region62: #{st2cspa_forward.5} parent=59 // pred_check_branch
        %2536 = sbr.rel (%p2534) target = $region64
      $region63: #{st2cspa_forward.5} parent=59 // pred_region
        %s2537 = smul.u32 4, %s21
        %p2538 = scmp.lt.s32.totalorder %s2537, 7
        %s2539 = scalar_select %p2538, %s2537, 7
        %s2540 = smul.addr %s2539, 7
        %s2541 = smul.addr %s2540, 8
        %s2542 = scalar_lea.vmem %s8, %s2541
      $region64: #{st2cspa_forward.5} parent=59 // pred_fallthru
        _
    $region60: #{st2cspa_forward.5} parent=5 // pred_fallthru
      _
  $region6: #{st2cspa_forward.5} parent=0 // loop_footer
    %s19 = sadd.s32 1, %s15
  $region7: #{st2cspa_forward.5} parent=0 // loop_footer_branch
    %14 = sbr.rel target = $region3
  $region8: #{st2cspa_forward.5} parent=0 // loop_exit
    _

// kernel: st2cspa_forward.7
$region0: #{st2cspa_forward.7}
  #allocation0 [shape = 'u32[]', space=smem, size = 0x4, offset = 0x4, fixed_abs, tag = 'smem constant byte address 0x4 - core index']
  #allocation1 [shape = 'u32[144,128]{1,0:T(1,128)}', space=vmem, size = 0x12000, scoped, tag = 'internal scratch']
  %s0 = inlined_call_operand.vmem [shape: f32[512,32], index: 0, kind: input, shape index: {}]
  %s1 = inlined_call_operand.vmem [shape: f32[512,32], index: 1, kind: input, shape index: {}]
  %s2 = inlined_call_operand.vmem [shape: bf16[32,64], index: 2, kind: input, shape index: {}]
  %s3 = inlined_call_operand.vmem [shape: bf16[32,64], index: 3, kind: input, shape index: {}]
  %s4 = inlined_call_operand.vmem [shape: f32[1,64], index: 4, kind: input, shape index: {}]
  %s5 = inlined_call_operand.vmem [shape: f32[512,64], index: 5, kind: output, shape index: {}]
  %s6 = sld [smem:[#allocation0]]
  $region30: #{st2cspa_forward.7} parent=0
    _
  %s8 = ssub.s32 1, %s6
  %s9 = scalar_select 0, %s8, %s6
  // Predicated region
  $region2: #{st2cspa_forward.7} parent=0 // pred_check
    _
  $region3: #{st2cspa_forward.7} parent=0 // pred_check_branch
    %11 = sbr.rel (0) target = $region5
  $region4: #{st2cspa_forward.7} parent=0 // pred_region
    _
  $region5: #{st2cspa_forward.7} parent=0 // pred_fallthru
    _
  // Predicated region
  $region6: #{st2cspa_forward.7} parent=0 // pred_check
    _
  $region7: #{st2cspa_forward.7} parent=0 // pred_check_branch
    %13 = sbr.rel (0) target = $region9
  $region8: #{st2cspa_forward.7} parent=0 // pred_region
    _
  $region9: #{st2cspa_forward.7} parent=0 // pred_fallthru
    _
  // Predicated region
  $region10: #{st2cspa_forward.7} parent=0 // pred_check
    _
  $region11: #{st2cspa_forward.7} parent=0 // pred_check_branch
    %15 = sbr.rel (0) target = $region13
  $region12: #{st2cspa_forward.7} parent=0 // pred_region
    _
  $region13: #{st2cspa_forward.7} parent=0 // pred_fallthru
    _
  // Predicated region
  $region14: #{st2cspa_forward.7} parent=0 // pred_check
    _
  $region15: #{st2cspa_forward.7} parent=0 // pred_check_branch
    %17 = sbr.rel (0) target = $region17
  $region16: #{st2cspa_forward.7} parent=0 // pred_region
    _
  $region17: #{st2cspa_forward.7} parent=0 // pred_fallthru
    _
  // Predicated region
  $region18: #{st2cspa_forward.7} parent=0 // pred_check
    _
  $region19: #{st2cspa_forward.7} parent=0 // pred_check_branch
    %19 = sbr.rel (0) target = $region21
  $region20: #{st2cspa_forward.7} parent=0 // pred_region
    _
  $region21: #{st2cspa_forward.7} parent=0 // pred_fallthru
    _
  %v21 = vld [vmem:[%s0] sm:$0xff]
  %v22 = vld [vmem:[%s0 + $0x8] sm:$0xff]
  %v23 = vld [vmem:[%s0 + $0x10] sm:$0xff]
  %v24 = vld [vmem:[%s0 + $0x18] sm:$0xff]
  %v25 = vld [vmem:[%s0 + $0x20] sm:$0xff]
  %v26 = vld [vmem:[%s0 + $0x28] sm:$0xff]
  %v27 = vld [vmem:[%s0 + $0x30] sm:$0xff]
  %v28 = vld [vmem:[%s0 + $0x38] sm:$0xff]
  %v29 = vld [vmem:[%s0 + $0x40] sm:$0xff]
  %v30 = vld [vmem:[%s0 + $0x48] sm:$0xff]
  %v31 = vld [vmem:[%s0 + $0x50] sm:$0xff]
  %v32 = vld [vmem:[%s0 + $0x58] sm:$0xff]
  %v33 = vld [vmem:[%s0 + $0x60] sm:$0xff]
  %v34 = vld [vmem:[%s0 + $0x68] sm:$0xff]
  %v35 = vld [vmem:[%s0 + $0x70] sm:$0xff]
  %v36 = vld [vmem:[%s0 + $0x78] sm:$0xff]
  %v37 = vld [vmem:[%s0 + $0x80] sm:$0xff]
  %v38 = vld [vmem:[%s0 + $0x88] sm:$0xff]
  %v39 = vld [vmem:[%s0 + $0x90] sm:$0xff]
  %v40 = vld [vmem:[%s0 + $0x98] sm:$0xff]
  %v41 = vld [vmem:[%s0 + $0xa0] sm:$0xff]
  %v42 = vld [vmem:[%s0 + $0xa8] sm:$0xff]
  %v43 = vld [vmem:[%s0 + $0xb0] sm:$0xff]
  %v44 = vld [vmem:[%s0 + $0xb8] sm:$0xff]
  %v45 = vld [vmem:[%s0 + $0xc0] sm:$0xff]
  %v46 = vld [vmem:[%s0 + $0xc8] sm:$0xff]
  %v47 = vld [vmem:[%s0 + $0xd0] sm:$0xff]
  %v48 = vld [vmem:[%s0 + $0xd8] sm:$0xff]
  %v49 = vld [vmem:[%s0 + $0xe0] sm:$0xff]
  %v50 = vld [vmem:[%s0 + $0xe8] sm:$0xff]
  %v51 = vld [vmem:[%s0 + $0xf0] sm:$0xff]
  %v52 = vld [vmem:[%s0 + $0xf8] sm:$0xff]
  %v53 = vld [vmem:[%s0 + $0x100] sm:$0xff]
  %v54 = vld [vmem:[%s0 + $0x108] sm:$0xff]
  %v55 = vld [vmem:[%s0 + $0x110] sm:$0xff]
  %v56 = vld [vmem:[%s0 + $0x118] sm:$0xff]
  %v57 = vld [vmem:[%s0 + $0x120] sm:$0xff]
  %v58 = vld [vmem:[%s0 + $0x128] sm:$0xff]
  %v59 = vld [vmem:[%s0 + $0x130] sm:$0xff]
  %v60 = vld [vmem:[%s0 + $0x138] sm:$0xff]
  %v61 = vld [vmem:[%s0 + $0x140] sm:$0xff]
  %v62 = vld [vmem:[%s0 + $0x148] sm:$0xff]
  %v63 = vld [vmem:[%s0 + $0x150] sm:$0xff]
  %v64 = vld [vmem:[%s0 + $0x158] sm:$0xff]
  %v65 = vld [vmem:[%s0 + $0x160] sm:$0xff]
  %v66 = vld [vmem:[%s0 + $0x168] sm:$0xff]
  %v67 = vld [vmem:[%s0 + $0x170] sm:$0xff]
  %v68 = vld [vmem:[%s0 + $0x178] sm:$0xff]
  %v69 = vld [vmem:[%s0 + $0x180] sm:$0xff]
  %v70 = vld [vmem:[%s0 + $0x188] sm:$0xff]
  %v71 = vld [vmem:[%s0 + $0x190] sm:$0xff]
  %v72 = vld [vmem:[%s0 + $0x198] sm:$0xff]
  %v73 = vld [vmem:[%s0 + $0x1a0] sm:$0xff]
  %v74 = vld [vmem:[%s0 + $0x1a8] sm:$0xff]
  %v75 = vld [vmem:[%s0 + $0x1b0] sm:$0xff]
  %v76 = vld [vmem:[%s0 + $0x1b8] sm:$0xff]
  %v77 = vld [vmem:[%s0 + $0x1c0] sm:$0xff]
  %v78 = vld [vmem:[%s0 + $0x1c8] sm:$0xff]
  %v79 = vld [vmem:[%s0 + $0x1d0] sm:$0xff]
  %v80 = vld [vmem:[%s0 + $0x1d8] sm:$0xff]
  %v81 = vld [vmem:[%s0 + $0x1e0] sm:$0xff]
  %v82 = vld [vmem:[%s0 + $0x1e8] sm:$0xff]
  %v83 = vld [vmem:[%s0 + $0x1f0] sm:$0xff]
  %v84 = vld [vmem:[%s0 + $0x1f8] sm:$0xff]
  %v85 = vld [vmem:[%s2] sm:$0xf]
  %v86 = vld [vmem:[%s2 + $0x4] sm:$0xf]
  %v87 = vld [vmem:[%s2 + $0x8] sm:$0xf]
  %v88 = vld [vmem:[%s2 + $0xc] sm:$0xf]
  %v89 = vpack.c.bf16 %v22, %v21
  %v90 = vpack.c.bf16 %v24, %v23
  %v91 = vpack.c.bf16 %v26, %v25
  %v92 = vpack.c.bf16 %v28, %v27
  %v93 = vpack.c.bf16 %v30, %v29
  %v94 = vpack.c.bf16 %v32, %v31
  %v95 = vpack.c.bf16 %v34, %v33
  %v96 = vpack.c.bf16 %v36, %v35
  %v97 = vpack.c.bf16 %v38, %v37
  %v98 = vpack.c.bf16 %v40, %v39
  %v99 = vpack.c.bf16 %v42, %v41
  %v100 = vpack.c.bf16 %v44, %v43
  %v101 = vpack.c.bf16 %v46, %v45
  %v102 = vpack.c.bf16 %v48, %v47
  %v103 = vpack.c.bf16 %v50, %v49
  %v104 = vpack.c.bf16 %v52, %v51
  %v105 = vpack.c.bf16 %v54, %v53
  %v106 = vpack.c.bf16 %v56, %v55
  %v107 = vpack.c.bf16 %v58, %v57
  %v108 = vpack.c.bf16 %v60, %v59
  %v109 = vpack.c.bf16 %v62, %v61
  %v110 = vpack.c.bf16 %v64, %v63
  %v111 = vpack.c.bf16 %v66, %v65
  %v112 = vpack.c.bf16 %v68, %v67
  %v113 = vpack.c.bf16 %v70, %v69
  %v114 = vpack.c.bf16 %v72, %v71
  %v115 = vpack.c.bf16 %v74, %v73
  %v116 = vpack.c.bf16 %v76, %v75
  %v117 = vpack.c.bf16 %v78, %v77
  %v118 = vpack.c.bf16 %v80, %v79
  %v119 = vpack.c.bf16 %v82, %v81
  %v120 = vpack.c.bf16 %v84, %v83
  %v121 = vld [vmem:[%s1] sm:$0xff]
  %v122 = vld [vmem:[%s1 + $0x8] sm:$0xff]
  %v123 = vld [vmem:[%s1 + $0x10] sm:$0xff]
  %v124 = vld [vmem:[%s1 + $0x18] sm:$0xff]
  %v125 = vld [vmem:[%s1 + $0x20] sm:$0xff]
  %v126 = vld [vmem:[%s1 + $0x28] sm:$0xff]
  %v127 = vld [vmem:[%s1 + $0x30] sm:$0xff]
  %v128 = vld [vmem:[%s1 + $0x38] sm:$0xff]
  %v129 = vld [vmem:[%s1 + $0x40] sm:$0xff]
  %v130 = vld [vmem:[%s1 + $0x48] sm:$0xff]
  %v131 = vld [vmem:[%s1 + $0x50] sm:$0xff]
  %v132 = vld [vmem:[%s1 + $0x58] sm:$0xff]
  %v133 = vld [vmem:[%s1 + $0x60] sm:$0xff]
  %v134 = vld [vmem:[%s1 + $0x68] sm:$0xff]
  %v135 = vld [vmem:[%s1 + $0x70] sm:$0xff]
  %v136 = vld [vmem:[%s1 + $0x78] sm:$0xff]
  %v137 = vld [vmem:[%s1 + $0x80] sm:$0xff]
  %v138 = vld [vmem:[%s1 + $0x88] sm:$0xff]
  %v139 = vld [vmem:[%s1 + $0x90] sm:$0xff]
  %v140 = vld [vmem:[%s1 + $0x98] sm:$0xff]
  %v141 = vld [vmem:[%s1 + $0xa0] sm:$0xff]
  %v142 = vld [vmem:[%s1 + $0xa8] sm:$0xff]
  %v143 = vld [vmem:[%s1 + $0xb0] sm:$0xff]
  %v144 = vld [vmem:[%s1 + $0xb8] sm:$0xff]
  %v145 = vld [vmem:[%s1 + $0xc0] sm:$0xff]
  %v146 = vld [vmem:[%s1 + $0xc8] sm:$0xff]
  %v147 = vld [vmem:[%s1 + $0xd0] sm:$0xff]
  %v148 = vld [vmem:[%s1 + $0xd8] sm:$0xff]
  %v149 = vld [vmem:[%s1 + $0xe0] sm:$0xff]
  %v150 = vld [vmem:[%s1 + $0xe8] sm:$0xff]
  %v151 = vld [vmem:[%s1 + $0xf0] sm:$0xff]
  %v152 = vld [vmem:[%s1 + $0xf8] sm:$0xff]
  %v153 = vld [vmem:[%s1 + $0x100] sm:$0xff]
  %v154 = vld [vmem:[%s1 + $0x108] sm:$0xff]
  %v155 = vld [vmem:[%s1 + $0x110] sm:$0xff]
  %v156 = vld [vmem:[%s1 + $0x118] sm:$0xff]
  %v157 = vld [vmem:[%s1 + $0x120] sm:$0xff]
  %v158 = vld [vmem:[%s1 + $0x128] sm:$0xff]
  %v159 = vld [vmem:[%s1 + $0x130] sm:$0xff]
  %v160 = vld [vmem:[%s1 + $0x138] sm:$0xff]
  %v161 = vld [vmem:[%s1 + $0x140] sm:$0xff]
  %v162 = vld [vmem:[%s1 + $0x148] sm:$0xff]
  %v163 = vld [vmem:[%s1 + $0x150] sm:$0xff]
  %v164 = vld [vmem:[%s1 + $0x158] sm:$0xff]
  %v165 = vld [vmem:[%s1 + $0x160] sm:$0xff]
  %v166 = vld [vmem:[%s1 + $0x168] sm:$0xff]
  %v167 = vld [vmem:[%s1 + $0x170] sm:$0xff]
  %v168 = vld [vmem:[%s1 + $0x178] sm:$0xff]
  %v169 = vld [vmem:[%s1 + $0x180] sm:$0xff]
  %v170 = vld [vmem:[%s1 + $0x188] sm:$0xff]
  %v171 = vld [vmem:[%s1 + $0x190] sm:$0xff]
  %v172 = vld [vmem:[%s1 + $0x198] sm:$0xff]
  %v173 = vld [vmem:[%s1 + $0x1a0] sm:$0xff]
  %v174 = vld [vmem:[%s1 + $0x1a8] sm:$0xff]
  %v175 = vld [vmem:[%s1 + $0x1b0] sm:$0xff]
  %v176 = vld [vmem:[%s1 + $0x1b8] sm:$0xff]
  %v177 = vld [vmem:[%s1 + $0x1c0] sm:$0xff]
  %v178 = vld [vmem:[%s1 + $0x1c8] sm:$0xff]
  %v179 = vld [vmem:[%s1 + $0x1d0] sm:$0xff]
  %v180 = vld [vmem:[%s1 + $0x1d8] sm:$0xff]
  %v181 = vld [vmem:[%s1 + $0x1e0] sm:$0xff]
  %v182 = vld [vmem:[%s1 + $0x1e8] sm:$0xff]
  %v183 = vld [vmem:[%s1 + $0x1f0] sm:$0xff]
  %v184 = vld [vmem:[%s1 + $0x1f8] sm:$0xff]
  %v185 = vld [vmem:[%s3] sm:$0xf]
  %v186 = vld [vmem:[%s3 + $0x4] sm:$0xf]
  %v187 = vld [vmem:[%s3 + $0x8] sm:$0xf]
  %v188 = vld [vmem:[%s3 + $0xc] sm:$0xf]
  %v189 = vpack.c.bf16 %v122, %v121
  %v190 = vpack.c.bf16 %v124, %v123
  %v191 = vpack.c.bf16 %v126, %v125
  %v192 = vpack.c.bf16 %v128, %v127
  %v193 = vpack.c.bf16 %v130, %v129
  %v194 = vpack.c.bf16 %v132, %v131
  %v195 = vpack.c.bf16 %v134, %v133
  %v196 = vpack.c.bf16 %v136, %v135
  %v197 = vpack.c.bf16 %v138, %v137
  %v198 = vpack.c.bf16 %v140, %v139
  %v199 = vpack.c.bf16 %v142, %v141
  %v200 = vpack.c.bf16 %v144, %v143
  %v201 = vpack.c.bf16 %v146, %v145
  %v202 = vpack.c.bf16 %v148, %v147
  %v203 = vpack.c.bf16 %v150, %v149
  %v204 = vpack.c.bf16 %v152, %v151
  %v205 = vpack.c.bf16 %v154, %v153
  %v206 = vpack.c.bf16 %v156, %v155
  %v207 = vpack.c.bf16 %v158, %v157
  %v208 = vpack.c.bf16 %v160, %v159
  %v209 = vpack.c.bf16 %v162, %v161
  %v210 = vpack.c.bf16 %v164, %v163
  %v211 = vpack.c.bf16 %v166, %v165
  %v212 = vpack.c.bf16 %v168, %v167
  %v213 = vpack.c.bf16 %v170, %v169
  %v214 = vpack.c.bf16 %v172, %v171
  %v215 = vpack.c.bf16 %v174, %v173
  %v216 = vpack.c.bf16 %v176, %v175
  %v217 = vpack.c.bf16 %v178, %v177
  %v218 = vpack.c.bf16 %v180, %v179
  %v219 = vpack.c.bf16 %v182, %v181
  %v220 = vpack.c.bf16 %v184, %v183
  %v225 = vunpack.c.l.b16 %v185
  %v226 = vunpack.c.l.b16 %v186
  %v227 = vunpack.c.l.b16 %v187
  %v228 = vunpack.c.l.b16 %v188
  %v229 = vpack.c.b16 %v226, %v225
  %v230 = vpack.c.b16 %v228, %v227
  %vm233 = vcmask 261120
  %v235 = vsel %vm233, %v189, 0
  %v238 = vsel %vm233, %v190, 0
  %v241 = vsel %vm233, %v191, 0
  %v244 = vsel %vm233, %v192, 0
  %v247 = vsel %vm233, %v193, 0
  %v250 = vsel %vm233, %v194, 0
  %v253 = vsel %vm233, %v195, 0
  %v256 = vsel %vm233, %v196, 0
  %v259 = vsel %vm233, %v197, 0
  %v262 = vsel %vm233, %v198, 0
  %v265 = vsel %vm233, %v199, 0
  %v268 = vsel %vm233, %v200, 0
  %v271 = vsel %vm233, %v201, 0
  %v274 = vsel %vm233, %v202, 0
  %v277 = vsel %vm233, %v203, 0
  %v280 = vsel %vm233, %v204, 0
  %v283 = vsel %vm233, %v205, 0
  %v286 = vsel %vm233, %v206, 0
  %v289 = vsel %vm233, %v207, 0
  %v292 = vsel %vm233, %v208, 0
  %v295 = vsel %vm233, %v209, 0
  %v298 = vsel %vm233, %v210, 0
  %v301 = vsel %vm233, %v211, 0
  %v304 = vsel %vm233, %v212, 0
  %v307 = vsel %vm233, %v213, 0
  %v310 = vsel %vm233, %v214, 0
  %v313 = vsel %vm233, %v215, 0
  %v316 = vsel %vm233, %v216, 0
  %v319 = vsel %vm233, %v217, 0
  %v322 = vsel %vm233, %v218, 0
  %v325 = vsel %vm233, %v219, 0
  %v328 = vsel %vm233, %v220, 0
  %330 = vmatprep.subr.bf16.mxu0 0
  %331 = vmatpush1.bf16.msra.mxu0 0
  %332 = vmatprep.subr.bf16.mxu0 0
  %333 = vmatpush1.bf16.msra.mxu0 0
  %334 = vmatprep.subr.bf16.mxu0 0
  %335 = vmatpush1.bf16.msra.mxu0 0
  %336 = vmatprep.subr.bf16.mxu0 0
  %337 = vmatpush1.bf16.msra.mxu0 0
  %338 = vmatprep.subr.bf16.mxu0 0
  %339 = vmatpush1.bf16.msra.mxu0 0
  %340 = vmatprep.subr.bf16.mxu0 0
  %341 = vmatpush1.bf16.msra.mxu0 0
  %342 = vmatprep.subr.bf16.mxu0 0
  %343 = vmatpush1.bf16.msra.mxu0 %v230
  %344 = vmatprep.subr.bf16.mxu0 0
  %345 = vmatpush1.bf16.msra.mxu0 %v229
  %346 = vmatprep.subr.bf16.mxu0 0
  %347 = vmatpush2.bf16.msra.mxu0 0
  %348 = vmatprep.subr.bf16.mxu0 0
  %349 = vmatpush2.bf16.msra.mxu0 0
  %350 = vmatprep.subr.bf16.mxu0 0
  %351 = vmatpush2.bf16.msra.mxu0 0
  %352 = vmatprep.subr.bf16.mxu0 0
  %353 = vmatpush2.bf16.msra.mxu0 0
  %354 = vmatprep.subr.bf16.mxu0 0
  %355 = vmatpush2.bf16.msra.mxu0 0
  %356 = vmatprep.subr.bf16.mxu0 0
  %357 = vmatpush2.bf16.msra.mxu0 0
  %358 = vmatprep.subr.bf16.mxu0 0
  %359 = vmatpush2.bf16.msra.mxu0 0
  %360 = vmatprep.subr.bf16.mxu0 0
  %361 = vmatpush2.bf16.msra.mxu0 0
  %362 = vmatprep.mubr.bf16.mxu0 0
  %363 = vmatmul.mubr.bf16.gmra.mxu0 %v235
  %v364 = vpop.f32.mrf.mxu0
  %v365 = vadd.f32 0.0, %v364
  %v366 = vpop.f32.mrf.mxu0
  %v367 = vpop.f32.mrf.mxu0
  %v368 = vadd.f32 0.0, %v367
  %v369 = vpop.f32.mrf.mxu0
  %370 = vmatprep.mubr.bf16.mxu0 0
  %371 = vmatmul.mubr.bf16.gmra.mxu0 %v238
  %v372 = vpop.f32.mrf.mxu0
  %v373 = vadd.f32 0.0, %v372
  %v374 = vpop.f32.mrf.mxu0
  %v375 = vpop.f32.mrf.mxu0
  %v376 = vadd.f32 0.0, %v375
  %v377 = vpop.f32.mrf.mxu0
  %378 = vmatprep.mubr.bf16.mxu0 0
  %379 = vmatmul.mubr.bf16.gmra.mxu0 %v241
  %v380 = vpop.f32.mrf.mxu0
  %v381 = vadd.f32 0.0, %v380
  %v382 = vpop.f32.mrf.mxu0
  %v383 = vpop.f32.mrf.mxu0
  %v384 = vadd.f32 0.0, %v383
  %v385 = vpop.f32.mrf.mxu0
  %386 = vmatprep.mubr.bf16.mxu0 0
  %387 = vmatmul.mubr.bf16.gmra.mxu0 %v244
  %v388 = vpop.f32.mrf.mxu0
  %v389 = vadd.f32 0.0, %v388
  %v390 = vpop.f32.mrf.mxu0
  %v391 = vpop.f32.mrf.mxu0
  %v392 = vadd.f32 0.0, %v391
  %v393 = vpop.f32.mrf.mxu0
  %394 = vmatprep.mubr.bf16.mxu0 0
  %395 = vmatmul.mubr.bf16.gmra.mxu0 %v247
  %v396 = vpop.f32.mrf.mxu0
  %v397 = vadd.f32 0.0, %v396
  %v398 = vpop.f32.mrf.mxu0
  %v399 = vpop.f32.mrf.mxu0
  %v400 = vadd.f32 0.0, %v399
  %v401 = vpop.f32.mrf.mxu0
  %402 = vmatprep.mubr.bf16.mxu0 0
  %403 = vmatmul.mubr.bf16.gmra.mxu0 %v250
  %v404 = vpop.f32.mrf.mxu0
  %v405 = vadd.f32 0.0, %v404
  %v406 = vpop.f32.mrf.mxu0
  %v407 = vpop.f32.mrf.mxu0
  %v408 = vadd.f32 0.0, %v407
  %v409 = vpop.f32.mrf.mxu0
  %410 = vmatprep.mubr.bf16.mxu0 0
  %411 = vmatmul.mubr.bf16.gmra.mxu0 %v253
  %v412 = vpop.f32.mrf.mxu0
  %v413 = vadd.f32 0.0, %v412
  %v414 = vpop.f32.mrf.mxu0
  %v415 = vpop.f32.mrf.mxu0
  %v416 = vadd.f32 0.0, %v415
  %v417 = vpop.f32.mrf.mxu0
  %418 = vmatprep.mubr.bf16.mxu0 0
  %419 = vmatmul.mubr.bf16.gmra.mxu0 %v256
  %v420 = vpop.f32.mrf.mxu0
  %v421 = vadd.f32 0.0, %v420
  %v422 = vpop.f32.mrf.mxu0
  %v423 = vpop.f32.mrf.mxu0
  %v424 = vadd.f32 0.0, %v423
  %v425 = vpop.f32.mrf.mxu0
  %426 = vmatprep.mubr.bf16.mxu0 0
  %427 = vmatmul.mubr.bf16.gmra.mxu0 %v259
  %v428 = vpop.f32.mrf.mxu0
  %v429 = vadd.f32 0.0, %v428
  %v430 = vpop.f32.mrf.mxu0
  %v431 = vpop.f32.mrf.mxu0
  %v432 = vadd.f32 0.0, %v431
  %v433 = vpop.f32.mrf.mxu0
  %434 = vmatprep.mubr.bf16.mxu0 0
  %435 = vmatmul.mubr.bf16.gmra.mxu0 %v262
  %v436 = vpop.f32.mrf.mxu0
  %v437 = vadd.f32 0.0, %v436
  %v438 = vpop.f32.mrf.mxu0
  %v439 = vpop.f32.mrf.mxu0
  %v440 = vadd.f32 0.0, %v439
  %v441 = vpop.f32.mrf.mxu0
  %442 = vmatprep.mubr.bf16.mxu0 0
  %443 = vmatmul.mubr.bf16.gmra.mxu0 %v265
  %v444 = vpop.f32.mrf.mxu0
  %v445 = vadd.f32 0.0, %v444
  %v446 = vpop.f32.mrf.mxu0
  %v447 = vpop.f32.mrf.mxu0
  %v448 = vadd.f32 0.0, %v447
  %v449 = vpop.f32.mrf.mxu0
  %450 = vmatprep.mubr.bf16.mxu0 0
  %451 = vmatmul.mubr.bf16.gmra.mxu0 %v268
  %v452 = vpop.f32.mrf.mxu0
  %v453 = vadd.f32 0.0, %v452
  %v454 = vpop.f32.mrf.mxu0
  %v455 = vpop.f32.mrf.mxu0
  %v456 = vadd.f32 0.0, %v455
  %v457 = vpop.f32.mrf.mxu0
  %458 = vmatprep.mubr.bf16.mxu0 0
  %459 = vmatmul.mubr.bf16.gmra.mxu0 %v271
  %v460 = vpop.f32.mrf.mxu0
  %v461 = vadd.f32 0.0, %v460
  %v462 = vpop.f32.mrf.mxu0
  %v463 = vpop.f32.mrf.mxu0
  %v464 = vadd.f32 0.0, %v463
  %v465 = vpop.f32.mrf.mxu0
  %466 = vmatprep.mubr.bf16.mxu0 0
  %467 = vmatmul.mubr.bf16.gmra.mxu0 %v274
  %v468 = vpop.f32.mrf.mxu0
  %v469 = vadd.f32 0.0, %v468
  %v470 = vpop.f32.mrf.mxu0
  %v471 = vpop.f32.mrf.mxu0
  %v472 = vadd.f32 0.0, %v471
  %v473 = vpop.f32.mrf.mxu0
  %474 = vmatprep.mubr.bf16.mxu0 0
  %475 = vmatmul.mubr.bf16.gmra.mxu0 %v277
  %v476 = vpop.f32.mrf.mxu0
  %v477 = vadd.f32 0.0, %v476
  %v478 = vpop.f32.mrf.mxu0
  %v479 = vpop.f32.mrf.mxu0
  %v480 = vadd.f32 0.0, %v479
  %v481 = vpop.f32.mrf.mxu0
  %482 = vmatprep.mubr.bf16.mxu0 0
  %483 = vmatmul.mubr.bf16.gmra.mxu0 %v280
  %v484 = vpop.f32.mrf.mxu0
  %v485 = vadd.f32 0.0, %v484
  %v486 = vpop.f32.mrf.mxu0
  %v487 = vpop.f32.mrf.mxu0
  %v488 = vadd.f32 0.0, %v487
  %v489 = vpop.f32.mrf.mxu0
  %490 = vmatprep.mubr.bf16.mxu0 0
  %491 = vmatmul.mubr.bf16.gmra.mxu0 %v283
  %v492 = vpop.f32.mrf.mxu0
  %v493 = vadd.f32 0.0, %v492
  %v494 = vpop.f32.mrf.mxu0
  %v495 = vpop.f32.mrf.mxu0
  %v496 = vadd.f32 0.0, %v495
  %v497 = vpop.f32.mrf.mxu0
  %498 = vmatprep.mubr.bf16.mxu0 0
  %499 = vmatmul.mubr.bf16.gmra.mxu0 %v286
  %v500 = vpop.f32.mrf.mxu0
  %v501 = vadd.f32 0.0, %v500
  %v502 = vpop.f32.mrf.mxu0
  %v503 = vpop.f32.mrf.mxu0
  %v504 = vadd.f32 0.0, %v503
  %v505 = vpop.f32.mrf.mxu0
  %506 = vmatprep.mubr.bf16.mxu0 0
  %507 = vmatmul.mubr.bf16.gmra.mxu0 %v289
  %v508 = vpop.f32.mrf.mxu0
  %v509 = vadd.f32 0.0, %v508
  %v510 = vpop.f32.mrf.mxu0
  %v511 = vpop.f32.mrf.mxu0
  %v512 = vadd.f32 0.0, %v511
  %v513 = vpop.f32.mrf.mxu0
  %514 = vmatprep.mubr.bf16.mxu0 0
  %515 = vmatmul.mubr.bf16.gmra.mxu0 %v292
  %v516 = vpop.f32.mrf.mxu0
  %v517 = vadd.f32 0.0, %v516
  %v518 = vpop.f32.mrf.mxu0
  %v519 = vpop.f32.mrf.mxu0
  %v520 = vadd.f32 0.0, %v519
  %v521 = vpop.f32.mrf.mxu0
  %522 = vmatprep.mubr.bf16.mxu0 0
  %523 = vmatmul.mubr.bf16.gmra.mxu0 %v295
  %v524 = vpop.f32.mrf.mxu0
  %v525 = vadd.f32 0.0, %v524
  %v526 = vpop.f32.mrf.mxu0
  %v527 = vpop.f32.mrf.mxu0
  %v528 = vadd.f32 0.0, %v527
  %v529 = vpop.f32.mrf.mxu0
  %530 = vmatprep.mubr.bf16.mxu0 0
  %531 = vmatmul.mubr.bf16.gmra.mxu0 %v298
  %v532 = vpop.f32.mrf.mxu0
  %v533 = vadd.f32 0.0, %v532
  %v534 = vpop.f32.mrf.mxu0
  %v535 = vpop.f32.mrf.mxu0
  %v536 = vadd.f32 0.0, %v535
  %v537 = vpop.f32.mrf.mxu0
  %538 = vmatprep.mubr.bf16.mxu0 0
  %539 = vmatmul.mubr.bf16.gmra.mxu0 %v301
  %v540 = vpop.f32.mrf.mxu0
  %v541 = vadd.f32 0.0, %v540
  %v542 = vpop.f32.mrf.mxu0
  %v543 = vpop.f32.mrf.mxu0
  %v544 = vadd.f32 0.0, %v543
  %v545 = vpop.f32.mrf.mxu0
  %546 = vmatprep.mubr.bf16.mxu0 0
  %547 = vmatmul.mubr.bf16.gmra.mxu0 %v304
  %v548 = vpop.f32.mrf.mxu0
  %v549 = vadd.f32 0.0, %v548
  %v550 = vpop.f32.mrf.mxu0
  %v551 = vpop.f32.mrf.mxu0
  %v552 = vadd.f32 0.0, %v551
  %v553 = vpop.f32.mrf.mxu0
  %554 = vmatprep.mubr.bf16.mxu0 0
  %555 = vmatmul.mubr.bf16.gmra.mxu0 %v307
  %v556 = vpop.f32.mrf.mxu0
  %v557 = vadd.f32 0.0, %v556
  %v558 = vpop.f32.mrf.mxu0
  %v559 = vpop.f32.mrf.mxu0
  %v560 = vadd.f32 0.0, %v559
  %v561 = vpop.f32.mrf.mxu0
  %562 = vmatprep.mubr.bf16.mxu0 0
  %563 = vmatmul.mubr.bf16.gmra.mxu0 %v310
  %v564 = vpop.f32.mrf.mxu0
  %v565 = vadd.f32 0.0, %v564
  %v566 = vpop.f32.mrf.mxu0
  %v567 = vpop.f32.mrf.mxu0
  %v568 = vadd.f32 0.0, %v567
  %v569 = vpop.f32.mrf.mxu0
  %570 = vmatprep.mubr.bf16.mxu0 0
  %571 = vmatmul.mubr.bf16.gmra.mxu0 %v313
  %v572 = vpop.f32.mrf.mxu0
  %v573 = vadd.f32 0.0, %v572
  %v574 = vpop.f32.mrf.mxu0
  %v575 = vpop.f32.mrf.mxu0
  %v576 = vadd.f32 0.0, %v575
  %v577 = vpop.f32.mrf.mxu0
  %578 = vmatprep.mubr.bf16.mxu0 0
  %579 = vmatmul.mubr.bf16.gmra.mxu0 %v316
  %v580 = vpop.f32.mrf.mxu0
  %v581 = vadd.f32 0.0, %v580
  %v582 = vpop.f32.mrf.mxu0
  %v583 = vpop.f32.mrf.mxu0
  %v584 = vadd.f32 0.0, %v583
  %v585 = vpop.f32.mrf.mxu0
  %586 = vmatprep.mubr.bf16.mxu0 0
  %587 = vmatmul.mubr.bf16.gmra.mxu0 %v319
  %v588 = vpop.f32.mrf.mxu0
  %v589 = vadd.f32 0.0, %v588
  %v590 = vpop.f32.mrf.mxu0
  %v591 = vpop.f32.mrf.mxu0
  %v592 = vadd.f32 0.0, %v591
  %v593 = vpop.f32.mrf.mxu0
  %594 = vmatprep.mubr.bf16.mxu0 0
  %595 = vmatmul.mubr.bf16.gmra.mxu0 %v322
  %v596 = vpop.f32.mrf.mxu0
  %v597 = vadd.f32 0.0, %v596
  %v598 = vpop.f32.mrf.mxu0
  %v599 = vpop.f32.mrf.mxu0
  %v600 = vadd.f32 0.0, %v599
  %v601 = vpop.f32.mrf.mxu0
  %602 = vmatprep.mubr.bf16.mxu0 0
  %603 = vmatmul.mubr.bf16.gmra.mxu0 %v325
  %v604 = vpop.f32.mrf.mxu0
  %v605 = vadd.f32 0.0, %v604
  %v606 = vpop.f32.mrf.mxu0
  %v607 = vpop.f32.mrf.mxu0
  %v608 = vadd.f32 0.0, %v607
  %v609 = vpop.f32.mrf.mxu0
  %610 = vmatprep.mubr.bf16.mxu0 0
  %611 = vmatmul.mubr.bf16.gmra.mxu0 %v328
  %v612 = vpop.f32.mrf.mxu0
  %v613 = vadd.f32 0.0, %v612
  %v614 = vpop.f32.mrf.mxu0
  %v615 = vpop.f32.mrf.mxu0
  %v616 = vadd.f32 0.0, %v615
  %v617 = vpop.f32.mrf.mxu0
  %618 = vdwg.mxu0
  %v623 = vunpack.c.l.b16 %v85
  %v624 = vunpack.c.l.b16 %v86
  %v625 = vunpack.c.l.b16 %v87
  %v626 = vunpack.c.l.b16 %v88
  %v627 = vpack.c.b16 %v624, %v623
  %v628 = vpack.c.b16 %v626, %v625
  %v632 = vsel %vm233, %v89, 0
  %v635 = vsel %vm233, %v90, 0
  %v638 = vsel %vm233, %v91, 0
  %v641 = vsel %vm233, %v92, 0
  %v644 = vsel %vm233, %v93, 0
  %v647 = vsel %vm233, %v94, 0
  %v650 = vsel %vm233, %v95, 0
  %v653 = vsel %vm233, %v96, 0
  %v656 = vsel %vm233, %v97, 0
  %v659 = vsel %vm233, %v98, 0
  %v662 = vsel %vm233, %v99, 0
  %v665 = vsel %vm233, %v100, 0
  %v668 = vsel %vm233, %v101, 0
  %v671 = vsel %vm233, %v102, 0
  %v674 = vsel %vm233, %v103, 0
  %v677 = vsel %vm233, %v104, 0
  %v680 = vsel %vm233, %v105, 0
  %v683 = vsel %vm233, %v106, 0
  %v686 = vsel %vm233, %v107, 0
  %v689 = vsel %vm233, %v108, 0
  %v692 = vsel %vm233, %v109, 0
  %v695 = vsel %vm233, %v110, 0
  %v698 = vsel %vm233, %v111, 0
  %v701 = vsel %vm233, %v112, 0
  %v704 = vsel %vm233, %v113, 0
  %v707 = vsel %vm233, %v114, 0
  %v710 = vsel %vm233, %v115, 0
  %v713 = vsel %vm233, %v116, 0
  %v716 = vsel %vm233, %v117, 0
  %v719 = vsel %vm233, %v118, 0
  %v722 = vsel %vm233, %v119, 0
  %v725 = vsel %vm233, %v120, 0
  %727 = vmatprep.subr.bf16.mxu0 0
  %728 = vmatpush1.bf16.msra.mxu0 0
  %729 = vmatprep.subr.bf16.mxu0 0
  %730 = vmatpush1.bf16.msra.mxu0 0
  %731 = vmatprep.subr.bf16.mxu0 0
  %732 = vmatpush1.bf16.msra.mxu0 0
  %733 = vmatprep.subr.bf16.mxu0 0
  %734 = vmatpush1.bf16.msra.mxu0 0
  %735 = vmatprep.subr.bf16.mxu0 0
  %736 = vmatpush1.bf16.msra.mxu0 0
  %737 = vmatprep.subr.bf16.mxu0 0
  %738 = vmatpush1.bf16.msra.mxu0 0
  %739 = vmatprep.subr.bf16.mxu0 0
  %740 = vmatpush1.bf16.msra.mxu0 %v628
  %741 = vmatprep.subr.bf16.mxu0 0
  %742 = vmatpush1.bf16.msra.mxu0 %v627
  %743 = vmatprep.subr.bf16.mxu0 0
  %744 = vmatpush2.bf16.msra.mxu0 0
  %745 = vmatprep.subr.bf16.mxu0 0
  %746 = vmatpush2.bf16.msra.mxu0 0
  %747 = vmatprep.subr.bf16.mxu0 0
  %748 = vmatpush2.bf16.msra.mxu0 0
  %749 = vmatprep.subr.bf16.mxu0 0
  %750 = vmatpush2.bf16.msra.mxu0 0
  %751 = vmatprep.subr.bf16.mxu0 0
  %752 = vmatpush2.bf16.msra.mxu0 0
  %753 = vmatprep.subr.bf16.mxu0 0
  %754 = vmatpush2.bf16.msra.mxu0 0
  %755 = vmatprep.subr.bf16.mxu0 0
  %756 = vmatpush2.bf16.msra.mxu0 0
  %757 = vmatprep.subr.bf16.mxu0 0
  %758 = vmatpush2.bf16.msra.mxu0 0
  %759 = vmatprep.mubr.bf16.mxu0 0
  %760 = vmatmul.mubr.bf16.gmra.mxu0 %v632
  %v761 = vpop.f32.mrf.mxu0
  %v762 = vadd.f32 %v365, %v761
  %v763 = vpop.f32.mrf.mxu0
  %v764 = vpop.f32.mrf.mxu0
  %v765 = vadd.f32 %v368, %v764
  %v766 = vpop.f32.mrf.mxu0
  %767 = vmatprep.mubr.bf16.mxu0 0
  %768 = vmatmul.mubr.bf16.gmra.mxu0 %v635
  %v769 = vpop.f32.mrf.mxu0
  %v770 = vadd.f32 %v373, %v769
  %v771 = vpop.f32.mrf.mxu0
  %v772 = vpop.f32.mrf.mxu0
  %v773 = vadd.f32 %v376, %v772
  %v774 = vpop.f32.mrf.mxu0
  %775 = vmatprep.mubr.bf16.mxu0 0
  %776 = vmatmul.mubr.bf16.gmra.mxu0 %v638
  %v777 = vpop.f32.mrf.mxu0
  %v778 = vadd.f32 %v381, %v777
  %v779 = vpop.f32.mrf.mxu0
  %v780 = vpop.f32.mrf.mxu0
  %v781 = vadd.f32 %v384, %v780
  %v782 = vpop.f32.mrf.mxu0
  %783 = vmatprep.mubr.bf16.mxu0 0
  %784 = vmatmul.mubr.bf16.gmra.mxu0 %v641
  %v785 = vpop.f32.mrf.mxu0
  %v786 = vadd.f32 %v389, %v785
  %v787 = vpop.f32.mrf.mxu0
  %v788 = vpop.f32.mrf.mxu0
  %v789 = vadd.f32 %v392, %v788
  %v790 = vpop.f32.mrf.mxu0
  %791 = vmatprep.mubr.bf16.mxu0 0
  %792 = vmatmul.mubr.bf16.gmra.mxu0 %v644
  %v793 = vpop.f32.mrf.mxu0
  %v794 = vadd.f32 %v397, %v793
  %v795 = vpop.f32.mrf.mxu0
  %v796 = vpop.f32.mrf.mxu0
  %v797 = vadd.f32 %v400, %v796
  %v798 = vpop.f32.mrf.mxu0
  %799 = vmatprep.mubr.bf16.mxu0 0
  %800 = vmatmul.mubr.bf16.gmra.mxu0 %v647
  %v801 = vpop.f32.mrf.mxu0
  %v802 = vadd.f32 %v405, %v801
  %v803 = vpop.f32.mrf.mxu0
  %v804 = vpop.f32.mrf.mxu0
  %v805 = vadd.f32 %v408, %v804
  %v806 = vpop.f32.mrf.mxu0
  %807 = vmatprep.mubr.bf16.mxu0 0
  %808 = vmatmul.mubr.bf16.gmra.mxu0 %v650
  %v809 = vpop.f32.mrf.mxu0
  %v810 = vadd.f32 %v413, %v809
  %v811 = vpop.f32.mrf.mxu0
  %v812 = vpop.f32.mrf.mxu0
  %v813 = vadd.f32 %v416, %v812
  %v814 = vpop.f32.mrf.mxu0
  %815 = vmatprep.mubr.bf16.mxu0 0
  %816 = vmatmul.mubr.bf16.gmra.mxu0 %v653
  %v817 = vpop.f32.mrf.mxu0
  %v818 = vadd.f32 %v421, %v817
  %v819 = vpop.f32.mrf.mxu0
  %v820 = vpop.f32.mrf.mxu0
  %v821 = vadd.f32 %v424, %v820
  %v822 = vpop.f32.mrf.mxu0
  %823 = vmatprep.mubr.bf16.mxu0 0
  %824 = vmatmul.mubr.bf16.gmra.mxu0 %v656
  %v825 = vpop.f32.mrf.mxu0
  %v826 = vadd.f32 %v429, %v825
  %v827 = vpop.f32.mrf.mxu0
  %v828 = vpop.f32.mrf.mxu0
  %v829 = vadd.f32 %v432, %v828
  %v830 = vpop.f32.mrf.mxu0
  %831 = vmatprep.mubr.bf16.mxu0 0
  %832 = vmatmul.mubr.bf16.gmra.mxu0 %v659
  %v833 = vpop.f32.mrf.mxu0
  %v834 = vadd.f32 %v437, %v833
  %v835 = vpop.f32.mrf.mxu0
  %v836 = vpop.f32.mrf.mxu0
  %v837 = vadd.f32 %v440, %v836
  %v838 = vpop.f32.mrf.mxu0
  %839 = vmatprep.mubr.bf16.mxu0 0
  %840 = vmatmul.mubr.bf16.gmra.mxu0 %v662
  %v841 = vpop.f32.mrf.mxu0
  %v842 = vadd.f32 %v445, %v841
  %v843 = vpop.f32.mrf.mxu0
  %v844 = vpop.f32.mrf.mxu0
  %v845 = vadd.f32 %v448, %v844
  %v846 = vpop.f32.mrf.mxu0
  %847 = vmatprep.mubr.bf16.mxu0 0
  %848 = vmatmul.mubr.bf16.gmra.mxu0 %v665
  %v849 = vpop.f32.mrf.mxu0
  %v850 = vadd.f32 %v453, %v849
  %v851 = vpop.f32.mrf.mxu0
  %v852 = vpop.f32.mrf.mxu0
  %v853 = vadd.f32 %v456, %v852
  %v854 = vpop.f32.mrf.mxu0
  %855 = vmatprep.mubr.bf16.mxu0 0
  %856 = vmatmul.mubr.bf16.gmra.mxu0 %v668
  %v857 = vpop.f32.mrf.mxu0
  %v858 = vadd.f32 %v461, %v857
  %v859 = vpop.f32.mrf.mxu0
  %v860 = vpop.f32.mrf.mxu0
  %v861 = vadd.f32 %v464, %v860
  %v862 = vpop.f32.mrf.mxu0
  %863 = vmatprep.mubr.bf16.mxu0 0
  %864 = vmatmul.mubr.bf16.gmra.mxu0 %v671
  %v865 = vpop.f32.mrf.mxu0
  %v866 = vadd.f32 %v469, %v865
  %v867 = vpop.f32.mrf.mxu0
  %v868 = vpop.f32.mrf.mxu0
  %v869 = vadd.f32 %v472, %v868
  %v870 = vpop.f32.mrf.mxu0
  %871 = vmatprep.mubr.bf16.mxu0 0
  %872 = vmatmul.mubr.bf16.gmra.mxu0 %v674
  %v873 = vpop.f32.mrf.mxu0
  %v874 = vadd.f32 %v477, %v873
  %v875 = vpop.f32.mrf.mxu0
  %v876 = vpop.f32.mrf.mxu0
  %v877 = vadd.f32 %v480, %v876
  %v878 = vpop.f32.mrf.mxu0
  %879 = vmatprep.mubr.bf16.mxu0 0
  %880 = vmatmul.mubr.bf16.gmra.mxu0 %v677
  %v881 = vpop.f32.mrf.mxu0
  %v882 = vadd.f32 %v485, %v881
  %v883 = vpop.f32.mrf.mxu0
  %v884 = vpop.f32.mrf.mxu0
  %v885 = vadd.f32 %v488, %v884
  %v886 = vpop.f32.mrf.mxu0
  %887 = vmatprep.mubr.bf16.mxu0 0
  %888 = vmatmul.mubr.bf16.gmra.mxu0 %v680
  %v889 = vpop.f32.mrf.mxu0
  %v890 = vadd.f32 %v493, %v889
  %v891 = vpop.f32.mrf.mxu0
  %v892 = vpop.f32.mrf.mxu0
  %v893 = vadd.f32 %v496, %v892
  %v894 = vpop.f32.mrf.mxu0
  %895 = vmatprep.mubr.bf16.mxu0 0
  %896 = vmatmul.mubr.bf16.gmra.mxu0 %v683
  %v897 = vpop.f32.mrf.mxu0
  %v898 = vadd.f32 %v501, %v897
  %v899 = vpop.f32.mrf.mxu0
  %v900 = vpop.f32.mrf.mxu0
  %v901 = vadd.f32 %v504, %v900
  %v902 = vpop.f32.mrf.mxu0
  %903 = vmatprep.mubr.bf16.mxu0 0
  %904 = vmatmul.mubr.bf16.gmra.mxu0 %v686
  %v905 = vpop.f32.mrf.mxu0
  %v906 = vadd.f32 %v509, %v905
  %v907 = vpop.f32.mrf.mxu0
  %v908 = vpop.f32.mrf.mxu0
  %v909 = vadd.f32 %v512, %v908
  %v910 = vpop.f32.mrf.mxu0
  %911 = vmatprep.mubr.bf16.mxu0 0
  %912 = vmatmul.mubr.bf16.gmra.mxu0 %v689
  %v913 = vpop.f32.mrf.mxu0
  %v914 = vadd.f32 %v517, %v913
  %v915 = vpop.f32.mrf.mxu0
  %v916 = vpop.f32.mrf.mxu0
  %v917 = vadd.f32 %v520, %v916
  %v918 = vpop.f32.mrf.mxu0
  %919 = vmatprep.mubr.bf16.mxu0 0
  %920 = vmatmul.mubr.bf16.gmra.mxu0 %v692
  %v921 = vpop.f32.mrf.mxu0
  %v922 = vadd.f32 %v525, %v921
  %v923 = vpop.f32.mrf.mxu0
  %v924 = vpop.f32.mrf.mxu0
  %v925 = vadd.f32 %v528, %v924
  %v926 = vpop.f32.mrf.mxu0
  %927 = vmatprep.mubr.bf16.mxu0 0
  %928 = vmatmul.mubr.bf16.gmra.mxu0 %v695
  %v929 = vpop.f32.mrf.mxu0
  %v930 = vadd.f32 %v533, %v929
  %v931 = vpop.f32.mrf.mxu0
  %v932 = vpop.f32.mrf.mxu0
  %v933 = vadd.f32 %v536, %v932
  %v934 = vpop.f32.mrf.mxu0
  %935 = vmatprep.mubr.bf16.mxu0 0
  %936 = vmatmul.mubr.bf16.gmra.mxu0 %v698
  %v937 = vpop.f32.mrf.mxu0
  %v938 = vadd.f32 %v541, %v937
  %v939 = vpop.f32.mrf.mxu0
  %v940 = vpop.f32.mrf.mxu0
  %v941 = vadd.f32 %v544, %v940
  %v942 = vpop.f32.mrf.mxu0
  %943 = vmatprep.mubr.bf16.mxu0 0
  %944 = vmatmul.mubr.bf16.gmra.mxu0 %v701
  %v945 = vpop.f32.mrf.mxu0
  %v946 = vadd.f32 %v549, %v945
  %v947 = vpop.f32.mrf.mxu0
  %v948 = vpop.f32.mrf.mxu0
  %v949 = vadd.f32 %v552, %v948
  %v950 = vpop.f32.mrf.mxu0
  %951 = vmatprep.mubr.bf16.mxu0 0
  %952 = vmatmul.mubr.bf16.gmra.mxu0 %v704
  %v953 = vpop.f32.mrf.mxu0
  %v954 = vadd.f32 %v557, %v953
  %v955 = vpop.f32.mrf.mxu0
  %v956 = vpop.f32.mrf.mxu0
  %v957 = vadd.f32 %v560, %v956
  %v958 = vpop.f32.mrf.mxu0
  %959 = vmatprep.mubr.bf16.mxu0 0
  %960 = vmatmul.mubr.bf16.gmra.mxu0 %v707
  %v961 = vpop.f32.mrf.mxu0
  %v962 = vadd.f32 %v565, %v961
  %v963 = vpop.f32.mrf.mxu0
  %v964 = vpop.f32.mrf.mxu0
  %v965 = vadd.f32 %v568, %v964
  %v966 = vpop.f32.mrf.mxu0
  %967 = vmatprep.mubr.bf16.mxu0 0
  %968 = vmatmul.mubr.bf16.gmra.mxu0 %v710
  %v969 = vpop.f32.mrf.mxu0
  %v970 = vadd.f32 %v573, %v969
  %v971 = vpop.f32.mrf.mxu0
  %v972 = vpop.f32.mrf.mxu0
  %v973 = vadd.f32 %v576, %v972
  %v974 = vpop.f32.mrf.mxu0
  %975 = vmatprep.mubr.bf16.mxu0 0
  %976 = vmatmul.mubr.bf16.gmra.mxu0 %v713
  %v977 = vpop.f32.mrf.mxu0
  %v978 = vadd.f32 %v581, %v977
  %v979 = vpop.f32.mrf.mxu0
  %v980 = vpop.f32.mrf.mxu0
  %v981 = vadd.f32 %v584, %v980
  %v982 = vpop.f32.mrf.mxu0
  %983 = vmatprep.mubr.bf16.mxu0 0
  %984 = vmatmul.mubr.bf16.gmra.mxu0 %v716
  %v985 = vpop.f32.mrf.mxu0
  %v986 = vadd.f32 %v589, %v985
  %v987 = vpop.f32.mrf.mxu0
  %v988 = vpop.f32.mrf.mxu0
  %v989 = vadd.f32 %v592, %v988
  %v990 = vpop.f32.mrf.mxu0
  %991 = vmatprep.mubr.bf16.mxu0 0
  %992 = vmatmul.mubr.bf16.gmra.mxu0 %v719
  %v993 = vpop.f32.mrf.mxu0
  %v994 = vadd.f32 %v597, %v993
  %v995 = vpop.f32.mrf.mxu0
  %v996 = vpop.f32.mrf.mxu0
  %v997 = vadd.f32 %v600, %v996
  %v998 = vpop.f32.mrf.mxu0
  %999 = vmatprep.mubr.bf16.mxu0 0
  %1000 = vmatmul.mubr.bf16.gmra.mxu0 %v722
  %v1001 = vpop.f32.mrf.mxu0
  %v1002 = vadd.f32 %v605, %v1001
  %v1003 = vpop.f32.mrf.mxu0
  %v1004 = vpop.f32.mrf.mxu0
  %v1005 = vadd.f32 %v608, %v1004
  %v1006 = vpop.f32.mrf.mxu0
  %1007 = vmatprep.mubr.bf16.mxu0 0
  %1008 = vmatmul.mubr.bf16.gmra.mxu0 %v725
  %v1009 = vpop.f32.mrf.mxu0
  %v1010 = vadd.f32 %v613, %v1009
  %v1011 = vpop.f32.mrf.mxu0
  %v1012 = vpop.f32.mrf.mxu0
  %v1013 = vadd.f32 %v616, %v1012
  %v1014 = vpop.f32.mrf.mxu0
  %1015 = vdwg.mxu0
  %v1016 = vld [vmem:[%s4] sm:$0x1]
  %v1018 = vlaneseq
  %v1019 = vshrl.u32 %v1018, 7
  %v1020 = vsub.s32 0, %v1019
  %v1021 = vrot.slane %v1016, %v1020
  %v1023 = vadd.f32 %v762, %v1021
  %v1024 = vadd.f32 %v765, %v1021
  %v1025 = vadd.f32 %v770, %v1021
  %v1026 = vadd.f32 %v773, %v1021
  %v1027 = vadd.f32 %v778, %v1021
  %v1028 = vadd.f32 %v781, %v1021
  %v1029 = vadd.f32 %v786, %v1021
  %v1030 = vadd.f32 %v789, %v1021
  %v1031 = vadd.f32 %v794, %v1021
  %v1032 = vadd.f32 %v797, %v1021
  %v1033 = vadd.f32 %v802, %v1021
  %v1034 = vadd.f32 %v805, %v1021
  %v1035 = vadd.f32 %v810, %v1021
  %v1036 = vadd.f32 %v813, %v1021
  %v1037 = vadd.f32 %v818, %v1021
  %v1038 = vadd.f32 %v821, %v1021
  %v1039 = vadd.f32 %v826, %v1021
  %v1040 = vadd.f32 %v829, %v1021
  %v1041 = vadd.f32 %v834, %v1021
  %v1042 = vadd.f32 %v837, %v1021
  %v1043 = vadd.f32 %v842, %v1021
  %v1044 = vadd.f32 %v845, %v1021
  %v1045 = vadd.f32 %v850, %v1021
  %v1046 = vadd.f32 %v853, %v1021
  %v1047 = vadd.f32 %v858, %v1021
  %v1048 = vadd.f32 %v861, %v1021
  %v1049 = vadd.f32 %v866, %v1021
  %v1050 = vadd.f32 %v869, %v1021
  %v1051 = vadd.f32 %v874, %v1021
  %v1052 = vadd.f32 %v877, %v1021
  %v1053 = vadd.f32 %v882, %v1021
  %v1054 = vadd.f32 %v885, %v1021
  %v1055 = vadd.f32 %v890, %v1021
  %v1056 = vadd.f32 %v893, %v1021
  %v1057 = vadd.f32 %v898, %v1021
  %v1058 = vadd.f32 %v901, %v1021
  %v1059 = vadd.f32 %v906, %v1021
  %v1060 = vadd.f32 %v909, %v1021
  %v1061 = vadd.f32 %v914, %v1021
  %v1062 = vadd.f32 %v917, %v1021
  %v1063 = vadd.f32 %v922, %v1021
  %v1064 = vadd.f32 %v925, %v1021
  %v1065 = vadd.f32 %v930, %v1021
  %v1066 = vadd.f32 %v933, %v1021
  %v1067 = vadd.f32 %v938, %v1021
  %v1068 = vadd.f32 %v941, %v1021
  %v1069 = vadd.f32 %v946, %v1021
  %v1070 = vadd.f32 %v949, %v1021
  %v1071 = vadd.f32 %v954, %v1021
  %v1072 = vadd.f32 %v957, %v1021
  %v1073 = vadd.f32 %v962, %v1021
  %v1074 = vadd.f32 %v965, %v1021
  %v1075 = vadd.f32 %v970, %v1021
  %v1076 = vadd.f32 %v973, %v1021
  %v1077 = vadd.f32 %v978, %v1021
  %v1078 = vadd.f32 %v981, %v1021
  %v1079 = vadd.f32 %v986, %v1021
  %v1080 = vadd.f32 %v989, %v1021
  %v1081 = vadd.f32 %v994, %v1021
  %v1082 = vadd.f32 %v997, %v1021
  %v1083 = vadd.f32 %v1002, %v1021
  %v1084 = vadd.f32 %v1005, %v1021
  %v1085 = vadd.f32 %v1010, %v1021
  %v1086 = vadd.f32 %v1013, %v1021
  %v1087 = vsub.f32 0.0, %v1023
  %v1088 = vsub.f32 0.0, %v1024
  %v1089 = vsub.f32 0.0, %v1025
  %v1090 = vsub.f32 0.0, %v1026
  %v1091 = vsub.f32 0.0, %v1027
  %v1092 = vsub.f32 0.0, %v1028
  %v1093 = vsub.f32 0.0, %v1029
  %v1094 = vsub.f32 0.0, %v1030
  %v1095 = vsub.f32 0.0, %v1031
  %v1096 = vsub.f32 0.0, %v1032
  %v1097 = vsub.f32 0.0, %v1033
  %v1098 = vsub.f32 0.0, %v1034
  %v1099 = vsub.f32 0.0, %v1035
  %v1100 = vsub.f32 0.0, %v1036
  %v1101 = vsub.f32 0.0, %v1037
  %v1102 = vsub.f32 0.0, %v1038
  %v1103 = vsub.f32 0.0, %v1039
  %v1104 = vsub.f32 0.0, %v1040
  %v1105 = vsub.f32 0.0, %v1041
  %v1106 = vsub.f32 0.0, %v1042
  %v1107 = vsub.f32 0.0, %v1043
  %v1108 = vsub.f32 0.0, %v1044
  %v1109 = vsub.f32 0.0, %v1045
  %v1110 = vsub.f32 0.0, %v1046
  %v1111 = vsub.f32 0.0, %v1047
  %v1112 = vsub.f32 0.0, %v1048
  %v1113 = vsub.f32 0.0, %v1049
  %v1114 = vsub.f32 0.0, %v1050
  %v1115 = vsub.f32 0.0, %v1051
  %v1116 = vsub.f32 0.0, %v1052
  %v1117 = vsub.f32 0.0, %v1053
  %v1118 = vsub.f32 0.0, %v1054
  %v1119 = vsub.f32 0.0, %v1055
  %v1120 = vsub.f32 0.0, %v1056
  %v1121 = vsub.f32 0.0, %v1057
  %v1122 = vsub.f32 0.0, %v1058
  %v1123 = vsub.f32 0.0, %v1059
  %v1124 = vsub.f32 0.0, %v1060
  %v1125 = vsub.f32 0.0, %v1061
  %v1126 = vsub.f32 0.0, %v1062
  %v1127 = vsub.f32 0.0, %v1063
  %v1128 = vsub.f32 0.0, %v1064
  %v1129 = vsub.f32 0.0, %v1065
  %v1130 = vsub.f32 0.0, %v1066
  %v1131 = vsub.f32 0.0, %v1067
  %v1132 = vsub.f32 0.0, %v1068
  %v1133 = vsub.f32 0.0, %v1069
  %v1134 = vsub.f32 0.0, %v1070
  %v1135 = vsub.f32 0.0, %v1071
  %v1136 = vsub.f32 0.0, %v1072
  %v1137 = vsub.f32 0.0, %v1073
  %v1138 = vsub.f32 0.0, %v1074
  %v1139 = vsub.f32 0.0, %v1075
  %v1140 = vsub.f32 0.0, %v1076
  %v1141 = vsub.f32 0.0, %v1077
  %v1142 = vsub.f32 0.0, %v1078
  %v1143 = vsub.f32 0.0, %v1079
  %v1144 = vsub.f32 0.0, %v1080
  %v1145 = vsub.f32 0.0, %v1081
  %v1146 = vsub.f32 0.0, %v1082
  %v1147 = vsub.f32 0.0, %v1083
  %v1148 = vsub.f32 0.0, %v1084
  %v1149 = vsub.f32 0.0, %v1085
  %v1150 = vsub.f32 0.0, %v1086
  %v1151 = vmul.f32 %v1087, 1.442695
  %v1152 = vpow.pop %v1151
  %v1153 = vmul.f32 %v1088, 1.442695
  %v1154 = vpow.pop %v1153
  %v1155 = vmul.f32 %v1089, 1.442695
  %v1156 = vpow.pop %v1155
  %v1157 = vmul.f32 %v1090, 1.442695
  %v1158 = vpow.pop %v1157
  %v1159 = vmul.f32 %v1091, 1.442695
  %v1160 = vpow.pop %v1159
  %v1161 = vmul.f32 %v1092, 1.442695
  %v1162 = vpow.pop %v1161
  %v1163 = vmul.f32 %v1093, 1.442695
  %v1164 = vpow.pop %v1163
  %v1165 = vmul.f32 %v1094, 1.442695
  %v1166 = vpow.pop %v1165
  %v1167 = vmul.f32 %v1095, 1.442695
  %v1168 = vpow.pop %v1167
  %v1169 = vmul.f32 %v1096, 1.442695
  %v1170 = vpow.pop %v1169
  %v1171 = vmul.f32 %v1097, 1.442695
  %v1172 = vpow.pop %v1171
  %v1173 = vmul.f32 %v1098, 1.442695
  %v1174 = vpow.pop %v1173
  %v1175 = vmul.f32 %v1099, 1.442695
  %v1176 = vpow.pop %v1175
  %v1177 = vmul.f32 %v1100, 1.442695
  %v1178 = vpow.pop %v1177
  %v1179 = vmul.f32 %v1101, 1.442695
  %v1180 = vpow.pop %v1179
  %v1181 = vmul.f32 %v1102, 1.442695
  %v1182 = vpow.pop %v1181
  %v1183 = vmul.f32 %v1103, 1.442695
  %v1184 = vpow.pop %v1183
  %v1185 = vmul.f32 %v1104, 1.442695
  %v1186 = vpow.pop %v1185
  %v1187 = vmul.f32 %v1105, 1.442695
  %v1188 = vpow.pop %v1187
  %v1189 = vmul.f32 %v1106, 1.442695
  %v1190 = vpow.pop %v1189
  %v1191 = vmul.f32 %v1107, 1.442695
  %v1192 = vpow.pop %v1191
  %v1193 = vmul.f32 %v1108, 1.442695
  %v1194 = vpow.pop %v1193
  %v1195 = vmul.f32 %v1109, 1.442695
  %v1196 = vpow.pop %v1195
  %v1197 = vmul.f32 %v1110, 1.442695
  %v1198 = vpow.pop %v1197
  %v1199 = vmul.f32 %v1111, 1.442695
  %v1200 = vpow.pop %v1199
  %v1201 = vmul.f32 %v1112, 1.442695
  %v1202 = vpow.pop %v1201
  %v1203 = vmul.f32 %v1113, 1.442695
  %v1204 = vpow.pop %v1203
  %v1205 = vmul.f32 %v1114, 1.442695
  %v1206 = vpow.pop %v1205
  %v1207 = vmul.f32 %v1115, 1.442695
  %v1208 = vpow.pop %v1207
  %v1209 = vmul.f32 %v1116, 1.442695
  %v1210 = vpow.pop %v1209
  %v1211 = vmul.f32 %v1117, 1.442695
  %v1212 = vpow.pop %v1211
  %v1213 = vmul.f32 %v1118, 1.442695
  %v1214 = vpow.pop %v1213
  %v1215 = vmul.f32 %v1119, 1.442695
  %v1216 = vpow.pop %v1215
  %v1217 = vmul.f32 %v1120, 1.442695
  %v1218 = vpow.pop %v1217
  %v1219 = vmul.f32 %v1121, 1.442695
  %v1220 = vpow.pop %v1219
  %v1221 = vmul.f32 %v1122, 1.442695
  %v1222 = vpow.pop %v1221
  %v1223 = vmul.f32 %v1123, 1.442695
  %v1224 = vpow.pop %v1223
  %v1225 = vmul.f32 %v1124, 1.442695
  %v1226 = vpow.pop %v1225
  %v1227 = vmul.f32 %v1125, 1.442695
  %v1228 = vpow.pop %v1227
  %v1229 = vmul.f32 %v1126, 1.442695
  %v1230 = vpow.pop %v1229
  %v1231 = vmul.f32 %v1127, 1.442695
  %v1232 = vpow.pop %v1231
  %v1233 = vmul.f32 %v1128, 1.442695
  %v1234 = vpow.pop %v1233
  %v1235 = vmul.f32 %v1129, 1.442695
  %v1236 = vpow.pop %v1235
  %v1237 = vmul.f32 %v1130, 1.442695
  %v1238 = vpow.pop %v1237
  %v1239 = vmul.f32 %v1131, 1.442695
  %v1240 = vpow.pop %v1239
  %v1241 = vmul.f32 %v1132, 1.442695
  %v1242 = vpow.pop %v1241
  %v1243 = vmul.f32 %v1133, 1.442695
  %v1244 = vpow.pop %v1243
  %v1245 = vmul.f32 %v1134, 1.442695
  %v1246 = vpow.pop %v1245
  %v1247 = vmul.f32 %v1135, 1.442695
  %v1248 = vpow.pop %v1247
  %v1249 = vmul.f32 %v1136, 1.442695
  %v1250 = vpow.pop %v1249
  %v1251 = vmul.f32 %v1137, 1.442695
  %v1252 = vpow.pop %v1251
  %v1253 = vmul.f32 %v1138, 1.442695
  %v1254 = vpow.pop %v1253
  %v1255 = vmul.f32 %v1139, 1.442695
  %v1256 = vpow.pop %v1255
  %v1257 = vmul.f32 %v1140, 1.442695
  %v1258 = vpow.pop %v1257
  %v1259 = vmul.f32 %v1141, 1.442695
  %v1260 = vpow.pop %v1259
  %v1261 = vmul.f32 %v1142, 1.442695
  %v1262 = vpow.pop %v1261
  %v1263 = vmul.f32 %v1143, 1.442695
  %v1264 = vpow.pop %v1263
  %v1265 = vmul.f32 %v1144, 1.442695
  %v1266 = vpow.pop %v1265
  %v1267 = vmul.f32 %v1145, 1.442695
  %v1268 = vpow.pop %v1267
  %v1269 = vmul.f32 %v1146, 1.442695
  %v1270 = vpow.pop %v1269
  %v1271 = vmul.f32 %v1147, 1.442695
  %v1272 = vpow.pop %v1271
  %v1273 = vmul.f32 %v1148, 1.442695
  %v1274 = vpow.pop %v1273
  %v1275 = vmul.f32 %v1149, 1.442695
  %v1276 = vpow.pop %v1275
  %v1277 = vmul.f32 %v1150, 1.442695
  %v1278 = vpow.pop %v1277
  %v1279 = vadd.f32 %v1152, 1.0
  %v1280 = vadd.f32 %v1154, 1.0
  %v1281 = vadd.f32 %v1156, 1.0
  %v1282 = vadd.f32 %v1158, 1.0
  %v1283 = vadd.f32 %v1160, 1.0
  %v1284 = vadd.f32 %v1162, 1.0
  %v1285 = vadd.f32 %v1164, 1.0
  %v1286 = vadd.f32 %v1166, 1.0
  %v1287 = vadd.f32 %v1168, 1.0
  %v1288 = vadd.f32 %v1170, 1.0
  %v1289 = vadd.f32 %v1172, 1.0
  %v1290 = vadd.f32 %v1174, 1.0
  %v1291 = vadd.f32 %v1176, 1.0
  %v1292 = vadd.f32 %v1178, 1.0
  %v1293 = vadd.f32 %v1180, 1.0
  %v1294 = vadd.f32 %v1182, 1.0
  %v1295 = vadd.f32 %v1184, 1.0
  %v1296 = vadd.f32 %v1186, 1.0
  %v1297 = vadd.f32 %v1188, 1.0
  %v1298 = vadd.f32 %v1190, 1.0
  %v1299 = vadd.f32 %v1192, 1.0
  %v1300 = vadd.f32 %v1194, 1.0
  %v1301 = vadd.f32 %v1196, 1.0
  %v1302 = vadd.f32 %v1198, 1.0
  %v1303 = vadd.f32 %v1200, 1.0
  %v1304 = vadd.f32 %v1202, 1.0
  %v1305 = vadd.f32 %v1204, 1.0
  %v1306 = vadd.f32 %v1206, 1.0
  %v1307 = vadd.f32 %v1208, 1.0
  %v1308 = vadd.f32 %v1210, 1.0
  %v1309 = vadd.f32 %v1212, 1.0
  %v1310 = vadd.f32 %v1214, 1.0
  %v1311 = vadd.f32 %v1216, 1.0
  %v1312 = vadd.f32 %v1218, 1.0
  %v1313 = vadd.f32 %v1220, 1.0
  %v1314 = vadd.f32 %v1222, 1.0
  %v1315 = vadd.f32 %v1224, 1.0
  %v1316 = vadd.f32 %v1226, 1.0
  %v1317 = vadd.f32 %v1228, 1.0
  %v1318 = vadd.f32 %v1230, 1.0
  %v1319 = vadd.f32 %v1232, 1.0
  %v1320 = vadd.f32 %v1234, 1.0
  %v1321 = vadd.f32 %v1236, 1.0
  %v1322 = vadd.f32 %v1238, 1.0
  %v1323 = vadd.f32 %v1240, 1.0
  %v1324 = vadd.f32 %v1242, 1.0
  %v1325 = vadd.f32 %v1244, 1.0
  %v1326 = vadd.f32 %v1246, 1.0
  %v1327 = vadd.f32 %v1248, 1.0
  %v1328 = vadd.f32 %v1250, 1.0
  %v1329 = vadd.f32 %v1252, 1.0
  %v1330 = vadd.f32 %v1254, 1.0
  %v1331 = vadd.f32 %v1256, 1.0
  %v1332 = vadd.f32 %v1258, 1.0
  %v1333 = vadd.f32 %v1260, 1.0
  %v1334 = vadd.f32 %v1262, 1.0
  %v1335 = vadd.f32 %v1264, 1.0
  %v1336 = vadd.f32 %v1266, 1.0
  %v1337 = vadd.f32 %v1268, 1.0
  %v1338 = vadd.f32 %v1270, 1.0
  %v1339 = vadd.f32 %v1272, 1.0
  %v1340 = vadd.f32 %v1274, 1.0
  %v1341 = vadd.f32 %v1276, 1.0
  %v1342 = vadd.f32 %v1278, 1.0
  %v1343 = vrcp.pop %v1279
  %v1344 = vrcp.pop %v1280
  %v1345 = vrcp.pop %v1281
  %v1346 = vrcp.pop %v1282
  %v1347 = vrcp.pop %v1283
  %v1348 = vrcp.pop %v1284
  %v1349 = vrcp.pop %v1285
  %v1350 = vrcp.pop %v1286
  %v1351 = vrcp.pop %v1287
  %v1352 = vrcp.pop %v1288
  %v1353 = vrcp.pop %v1289
  %v1354 = vrcp.pop %v1290
  %v1355 = vrcp.pop %v1291
  %v1356 = vrcp.pop %v1292
  %v1357 = vrcp.pop %v1293
  %v1358 = vrcp.pop %v1294
  %v1359 = vrcp.pop %v1295
  %v1360 = vrcp.pop %v1296
  %v1361 = vrcp.pop %v1297
  %v1362 = vrcp.pop %v1298
  %v1363 = vrcp.pop %v1299
  %v1364 = vrcp.pop %v1300
  %v1365 = vrcp.pop %v1301
  %v1366 = vrcp.pop %v1302
  %v1367 = vrcp.pop %v1303
  %v1368 = vrcp.pop %v1304
  %v1369 = vrcp.pop %v1305
  %v1370 = vrcp.pop %v1306
  %v1371 = vrcp.pop %v1307
  %v1372 = vrcp.pop %v1308
  %v1373 = vrcp.pop %v1309
  %v1374 = vrcp.pop %v1310
  %v1375 = vrcp.pop %v1311
  %v1376 = vrcp.pop %v1312
  %v1377 = vrcp.pop %v1313
  %v1378 = vrcp.pop %v1314
  %v1379 = vrcp.pop %v1315
  %v1380 = vrcp.pop %v1316
  %v1381 = vrcp.pop %v1317
  %v1382 = vrcp.pop %v1318
  %v1383 = vrcp.pop %v1319
  %v1384 = vrcp.pop %v1320
  %v1385 = vrcp.pop %v1321
  %v1386 = vrcp.pop %v1322
  %v1387 = vrcp.pop %v1323
  %v1388 = vrcp.pop %v1324
  %v1389 = vrcp.pop %v1325
  %v1390 = vrcp.pop %v1326
  %v1391 = vrcp.pop %v1327
  %v1392 = vrcp.pop %v1328
  %v1393 = vrcp.pop %v1329
  %v1394 = vrcp.pop %v1330
  %v1395 = vrcp.pop %v1331
  %v1396 = vrcp.pop %v1332
  %v1397 = vrcp.pop %v1333
  %v1398 = vrcp.pop %v1334
  %v1399 = vrcp.pop %v1335
  %v1400 = vrcp.pop %v1336
  %v1401 = vrcp.pop %v1337
  %v1402 = vrcp.pop %v1338
  %v1403 = vrcp.pop %v1339
  %v1404 = vrcp.pop %v1340
  %v1405 = vrcp.pop %v1341
  %v1406 = vrcp.pop %v1342
  %v1407 = vmul.f32 %v1023, %v1343
  %v1408 = vmul.f32 %v1024, %v1344
  %v1409 = vmul.f32 %v1025, %v1345
  %v1410 = vmul.f32 %v1026, %v1346
  %v1411 = vmul.f32 %v1027, %v1347
  %v1412 = vmul.f32 %v1028, %v1348
  %v1413 = vmul.f32 %v1029, %v1349
  %v1414 = vmul.f32 %v1030, %v1350
  %v1415 = vmul.f32 %v1031, %v1351
  %v1416 = vmul.f32 %v1032, %v1352
  %v1417 = vmul.f32 %v1033, %v1353
  %v1418 = vmul.f32 %v1034, %v1354
  %v1419 = vmul.f32 %v1035, %v1355
  %v1420 = vmul.f32 %v1036, %v1356
  %v1421 = vmul.f32 %v1037, %v1357
  %v1422 = vmul.f32 %v1038, %v1358
  %v1423 = vmul.f32 %v1039, %v1359
  %v1424 = vmul.f32 %v1040, %v1360
  %v1425 = vmul.f32 %v1041, %v1361
  %v1426 = vmul.f32 %v1042, %v1362
  %v1427 = vmul.f32 %v1043, %v1363
  %v1428 = vmul.f32 %v1044, %v1364
  %v1429 = vmul.f32 %v1045, %v1365
  %v1430 = vmul.f32 %v1046, %v1366
  %v1431 = vmul.f32 %v1047, %v1367
  %v1432 = vmul.f32 %v1048, %v1368
  %v1433 = vmul.f32 %v1049, %v1369
  %v1434 = vmul.f32 %v1050, %v1370
  %v1435 = vmul.f32 %v1051, %v1371
  %v1436 = vmul.f32 %v1052, %v1372
  %v1437 = vmul.f32 %v1053, %v1373
  %v1438 = vmul.f32 %v1054, %v1374
  %v1439 = vmul.f32 %v1055, %v1375
  %v1440 = vmul.f32 %v1056, %v1376
  %v1441 = vmul.f32 %v1057, %v1377
  %v1442 = vmul.f32 %v1058, %v1378
  %v1443 = vmul.f32 %v1059, %v1379
  %v1444 = vmul.f32 %v1060, %v1380
  %v1445 = vmul.f32 %v1061, %v1381
  %v1446 = vmul.f32 %v1062, %v1382
  %v1447 = vmul.f32 %v1063, %v1383
  %v1448 = vmul.f32 %v1064, %v1384
  %v1449 = vmul.f32 %v1065, %v1385
  %v1450 = vmul.f32 %v1066, %v1386
  %v1451 = vmul.f32 %v1067, %v1387
  %v1452 = vmul.f32 %v1068, %v1388
  %v1453 = vmul.f32 %v1069, %v1389
  %v1454 = vmul.f32 %v1070, %v1390
  %v1455 = vmul.f32 %v1071, %v1391
  %v1456 = vmul.f32 %v1072, %v1392
  %v1457 = vmul.f32 %v1073, %v1393
  %v1458 = vmul.f32 %v1074, %v1394
  %v1459 = vmul.f32 %v1075, %v1395
  %v1460 = vmul.f32 %v1076, %v1396
  %v1461 = vmul.f32 %v1077, %v1397
  %v1462 = vmul.f32 %v1078, %v1398
  %v1463 = vmul.f32 %v1079, %v1399
  %v1464 = vmul.f32 %v1080, %v1400
  %v1465 = vmul.f32 %v1081, %v1401
  %v1466 = vmul.f32 %v1082, %v1402
  %v1467 = vmul.f32 %v1083, %v1403
  %v1468 = vmul.f32 %v1084, %v1404
  %v1469 = vmul.f32 %v1085, %v1405
  %v1470 = vmul.f32 %v1086, %v1406
  %vm1471 = vcmask 523264
  %1472 = vst.msk [vmem:[%s5] sm:$0xff] %vm1471, %v1407
  %1473 = vst.msk [vmem:[%s5 + $0x8] sm:$0xff] %vm1471, %v1408
  %1474 = vst.msk [vmem:[%s5 + $0x10] sm:$0xff] %vm1471, %v1409
  %1475 = vst.msk [vmem:[%s5 + $0x18] sm:$0xff] %vm1471, %v1410
  %1476 = vst.msk [vmem:[%s5 + $0x20] sm:$0xff] %vm1471, %v1411
  %1477 = vst.msk [vmem:[%s5 + $0x28] sm:$0xff] %vm1471, %v1412
  %1478 = vst.msk [vmem:[%s5 + $0x30] sm:$0xff] %vm1471, %v1413
  %1479 = vst.msk [vmem:[%s5 + $0x38] sm:$0xff] %vm1471, %v1414
  %1480 = vst.msk [vmem:[%s5 + $0x40] sm:$0xff] %vm1471, %v1415
  %1481 = vst.msk [vmem:[%s5 + $0x48] sm:$0xff] %vm1471, %v1416
  %1482 = vst.msk [vmem:[%s5 + $0x50] sm:$0xff] %vm1471, %v1417
  %1483 = vst.msk [vmem:[%s5 + $0x58] sm:$0xff] %vm1471, %v1418
  %1484 = vst.msk [vmem:[%s5 + $0x60] sm:$0xff] %vm1471, %v1419
  %1485 = vst.msk [vmem:[%s5 + $0x68] sm:$0xff] %vm1471, %v1420
  %1486 = vst.msk [vmem:[%s5 + $0x70] sm:$0xff] %vm1471, %v1421
  %1487 = vst.msk [vmem:[%s5 + $0x78] sm:$0xff] %vm1471, %v1422
  %1488 = vst.msk [vmem:[%s5 + $0x80] sm:$0xff] %vm1471, %v1423
  %1489 = vst.msk [vmem:[%s5 + $0x88] sm:$0xff] %vm1471, %v1424
  %1490 = vst.msk [vmem:[%s5 + $0x90] sm:$0xff] %vm1471, %v1425
  %1491 = vst.msk [vmem:[%s5 + $0x98] sm:$0xff] %vm1471, %v1426
  %1492 = vst.msk [vmem:[%s5 + $0xa0] sm:$0xff] %vm1471, %v1427
  %1493 = vst.msk [vmem:[%s5 + $0xa8] sm:$0xff] %vm1471, %v1428
  %1494 = vst.msk [vmem:[%s5 + $0xb0] sm:$0xff] %vm1471, %v1429
  %1495 = vst.msk [vmem:[%s5 + $0xb8] sm:$0xff] %vm1471, %v1430
  %1496 = vst.msk [vmem:[%s5 + $0xc0] sm:$0xff] %vm1471, %v1431
  %1497 = vst.msk [vmem:[%s5 + $0xc8] sm:$0xff] %vm1471, %v1432
  %1498 = vst.msk [vmem:[%s5 + $0xd0] sm:$0xff] %vm1471, %v1433
  %1499 = vst.msk [vmem:[%s5 + $0xd8] sm:$0xff] %vm1471, %v1434
  %1500 = vst.msk [vmem:[%s5 + $0xe0] sm:$0xff] %vm1471, %v1435
  %1501 = vst.msk [vmem:[%s5 + $0xe8] sm:$0xff] %vm1471, %v1436
  %1502 = vst.msk [vmem:[%s5 + $0xf0] sm:$0xff] %vm1471, %v1437
  %1503 = vst.msk [vmem:[%s5 + $0xf8] sm:$0xff] %vm1471, %v1438
  %1504 = vst.msk [vmem:[%s5 + $0x100] sm:$0xff] %vm1471, %v1439
  %1505 = vst.msk [vmem:[%s5 + $0x108] sm:$0xff] %vm1471, %v1440
  %1506 = vst.msk [vmem:[%s5 + $0x110] sm:$0xff] %vm1471, %v1441
  %1507 = vst.msk [vmem:[%s5 + $0x118] sm:$0xff] %vm1471, %v1442
  %1508 = vst.msk [vmem:[%s5 + $0x120] sm:$0xff] %vm1471, %v1443
  %1509 = vst.msk [vmem:[%s5 + $0x128] sm:$0xff] %vm1471, %v1444
  %1510 = vst.msk [vmem:[%s5 + $0x130] sm:$0xff] %vm1471, %v1445
  %1511 = vst.msk [vmem:[%s5 + $0x138] sm:$0xff] %vm1471, %v1446
  %1512 = vst.msk [vmem:[%s5 + $0x140] sm:$0xff] %vm1471, %v1447
  %1513 = vst.msk [vmem:[%s5 + $0x148] sm:$0xff] %vm1471, %v1448
  %1514 = vst.msk [vmem:[%s5 + $0x150] sm:$0xff] %vm1471, %v1449
  %1515 = vst.msk [vmem:[%s5 + $0x158] sm:$0xff] %vm1471, %v1450
  %1516 = vst.msk [vmem:[%s5 + $0x160] sm:$0xff] %vm1471, %v1451
  %1517 = vst.msk [vmem:[%s5 + $0x168] sm:$0xff] %vm1471, %v1452
  %1518 = vst.msk [vmem:[%s5 + $0x170] sm:$0xff] %vm1471, %v1453
  %1519 = vst.msk [vmem:[%s5 + $0x178] sm:$0xff] %vm1471, %v1454
  %1520 = vst.msk [vmem:[%s5 + $0x180] sm:$0xff] %vm1471, %v1455
  %1521 = vst.msk [vmem:[%s5 + $0x188] sm:$0xff] %vm1471, %v1456
  %1522 = vst.msk [vmem:[%s5 + $0x190] sm:$0xff] %vm1471, %v1457
  %1523 = vst.msk [vmem:[%s5 + $0x198] sm:$0xff] %vm1471, %v1458
  %1524 = vst.msk [vmem:[%s5 + $0x1a0] sm:$0xff] %vm1471, %v1459
  %1525 = vst.msk [vmem:[%s5 + $0x1a8] sm:$0xff] %vm1471, %v1460
  %1526 = vst.msk [vmem:[%s5 + $0x1b0] sm:$0xff] %vm1471, %v1461
  %1527 = vst.msk [vmem:[%s5 + $0x1b8] sm:$0xff] %vm1471, %v1462
  %1528 = vst.msk [vmem:[%s5 + $0x1c0] sm:$0xff] %vm1471, %v1463
  %1529 = vst.msk [vmem:[%s5 + $0x1c8] sm:$0xff] %vm1471, %v1464
  %1530 = vst.msk [vmem:[%s5 + $0x1d0] sm:$0xff] %vm1471, %v1465
  %1531 = vst.msk [vmem:[%s5 + $0x1d8] sm:$0xff] %vm1471, %v1466
  %1532 = vst.msk [vmem:[%s5 + $0x1e0] sm:$0xff] %vm1471, %v1467
  %1533 = vst.msk [vmem:[%s5 + $0x1e8] sm:$0xff] %vm1471, %v1468
  %1534 = vst.msk [vmem:[%s5 + $0x1f0] sm:$0xff] %vm1471, %v1469
  %1535 = vst.msk [vmem:[%s5 + $0x1f8] sm:$0xff] %vm1471, %v1470
  // Predicated region
  $region22: #{st2cspa_forward.7} parent=0 // pred_check
    _
  $region23: #{st2cspa_forward.7} parent=0 // pred_check_branch
    %1537 = sbr.rel (0) target = $region25
  $region24: #{st2cspa_forward.7} parent=0 // pred_region
    _
  $region25: #{st2cspa_forward.7} parent=0 // pred_fallthru
    _
  // Predicated region
  $region26: #{st2cspa_forward.7} parent=0 // pred_check
    _
  $region27: #{st2cspa_forward.7} parent=0 // pred_check_branch
    %1539 = sbr.rel (0) target = $region29
  $region28: #{st2cspa_forward.7} parent=0 // pred_region
    _
  $region29: #{st2cspa_forward.7} parent=0 // pred_fallthru
    _

// kernel: st2cspa_forward.6
$region0: #{st2cspa_forward.6}
  #allocation0 [shape = 'u32[]', space=smem, size = 0x4, offset = 0x4, fixed_abs, tag = 'smem constant byte address 0x4 - core index']
  #allocation1 [shape = 'u32[144,128]{1,0:T(1,128)}', space=vmem, size = 0x12000, scoped, tag = 'internal scratch']
  %s0 = inlined_call_operand.vmem [shape: f32[512,32], index: 0, kind: input, shape index: {}]
  %s1 = inlined_call_operand.vmem [shape: f32[512,32], index: 1, kind: input, shape index: {}]
  %s2 = inlined_call_operand.vmem [shape: f32[1,32], index: 2, kind: input, shape index: {}]
  %s3 = inlined_call_operand.vmem [shape: f32[1,32], index: 3, kind: input, shape index: {}]
  %s4 = inlined_call_operand.vmem [shape: bf16[32,128], index: 4, kind: input, shape index: {}]
  %s5 = inlined_call_operand.vmem [shape: f32[1,128], index: 5, kind: input, shape index: {}]
  %s6 = inlined_call_operand.vmem [shape: bf16[128,32], index: 6, kind: input, shape index: {}]
  %s7 = inlined_call_operand.vmem [shape: f32[1,32], index: 7, kind: input, shape index: {}]
  %s8 = inlined_call_operand.vmem [shape: f32[1,32], index: 8, kind: input, shape index: {}]
  %s9 = inlined_call_operand.vmem [shape: f32[1,32], index: 9, kind: input, shape index: {}]
  %s10 = inlined_call_operand.vmem [shape: f32[512,32], index: 10, kind: output, shape index: {}]
  %s11 = sld [smem:[#allocation0]]
  $region50: #{st2cspa_forward.6} parent=0
    _
  %s13 = ssub.s32 1, %s11
  %s14 = scalar_select 0, %s13, %s11
  // Predicated region
  $region2: #{st2cspa_forward.6} parent=0 // pred_check
    _
  $region3: #{st2cspa_forward.6} parent=0 // pred_check_branch
    %16 = sbr.rel (0) target = $region5
  $region4: #{st2cspa_forward.6} parent=0 // pred_region
    _
  $region5: #{st2cspa_forward.6} parent=0 // pred_fallthru
    _
  // Predicated region
  $region6: #{st2cspa_forward.6} parent=0 // pred_check
    _
  $region7: #{st2cspa_forward.6} parent=0 // pred_check_branch
    %18 = sbr.rel (0) target = $region9
  $region8: #{st2cspa_forward.6} parent=0 // pred_region
    _
  $region9: #{st2cspa_forward.6} parent=0 // pred_fallthru
    _
  // Predicated region
  $region10: #{st2cspa_forward.6} parent=0 // pred_check
    _
  $region11: #{st2cspa_forward.6} parent=0 // pred_check_branch
    %20 = sbr.rel (0) target = $region13
  $region12: #{st2cspa_forward.6} parent=0 // pred_region
    _
  $region13: #{st2cspa_forward.6} parent=0 // pred_fallthru
    _
  // Predicated region
  $region14: #{st2cspa_forward.6} parent=0 // pred_check
    _
  $region15: #{st2cspa_forward.6} parent=0 // pred_check_branch
    %22 = sbr.rel (0) target = $region17
  $region16: #{st2cspa_forward.6} parent=0 // pred_region
    _
  $region17: #{st2cspa_forward.6} parent=0 // pred_fallthru
    _
  // Predicated region
  $region18: #{st2cspa_forward.6} parent=0 // pred_check
    _
  $region19: #{st2cspa_forward.6} parent=0 // pred_check_branch
    %24 = sbr.rel (0) target = $region21
  $region20: #{st2cspa_forward.6} parent=0 // pred_region
    _
  $region21: #{st2cspa_forward.6} parent=0 // pred_fallthru
    _
  // Predicated region
  $region22: #{st2cspa_forward.6} parent=0 // pred_check
    _
  $region23: #{st2cspa_forward.6} parent=0 // pred_check_branch
    %26 = sbr.rel (0) target = $region25
  $region24: #{st2cspa_forward.6} parent=0 // pred_region
    _
  $region25: #{st2cspa_forward.6} parent=0 // pred_fallthru
    _
  // Predicated region
  $region26: #{st2cspa_forward.6} parent=0 // pred_check
    _
  $region27: #{st2cspa_forward.6} parent=0 // pred_check_branch
    %28 = sbr.rel (0) target = $region29
  $region28: #{st2cspa_forward.6} parent=0 // pred_region
    _
  $region29: #{st2cspa_forward.6} parent=0 // pred_fallthru
    _
  // Predicated region
  $region30: #{st2cspa_forward.6} parent=0 // pred_check
    _
  $region31: #{st2cspa_forward.6} parent=0 // pred_check_branch
    %30 = sbr.rel (0) target = $region33
  $region32: #{st2cspa_forward.6} parent=0 // pred_region
    _
  $region33: #{st2cspa_forward.6} parent=0 // pred_fallthru
    _
  // Predicated region
  $region34: #{st2cspa_forward.6} parent=0 // pred_check
    _
  $region35: #{st2cspa_forward.6} parent=0 // pred_check_branch
    %32 = sbr.rel (0) target = $region37
  $region36: #{st2cspa_forward.6} parent=0 // pred_region
    _
  $region37: #{st2cspa_forward.6} parent=0 // pred_fallthru
    _
  // Predicated region
  $region38: #{st2cspa_forward.6} parent=0 // pred_check
    _
  $region39: #{st2cspa_forward.6} parent=0 // pred_check_branch
    %34 = sbr.rel (0) target = $region41
  $region40: #{st2cspa_forward.6} parent=0 // pred_region
    _
  $region41: #{st2cspa_forward.6} parent=0 // pred_fallthru
    _
  %v36 = vld [vmem:[%s0] sm:$0xff]
  %v37 = vld [vmem:[%s0 + $0x8] sm:$0xff]
  %v38 = vld [vmem:[%s0 + $0x10] sm:$0xff]
  %v39 = vld [vmem:[%s0 + $0x18] sm:$0xff]
  %v40 = vld [vmem:[%s0 + $0x20] sm:$0xff]
  %v41 = vld [vmem:[%s0 + $0x28] sm:$0xff]
  %v42 = vld [vmem:[%s0 + $0x30] sm:$0xff]
  %v43 = vld [vmem:[%s0 + $0x38] sm:$0xff]
  %v44 = vld [vmem:[%s0 + $0x40] sm:$0xff]
  %v45 = vld [vmem:[%s0 + $0x48] sm:$0xff]
  %v46 = vld [vmem:[%s0 + $0x50] sm:$0xff]
  %v47 = vld [vmem:[%s0 + $0x58] sm:$0xff]
  %v48 = vld [vmem:[%s0 + $0x60] sm:$0xff]
  %v49 = vld [vmem:[%s0 + $0x68] sm:$0xff]
  %v50 = vld [vmem:[%s0 + $0x70] sm:$0xff]
  %v51 = vld [vmem:[%s0 + $0x78] sm:$0xff]
  %v52 = vld [vmem:[%s0 + $0x80] sm:$0xff]
  %v53 = vld [vmem:[%s0 + $0x88] sm:$0xff]
  %v54 = vld [vmem:[%s0 + $0x90] sm:$0xff]
  %v55 = vld [vmem:[%s0 + $0x98] sm:$0xff]
  %v56 = vld [vmem:[%s0 + $0xa0] sm:$0xff]
  %v57 = vld [vmem:[%s0 + $0xa8] sm:$0xff]
  %v58 = vld [vmem:[%s0 + $0xb0] sm:$0xff]
  %v59 = vld [vmem:[%s0 + $0xb8] sm:$0xff]
  %v60 = vld [vmem:[%s0 + $0xc0] sm:$0xff]
  %v61 = vld [vmem:[%s0 + $0xc8] sm:$0xff]
  %v62 = vld [vmem:[%s0 + $0xd0] sm:$0xff]
  %v63 = vld [vmem:[%s0 + $0xd8] sm:$0xff]
  %v64 = vld [vmem:[%s0 + $0xe0] sm:$0xff]
  %v65 = vld [vmem:[%s0 + $0xe8] sm:$0xff]
  %v66 = vld [vmem:[%s0 + $0xf0] sm:$0xff]
  %v67 = vld [vmem:[%s0 + $0xf8] sm:$0xff]
  %v68 = vld [vmem:[%s0 + $0x100] sm:$0xff]
  %v69 = vld [vmem:[%s0 + $0x108] sm:$0xff]
  %v70 = vld [vmem:[%s0 + $0x110] sm:$0xff]
  %v71 = vld [vmem:[%s0 + $0x118] sm:$0xff]
  %v72 = vld [vmem:[%s0 + $0x120] sm:$0xff]
  %v73 = vld [vmem:[%s0 + $0x128] sm:$0xff]
  %v74 = vld [vmem:[%s0 + $0x130] sm:$0xff]
  %v75 = vld [vmem:[%s0 + $0x138] sm:$0xff]
  %v76 = vld [vmem:[%s0 + $0x140] sm:$0xff]
  %v77 = vld [vmem:[%s0 + $0x148] sm:$0xff]
  %v78 = vld [vmem:[%s0 + $0x150] sm:$0xff]
  %v79 = vld [vmem:[%s0 + $0x158] sm:$0xff]
  %v80 = vld [vmem:[%s0 + $0x160] sm:$0xff]
  %v81 = vld [vmem:[%s0 + $0x168] sm:$0xff]
  %v82 = vld [vmem:[%s0 + $0x170] sm:$0xff]
  %v83 = vld [vmem:[%s0 + $0x178] sm:$0xff]
  %v84 = vld [vmem:[%s0 + $0x180] sm:$0xff]
  %v85 = vld [vmem:[%s0 + $0x188] sm:$0xff]
  %v86 = vld [vmem:[%s0 + $0x190] sm:$0xff]
  %v87 = vld [vmem:[%s0 + $0x198] sm:$0xff]
  %v88 = vld [vmem:[%s0 + $0x1a0] sm:$0xff]
  %v89 = vld [vmem:[%s0 + $0x1a8] sm:$0xff]
  %v90 = vld [vmem:[%s0 + $0x1b0] sm:$0xff]
  %v91 = vld [vmem:[%s0 + $0x1b8] sm:$0xff]
  %v92 = vld [vmem:[%s0 + $0x1c0] sm:$0xff]
  %v93 = vld [vmem:[%s0 + $0x1c8] sm:$0xff]
  %v94 = vld [vmem:[%s0 + $0x1d0] sm:$0xff]
  %v95 = vld [vmem:[%s0 + $0x1d8] sm:$0xff]
  %v96 = vld [vmem:[%s0 + $0x1e0] sm:$0xff]
  %v97 = vld [vmem:[%s0 + $0x1e8] sm:$0xff]
  %v98 = vld [vmem:[%s0 + $0x1f0] sm:$0xff]
  %v99 = vld [vmem:[%s0 + $0x1f8] sm:$0xff]
  %v100 = vld [vmem:[%s1] sm:$0xff]
  %v101 = vld [vmem:[%s1 + $0x8] sm:$0xff]
  %v102 = vld [vmem:[%s1 + $0x10] sm:$0xff]
  %v103 = vld [vmem:[%s1 + $0x18] sm:$0xff]
  %v104 = vld [vmem:[%s1 + $0x20] sm:$0xff]
  %v105 = vld [vmem:[%s1 + $0x28] sm:$0xff]
  %v106 = vld [vmem:[%s1 + $0x30] sm:$0xff]
  %v107 = vld [vmem:[%s1 + $0x38] sm:$0xff]
  %v108 = vld [vmem:[%s1 + $0x40] sm:$0xff]
  %v109 = vld [vmem:[%s1 + $0x48] sm:$0xff]
  %v110 = vld [vmem:[%s1 + $0x50] sm:$0xff]
  %v111 = vld [vmem:[%s1 + $0x58] sm:$0xff]
  %v112 = vld [vmem:[%s1 + $0x60] sm:$0xff]
  %v113 = vld [vmem:[%s1 + $0x68] sm:$0xff]
  %v114 = vld [vmem:[%s1 + $0x70] sm:$0xff]
  %v115 = vld [vmem:[%s1 + $0x78] sm:$0xff]
  %v116 = vld [vmem:[%s1 + $0x80] sm:$0xff]
  %v117 = vld [vmem:[%s1 + $0x88] sm:$0xff]
  %v118 = vld [vmem:[%s1 + $0x90] sm:$0xff]
  %v119 = vld [vmem:[%s1 + $0x98] sm:$0xff]
  %v120 = vld [vmem:[%s1 + $0xa0] sm:$0xff]
  %v121 = vld [vmem:[%s1 + $0xa8] sm:$0xff]
  %v122 = vld [vmem:[%s1 + $0xb0] sm:$0xff]
  %v123 = vld [vmem:[%s1 + $0xb8] sm:$0xff]
  %v124 = vld [vmem:[%s1 + $0xc0] sm:$0xff]
  %v125 = vld [vmem:[%s1 + $0xc8] sm:$0xff]
  %v126 = vld [vmem:[%s1 + $0xd0] sm:$0xff]
  %v127 = vld [vmem:[%s1 + $0xd8] sm:$0xff]
  %v128 = vld [vmem:[%s1 + $0xe0] sm:$0xff]
  %v129 = vld [vmem:[%s1 + $0xe8] sm:$0xff]
  %v130 = vld [vmem:[%s1 + $0xf0] sm:$0xff]
  %v131 = vld [vmem:[%s1 + $0xf8] sm:$0xff]
  %v132 = vld [vmem:[%s1 + $0x100] sm:$0xff]
  %v133 = vld [vmem:[%s1 + $0x108] sm:$0xff]
  %v134 = vld [vmem:[%s1 + $0x110] sm:$0xff]
  %v135 = vld [vmem:[%s1 + $0x118] sm:$0xff]
  %v136 = vld [vmem:[%s1 + $0x120] sm:$0xff]
  %v137 = vld [vmem:[%s1 + $0x128] sm:$0xff]
  %v138 = vld [vmem:[%s1 + $0x130] sm:$0xff]
  %v139 = vld [vmem:[%s1 + $0x138] sm:$0xff]
  %v140 = vld [vmem:[%s1 + $0x140] sm:$0xff]
  %v141 = vld [vmem:[%s1 + $0x148] sm:$0xff]
  %v142 = vld [vmem:[%s1 + $0x150] sm:$0xff]
  %v143 = vld [vmem:[%s1 + $0x158] sm:$0xff]
  %v144 = vld [vmem:[%s1 + $0x160] sm:$0xff]
  %v145 = vld [vmem:[%s1 + $0x168] sm:$0xff]
  %v146 = vld [vmem:[%s1 + $0x170] sm:$0xff]
  %v147 = vld [vmem:[%s1 + $0x178] sm:$0xff]
  %v148 = vld [vmem:[%s1 + $0x180] sm:$0xff]
  %v149 = vld [vmem:[%s1 + $0x188] sm:$0xff]
  %v150 = vld [vmem:[%s1 + $0x190] sm:$0xff]
  %v151 = vld [vmem:[%s1 + $0x198] sm:$0xff]
  %v152 = vld [vmem:[%s1 + $0x1a0] sm:$0xff]
  %v153 = vld [vmem:[%s1 + $0x1a8] sm:$0xff]
  %v154 = vld [vmem:[%s1 + $0x1b0] sm:$0xff]
  %v155 = vld [vmem:[%s1 + $0x1b8] sm:$0xff]
  %v156 = vld [vmem:[%s1 + $0x1c0] sm:$0xff]
  %v157 = vld [vmem:[%s1 + $0x1c8] sm:$0xff]
  %v158 = vld [vmem:[%s1 + $0x1d0] sm:$0xff]
  %v159 = vld [vmem:[%s1 + $0x1d8] sm:$0xff]
  %v160 = vld [vmem:[%s1 + $0x1e0] sm:$0xff]
  %v161 = vld [vmem:[%s1 + $0x1e8] sm:$0xff]
  %v162 = vld [vmem:[%s1 + $0x1f0] sm:$0xff]
  %v163 = vld [vmem:[%s1 + $0x1f8] sm:$0xff]
  %v164 = vld [vmem:[%s2] sm:$0x1]
  %v165 = vld [vmem:[%s3] sm:$0x1]
  %vm166 = vcmask 261120
  %v167 = vsel %vm166, %v100, 0.0
  %168 = vadd.xlane.f32.xlu0 %v167
  %v169 = vpop.xlane.xlu0 %168
  %v170 = vsel %vm166, %v101, 0.0
  %171 = vadd.xlane.f32.xlu0 %v170
  %v172 = vpop.xlane.xlu0 %171
  %v173 = vsel %vm166, %v102, 0.0
  %174 = vadd.xlane.f32.xlu0 %v173
  %v175 = vpop.xlane.xlu0 %174
  %v176 = vsel %vm166, %v103, 0.0
  %177 = vadd.xlane.f32.xlu0 %v176
  %v178 = vpop.xlane.xlu0 %177
  %v179 = vsel %vm166, %v104, 0.0
  %180 = vadd.xlane.f32.xlu0 %v179
  %v181 = vpop.xlane.xlu0 %180
  %v182 = vsel %vm166, %v105, 0.0
  %183 = vadd.xlane.f32.xlu0 %v182
  %v184 = vpop.xlane.xlu0 %183
  %v185 = vsel %vm166, %v106, 0.0
  %186 = vadd.xlane.f32.xlu0 %v185
  %v187 = vpop.xlane.xlu0 %186
  %v188 = vsel %vm166, %v107, 0.0
  %189 = vadd.xlane.f32.xlu0 %v188
  %v190 = vpop.xlane.xlu0 %189
  %v191 = vsel %vm166, %v108, 0.0
  %192 = vadd.xlane.f32.xlu0 %v191
  %v193 = vpop.xlane.xlu0 %192
  %v194 = vsel %vm166, %v109, 0.0
  %195 = vadd.xlane.f32.xlu0 %v194
  %v196 = vpop.xlane.xlu0 %195
  %v197 = vsel %vm166, %v110, 0.0
  %198 = vadd.xlane.f32.xlu0 %v197
  %v199 = vpop.xlane.xlu0 %198
  %v200 = vsel %vm166, %v111, 0.0
  %201 = vadd.xlane.f32.xlu0 %v200
  %v202 = vpop.xlane.xlu0 %201
  %v203 = vsel %vm166, %v112, 0.0
  %204 = vadd.xlane.f32.xlu0 %v203
  %v205 = vpop.xlane.xlu0 %204
  %v206 = vsel %vm166, %v113, 0.0
  %207 = vadd.xlane.f32.xlu0 %v206
  %v208 = vpop.xlane.xlu0 %207
  %v209 = vsel %vm166, %v114, 0.0
  %210 = vadd.xlane.f32.xlu0 %v209
  %v211 = vpop.xlane.xlu0 %210
  %v212 = vsel %vm166, %v115, 0.0
  %213 = vadd.xlane.f32.xlu0 %v212
  %v214 = vpop.xlane.xlu0 %213
  %v215 = vsel %vm166, %v116, 0.0
  %216 = vadd.xlane.f32.xlu0 %v215
  %v217 = vpop.xlane.xlu0 %216
  %v218 = vsel %vm166, %v117, 0.0
  %219 = vadd.xlane.f32.xlu0 %v218
  %v220 = vpop.xlane.xlu0 %219
  %v221 = vsel %vm166, %v118, 0.0
  %222 = vadd.xlane.f32.xlu0 %v221
  %v223 = vpop.xlane.xlu0 %222
  %v224 = vsel %vm166, %v119, 0.0
  %225 = vadd.xlane.f32.xlu0 %v224
  %v226 = vpop.xlane.xlu0 %225
  %v227 = vsel %vm166, %v120, 0.0
  %228 = vadd.xlane.f32.xlu0 %v227
  %v229 = vpop.xlane.xlu0 %228
  %v230 = vsel %vm166, %v121, 0.0
  %231 = vadd.xlane.f32.xlu0 %v230
  %v232 = vpop.xlane.xlu0 %231
  %v233 = vsel %vm166, %v122, 0.0
  %234 = vadd.xlane.f32.xlu0 %v233
  %v235 = vpop.xlane.xlu0 %234
  %v236 = vsel %vm166, %v123, 0.0
  %237 = vadd.xlane.f32.xlu0 %v236
  %v238 = vpop.xlane.xlu0 %237
  %v239 = vsel %vm166, %v124, 0.0
  %240 = vadd.xlane.f32.xlu0 %v239
  %v241 = vpop.xlane.xlu0 %240
  %v242 = vsel %vm166, %v125, 0.0
  %243 = vadd.xlane.f32.xlu0 %v242
  %v244 = vpop.xlane.xlu0 %243
  %v245 = vsel %vm166, %v126, 0.0
  %246 = vadd.xlane.f32.xlu0 %v245
  %v247 = vpop.xlane.xlu0 %246
  %v248 = vsel %vm166, %v127, 0.0
  %249 = vadd.xlane.f32.xlu0 %v248
  %v250 = vpop.xlane.xlu0 %249
  %v251 = vsel %vm166, %v128, 0.0
  %252 = vadd.xlane.f32.xlu0 %v251
  %v253 = vpop.xlane.xlu0 %252
  %v254 = vsel %vm166, %v129, 0.0
  %255 = vadd.xlane.f32.xlu0 %v254
  %v256 = vpop.xlane.xlu0 %255
  %v257 = vsel %vm166, %v130, 0.0
  %258 = vadd.xlane.f32.xlu0 %v257
  %v259 = vpop.xlane.xlu0 %258
  %v260 = vsel %vm166, %v131, 0.0
  %261 = vadd.xlane.f32.xlu0 %v260
  %v262 = vpop.xlane.xlu0 %261
  %v263 = vsel %vm166, %v132, 0.0
  %264 = vadd.xlane.f32.xlu0 %v263
  %v265 = vpop.xlane.xlu0 %264
  %v266 = vsel %vm166, %v133, 0.0
  %267 = vadd.xlane.f32.xlu0 %v266
  %v268 = vpop.xlane.xlu0 %267
  %v269 = vsel %vm166, %v134, 0.0
  %270 = vadd.xlane.f32.xlu0 %v269
  %v271 = vpop.xlane.xlu0 %270
  %v272 = vsel %vm166, %v135, 0.0
  %273 = vadd.xlane.f32.xlu0 %v272
  %v274 = vpop.xlane.xlu0 %273
  %v275 = vsel %vm166, %v136, 0.0
  %276 = vadd.xlane.f32.xlu0 %v275
  %v277 = vpop.xlane.xlu0 %276
  %v278 = vsel %vm166, %v137, 0.0
  %279 = vadd.xlane.f32.xlu0 %v278
  %v280 = vpop.xlane.xlu0 %279
  %v281 = vsel %vm166, %v138, 0.0
  %282 = vadd.xlane.f32.xlu0 %v281
  %v283 = vpop.xlane.xlu0 %282
  %v284 = vsel %vm166, %v139, 0.0
  %285 = vadd.xlane.f32.xlu0 %v284
  %v286 = vpop.xlane.xlu0 %285
  %v287 = vsel %vm166, %v140, 0.0
  %288 = vadd.xlane.f32.xlu0 %v287
  %v289 = vpop.xlane.xlu0 %288
  %v290 = vsel %vm166, %v141, 0.0
  %291 = vadd.xlane.f32.xlu0 %v290
  %v292 = vpop.xlane.xlu0 %291
  %v293 = vsel %vm166, %v142, 0.0
  %294 = vadd.xlane.f32.xlu0 %v293
  %v295 = vpop.xlane.xlu0 %294
  %v296 = vsel %vm166, %v143, 0.0
  %297 = vadd.xlane.f32.xlu0 %v296
  %v298 = vpop.xlane.xlu0 %297
  %v299 = vsel %vm166, %v144, 0.0
  %300 = vadd.xlane.f32.xlu0 %v299
  %v301 = vpop.xlane.xlu0 %300
  %v302 = vsel %vm166, %v145, 0.0
  %303 = vadd.xlane.f32.xlu0 %v302
  %v304 = vpop.xlane.xlu0 %303
  %v305 = vsel %vm166, %v146, 0.0
  %306 = vadd.xlane.f32.xlu0 %v305
  %v307 = vpop.xlane.xlu0 %306
  %v308 = vsel %vm166, %v147, 0.0
  %309 = vadd.xlane.f32.xlu0 %v308
  %v310 = vpop.xlane.xlu0 %309
  %v311 = vsel %vm166, %v148, 0.0
  %312 = vadd.xlane.f32.xlu0 %v311
  %v313 = vpop.xlane.xlu0 %312
  %v314 = vsel %vm166, %v149, 0.0
  %315 = vadd.xlane.f32.xlu0 %v314
  %v316 = vpop.xlane.xlu0 %315
  %v317 = vsel %vm166, %v150, 0.0
  %318 = vadd.xlane.f32.xlu0 %v317
  %v319 = vpop.xlane.xlu0 %318
  %v320 = vsel %vm166, %v151, 0.0
  %321 = vadd.xlane.f32.xlu0 %v320
  %v322 = vpop.xlane.xlu0 %321
  %v323 = vsel %vm166, %v152, 0.0
  %324 = vadd.xlane.f32.xlu0 %v323
  %v325 = vpop.xlane.xlu0 %324
  %v326 = vsel %vm166, %v153, 0.0
  %327 = vadd.xlane.f32.xlu0 %v326
  %v328 = vpop.xlane.xlu0 %327
  %v329 = vsel %vm166, %v154, 0.0
  %330 = vadd.xlane.f32.xlu0 %v329
  %v331 = vpop.xlane.xlu0 %330
  %v332 = vsel %vm166, %v155, 0.0
  %333 = vadd.xlane.f32.xlu0 %v332
  %v334 = vpop.xlane.xlu0 %333
  %v335 = vsel %vm166, %v156, 0.0
  %336 = vadd.xlane.f32.xlu0 %v335
  %v337 = vpop.xlane.xlu0 %336
  %v338 = vsel %vm166, %v157, 0.0
  %339 = vadd.xlane.f32.xlu0 %v338
  %v340 = vpop.xlane.xlu0 %339
  %v341 = vsel %vm166, %v158, 0.0
  %342 = vadd.xlane.f32.xlu0 %v341
  %v343 = vpop.xlane.xlu0 %342
  %v344 = vsel %vm166, %v159, 0.0
  %345 = vadd.xlane.f32.xlu0 %v344
  %v346 = vpop.xlane.xlu0 %345
  %v347 = vsel %vm166, %v160, 0.0
  %348 = vadd.xlane.f32.xlu0 %v347
  %v349 = vpop.xlane.xlu0 %348
  %v350 = vsel %vm166, %v161, 0.0
  %351 = vadd.xlane.f32.xlu0 %v350
  %v352 = vpop.xlane.xlu0 %351
  %v353 = vsel %vm166, %v162, 0.0
  %354 = vadd.xlane.f32.xlu0 %v353
  %v355 = vpop.xlane.xlu0 %354
  %v356 = vsel %vm166, %v163, 0.0
  %357 = vadd.xlane.f32.xlu0 %v356
  %v358 = vpop.xlane.xlu0 %357
  %v359 = vrcp.pop 32.0
  %v360 = vmul.f32 %v169, %v359
  %v361 = vmul.f32 %v172, %v359
  %v362 = vmul.f32 %v175, %v359
  %v363 = vmul.f32 %v178, %v359
  %v364 = vmul.f32 %v181, %v359
  %v365 = vmul.f32 %v184, %v359
  %v366 = vmul.f32 %v187, %v359
  %v367 = vmul.f32 %v190, %v359
  %v368 = vmul.f32 %v193, %v359
  %v369 = vmul.f32 %v196, %v359
  %v370 = vmul.f32 %v199, %v359
  %v371 = vmul.f32 %v202, %v359
  %v372 = vmul.f32 %v205, %v359
  %v373 = vmul.f32 %v208, %v359
  %v374 = vmul.f32 %v211, %v359
  %v375 = vmul.f32 %v214, %v359
  %v376 = vmul.f32 %v217, %v359
  %v377 = vmul.f32 %v220, %v359
  %v378 = vmul.f32 %v223, %v359
  %v379 = vmul.f32 %v226, %v359
  %v380 = vmul.f32 %v229, %v359
  %v381 = vmul.f32 %v232, %v359
  %v382 = vmul.f32 %v235, %v359
  %v383 = vmul.f32 %v238, %v359
  %v384 = vmul.f32 %v241, %v359
  %v385 = vmul.f32 %v244, %v359
  %v386 = vmul.f32 %v247, %v359
  %v387 = vmul.f32 %v250, %v359
  %v388 = vmul.f32 %v253, %v359
  %v389 = vmul.f32 %v256, %v359
  %v390 = vmul.f32 %v259, %v359
  %v391 = vmul.f32 %v262, %v359
  %v392 = vmul.f32 %v265, %v359
  %v393 = vmul.f32 %v268, %v359
  %v394 = vmul.f32 %v271, %v359
  %v395 = vmul.f32 %v274, %v359
  %v396 = vmul.f32 %v277, %v359
  %v397 = vmul.f32 %v280, %v359
  %v398 = vmul.f32 %v283, %v359
  %v399 = vmul.f32 %v286, %v359
  %v400 = vmul.f32 %v289, %v359
  %v401 = vmul.f32 %v292, %v359
  %v402 = vmul.f32 %v295, %v359
  %v403 = vmul.f32 %v298, %v359
  %v404 = vmul.f32 %v301, %v359
  %v405 = vmul.f32 %v304, %v359
  %v406 = vmul.f32 %v307, %v359
  %v407 = vmul.f32 %v310, %v359
  %v408 = vmul.f32 %v313, %v359
  %v409 = vmul.f32 %v316, %v359
  %v410 = vmul.f32 %v319, %v359
  %v411 = vmul.f32 %v322, %v359
  %v412 = vmul.f32 %v325, %v359
  %v413 = vmul.f32 %v328, %v359
  %v414 = vmul.f32 %v331, %v359
  %v415 = vmul.f32 %v334, %v359
  %v416 = vmul.f32 %v337, %v359
  %v417 = vmul.f32 %v340, %v359
  %v418 = vmul.f32 %v343, %v359
  %v419 = vmul.f32 %v346, %v359
  %v420 = vmul.f32 %v349, %v359
  %v421 = vmul.f32 %v352, %v359
  %v422 = vmul.f32 %v355, %v359
  %v423 = vmul.f32 %v358, %v359
  %v424 = vsub.f32 %v100, %v360
  %v425 = vsub.f32 %v101, %v361
  %v426 = vsub.f32 %v102, %v362
  %v427 = vsub.f32 %v103, %v363
  %v428 = vsub.f32 %v104, %v364
  %v429 = vsub.f32 %v105, %v365
  %v430 = vsub.f32 %v106, %v366
  %v431 = vsub.f32 %v107, %v367
  %v432 = vsub.f32 %v108, %v368
  %v433 = vsub.f32 %v109, %v369
  %v434 = vsub.f32 %v110, %v370
  %v435 = vsub.f32 %v111, %v371
  %v436 = vsub.f32 %v112, %v372
  %v437 = vsub.f32 %v113, %v373
  %v438 = vsub.f32 %v114, %v374
  %v439 = vsub.f32 %v115, %v375
  %v440 = vsub.f32 %v116, %v376
  %v441 = vsub.f32 %v117, %v377
  %v442 = vsub.f32 %v118, %v378
  %v443 = vsub.f32 %v119, %v379
  %v444 = vsub.f32 %v120, %v380
  %v445 = vsub.f32 %v121, %v381
  %v446 = vsub.f32 %v122, %v382
  %v447 = vsub.f32 %v123, %v383
  %v448 = vsub.f32 %v124, %v384
  %v449 = vsub.f32 %v125, %v385
  %v450 = vsub.f32 %v126, %v386
  %v451 = vsub.f32 %v127, %v387
  %v452 = vsub.f32 %v128, %v388
  %v453 = vsub.f32 %v129, %v389
  %v454 = vsub.f32 %v130, %v390
  %v455 = vsub.f32 %v131, %v391
  %v456 = vsub.f32 %v132, %v392
  %v457 = vsub.f32 %v133, %v393
  %v458 = vsub.f32 %v134, %v394
  %v459 = vsub.f32 %v135, %v395
  %v460 = vsub.f32 %v136, %v396
  %v461 = vsub.f32 %v137, %v397
  %v462 = vsub.f32 %v138, %v398
  %v463 = vsub.f32 %v139, %v399
  %v464 = vsub.f32 %v140, %v400
  %v465 = vsub.f32 %v141, %v401
  %v466 = vsub.f32 %v142, %v402
  %v467 = vsub.f32 %v143, %v403
  %v468 = vsub.f32 %v144, %v404
  %v469 = vsub.f32 %v145, %v405
  %v470 = vsub.f32 %v146, %v406
  %v471 = vsub.f32 %v147, %v407
  %v472 = vsub.f32 %v148, %v408
  %v473 = vsub.f32 %v149, %v409
  %v474 = vsub.f32 %v150, %v410
  %v475 = vsub.f32 %v151, %v411
  %v476 = vsub.f32 %v152, %v412
  %v477 = vsub.f32 %v153, %v413
  %v478 = vsub.f32 %v154, %v414
  %v479 = vsub.f32 %v155, %v415
  %v480 = vsub.f32 %v156, %v416
  %v481 = vsub.f32 %v157, %v417
  %v482 = vsub.f32 %v158, %v418
  %v483 = vsub.f32 %v159, %v419
  %v484 = vsub.f32 %v160, %v420
  %v485 = vsub.f32 %v161, %v421
  %v486 = vsub.f32 %v162, %v422
  %v487 = vsub.f32 %v163, %v423
  %v488 = vmul.f32 %v424, %v424
  %v489 = vmul.f32 %v425, %v425
  %v490 = vmul.f32 %v426, %v426
  %v491 = vmul.f32 %v427, %v427
  %v492 = vmul.f32 %v428, %v428
  %v493 = vmul.f32 %v429, %v429
  %v494 = vmul.f32 %v430, %v430
  %v495 = vmul.f32 %v431, %v431
  %v496 = vmul.f32 %v432, %v432
  %v497 = vmul.f32 %v433, %v433
  %v498 = vmul.f32 %v434, %v434
  %v499 = vmul.f32 %v435, %v435
  %v500 = vmul.f32 %v436, %v436
  %v501 = vmul.f32 %v437, %v437
  %v502 = vmul.f32 %v438, %v438
  %v503 = vmul.f32 %v439, %v439
  %v504 = vmul.f32 %v440, %v440
  %v505 = vmul.f32 %v441, %v441
  %v506 = vmul.f32 %v442, %v442
  %v507 = vmul.f32 %v443, %v443
  %v508 = vmul.f32 %v444, %v444
  %v509 = vmul.f32 %v445, %v445
  %v510 = vmul.f32 %v446, %v446
  %v511 = vmul.f32 %v447, %v447
  %v512 = vmul.f32 %v448, %v448
  %v513 = vmul.f32 %v449, %v449
  %v514 = vmul.f32 %v450, %v450
  %v515 = vmul.f32 %v451, %v451
  %v516 = vmul.f32 %v452, %v452
  %v517 = vmul.f32 %v453, %v453
  %v518 = vmul.f32 %v454, %v454
  %v519 = vmul.f32 %v455, %v455
  %v520 = vmul.f32 %v456, %v456
  %v521 = vmul.f32 %v457, %v457
  %v522 = vmul.f32 %v458, %v458
  %v523 = vmul.f32 %v459, %v459
  %v524 = vmul.f32 %v460, %v460
  %v525 = vmul.f32 %v461, %v461
  %v526 = vmul.f32 %v462, %v462
  %v527 = vmul.f32 %v463, %v463
  %v528 = vmul.f32 %v464, %v464
  %v529 = vmul.f32 %v465, %v465
  %v530 = vmul.f32 %v466, %v466
  %v531 = vmul.f32 %v467, %v467
  %v532 = vmul.f32 %v468, %v468
  %v533 = vmul.f32 %v469, %v469
  %v534 = vmul.f32 %v470, %v470
  %v535 = vmul.f32 %v471, %v471
  %v536 = vmul.f32 %v472, %v472
  %v537 = vmul.f32 %v473, %v473
  %v538 = vmul.f32 %v474, %v474
  %v539 = vmul.f32 %v475, %v475
  %v540 = vmul.f32 %v476, %v476
  %v541 = vmul.f32 %v477, %v477
  %v542 = vmul.f32 %v478, %v478
  %v543 = vmul.f32 %v479, %v479
  %v544 = vmul.f32 %v480, %v480
  %v545 = vmul.f32 %v481, %v481
  %v546 = vmul.f32 %v482, %v482
  %v547 = vmul.f32 %v483, %v483
  %v548 = vmul.f32 %v484, %v484
  %v549 = vmul.f32 %v485, %v485
  %v550 = vmul.f32 %v486, %v486
  %v551 = vmul.f32 %v487, %v487
  %v552 = vsel %vm166, %v488, 0.0
  %553 = vadd.xlane.f32.xlu0 %v552
  %v554 = vpop.xlane.xlu0 %553
  %v555 = vsel %vm166, %v489, 0.0
  %556 = vadd.xlane.f32.xlu0 %v555
  %v557 = vpop.xlane.xlu0 %556
  %v558 = vsel %vm166, %v490, 0.0
  %559 = vadd.xlane.f32.xlu0 %v558
  %v560 = vpop.xlane.xlu0 %559
  %v561 = vsel %vm166, %v491, 0.0
  %562 = vadd.xlane.f32.xlu0 %v561
  %v563 = vpop.xlane.xlu0 %562
  %v564 = vsel %vm166, %v492, 0.0
  %565 = vadd.xlane.f32.xlu0 %v564
  %v566 = vpop.xlane.xlu0 %565
  %v567 = vsel %vm166, %v493, 0.0
  %568 = vadd.xlane.f32.xlu0 %v567
  %v569 = vpop.xlane.xlu0 %568
  %v570 = vsel %vm166, %v494, 0.0
  %571 = vadd.xlane.f32.xlu0 %v570
  %v572 = vpop.xlane.xlu0 %571
  %v573 = vsel %vm166, %v495, 0.0
  %574 = vadd.xlane.f32.xlu0 %v573
  %v575 = vpop.xlane.xlu0 %574
  %v576 = vsel %vm166, %v496, 0.0
  %577 = vadd.xlane.f32.xlu0 %v576
  %v578 = vpop.xlane.xlu0 %577
  %v579 = vsel %vm166, %v497, 0.0
  %580 = vadd.xlane.f32.xlu0 %v579
  %v581 = vpop.xlane.xlu0 %580
  %v582 = vsel %vm166, %v498, 0.0
  %583 = vadd.xlane.f32.xlu0 %v582
  %v584 = vpop.xlane.xlu0 %583
  %v585 = vsel %vm166, %v499, 0.0
  %586 = vadd.xlane.f32.xlu0 %v585
  %v587 = vpop.xlane.xlu0 %586
  %v588 = vsel %vm166, %v500, 0.0
  %589 = vadd.xlane.f32.xlu0 %v588
  %v590 = vpop.xlane.xlu0 %589
  %v591 = vsel %vm166, %v501, 0.0
  %592 = vadd.xlane.f32.xlu0 %v591
  %v593 = vpop.xlane.xlu0 %592
  %v594 = vsel %vm166, %v502, 0.0
  %595 = vadd.xlane.f32.xlu0 %v594
  %v596 = vpop.xlane.xlu0 %595
  %v597 = vsel %vm166, %v503, 0.0
  %598 = vadd.xlane.f32.xlu0 %v597
  %v599 = vpop.xlane.xlu0 %598
  %v600 = vsel %vm166, %v504, 0.0
  %601 = vadd.xlane.f32.xlu0 %v600
  %v602 = vpop.xlane.xlu0 %601
  %v603 = vsel %vm166, %v505, 0.0
  %604 = vadd.xlane.f32.xlu0 %v603
  %v605 = vpop.xlane.xlu0 %604
  %v606 = vsel %vm166, %v506, 0.0
  %607 = vadd.xlane.f32.xlu0 %v606
  %v608 = vpop.xlane.xlu0 %607
  %v609 = vsel %vm166, %v507, 0.0
  %610 = vadd.xlane.f32.xlu0 %v609
  %v611 = vpop.xlane.xlu0 %610
  %v612 = vsel %vm166, %v508, 0.0
  %613 = vadd.xlane.f32.xlu0 %v612
  %v614 = vpop.xlane.xlu0 %613
  %v615 = vsel %vm166, %v509, 0.0
  %616 = vadd.xlane.f32.xlu0 %v615
  %v617 = vpop.xlane.xlu0 %616
  %v618 = vsel %vm166, %v510, 0.0
  %619 = vadd.xlane.f32.xlu0 %v618
  %v620 = vpop.xlane.xlu0 %619
  %v621 = vsel %vm166, %v511, 0.0
  %622 = vadd.xlane.f32.xlu0 %v621
  %v623 = vpop.xlane.xlu0 %622
  %v624 = vsel %vm166, %v512, 0.0
  %625 = vadd.xlane.f32.xlu0 %v624
  %v626 = vpop.xlane.xlu0 %625
  %v627 = vsel %vm166, %v513, 0.0
  %628 = vadd.xlane.f32.xlu0 %v627
  %v629 = vpop.xlane.xlu0 %628
  %v630 = vsel %vm166, %v514, 0.0
  %631 = vadd.xlane.f32.xlu0 %v630
  %v632 = vpop.xlane.xlu0 %631
  %v633 = vsel %vm166, %v515, 0.0
  %634 = vadd.xlane.f32.xlu0 %v633
  %v635 = vpop.xlane.xlu0 %634
  %v636 = vsel %vm166, %v516, 0.0
  %637 = vadd.xlane.f32.xlu0 %v636
  %v638 = vpop.xlane.xlu0 %637
  %v639 = vsel %vm166, %v517, 0.0
  %640 = vadd.xlane.f32.xlu0 %v639
  %v641 = vpop.xlane.xlu0 %640
  %v642 = vsel %vm166, %v518, 0.0
  %643 = vadd.xlane.f32.xlu0 %v642
  %v644 = vpop.xlane.xlu0 %643
  %v645 = vsel %vm166, %v519, 0.0
  %646 = vadd.xlane.f32.xlu0 %v645
  %v647 = vpop.xlane.xlu0 %646
  %v648 = vsel %vm166, %v520, 0.0
  %649 = vadd.xlane.f32.xlu0 %v648
  %v650 = vpop.xlane.xlu0 %649
  %v651 = vsel %vm166, %v521, 0.0
  %652 = vadd.xlane.f32.xlu0 %v651
  %v653 = vpop.xlane.xlu0 %652
  %v654 = vsel %vm166, %v522, 0.0
  %655 = vadd.xlane.f32.xlu0 %v654
  %v656 = vpop.xlane.xlu0 %655
  %v657 = vsel %vm166, %v523, 0.0
  %658 = vadd.xlane.f32.xlu0 %v657
  %v659 = vpop.xlane.xlu0 %658
  %v660 = vsel %vm166, %v524, 0.0
  %661 = vadd.xlane.f32.xlu0 %v660
  %v662 = vpop.xlane.xlu0 %661
  %v663 = vsel %vm166, %v525, 0.0
  %664 = vadd.xlane.f32.xlu0 %v663
  %v665 = vpop.xlane.xlu0 %664
  %v666 = vsel %vm166, %v526, 0.0
  %667 = vadd.xlane.f32.xlu0 %v666
  %v668 = vpop.xlane.xlu0 %667
  %v669 = vsel %vm166, %v527, 0.0
  %670 = vadd.xlane.f32.xlu0 %v669
  %v671 = vpop.xlane.xlu0 %670
  %v672 = vsel %vm166, %v528, 0.0
  %673 = vadd.xlane.f32.xlu0 %v672
  %v674 = vpop.xlane.xlu0 %673
  %v675 = vsel %vm166, %v529, 0.0
  %676 = vadd.xlane.f32.xlu0 %v675
  %v677 = vpop.xlane.xlu0 %676
  %v678 = vsel %vm166, %v530, 0.0
  %679 = vadd.xlane.f32.xlu0 %v678
  %v680 = vpop.xlane.xlu0 %679
  %v681 = vsel %vm166, %v531, 0.0
  %682 = vadd.xlane.f32.xlu0 %v681
  %v683 = vpop.xlane.xlu0 %682
  %v684 = vsel %vm166, %v532, 0.0
  %685 = vadd.xlane.f32.xlu0 %v684
  %v686 = vpop.xlane.xlu0 %685
  %v687 = vsel %vm166, %v533, 0.0
  %688 = vadd.xlane.f32.xlu0 %v687
  %v689 = vpop.xlane.xlu0 %688
  %v690 = vsel %vm166, %v534, 0.0
  %691 = vadd.xlane.f32.xlu0 %v690
  %v692 = vpop.xlane.xlu0 %691
  %v693 = vsel %vm166, %v535, 0.0
  %694 = vadd.xlane.f32.xlu0 %v693
  %v695 = vpop.xlane.xlu0 %694
  %v696 = vsel %vm166, %v536, 0.0
  %697 = vadd.xlane.f32.xlu0 %v696
  %v698 = vpop.xlane.xlu0 %697
  %v699 = vsel %vm166, %v537, 0.0
  %700 = vadd.xlane.f32.xlu0 %v699
  %v701 = vpop.xlane.xlu0 %700
  %v702 = vsel %vm166, %v538, 0.0
  %703 = vadd.xlane.f32.xlu0 %v702
  %v704 = vpop.xlane.xlu0 %703
  %v705 = vsel %vm166, %v539, 0.0
  %706 = vadd.xlane.f32.xlu0 %v705
  %v707 = vpop.xlane.xlu0 %706
  %v708 = vsel %vm166, %v540, 0.0
  %709 = vadd.xlane.f32.xlu0 %v708
  %v710 = vpop.xlane.xlu0 %709
  %v711 = vsel %vm166, %v541, 0.0
  %712 = vadd.xlane.f32.xlu0 %v711
  %v713 = vpop.xlane.xlu0 %712
  %v714 = vsel %vm166, %v542, 0.0
  %715 = vadd.xlane.f32.xlu0 %v714
  %v716 = vpop.xlane.xlu0 %715
  %v717 = vsel %vm166, %v543, 0.0
  %718 = vadd.xlane.f32.xlu0 %v717
  %v719 = vpop.xlane.xlu0 %718
  %v720 = vsel %vm166, %v544, 0.0
  %721 = vadd.xlane.f32.xlu0 %v720
  %v722 = vpop.xlane.xlu0 %721
  %v723 = vsel %vm166, %v545, 0.0
  %724 = vadd.xlane.f32.xlu0 %v723
  %v725 = vpop.xlane.xlu0 %724
  %v726 = vsel %vm166, %v546, 0.0
  %727 = vadd.xlane.f32.xlu0 %v726
  %v728 = vpop.xlane.xlu0 %727
  %v729 = vsel %vm166, %v547, 0.0
  %730 = vadd.xlane.f32.xlu0 %v729
  %v731 = vpop.xlane.xlu0 %730
  %v732 = vsel %vm166, %v548, 0.0
  %733 = vadd.xlane.f32.xlu0 %v732
  %v734 = vpop.xlane.xlu0 %733
  %v735 = vsel %vm166, %v549, 0.0
  %736 = vadd.xlane.f32.xlu0 %v735
  %v737 = vpop.xlane.xlu0 %736
  %v738 = vsel %vm166, %v550, 0.0
  %739 = vadd.xlane.f32.xlu0 %v738
  %v740 = vpop.xlane.xlu0 %739
  %v741 = vsel %vm166, %v551, 0.0
  %742 = vadd.xlane.f32.xlu0 %v741
  %v743 = vpop.xlane.xlu0 %742
  %v744 = vmul.f32 %v554, %v359
  %v745 = vmul.f32 %v557, %v359
  %v746 = vmul.f32 %v560, %v359
  %v747 = vmul.f32 %v563, %v359
  %v748 = vmul.f32 %v566, %v359
  %v749 = vmul.f32 %v569, %v359
  %v750 = vmul.f32 %v572, %v359
  %v751 = vmul.f32 %v575, %v359
  %v752 = vmul.f32 %v578, %v359
  %v753 = vmul.f32 %v581, %v359
  %v754 = vmul.f32 %v584, %v359
  %v755 = vmul.f32 %v587, %v359
  %v756 = vmul.f32 %v590, %v359
  %v757 = vmul.f32 %v593, %v359
  %v758 = vmul.f32 %v596, %v359
  %v759 = vmul.f32 %v599, %v359
  %v760 = vmul.f32 %v602, %v359
  %v761 = vmul.f32 %v605, %v359
  %v762 = vmul.f32 %v608, %v359
  %v763 = vmul.f32 %v611, %v359
  %v764 = vmul.f32 %v614, %v359
  %v765 = vmul.f32 %v617, %v359
  %v766 = vmul.f32 %v620, %v359
  %v767 = vmul.f32 %v623, %v359
  %v768 = vmul.f32 %v626, %v359
  %v769 = vmul.f32 %v629, %v359
  %v770 = vmul.f32 %v632, %v359
  %v771 = vmul.f32 %v635, %v359
  %v772 = vmul.f32 %v638, %v359
  %v773 = vmul.f32 %v641, %v359
  %v774 = vmul.f32 %v644, %v359
  %v775 = vmul.f32 %v647, %v359
  %v776 = vmul.f32 %v650, %v359
  %v777 = vmul.f32 %v653, %v359
  %v778 = vmul.f32 %v656, %v359
  %v779 = vmul.f32 %v659, %v359
  %v780 = vmul.f32 %v662, %v359
  %v781 = vmul.f32 %v665, %v359
  %v782 = vmul.f32 %v668, %v359
  %v783 = vmul.f32 %v671, %v359
  %v784 = vmul.f32 %v674, %v359
  %v785 = vmul.f32 %v677, %v359
  %v786 = vmul.f32 %v680, %v359
  %v787 = vmul.f32 %v683, %v359
  %v788 = vmul.f32 %v686, %v359
  %v789 = vmul.f32 %v689, %v359
  %v790 = vmul.f32 %v692, %v359
  %v791 = vmul.f32 %v695, %v359
  %v792 = vmul.f32 %v698, %v359
  %v793 = vmul.f32 %v701, %v359
  %v794 = vmul.f32 %v704, %v359
  %v795 = vmul.f32 %v707, %v359
  %v796 = vmul.f32 %v710, %v359
  %v797 = vmul.f32 %v713, %v359
  %v798 = vmul.f32 %v716, %v359
  %v799 = vmul.f32 %v719, %v359
  %v800 = vmul.f32 %v722, %v359
  %v801 = vmul.f32 %v725, %v359
  %v802 = vmul.f32 %v728, %v359
  %v803 = vmul.f32 %v731, %v359
  %v804 = vmul.f32 %v734, %v359
  %v805 = vmul.f32 %v737, %v359
  %v806 = vmul.f32 %v740, %v359
  %v807 = vmul.f32 %v743, %v359
  %v808 = vadd.f32 %v744, 1e-05
  %v809 = vadd.f32 %v745, 1e-05
  %v810 = vadd.f32 %v746, 1e-05
  %v811 = vadd.f32 %v747, 1e-05
  %v812 = vadd.f32 %v748, 1e-05
  %v813 = vadd.f32 %v749, 1e-05
  %v814 = vadd.f32 %v750, 1e-05
  %v815 = vadd.f32 %v751, 1e-05
  %v816 = vadd.f32 %v752, 1e-05
  %v817 = vadd.f32 %v753, 1e-05
  %v818 = vadd.f32 %v754, 1e-05
  %v819 = vadd.f32 %v755, 1e-05
  %v820 = vadd.f32 %v756, 1e-05
  %v821 = vadd.f32 %v757, 1e-05
  %v822 = vadd.f32 %v758, 1e-05
  %v823 = vadd.f32 %v759, 1e-05
  %v824 = vadd.f32 %v760, 1e-05
  %v825 = vadd.f32 %v761, 1e-05
  %v826 = vadd.f32 %v762, 1e-05
  %v827 = vadd.f32 %v763, 1e-05
  %v828 = vadd.f32 %v764, 1e-05
  %v829 = vadd.f32 %v765, 1e-05
  %v830 = vadd.f32 %v766, 1e-05
  %v831 = vadd.f32 %v767, 1e-05
  %v832 = vadd.f32 %v768, 1e-05
  %v833 = vadd.f32 %v769, 1e-05
  %v834 = vadd.f32 %v770, 1e-05
  %v835 = vadd.f32 %v771, 1e-05
  %v836 = vadd.f32 %v772, 1e-05
  %v837 = vadd.f32 %v773, 1e-05
  %v838 = vadd.f32 %v774, 1e-05
  %v839 = vadd.f32 %v775, 1e-05
  %v840 = vadd.f32 %v776, 1e-05
  %v841 = vadd.f32 %v777, 1e-05
  %v842 = vadd.f32 %v778, 1e-05
  %v843 = vadd.f32 %v779, 1e-05
  %v844 = vadd.f32 %v780, 1e-05
  %v845 = vadd.f32 %v781, 1e-05
  %v846 = vadd.f32 %v782, 1e-05
  %v847 = vadd.f32 %v783, 1e-05
  %v848 = vadd.f32 %v784, 1e-05
  %v849 = vadd.f32 %v785, 1e-05
  %v850 = vadd.f32 %v786, 1e-05
  %v851 = vadd.f32 %v787, 1e-05
  %v852 = vadd.f32 %v788, 1e-05
  %v853 = vadd.f32 %v789, 1e-05
  %v854 = vadd.f32 %v790, 1e-05
  %v855 = vadd.f32 %v791, 1e-05
  %v856 = vadd.f32 %v792, 1e-05
  %v857 = vadd.f32 %v793, 1e-05
  %v858 = vadd.f32 %v794, 1e-05
  %v859 = vadd.f32 %v795, 1e-05
  %v860 = vadd.f32 %v796, 1e-05
  %v861 = vadd.f32 %v797, 1e-05
  %v862 = vadd.f32 %v798, 1e-05
  %v863 = vadd.f32 %v799, 1e-05
  %v864 = vadd.f32 %v800, 1e-05
  %v865 = vadd.f32 %v801, 1e-05
  %v866 = vadd.f32 %v802, 1e-05
  %v867 = vadd.f32 %v803, 1e-05
  %v868 = vadd.f32 %v804, 1e-05
  %v869 = vadd.f32 %v805, 1e-05
  %v870 = vadd.f32 %v806, 1e-05
  %v871 = vadd.f32 %v807, 1e-05
  %v872 = vrsqrt.pop %v808
  %v873 = vrsqrt.pop %v809
  %v874 = vrsqrt.pop %v810
  %v875 = vrsqrt.pop %v811
  %v876 = vrsqrt.pop %v812
  %v877 = vrsqrt.pop %v813
  %v878 = vrsqrt.pop %v814
  %v879 = vrsqrt.pop %v815
  %v880 = vrsqrt.pop %v816
  %v881 = vrsqrt.pop %v817
  %v882 = vrsqrt.pop %v818
  %v883 = vrsqrt.pop %v819
  %v884 = vrsqrt.pop %v820
  %v885 = vrsqrt.pop %v821
  %v886 = vrsqrt.pop %v822
  %v887 = vrsqrt.pop %v823
  %v888 = vrsqrt.pop %v824
  %v889 = vrsqrt.pop %v825
  %v890 = vrsqrt.pop %v826
  %v891 = vrsqrt.pop %v827
  %v892 = vrsqrt.pop %v828
  %v893 = vrsqrt.pop %v829
  %v894 = vrsqrt.pop %v830
  %v895 = vrsqrt.pop %v831
  %v896 = vrsqrt.pop %v832
  %v897 = vrsqrt.pop %v833
  %v898 = vrsqrt.pop %v834
  %v899 = vrsqrt.pop %v835
  %v900 = vrsqrt.pop %v836
  %v901 = vrsqrt.pop %v837
  %v902 = vrsqrt.pop %v838
  %v903 = vrsqrt.pop %v839
  %v904 = vrsqrt.pop %v840
  %v905 = vrsqrt.pop %v841
  %v906 = vrsqrt.pop %v842
  %v907 = vrsqrt.pop %v843
  %v908 = vrsqrt.pop %v844
  %v909 = vrsqrt.pop %v845
  %v910 = vrsqrt.pop %v846
  %v911 = vrsqrt.pop %v847
  %v912 = vrsqrt.pop %v848
  %v913 = vrsqrt.pop %v849
  %v914 = vrsqrt.pop %v850
  %v915 = vrsqrt.pop %v851
  %v916 = vrsqrt.pop %v852
  %v917 = vrsqrt.pop %v853
  %v918 = vrsqrt.pop %v854
  %v919 = vrsqrt.pop %v855
  %v920 = vrsqrt.pop %v856
  %v921 = vrsqrt.pop %v857
  %v922 = vrsqrt.pop %v858
  %v923 = vrsqrt.pop %v859
  %v924 = vrsqrt.pop %v860
  %v925 = vrsqrt.pop %v861
  %v926 = vrsqrt.pop %v862
  %v927 = vrsqrt.pop %v863
  %v928 = vrsqrt.pop %v864
  %v929 = vrsqrt.pop %v865
  %v930 = vrsqrt.pop %v866
  %v931 = vrsqrt.pop %v867
  %v932 = vrsqrt.pop %v868
  %v933 = vrsqrt.pop %v869
  %v934 = vrsqrt.pop %v870
  %v935 = vrsqrt.pop %v871
  %v936 = vmul.f32 %v424, %v872
  %v937 = vmul.f32 %v425, %v873
  %v938 = vmul.f32 %v426, %v874
  %v939 = vmul.f32 %v427, %v875
  %v940 = vmul.f32 %v428, %v876
  %v941 = vmul.f32 %v429, %v877
  %v942 = vmul.f32 %v430, %v878
  %v943 = vmul.f32 %v431, %v879
  %v944 = vmul.f32 %v432, %v880
  %v945 = vmul.f32 %v433, %v881
  %v946 = vmul.f32 %v434, %v882
  %v947 = vmul.f32 %v435, %v883
  %v948 = vmul.f32 %v436, %v884
  %v949 = vmul.f32 %v437, %v885
  %v950 = vmul.f32 %v438, %v886
  %v951 = vmul.f32 %v439, %v887
  %v952 = vmul.f32 %v440, %v888
  %v953 = vmul.f32 %v441, %v889
  %v954 = vmul.f32 %v442, %v890
  %v955 = vmul.f32 %v443, %v891
  %v956 = vmul.f32 %v444, %v892
  %v957 = vmul.f32 %v445, %v893
  %v958 = vmul.f32 %v446, %v894
  %v959 = vmul.f32 %v447, %v895
  %v960 = vmul.f32 %v448, %v896
  %v961 = vmul.f32 %v449, %v897
  %v962 = vmul.f32 %v450, %v898
  %v963 = vmul.f32 %v451, %v899
  %v964 = vmul.f32 %v452, %v900
  %v965 = vmul.f32 %v453, %v901
  %v966 = vmul.f32 %v454, %v902
  %v967 = vmul.f32 %v455, %v903
  %v968 = vmul.f32 %v456, %v904
  %v969 = vmul.f32 %v457, %v905
  %v970 = vmul.f32 %v458, %v906
  %v971 = vmul.f32 %v459, %v907
  %v972 = vmul.f32 %v460, %v908
  %v973 = vmul.f32 %v461, %v909
  %v974 = vmul.f32 %v462, %v910
  %v975 = vmul.f32 %v463, %v911
  %v976 = vmul.f32 %v464, %v912
  %v977 = vmul.f32 %v465, %v913
  %v978 = vmul.f32 %v466, %v914
  %v979 = vmul.f32 %v467, %v915
  %v980 = vmul.f32 %v468, %v916
  %v981 = vmul.f32 %v469, %v917
  %v982 = vmul.f32 %v470, %v918
  %v983 = vmul.f32 %v471, %v919
  %v984 = vmul.f32 %v472, %v920
  %v985 = vmul.f32 %v473, %v921
  %v986 = vmul.f32 %v474, %v922
  %v987 = vmul.f32 %v475, %v923
  %v988 = vmul.f32 %v476, %v924
  %v989 = vmul.f32 %v477, %v925
  %v990 = vmul.f32 %v478, %v926
  %v991 = vmul.f32 %v479, %v927
  %v992 = vmul.f32 %v480, %v928
  %v993 = vmul.f32 %v481, %v929
  %v994 = vmul.f32 %v482, %v930
  %v995 = vmul.f32 %v483, %v931
  %v996 = vmul.f32 %v484, %v932
  %v997 = vmul.f32 %v485, %v933
  %v998 = vmul.f32 %v486, %v934
  %v999 = vmul.f32 %v487, %v935
  %v1001 = vlaneseq
  %v1002 = vshrl.u32 %v1001, 7
  %v1003 = vsub.s32 0, %v1002
  %v1004 = vrot.slane %v164, %v1003
  %v1006 = vmul.f32 %v936, %v1004
  %v1007 = vmul.f32 %v937, %v1004
  %v1008 = vmul.f32 %v938, %v1004
  %v1009 = vmul.f32 %v939, %v1004
  %v1010 = vmul.f32 %v940, %v1004
  %v1011 = vmul.f32 %v941, %v1004
  %v1012 = vmul.f32 %v942, %v1004
  %v1013 = vmul.f32 %v943, %v1004
  %v1014 = vmul.f32 %v944, %v1004
  %v1015 = vmul.f32 %v945, %v1004
  %v1016 = vmul.f32 %v946, %v1004
  %v1017 = vmul.f32 %v947, %v1004
  %v1018 = vmul.f32 %v948, %v1004
  %v1019 = vmul.f32 %v949, %v1004
  %v1020 = vmul.f32 %v950, %v1004
  %v1021 = vmul.f32 %v951, %v1004
  %v1022 = vmul.f32 %v952, %v1004
  %v1023 = vmul.f32 %v953, %v1004
  %v1024 = vmul.f32 %v954, %v1004
  %v1025 = vmul.f32 %v955, %v1004
  %v1026 = vmul.f32 %v956, %v1004
  %v1027 = vmul.f32 %v957, %v1004
  %v1028 = vmul.f32 %v958, %v1004
  %v1029 = vmul.f32 %v959, %v1004
  %v1030 = vmul.f32 %v960, %v1004
  %v1031 = vmul.f32 %v961, %v1004
  %v1032 = vmul.f32 %v962, %v1004
  %v1033 = vmul.f32 %v963, %v1004
  %v1034 = vmul.f32 %v964, %v1004
  %v1035 = vmul.f32 %v965, %v1004
  %v1036 = vmul.f32 %v966, %v1004
  %v1037 = vmul.f32 %v967, %v1004
  %v1038 = vmul.f32 %v968, %v1004
  %v1039 = vmul.f32 %v969, %v1004
  %v1040 = vmul.f32 %v970, %v1004
  %v1041 = vmul.f32 %v971, %v1004
  %v1042 = vmul.f32 %v972, %v1004
  %v1043 = vmul.f32 %v973, %v1004
  %v1044 = vmul.f32 %v974, %v1004
  %v1045 = vmul.f32 %v975, %v1004
  %v1046 = vmul.f32 %v976, %v1004
  %v1047 = vmul.f32 %v977, %v1004
  %v1048 = vmul.f32 %v978, %v1004
  %v1049 = vmul.f32 %v979, %v1004
  %v1050 = vmul.f32 %v980, %v1004
  %v1051 = vmul.f32 %v981, %v1004
  %v1052 = vmul.f32 %v982, %v1004
  %v1053 = vmul.f32 %v983, %v1004
  %v1054 = vmul.f32 %v984, %v1004
  %v1055 = vmul.f32 %v985, %v1004
  %v1056 = vmul.f32 %v986, %v1004
  %v1057 = vmul.f32 %v987, %v1004
  %v1058 = vmul.f32 %v988, %v1004
  %v1059 = vmul.f32 %v989, %v1004
  %v1060 = vmul.f32 %v990, %v1004
  %v1061 = vmul.f32 %v991, %v1004
  %v1062 = vmul.f32 %v992, %v1004
  %v1063 = vmul.f32 %v993, %v1004
  %v1064 = vmul.f32 %v994, %v1004
  %v1065 = vmul.f32 %v995, %v1004
  %v1066 = vmul.f32 %v996, %v1004
  %v1067 = vmul.f32 %v997, %v1004
  %v1068 = vmul.f32 %v998, %v1004
  %v1069 = vmul.f32 %v999, %v1004
  %v1071 = vlaneseq
  %v1072 = vshrl.u32 %v1071, 7
  %v1073 = vsub.s32 0, %v1072
  %v1074 = vrot.slane %v165, %v1073
  %v1076 = vadd.f32 %v1006, %v1074
  %v1077 = vadd.f32 %v1007, %v1074
  %v1078 = vadd.f32 %v1008, %v1074
  %v1079 = vadd.f32 %v1009, %v1074
  %v1080 = vadd.f32 %v1010, %v1074
  %v1081 = vadd.f32 %v1011, %v1074
  %v1082 = vadd.f32 %v1012, %v1074
  %v1083 = vadd.f32 %v1013, %v1074
  %v1084 = vadd.f32 %v1014, %v1074
  %v1085 = vadd.f32 %v1015, %v1074
  %v1086 = vadd.f32 %v1016, %v1074
  %v1087 = vadd.f32 %v1017, %v1074
  %v1088 = vadd.f32 %v1018, %v1074
  %v1089 = vadd.f32 %v1019, %v1074
  %v1090 = vadd.f32 %v1020, %v1074
  %v1091 = vadd.f32 %v1021, %v1074
  %v1092 = vadd.f32 %v1022, %v1074
  %v1093 = vadd.f32 %v1023, %v1074
  %v1094 = vadd.f32 %v1024, %v1074
  %v1095 = vadd.f32 %v1025, %v1074
  %v1096 = vadd.f32 %v1026, %v1074
  %v1097 = vadd.f32 %v1027, %v1074
  %v1098 = vadd.f32 %v1028, %v1074
  %v1099 = vadd.f32 %v1029, %v1074
  %v1100 = vadd.f32 %v1030, %v1074
  %v1101 = vadd.f32 %v1031, %v1074
  %v1102 = vadd.f32 %v1032, %v1074
  %v1103 = vadd.f32 %v1033, %v1074
  %v1104 = vadd.f32 %v1034, %v1074
  %v1105 = vadd.f32 %v1035, %v1074
  %v1106 = vadd.f32 %v1036, %v1074
  %v1107 = vadd.f32 %v1037, %v1074
  %v1108 = vadd.f32 %v1038, %v1074
  %v1109 = vadd.f32 %v1039, %v1074
  %v1110 = vadd.f32 %v1040, %v1074
  %v1111 = vadd.f32 %v1041, %v1074
  %v1112 = vadd.f32 %v1042, %v1074
  %v1113 = vadd.f32 %v1043, %v1074
  %v1114 = vadd.f32 %v1044, %v1074
  %v1115 = vadd.f32 %v1045, %v1074
  %v1116 = vadd.f32 %v1046, %v1074
  %v1117 = vadd.f32 %v1047, %v1074
  %v1118 = vadd.f32 %v1048, %v1074
  %v1119 = vadd.f32 %v1049, %v1074
  %v1120 = vadd.f32 %v1050, %v1074
  %v1121 = vadd.f32 %v1051, %v1074
  %v1122 = vadd.f32 %v1052, %v1074
  %v1123 = vadd.f32 %v1053, %v1074
  %v1124 = vadd.f32 %v1054, %v1074
  %v1125 = vadd.f32 %v1055, %v1074
  %v1126 = vadd.f32 %v1056, %v1074
  %v1127 = vadd.f32 %v1057, %v1074
  %v1128 = vadd.f32 %v1058, %v1074
  %v1129 = vadd.f32 %v1059, %v1074
  %v1130 = vadd.f32 %v1060, %v1074
  %v1131 = vadd.f32 %v1061, %v1074
  %v1132 = vadd.f32 %v1062, %v1074
  %v1133 = vadd.f32 %v1063, %v1074
  %v1134 = vadd.f32 %v1064, %v1074
  %v1135 = vadd.f32 %v1065, %v1074
  %v1136 = vadd.f32 %v1066, %v1074
  %v1137 = vadd.f32 %v1067, %v1074
  %v1138 = vadd.f32 %v1068, %v1074
  %v1139 = vadd.f32 %v1069, %v1074
  %v1140 = vadd.f32 %v36, %v1076
  %v1141 = vadd.f32 %v37, %v1077
  %v1142 = vadd.f32 %v38, %v1078
  %v1143 = vadd.f32 %v39, %v1079
  %v1144 = vadd.f32 %v40, %v1080
  %v1145 = vadd.f32 %v41, %v1081
  %v1146 = vadd.f32 %v42, %v1082
  %v1147 = vadd.f32 %v43, %v1083
  %v1148 = vadd.f32 %v44, %v1084
  %v1149 = vadd.f32 %v45, %v1085
  %v1150 = vadd.f32 %v46, %v1086
  %v1151 = vadd.f32 %v47, %v1087
  %v1152 = vadd.f32 %v48, %v1088
  %v1153 = vadd.f32 %v49, %v1089
  %v1154 = vadd.f32 %v50, %v1090
  %v1155 = vadd.f32 %v51, %v1091
  %v1156 = vadd.f32 %v52, %v1092
  %v1157 = vadd.f32 %v53, %v1093
  %v1158 = vadd.f32 %v54, %v1094
  %v1159 = vadd.f32 %v55, %v1095
  %v1160 = vadd.f32 %v56, %v1096
  %v1161 = vadd.f32 %v57, %v1097
  %v1162 = vadd.f32 %v58, %v1098
  %v1163 = vadd.f32 %v59, %v1099
  %v1164 = vadd.f32 %v60, %v1100
  %v1165 = vadd.f32 %v61, %v1101
  %v1166 = vadd.f32 %v62, %v1102
  %v1167 = vadd.f32 %v63, %v1103
  %v1168 = vadd.f32 %v64, %v1104
  %v1169 = vadd.f32 %v65, %v1105
  %v1170 = vadd.f32 %v66, %v1106
  %v1171 = vadd.f32 %v67, %v1107
  %v1172 = vadd.f32 %v68, %v1108
  %v1173 = vadd.f32 %v69, %v1109
  %v1174 = vadd.f32 %v70, %v1110
  %v1175 = vadd.f32 %v71, %v1111
  %v1176 = vadd.f32 %v72, %v1112
  %v1177 = vadd.f32 %v73, %v1113
  %v1178 = vadd.f32 %v74, %v1114
  %v1179 = vadd.f32 %v75, %v1115
  %v1180 = vadd.f32 %v76, %v1116
  %v1181 = vadd.f32 %v77, %v1117
  %v1182 = vadd.f32 %v78, %v1118
  %v1183 = vadd.f32 %v79, %v1119
  %v1184 = vadd.f32 %v80, %v1120
  %v1185 = vadd.f32 %v81, %v1121
  %v1186 = vadd.f32 %v82, %v1122
  %v1187 = vadd.f32 %v83, %v1123
  %v1188 = vadd.f32 %v84, %v1124
  %v1189 = vadd.f32 %v85, %v1125
  %v1190 = vadd.f32 %v86, %v1126
  %v1191 = vadd.f32 %v87, %v1127
  %v1192 = vadd.f32 %v88, %v1128
  %v1193 = vadd.f32 %v89, %v1129
  %v1194 = vadd.f32 %v90, %v1130
  %v1195 = vadd.f32 %v91, %v1131
  %v1196 = vadd.f32 %v92, %v1132
  %v1197 = vadd.f32 %v93, %v1133
  %v1198 = vadd.f32 %v94, %v1134
  %v1199 = vadd.f32 %v95, %v1135
  %v1200 = vadd.f32 %v96, %v1136
  %v1201 = vadd.f32 %v97, %v1137
  %v1202 = vadd.f32 %v98, %v1138
  %v1203 = vadd.f32 %v99, %v1139
  %v1204 = vld [vmem:[%s4] sm:$0xf]
  %v1205 = vld [vmem:[%s4 + $0x4] sm:$0xf]
  %v1206 = vld [vmem:[%s4 + $0x8] sm:$0xf]
  %v1207 = vld [vmem:[%s4 + $0xc] sm:$0xf]
  %v1208 = vpack.c.bf16 %v1141, %v1140
  %v1209 = vpack.c.bf16 %v1143, %v1142
  %v1210 = vpack.c.bf16 %v1145, %v1144
  %v1211 = vpack.c.bf16 %v1147, %v1146
  %v1212 = vpack.c.bf16 %v1149, %v1148
  %v1213 = vpack.c.bf16 %v1151, %v1150
  %v1214 = vpack.c.bf16 %v1153, %v1152
  %v1215 = vpack.c.bf16 %v1155, %v1154
  %v1216 = vpack.c.bf16 %v1157, %v1156
  %v1217 = vpack.c.bf16 %v1159, %v1158
  %v1218 = vpack.c.bf16 %v1161, %v1160
  %v1219 = vpack.c.bf16 %v1163, %v1162
  %v1220 = vpack.c.bf16 %v1165, %v1164
  %v1221 = vpack.c.bf16 %v1167, %v1166
  %v1222 = vpack.c.bf16 %v1169, %v1168
  %v1223 = vpack.c.bf16 %v1171, %v1170
  %v1224 = vpack.c.bf16 %v1173, %v1172
  %v1225 = vpack.c.bf16 %v1175, %v1174
  %v1226 = vpack.c.bf16 %v1177, %v1176
  %v1227 = vpack.c.bf16 %v1179, %v1178
  %v1228 = vpack.c.bf16 %v1181, %v1180
  %v1229 = vpack.c.bf16 %v1183, %v1182
  %v1230 = vpack.c.bf16 %v1185, %v1184
  %v1231 = vpack.c.bf16 %v1187, %v1186
  %v1232 = vpack.c.bf16 %v1189, %v1188
  %v1233 = vpack.c.bf16 %v1191, %v1190
  %v1234 = vpack.c.bf16 %v1193, %v1192
  %v1235 = vpack.c.bf16 %v1195, %v1194
  %v1236 = vpack.c.bf16 %v1197, %v1196
  %v1237 = vpack.c.bf16 %v1199, %v1198
  %v1238 = vpack.c.bf16 %v1201, %v1200
  %v1239 = vpack.c.bf16 %v1203, %v1202
  %v1240 = vld [vmem:[%s5] sm:$0x1]
  %v1242 = vlaneseq
  %v1243 = vshrl.u32 %v1242, 7
  %v1244 = vsub.s32 0, %v1243
  %v1245 = vrot.slane %v1240, %v1244
  %v1251 = vunpack.c.l.b16 %v1204
  %v1252 = vunpack.c.l.b16 %v1205
  %v1253 = vunpack.c.l.b16 %v1206
  %v1254 = vunpack.c.l.b16 %v1207
  %v1255 = vpack.c.b16 %v1252, %v1251
  %v1256 = vpack.c.b16 %v1254, %v1253
  %v1260 = vsel %vm166, %v1208, 0
  %v1263 = vsel %vm166, %v1209, 0
  %v1266 = vsel %vm166, %v1210, 0
  %v1269 = vsel %vm166, %v1211, 0
  %v1272 = vsel %vm166, %v1212, 0
  %v1275 = vsel %vm166, %v1213, 0
  %v1278 = vsel %vm166, %v1214, 0
  %v1281 = vsel %vm166, %v1215, 0
  %v1284 = vsel %vm166, %v1216, 0
  %v1287 = vsel %vm166, %v1217, 0
  %v1290 = vsel %vm166, %v1218, 0
  %v1293 = vsel %vm166, %v1219, 0
  %v1296 = vsel %vm166, %v1220, 0
  %v1299 = vsel %vm166, %v1221, 0
  %v1302 = vsel %vm166, %v1222, 0
  %v1305 = vsel %vm166, %v1223, 0
  %v1308 = vsel %vm166, %v1224, 0
  %v1311 = vsel %vm166, %v1225, 0
  %v1314 = vsel %vm166, %v1226, 0
  %v1317 = vsel %vm166, %v1227, 0
  %v1320 = vsel %vm166, %v1228, 0
  %v1323 = vsel %vm166, %v1229, 0
  %v1326 = vsel %vm166, %v1230, 0
  %v1329 = vsel %vm166, %v1231, 0
  %v1332 = vsel %vm166, %v1232, 0
  %v1335 = vsel %vm166, %v1233, 0
  %v1338 = vsel %vm166, %v1234, 0
  %v1341 = vsel %vm166, %v1235, 0
  %v1344 = vsel %vm166, %v1236, 0
  %v1347 = vsel %vm166, %v1237, 0
  %v1350 = vsel %vm166, %v1238, 0
  %v1353 = vsel %vm166, %v1239, 0
  %1355 = vmatprep.subr.bf16.mxu0 0
  %1356 = vmatpush1.bf16.msra.mxu0 0
  %1357 = vmatprep.subr.bf16.mxu0 0
  %1358 = vmatpush1.bf16.msra.mxu0 0
  %1359 = vmatprep.subr.bf16.mxu0 0
  %1360 = vmatpush1.bf16.msra.mxu0 0
  %1361 = vmatprep.subr.bf16.mxu0 0
  %1362 = vmatpush1.bf16.msra.mxu0 0
  %1363 = vmatprep.subr.bf16.mxu0 0
  %1364 = vmatpush1.bf16.msra.mxu0 0
  %1365 = vmatprep.subr.bf16.mxu0 0
  %1366 = vmatpush1.bf16.msra.mxu0 0
  %1367 = vmatprep.subr.bf16.mxu0 0
  %1368 = vmatpush1.bf16.msra.mxu0 %v1256
  %1369 = vmatprep.subr.bf16.mxu0 0
  %1370 = vmatpush1.bf16.msra.mxu0 %v1255
  %1371 = vmatprep.subr.bf16.mxu0 0
  %1372 = vmatpush2.bf16.msra.mxu0 0
  %1373 = vmatprep.subr.bf16.mxu0 0
  %1374 = vmatpush2.bf16.msra.mxu0 0
  %1375 = vmatprep.subr.bf16.mxu0 0
  %1376 = vmatpush2.bf16.msra.mxu0 0
  %1377 = vmatprep.subr.bf16.mxu0 0
  %1378 = vmatpush2.bf16.msra.mxu0 0
  %1379 = vmatprep.subr.bf16.mxu0 0
  %1380 = vmatpush2.bf16.msra.mxu0 0
  %1381 = vmatprep.subr.bf16.mxu0 0
  %1382 = vmatpush2.bf16.msra.mxu0 0
  %1383 = vmatprep.subr.bf16.mxu0 0
  %1384 = vmatpush2.bf16.msra.mxu0 0
  %1385 = vmatprep.subr.bf16.mxu0 0
  %1386 = vmatpush2.bf16.msra.mxu0 0
  %1387 = vmatprep.mubr.bf16.mxu0 0
  %1388 = vmatmul.mubr.bf16.gmra.mxu0 %v1260
  %v1389 = vpop.f32.mrf.mxu0
  %v1390 = vadd.f32 %v1245, %v1389
  %v1391 = vpop.f32.mrf.mxu0
  %v1392 = vpop.f32.mrf.mxu0
  %v1393 = vadd.f32 %v1245, %v1392
  %v1394 = vpop.f32.mrf.mxu0
  %1395 = vmatprep.mubr.bf16.mxu0 0
  %1396 = vmatmul.mubr.bf16.gmra.mxu0 %v1263
  %v1397 = vpop.f32.mrf.mxu0
  %v1398 = vadd.f32 %v1245, %v1397
  %v1399 = vpop.f32.mrf.mxu0
  %v1400 = vpop.f32.mrf.mxu0
  %v1401 = vadd.f32 %v1245, %v1400
  %v1402 = vpop.f32.mrf.mxu0
  %1403 = vmatprep.mubr.bf16.mxu0 0
  %1404 = vmatmul.mubr.bf16.gmra.mxu0 %v1266
  %v1405 = vpop.f32.mrf.mxu0
  %v1406 = vadd.f32 %v1245, %v1405
  %v1407 = vpop.f32.mrf.mxu0
  %v1408 = vpop.f32.mrf.mxu0
  %v1409 = vadd.f32 %v1245, %v1408
  %v1410 = vpop.f32.mrf.mxu0
  %1411 = vmatprep.mubr.bf16.mxu0 0
  %1412 = vmatmul.mubr.bf16.gmra.mxu0 %v1269
  %v1413 = vpop.f32.mrf.mxu0
  %v1414 = vadd.f32 %v1245, %v1413
  %v1415 = vpop.f32.mrf.mxu0
  %v1416 = vpop.f32.mrf.mxu0
  %v1417 = vadd.f32 %v1245, %v1416
  %v1418 = vpop.f32.mrf.mxu0
  %1419 = vmatprep.mubr.bf16.mxu0 0
  %1420 = vmatmul.mubr.bf16.gmra.mxu0 %v1272
  %v1421 = vpop.f32.mrf.mxu0
  %v1422 = vadd.f32 %v1245, %v1421
  %v1423 = vpop.f32.mrf.mxu0
  %v1424 = vpop.f32.mrf.mxu0
  %v1425 = vadd.f32 %v1245, %v1424
  %v1426 = vpop.f32.mrf.mxu0
  %1427 = vmatprep.mubr.bf16.mxu0 0
  %1428 = vmatmul.mubr.bf16.gmra.mxu0 %v1275
  %v1429 = vpop.f32.mrf.mxu0
  %v1430 = vadd.f32 %v1245, %v1429
  %v1431 = vpop.f32.mrf.mxu0
  %v1432 = vpop.f32.mrf.mxu0
  %v1433 = vadd.f32 %v1245, %v1432
  %v1434 = vpop.f32.mrf.mxu0
  %1435 = vmatprep.mubr.bf16.mxu0 0
  %1436 = vmatmul.mubr.bf16.gmra.mxu0 %v1278
  %v1437 = vpop.f32.mrf.mxu0
  %v1438 = vadd.f32 %v1245, %v1437
  %v1439 = vpop.f32.mrf.mxu0
  %v1440 = vpop.f32.mrf.mxu0
  %v1441 = vadd.f32 %v1245, %v1440
  %v1442 = vpop.f32.mrf.mxu0
  %1443 = vmatprep.mubr.bf16.mxu0 0
  %1444 = vmatmul.mubr.bf16.gmra.mxu0 %v1281
  %v1445 = vpop.f32.mrf.mxu0
  %v1446 = vadd.f32 %v1245, %v1445
  %v1447 = vpop.f32.mrf.mxu0
  %v1448 = vpop.f32.mrf.mxu0
  %v1449 = vadd.f32 %v1245, %v1448
  %v1450 = vpop.f32.mrf.mxu0
  %1451 = vmatprep.mubr.bf16.mxu0 0
  %1452 = vmatmul.mubr.bf16.gmra.mxu0 %v1284
  %v1453 = vpop.f32.mrf.mxu0
  %v1454 = vadd.f32 %v1245, %v1453
  %v1455 = vpop.f32.mrf.mxu0
  %v1456 = vpop.f32.mrf.mxu0
  %v1457 = vadd.f32 %v1245, %v1456
  %v1458 = vpop.f32.mrf.mxu0
  %1459 = vmatprep.mubr.bf16.mxu0 0
  %1460 = vmatmul.mubr.bf16.gmra.mxu0 %v1287
  %v1461 = vpop.f32.mrf.mxu0
  %v1462 = vadd.f32 %v1245, %v1461
  %v1463 = vpop.f32.mrf.mxu0
  %v1464 = vpop.f32.mrf.mxu0
  %v1465 = vadd.f32 %v1245, %v1464
  %v1466 = vpop.f32.mrf.mxu0
  %1467 = vmatprep.mubr.bf16.mxu0 0
  %1468 = vmatmul.mubr.bf16.gmra.mxu0 %v1290
  %v1469 = vpop.f32.mrf.mxu0
  %v1470 = vadd.f32 %v1245, %v1469
  %v1471 = vpop.f32.mrf.mxu0
  %v1472 = vpop.f32.mrf.mxu0
  %v1473 = vadd.f32 %v1245, %v1472
  %v1474 = vpop.f32.mrf.mxu0
  %1475 = vmatprep.mubr.bf16.mxu0 0
  %1476 = vmatmul.mubr.bf16.gmra.mxu0 %v1293
  %v1477 = vpop.f32.mrf.mxu0
  %v1478 = vadd.f32 %v1245, %v1477
  %v1479 = vpop.f32.mrf.mxu0
  %v1480 = vpop.f32.mrf.mxu0
  %v1481 = vadd.f32 %v1245, %v1480
  %v1482 = vpop.f32.mrf.mxu0
  %1483 = vmatprep.mubr.bf16.mxu0 0
  %1484 = vmatmul.mubr.bf16.gmra.mxu0 %v1296
  %v1485 = vpop.f32.mrf.mxu0
  %v1486 = vadd.f32 %v1245, %v1485
  %v1487 = vpop.f32.mrf.mxu0
  %v1488 = vpop.f32.mrf.mxu0
  %v1489 = vadd.f32 %v1245, %v1488
  %v1490 = vpop.f32.mrf.mxu0
  %1491 = vmatprep.mubr.bf16.mxu0 0
  %1492 = vmatmul.mubr.bf16.gmra.mxu0 %v1299
  %v1493 = vpop.f32.mrf.mxu0
  %v1494 = vadd.f32 %v1245, %v1493
  %v1495 = vpop.f32.mrf.mxu0
  %v1496 = vpop.f32.mrf.mxu0
  %v1497 = vadd.f32 %v1245, %v1496
  %v1498 = vpop.f32.mrf.mxu0
  %1499 = vmatprep.mubr.bf16.mxu0 0
  %1500 = vmatmul.mubr.bf16.gmra.mxu0 %v1302
  %v1501 = vpop.f32.mrf.mxu0
  %v1502 = vadd.f32 %v1245, %v1501
  %v1503 = vpop.f32.mrf.mxu0
  %v1504 = vpop.f32.mrf.mxu0
  %v1505 = vadd.f32 %v1245, %v1504
  %v1506 = vpop.f32.mrf.mxu0
  %1507 = vmatprep.mubr.bf16.mxu0 0
  %1508 = vmatmul.mubr.bf16.gmra.mxu0 %v1305
  %v1509 = vpop.f32.mrf.mxu0
  %v1510 = vadd.f32 %v1245, %v1509
  %v1511 = vpop.f32.mrf.mxu0
  %v1512 = vpop.f32.mrf.mxu0
  %v1513 = vadd.f32 %v1245, %v1512
  %v1514 = vpop.f32.mrf.mxu0
  %1515 = vmatprep.mubr.bf16.mxu0 0
  %1516 = vmatmul.mubr.bf16.gmra.mxu0 %v1308
  %v1517 = vpop.f32.mrf.mxu0
  %v1518 = vadd.f32 %v1245, %v1517
  %v1519 = vpop.f32.mrf.mxu0
  %v1520 = vpop.f32.mrf.mxu0
  %v1521 = vadd.f32 %v1245, %v1520
  %v1522 = vpop.f32.mrf.mxu0
  %1523 = vmatprep.mubr.bf16.mxu0 0
  %1524 = vmatmul.mubr.bf16.gmra.mxu0 %v1311
  %v1525 = vpop.f32.mrf.mxu0
  %v1526 = vadd.f32 %v1245, %v1525
  %v1527 = vpop.f32.mrf.mxu0
  %v1528 = vpop.f32.mrf.mxu0
  %v1529 = vadd.f32 %v1245, %v1528
  %v1530 = vpop.f32.mrf.mxu0
  %1531 = vmatprep.mubr.bf16.mxu0 0
  %1532 = vmatmul.mubr.bf16.gmra.mxu0 %v1314
  %v1533 = vpop.f32.mrf.mxu0
  %v1534 = vadd.f32 %v1245, %v1533
  %v1535 = vpop.f32.mrf.mxu0
  %v1536 = vpop.f32.mrf.mxu0
  %v1537 = vadd.f32 %v1245, %v1536
  %v1538 = vpop.f32.mrf.mxu0
  %1539 = vmatprep.mubr.bf16.mxu0 0
  %1540 = vmatmul.mubr.bf16.gmra.mxu0 %v1317
  %v1541 = vpop.f32.mrf.mxu0
  %v1542 = vadd.f32 %v1245, %v1541
  %v1543 = vpop.f32.mrf.mxu0
  %v1544 = vpop.f32.mrf.mxu0
  %v1545 = vadd.f32 %v1245, %v1544
  %v1546 = vpop.f32.mrf.mxu0
  %1547 = vmatprep.mubr.bf16.mxu0 0
  %1548 = vmatmul.mubr.bf16.gmra.mxu0 %v1320
  %v1549 = vpop.f32.mrf.mxu0
  %v1550 = vadd.f32 %v1245, %v1549
  %v1551 = vpop.f32.mrf.mxu0
  %v1552 = vpop.f32.mrf.mxu0
  %v1553 = vadd.f32 %v1245, %v1552
  %v1554 = vpop.f32.mrf.mxu0
  %1555 = vmatprep.mubr.bf16.mxu0 0
  %1556 = vmatmul.mubr.bf16.gmra.mxu0 %v1323
  %v1557 = vpop.f32.mrf.mxu0
  %v1558 = vadd.f32 %v1245, %v1557
  %v1559 = vpop.f32.mrf.mxu0
  %v1560 = vpop.f32.mrf.mxu0
  %v1561 = vadd.f32 %v1245, %v1560
  %v1562 = vpop.f32.mrf.mxu0
  %1563 = vmatprep.mubr.bf16.mxu0 0
  %1564 = vmatmul.mubr.bf16.gmra.mxu0 %v1326
  %v1565 = vpop.f32.mrf.mxu0
  %v1566 = vadd.f32 %v1245, %v1565
  %v1567 = vpop.f32.mrf.mxu0
  %v1568 = vpop.f32.mrf.mxu0
  %v1569 = vadd.f32 %v1245, %v1568
  %v1570 = vpop.f32.mrf.mxu0
  %1571 = vmatprep.mubr.bf16.mxu0 0
  %1572 = vmatmul.mubr.bf16.gmra.mxu0 %v1329
  %v1573 = vpop.f32.mrf.mxu0
  %v1574 = vadd.f32 %v1245, %v1573
  %v1575 = vpop.f32.mrf.mxu0
  %v1576 = vpop.f32.mrf.mxu0
  %v1577 = vadd.f32 %v1245, %v1576
  %v1578 = vpop.f32.mrf.mxu0
  %1579 = vmatprep.mubr.bf16.mxu0 0
  %1580 = vmatmul.mubr.bf16.gmra.mxu0 %v1332
  %v1581 = vpop.f32.mrf.mxu0
  %v1582 = vadd.f32 %v1245, %v1581
  %v1583 = vpop.f32.mrf.mxu0
  %v1584 = vpop.f32.mrf.mxu0
  %v1585 = vadd.f32 %v1245, %v1584
  %v1586 = vpop.f32.mrf.mxu0
  %1587 = vmatprep.mubr.bf16.mxu0 0
  %1588 = vmatmul.mubr.bf16.gmra.mxu0 %v1335
  %v1589 = vpop.f32.mrf.mxu0
  %v1590 = vadd.f32 %v1245, %v1589
  %v1591 = vpop.f32.mrf.mxu0
  %v1592 = vpop.f32.mrf.mxu0
  %v1593 = vadd.f32 %v1245, %v1592
  %v1594 = vpop.f32.mrf.mxu0
  %1595 = vmatprep.mubr.bf16.mxu0 0
  %1596 = vmatmul.mubr.bf16.gmra.mxu0 %v1338
  %v1597 = vpop.f32.mrf.mxu0
  %v1598 = vadd.f32 %v1245, %v1597
  %v1599 = vpop.f32.mrf.mxu0
  %v1600 = vpop.f32.mrf.mxu0
  %v1601 = vadd.f32 %v1245, %v1600
  %v1602 = vpop.f32.mrf.mxu0
  %1603 = vmatprep.mubr.bf16.mxu0 0
  %1604 = vmatmul.mubr.bf16.gmra.mxu0 %v1341
  %v1605 = vpop.f32.mrf.mxu0
  %v1606 = vadd.f32 %v1245, %v1605
  %v1607 = vpop.f32.mrf.mxu0
  %v1608 = vpop.f32.mrf.mxu0
  %v1609 = vadd.f32 %v1245, %v1608
  %v1610 = vpop.f32.mrf.mxu0
  %1611 = vmatprep.mubr.bf16.mxu0 0
  %1612 = vmatmul.mubr.bf16.gmra.mxu0 %v1344
  %v1613 = vpop.f32.mrf.mxu0
  %v1614 = vadd.f32 %v1245, %v1613
  %v1615 = vpop.f32.mrf.mxu0
  %v1616 = vpop.f32.mrf.mxu0
  %v1617 = vadd.f32 %v1245, %v1616
  %v1618 = vpop.f32.mrf.mxu0
  %1619 = vmatprep.mubr.bf16.mxu0 0
  %1620 = vmatmul.mubr.bf16.gmra.mxu0 %v1347
  %v1621 = vpop.f32.mrf.mxu0
  %v1622 = vadd.f32 %v1245, %v1621
  %v1623 = vpop.f32.mrf.mxu0
  %v1624 = vpop.f32.mrf.mxu0
  %v1625 = vadd.f32 %v1245, %v1624
  %v1626 = vpop.f32.mrf.mxu0
  %1627 = vmatprep.mubr.bf16.mxu0 0
  %1628 = vmatmul.mubr.bf16.gmra.mxu0 %v1350
  %v1629 = vpop.f32.mrf.mxu0
  %v1630 = vadd.f32 %v1245, %v1629
  %v1631 = vpop.f32.mrf.mxu0
  %v1632 = vpop.f32.mrf.mxu0
  %v1633 = vadd.f32 %v1245, %v1632
  %v1634 = vpop.f32.mrf.mxu0
  %1635 = vmatprep.mubr.bf16.mxu0 0
  %1636 = vmatmul.mubr.bf16.gmra.mxu0 %v1353
  %v1637 = vpop.f32.mrf.mxu0
  %v1638 = vadd.f32 %v1245, %v1637
  %v1639 = vpop.f32.mrf.mxu0
  %v1640 = vpop.f32.mrf.mxu0
  %v1641 = vadd.f32 %v1245, %v1640
  %v1642 = vpop.f32.mrf.mxu0
  %1643 = vdwg.mxu0
  %v1644 = vsub.f32 0.0, %v1390
  %v1645 = vsub.f32 0.0, %v1393
  %v1646 = vsub.f32 0.0, %v1398
  %v1647 = vsub.f32 0.0, %v1401
  %v1648 = vsub.f32 0.0, %v1406
  %v1649 = vsub.f32 0.0, %v1409
  %v1650 = vsub.f32 0.0, %v1414
  %v1651 = vsub.f32 0.0, %v1417
  %v1652 = vsub.f32 0.0, %v1422
  %v1653 = vsub.f32 0.0, %v1425
  %v1654 = vsub.f32 0.0, %v1430
  %v1655 = vsub.f32 0.0, %v1433
  %v1656 = vsub.f32 0.0, %v1438
  %v1657 = vsub.f32 0.0, %v1441
  %v1658 = vsub.f32 0.0, %v1446
  %v1659 = vsub.f32 0.0, %v1449
  %v1660 = vsub.f32 0.0, %v1454
  %v1661 = vsub.f32 0.0, %v1457
  %v1662 = vsub.f32 0.0, %v1462
  %v1663 = vsub.f32 0.0, %v1465
  %v1664 = vsub.f32 0.0, %v1470
  %v1665 = vsub.f32 0.0, %v1473
  %v1666 = vsub.f32 0.0, %v1478
  %v1667 = vsub.f32 0.0, %v1481
  %v1668 = vsub.f32 0.0, %v1486
  %v1669 = vsub.f32 0.0, %v1489
  %v1670 = vsub.f32 0.0, %v1494
  %v1671 = vsub.f32 0.0, %v1497
  %v1672 = vsub.f32 0.0, %v1502
  %v1673 = vsub.f32 0.0, %v1505
  %v1674 = vsub.f32 0.0, %v1510
  %v1675 = vsub.f32 0.0, %v1513
  %v1676 = vsub.f32 0.0, %v1518
  %v1677 = vsub.f32 0.0, %v1521
  %v1678 = vsub.f32 0.0, %v1526
  %v1679 = vsub.f32 0.0, %v1529
  %v1680 = vsub.f32 0.0, %v1534
  %v1681 = vsub.f32 0.0, %v1537
  %v1682 = vsub.f32 0.0, %v1542
  %v1683 = vsub.f32 0.0, %v1545
  %v1684 = vsub.f32 0.0, %v1550
  %v1685 = vsub.f32 0.0, %v1553
  %v1686 = vsub.f32 0.0, %v1558
  %v1687 = vsub.f32 0.0, %v1561
  %v1688 = vsub.f32 0.0, %v1566
  %v1689 = vsub.f32 0.0, %v1569
  %v1690 = vsub.f32 0.0, %v1574
  %v1691 = vsub.f32 0.0, %v1577
  %v1692 = vsub.f32 0.0, %v1582
  %v1693 = vsub.f32 0.0, %v1585
  %v1694 = vsub.f32 0.0, %v1590
  %v1695 = vsub.f32 0.0, %v1593
  %v1696 = vsub.f32 0.0, %v1598
  %v1697 = vsub.f32 0.0, %v1601
  %v1698 = vsub.f32 0.0, %v1606
  %v1699 = vsub.f32 0.0, %v1609
  %v1700 = vsub.f32 0.0, %v1614
  %v1701 = vsub.f32 0.0, %v1617
  %v1702 = vsub.f32 0.0, %v1622
  %v1703 = vsub.f32 0.0, %v1625
  %v1704 = vsub.f32 0.0, %v1630
  %v1705 = vsub.f32 0.0, %v1633
  %v1706 = vsub.f32 0.0, %v1638
  %v1707 = vsub.f32 0.0, %v1641
  %v1708 = vmul.f32 %v1644, 1.442695
  %v1709 = vpow.pop %v1708
  %v1710 = vmul.f32 %v1645, 1.442695
  %v1711 = vpow.pop %v1710
  %v1712 = vmul.f32 %v1646, 1.442695
  %v1713 = vpow.pop %v1712
  %v1714 = vmul.f32 %v1647, 1.442695
  %v1715 = vpow.pop %v1714
  %v1716 = vmul.f32 %v1648, 1.442695
  %v1717 = vpow.pop %v1716
  %v1718 = vmul.f32 %v1649, 1.442695
  %v1719 = vpow.pop %v1718
  %v1720 = vmul.f32 %v1650, 1.442695
  %v1721 = vpow.pop %v1720
  %v1722 = vmul.f32 %v1651, 1.442695
  %v1723 = vpow.pop %v1722
  %v1724 = vmul.f32 %v1652, 1.442695
  %v1725 = vpow.pop %v1724
  %v1726 = vmul.f32 %v1653, 1.442695
  %v1727 = vpow.pop %v1726
  %v1728 = vmul.f32 %v1654, 1.442695
  %v1729 = vpow.pop %v1728
  %v1730 = vmul.f32 %v1655, 1.442695
  %v1731 = vpow.pop %v1730
  %v1732 = vmul.f32 %v1656, 1.442695
  %v1733 = vpow.pop %v1732
  %v1734 = vmul.f32 %v1657, 1.442695
  %v1735 = vpow.pop %v1734
  %v1736 = vmul.f32 %v1658, 1.442695
  %v1737 = vpow.pop %v1736
  %v1738 = vmul.f32 %v1659, 1.442695
  %v1739 = vpow.pop %v1738
  %v1740 = vmul.f32 %v1660, 1.442695
  %v1741 = vpow.pop %v1740
  %v1742 = vmul.f32 %v1661, 1.442695
  %v1743 = vpow.pop %v1742
  %v1744 = vmul.f32 %v1662, 1.442695
  %v1745 = vpow.pop %v1744
  %v1746 = vmul.f32 %v1663, 1.442695
  %v1747 = vpow.pop %v1746
  %v1748 = vmul.f32 %v1664, 1.442695
  %v1749 = vpow.pop %v1748
  %v1750 = vmul.f32 %v1665, 1.442695
  %v1751 = vpow.pop %v1750
  %v1752 = vmul.f32 %v1666, 1.442695
  %v1753 = vpow.pop %v1752
  %v1754 = vmul.f32 %v1667, 1.442695
  %v1755 = vpow.pop %v1754
  %v1756 = vmul.f32 %v1668, 1.442695
  %v1757 = vpow.pop %v1756
  %v1758 = vmul.f32 %v1669, 1.442695
  %v1759 = vpow.pop %v1758
  %v1760 = vmul.f32 %v1670, 1.442695
  %v1761 = vpow.pop %v1760
  %v1762 = vmul.f32 %v1671, 1.442695
  %v1763 = vpow.pop %v1762
  %v1764 = vmul.f32 %v1672, 1.442695
  %v1765 = vpow.pop %v1764
  %v1766 = vmul.f32 %v1673, 1.442695
  %v1767 = vpow.pop %v1766
  %v1768 = vmul.f32 %v1674, 1.442695
  %v1769 = vpow.pop %v1768
  %v1770 = vmul.f32 %v1675, 1.442695
  %v1771 = vpow.pop %v1770
  %v1772 = vmul.f32 %v1676, 1.442695
  %v1773 = vpow.pop %v1772
  %v1774 = vmul.f32 %v1677, 1.442695
  %v1775 = vpow.pop %v1774
  %v1776 = vmul.f32 %v1678, 1.442695
  %v1777 = vpow.pop %v1776
  %v1778 = vmul.f32 %v1679, 1.442695
  %v1779 = vpow.pop %v1778
  %v1780 = vmul.f32 %v1680, 1.442695
  %v1781 = vpow.pop %v1780
  %v1782 = vmul.f32 %v1681, 1.442695
  %v1783 = vpow.pop %v1782
  %v1784 = vmul.f32 %v1682, 1.442695
  %v1785 = vpow.pop %v1784
  %v1786 = vmul.f32 %v1683, 1.442695
  %v1787 = vpow.pop %v1786
  %v1788 = vmul.f32 %v1684, 1.442695
  %v1789 = vpow.pop %v1788
  %v1790 = vmul.f32 %v1685, 1.442695
  %v1791 = vpow.pop %v1790
  %v1792 = vmul.f32 %v1686, 1.442695
  %v1793 = vpow.pop %v1792
  %v1794 = vmul.f32 %v1687, 1.442695
  %v1795 = vpow.pop %v1794
  %v1796 = vmul.f32 %v1688, 1.442695
  %v1797 = vpow.pop %v1796
  %v1798 = vmul.f32 %v1689, 1.442695
  %v1799 = vpow.pop %v1798
  %v1800 = vmul.f32 %v1690, 1.442695
  %v1801 = vpow.pop %v1800
  %v1802 = vmul.f32 %v1691, 1.442695
  %v1803 = vpow.pop %v1802
  %v1804 = vmul.f32 %v1692, 1.442695
  %v1805 = vpow.pop %v1804
  %v1806 = vmul.f32 %v1693, 1.442695
  %v1807 = vpow.pop %v1806
  %v1808 = vmul.f32 %v1694, 1.442695
  %v1809 = vpow.pop %v1808
  %v1810 = vmul.f32 %v1695, 1.442695
  %v1811 = vpow.pop %v1810
  %v1812 = vmul.f32 %v1696, 1.442695
  %v1813 = vpow.pop %v1812
  %v1814 = vmul.f32 %v1697, 1.442695
  %v1815 = vpow.pop %v1814
  %v1816 = vmul.f32 %v1698, 1.442695
  %v1817 = vpow.pop %v1816
  %v1818 = vmul.f32 %v1699, 1.442695
  %v1819 = vpow.pop %v1818
  %v1820 = vmul.f32 %v1700, 1.442695
  %v1821 = vpow.pop %v1820
  %v1822 = vmul.f32 %v1701, 1.442695
  %v1823 = vpow.pop %v1822
  %v1824 = vmul.f32 %v1702, 1.442695
  %v1825 = vpow.pop %v1824
  %v1826 = vmul.f32 %v1703, 1.442695
  %v1827 = vpow.pop %v1826
  %v1828 = vmul.f32 %v1704, 1.442695
  %v1829 = vpow.pop %v1828
  %v1830 = vmul.f32 %v1705, 1.442695
  %v1831 = vpow.pop %v1830
  %v1832 = vmul.f32 %v1706, 1.442695
  %v1833 = vpow.pop %v1832
  %v1834 = vmul.f32 %v1707, 1.442695
  %v1835 = vpow.pop %v1834
  %v1836 = vadd.f32 %v1709, 1.0
  %v1837 = vadd.f32 %v1711, 1.0
  %v1838 = vadd.f32 %v1713, 1.0
  %v1839 = vadd.f32 %v1715, 1.0
  %v1840 = vadd.f32 %v1717, 1.0
  %v1841 = vadd.f32 %v1719, 1.0
  %v1842 = vadd.f32 %v1721, 1.0
  %v1843 = vadd.f32 %v1723, 1.0
  %v1844 = vadd.f32 %v1725, 1.0
  %v1845 = vadd.f32 %v1727, 1.0
  %v1846 = vadd.f32 %v1729, 1.0
  %v1847 = vadd.f32 %v1731, 1.0
  %v1848 = vadd.f32 %v1733, 1.0
  %v1849 = vadd.f32 %v1735, 1.0
  %v1850 = vadd.f32 %v1737, 1.0
  %v1851 = vadd.f32 %v1739, 1.0
  %v1852 = vadd.f32 %v1741, 1.0
  %v1853 = vadd.f32 %v1743, 1.0
  %v1854 = vadd.f32 %v1745, 1.0
  %v1855 = vadd.f32 %v1747, 1.0
  %v1856 = vadd.f32 %v1749, 1.0
  %v1857 = vadd.f32 %v1751, 1.0
  %v1858 = vadd.f32 %v1753, 1.0
  %v1859 = vadd.f32 %v1755, 1.0
  %v1860 = vadd.f32 %v1757, 1.0
  %v1861 = vadd.f32 %v1759, 1.0
  %v1862 = vadd.f32 %v1761, 1.0
  %v1863 = vadd.f32 %v1763, 1.0
  %v1864 = vadd.f32 %v1765, 1.0
  %v1865 = vadd.f32 %v1767, 1.0
  %v1866 = vadd.f32 %v1769, 1.0
  %v1867 = vadd.f32 %v1771, 1.0
  %v1868 = vadd.f32 %v1773, 1.0
  %v1869 = vadd.f32 %v1775, 1.0
  %v1870 = vadd.f32 %v1777, 1.0
  %v1871 = vadd.f32 %v1779, 1.0
  %v1872 = vadd.f32 %v1781, 1.0
  %v1873 = vadd.f32 %v1783, 1.0
  %v1874 = vadd.f32 %v1785, 1.0
  %v1875 = vadd.f32 %v1787, 1.0
  %v1876 = vadd.f32 %v1789, 1.0
  %v1877 = vadd.f32 %v1791, 1.0
  %v1878 = vadd.f32 %v1793, 1.0
  %v1879 = vadd.f32 %v1795, 1.0
  %v1880 = vadd.f32 %v1797, 1.0
  %v1881 = vadd.f32 %v1799, 1.0
  %v1882 = vadd.f32 %v1801, 1.0
  %v1883 = vadd.f32 %v1803, 1.0
  %v1884 = vadd.f32 %v1805, 1.0
  %v1885 = vadd.f32 %v1807, 1.0
  %v1886 = vadd.f32 %v1809, 1.0
  %v1887 = vadd.f32 %v1811, 1.0
  %v1888 = vadd.f32 %v1813, 1.0
  %v1889 = vadd.f32 %v1815, 1.0
  %v1890 = vadd.f32 %v1817, 1.0
  %v1891 = vadd.f32 %v1819, 1.0
  %v1892 = vadd.f32 %v1821, 1.0
  %v1893 = vadd.f32 %v1823, 1.0
  %v1894 = vadd.f32 %v1825, 1.0
  %v1895 = vadd.f32 %v1827, 1.0
  %v1896 = vadd.f32 %v1829, 1.0
  %v1897 = vadd.f32 %v1831, 1.0
  %v1898 = vadd.f32 %v1833, 1.0
  %v1899 = vadd.f32 %v1835, 1.0
  %v1900 = vrcp.pop %v1836
  %v1901 = vrcp.pop %v1837
  %v1902 = vrcp.pop %v1838
  %v1903 = vrcp.pop %v1839
  %v1904 = vrcp.pop %v1840
  %v1905 = vrcp.pop %v1841
  %v1906 = vrcp.pop %v1842
  %v1907 = vrcp.pop %v1843
  %v1908 = vrcp.pop %v1844
  %v1909 = vrcp.pop %v1845
  %v1910 = vrcp.pop %v1846
  %v1911 = vrcp.pop %v1847
  %v1912 = vrcp.pop %v1848
  %v1913 = vrcp.pop %v1849
  %v1914 = vrcp.pop %v1850
  %v1915 = vrcp.pop %v1851
  %v1916 = vrcp.pop %v1852
  %v1917 = vrcp.pop %v1853
  %v1918 = vrcp.pop %v1854
  %v1919 = vrcp.pop %v1855
  %v1920 = vrcp.pop %v1856
  %v1921 = vrcp.pop %v1857
  %v1922 = vrcp.pop %v1858
  %v1923 = vrcp.pop %v1859
  %v1924 = vrcp.pop %v1860
  %v1925 = vrcp.pop %v1861
  %v1926 = vrcp.pop %v1862
  %v1927 = vrcp.pop %v1863
  %v1928 = vrcp.pop %v1864
  %v1929 = vrcp.pop %v1865
  %v1930 = vrcp.pop %v1866
  %v1931 = vrcp.pop %v1867
  %v1932 = vrcp.pop %v1868
  %v1933 = vrcp.pop %v1869
  %v1934 = vrcp.pop %v1870
  %v1935 = vrcp.pop %v1871
  %v1936 = vrcp.pop %v1872
  %v1937 = vrcp.pop %v1873
  %v1938 = vrcp.pop %v1874
  %v1939 = vrcp.pop %v1875
  %v1940 = vrcp.pop %v1876
  %v1941 = vrcp.pop %v1877
  %v1942 = vrcp.pop %v1878
  %v1943 = vrcp.pop %v1879
  %v1944 = vrcp.pop %v1880
  %v1945 = vrcp.pop %v1881
  %v1946 = vrcp.pop %v1882
  %v1947 = vrcp.pop %v1883
  %v1948 = vrcp.pop %v1884
  %v1949 = vrcp.pop %v1885
  %v1950 = vrcp.pop %v1886
  %v1951 = vrcp.pop %v1887
  %v1952 = vrcp.pop %v1888
  %v1953 = vrcp.pop %v1889
  %v1954 = vrcp.pop %v1890
  %v1955 = vrcp.pop %v1891
  %v1956 = vrcp.pop %v1892
  %v1957 = vrcp.pop %v1893
  %v1958 = vrcp.pop %v1894
  %v1959 = vrcp.pop %v1895
  %v1960 = vrcp.pop %v1896
  %v1961 = vrcp.pop %v1897
  %v1962 = vrcp.pop %v1898
  %v1963 = vrcp.pop %v1899
  %v1964 = vmul.f32 %v1390, %v1900
  %v1965 = vmul.f32 %v1393, %v1901
  %v1966 = vmul.f32 %v1398, %v1902
  %v1967 = vmul.f32 %v1401, %v1903
  %v1968 = vmul.f32 %v1406, %v1904
  %v1969 = vmul.f32 %v1409, %v1905
  %v1970 = vmul.f32 %v1414, %v1906
  %v1971 = vmul.f32 %v1417, %v1907
  %v1972 = vmul.f32 %v1422, %v1908
  %v1973 = vmul.f32 %v1425, %v1909
  %v1974 = vmul.f32 %v1430, %v1910
  %v1975 = vmul.f32 %v1433, %v1911
  %v1976 = vmul.f32 %v1438, %v1912
  %v1977 = vmul.f32 %v1441, %v1913
  %v1978 = vmul.f32 %v1446, %v1914
  %v1979 = vmul.f32 %v1449, %v1915
  %v1980 = vmul.f32 %v1454, %v1916
  %v1981 = vmul.f32 %v1457, %v1917
  %v1982 = vmul.f32 %v1462, %v1918
  %v1983 = vmul.f32 %v1465, %v1919
  %v1984 = vmul.f32 %v1470, %v1920
  %v1985 = vmul.f32 %v1473, %v1921
  %v1986 = vmul.f32 %v1478, %v1922
  %v1987 = vmul.f32 %v1481, %v1923
  %v1988 = vmul.f32 %v1486, %v1924
  %v1989 = vmul.f32 %v1489, %v1925
  %v1990 = vmul.f32 %v1494, %v1926
  %v1991 = vmul.f32 %v1497, %v1927
  %v1992 = vmul.f32 %v1502, %v1928
  %v1993 = vmul.f32 %v1505, %v1929
  %v1994 = vmul.f32 %v1510, %v1930
  %v1995 = vmul.f32 %v1513, %v1931
  %v1996 = vmul.f32 %v1518, %v1932
  %v1997 = vmul.f32 %v1521, %v1933
  %v1998 = vmul.f32 %v1526, %v1934
  %v1999 = vmul.f32 %v1529, %v1935
  %v2000 = vmul.f32 %v1534, %v1936
  %v2001 = vmul.f32 %v1537, %v1937
  %v2002 = vmul.f32 %v1542, %v1938
  %v2003 = vmul.f32 %v1545, %v1939
  %v2004 = vmul.f32 %v1550, %v1940
  %v2005 = vmul.f32 %v1553, %v1941
  %v2006 = vmul.f32 %v1558, %v1942
  %v2007 = vmul.f32 %v1561, %v1943
  %v2008 = vmul.f32 %v1566, %v1944
  %v2009 = vmul.f32 %v1569, %v1945
  %v2010 = vmul.f32 %v1574, %v1946
  %v2011 = vmul.f32 %v1577, %v1947
  %v2012 = vmul.f32 %v1582, %v1948
  %v2013 = vmul.f32 %v1585, %v1949
  %v2014 = vmul.f32 %v1590, %v1950
  %v2015 = vmul.f32 %v1593, %v1951
  %v2016 = vmul.f32 %v1598, %v1952
  %v2017 = vmul.f32 %v1601, %v1953
  %v2018 = vmul.f32 %v1606, %v1954
  %v2019 = vmul.f32 %v1609, %v1955
  %v2020 = vmul.f32 %v1614, %v1956
  %v2021 = vmul.f32 %v1617, %v1957
  %v2022 = vmul.f32 %v1622, %v1958
  %v2023 = vmul.f32 %v1625, %v1959
  %v2024 = vmul.f32 %v1630, %v1960
  %v2025 = vmul.f32 %v1633, %v1961
  %v2026 = vmul.f32 %v1638, %v1962
  %v2027 = vmul.f32 %v1641, %v1963
  %v2028 = vld [vmem:[%s6] sm:$0xf]
  %v2029 = vld [vmem:[%s6 + $0x4] sm:$0xf]
  %v2030 = vld [vmem:[%s6 + $0x8] sm:$0xf]
  %v2031 = vld [vmem:[%s6 + $0xc] sm:$0xf]
  %v2032 = vld [vmem:[%s6 + $0x10] sm:$0xf]
  %v2033 = vld [vmem:[%s6 + $0x14] sm:$0xf]
  %v2034 = vld [vmem:[%s6 + $0x18] sm:$0xf]
  %v2035 = vld [vmem:[%s6 + $0x1c] sm:$0xf]
  %v2036 = vld [vmem:[%s6 + $0x20] sm:$0xf]
  %v2037 = vld [vmem:[%s6 + $0x24] sm:$0xf]
  %v2038 = vld [vmem:[%s6 + $0x28] sm:$0xf]
  %v2039 = vld [vmem:[%s6 + $0x2c] sm:$0xf]
  %v2040 = vld [vmem:[%s6 + $0x30] sm:$0xf]
  %v2041 = vld [vmem:[%s6 + $0x34] sm:$0xf]
  %v2042 = vld [vmem:[%s6 + $0x38] sm:$0xf]
  %v2043 = vld [vmem:[%s6 + $0x3c] sm:$0xf]
  %v2044 = vpack.c.bf16 %v1965, %v1964
  %v2045 = vpack.c.bf16 %v1967, %v1966
  %v2046 = vpack.c.bf16 %v1969, %v1968
  %v2047 = vpack.c.bf16 %v1971, %v1970
  %v2048 = vpack.c.bf16 %v1973, %v1972
  %v2049 = vpack.c.bf16 %v1975, %v1974
  %v2050 = vpack.c.bf16 %v1977, %v1976
  %v2051 = vpack.c.bf16 %v1979, %v1978
  %v2052 = vpack.c.bf16 %v1981, %v1980
  %v2053 = vpack.c.bf16 %v1983, %v1982
  %v2054 = vpack.c.bf16 %v1985, %v1984
  %v2055 = vpack.c.bf16 %v1987, %v1986
  %v2056 = vpack.c.bf16 %v1989, %v1988
  %v2057 = vpack.c.bf16 %v1991, %v1990
  %v2058 = vpack.c.bf16 %v1993, %v1992
  %v2059 = vpack.c.bf16 %v1995, %v1994
  %v2060 = vpack.c.bf16 %v1997, %v1996
  %v2061 = vpack.c.bf16 %v1999, %v1998
  %v2062 = vpack.c.bf16 %v2001, %v2000
  %v2063 = vpack.c.bf16 %v2003, %v2002
  %v2064 = vpack.c.bf16 %v2005, %v2004
  %v2065 = vpack.c.bf16 %v2007, %v2006
  %v2066 = vpack.c.bf16 %v2009, %v2008
  %v2067 = vpack.c.bf16 %v2011, %v2010
  %v2068 = vpack.c.bf16 %v2013, %v2012
  %v2069 = vpack.c.bf16 %v2015, %v2014
  %v2070 = vpack.c.bf16 %v2017, %v2016
  %v2071 = vpack.c.bf16 %v2019, %v2018
  %v2072 = vpack.c.bf16 %v2021, %v2020
  %v2073 = vpack.c.bf16 %v2023, %v2022
  %v2074 = vpack.c.bf16 %v2025, %v2024
  %v2075 = vpack.c.bf16 %v2027, %v2026
  %v2076 = vld [vmem:[%s7] sm:$0x1]
  %v2078 = vlaneseq
  %v2079 = vshrl.u32 %v2078, 7
  %v2080 = vsub.s32 0, %v2079
  %v2081 = vrot.slane %v2076, %v2080
  %v2099 = vunpack.c.l.b16 %v2028
  %v2100 = vunpack.c.l.b16 %v2029
  %v2101 = vunpack.c.l.b16 %v2030
  %v2102 = vunpack.c.l.b16 %v2031
  %v2103 = vunpack.c.l.b16 %v2032
  %v2104 = vunpack.c.l.b16 %v2033
  %v2105 = vunpack.c.l.b16 %v2034
  %v2106 = vunpack.c.l.b16 %v2035
  %v2107 = vunpack.c.l.b16 %v2036
  %v2108 = vunpack.c.l.b16 %v2037
  %v2109 = vunpack.c.l.b16 %v2038
  %v2110 = vunpack.c.l.b16 %v2039
  %v2111 = vunpack.c.l.b16 %v2040
  %v2112 = vunpack.c.l.b16 %v2041
  %v2113 = vunpack.c.l.b16 %v2042
  %v2114 = vunpack.c.l.b16 %v2043
  %v2115 = vpack.c.b16 %v2100, %v2099
  %v2116 = vpack.c.b16 %v2102, %v2101
  %v2117 = vpack.c.b16 %v2104, %v2103
  %v2118 = vpack.c.b16 %v2106, %v2105
  %v2119 = vpack.c.b16 %v2108, %v2107
  %v2120 = vpack.c.b16 %v2110, %v2109
  %v2121 = vpack.c.b16 %v2112, %v2111
  %v2122 = vpack.c.b16 %v2114, %v2113
  %2131 = vmatprep.subr.bf16.mxu0 0
  %2132 = vmatpush1.bf16.msra.mxu0 %v2122
  %2133 = vmatprep.subr.bf16.mxu0 0
  %2134 = vmatpush1.bf16.msra.mxu0 %v2121
  %2135 = vmatprep.subr.bf16.mxu0 0
  %2136 = vmatpush1.bf16.msra.mxu0 %v2120
  %2137 = vmatprep.subr.bf16.mxu0 0
  %2138 = vmatpush1.bf16.msra.mxu0 %v2119
  %2139 = vmatprep.subr.bf16.mxu0 0
  %2140 = vmatpush1.bf16.msra.mxu0 %v2118
  %2141 = vmatprep.subr.bf16.mxu0 0
  %2142 = vmatpush1.bf16.msra.mxu0 %v2117
  %2143 = vmatprep.subr.bf16.mxu0 0
  %2144 = vmatpush1.bf16.msra.mxu0 %v2116
  %2145 = vmatprep.subr.bf16.mxu0 0
  %2146 = vmatpush1.bf16.msra.mxu0 %v2115
  %2147 = vmatprep.subr.bf16.mxu0 0
  %2148 = vmatpush2.bf16.msra.mxu0 0
  %2149 = vmatprep.subr.bf16.mxu0 0
  %2150 = vmatpush2.bf16.msra.mxu0 0
  %2151 = vmatprep.subr.bf16.mxu0 0
  %2152 = vmatpush2.bf16.msra.mxu0 0
  %2153 = vmatprep.subr.bf16.mxu0 0
  %2154 = vmatpush2.bf16.msra.mxu0 0
  %2155 = vmatprep.subr.bf16.mxu0 0
  %2156 = vmatpush2.bf16.msra.mxu0 0
  %2157 = vmatprep.subr.bf16.mxu0 0
  %2158 = vmatpush2.bf16.msra.mxu0 0
  %2159 = vmatprep.subr.bf16.mxu0 0
  %2160 = vmatpush2.bf16.msra.mxu0 0
  %2161 = vmatprep.subr.bf16.mxu0 0
  %2162 = vmatpush2.bf16.msra.mxu0 0
  %2163 = vmatprep.mubr.bf16.mxu0 0
  %2164 = vmatmul.mubr.bf16.gmra.mxu0 %v2044
  %v2165 = vpop.f32.mrf.mxu0
  %v2166 = vadd.f32 %v2081, %v2165
  %v2167 = vpop.f32.mrf.mxu0
  %v2168 = vpop.f32.mrf.mxu0
  %v2169 = vadd.f32 %v2081, %v2168
  %v2170 = vpop.f32.mrf.mxu0
  %2171 = vmatprep.mubr.bf16.mxu0 0
  %2172 = vmatmul.mubr.bf16.gmra.mxu0 %v2045
  %v2173 = vpop.f32.mrf.mxu0
  %v2174 = vadd.f32 %v2081, %v2173
  %v2175 = vpop.f32.mrf.mxu0
  %v2176 = vpop.f32.mrf.mxu0
  %v2177 = vadd.f32 %v2081, %v2176
  %v2178 = vpop.f32.mrf.mxu0
  %2179 = vmatprep.mubr.bf16.mxu0 0
  %2180 = vmatmul.mubr.bf16.gmra.mxu0 %v2046
  %v2181 = vpop.f32.mrf.mxu0
  %v2182 = vadd.f32 %v2081, %v2181
  %v2183 = vpop.f32.mrf.mxu0
  %v2184 = vpop.f32.mrf.mxu0
  %v2185 = vadd.f32 %v2081, %v2184
  %v2186 = vpop.f32.mrf.mxu0
  %2187 = vmatprep.mubr.bf16.mxu0 0
  %2188 = vmatmul.mubr.bf16.gmra.mxu0 %v2047
  %v2189 = vpop.f32.mrf.mxu0
  %v2190 = vadd.f32 %v2081, %v2189
  %v2191 = vpop.f32.mrf.mxu0
  %v2192 = vpop.f32.mrf.mxu0
  %v2193 = vadd.f32 %v2081, %v2192
  %v2194 = vpop.f32.mrf.mxu0
  %2195 = vmatprep.mubr.bf16.mxu0 0
  %2196 = vmatmul.mubr.bf16.gmra.mxu0 %v2048
  %v2197 = vpop.f32.mrf.mxu0
  %v2198 = vadd.f32 %v2081, %v2197
  %v2199 = vpop.f32.mrf.mxu0
  %v2200 = vpop.f32.mrf.mxu0
  %v2201 = vadd.f32 %v2081, %v2200
  %v2202 = vpop.f32.mrf.mxu0
  %2203 = vmatprep.mubr.bf16.mxu0 0
  %2204 = vmatmul.mubr.bf16.gmra.mxu0 %v2049
  %v2205 = vpop.f32.mrf.mxu0
  %v2206 = vadd.f32 %v2081, %v2205
  %v2207 = vpop.f32.mrf.mxu0
  %v2208 = vpop.f32.mrf.mxu0
  %v2209 = vadd.f32 %v2081, %v2208
  %v2210 = vpop.f32.mrf.mxu0
  %2211 = vmatprep.mubr.bf16.mxu0 0
  %2212 = vmatmul.mubr.bf16.gmra.mxu0 %v2050
  %v2213 = vpop.f32.mrf.mxu0
  %v2214 = vadd.f32 %v2081, %v2213
  %v2215 = vpop.f32.mrf.mxu0
  %v2216 = vpop.f32.mrf.mxu0
  %v2217 = vadd.f32 %v2081, %v2216
  %v2218 = vpop.f32.mrf.mxu0
  %2219 = vmatprep.mubr.bf16.mxu0 0
  %2220 = vmatmul.mubr.bf16.gmra.mxu0 %v2051
  %v2221 = vpop.f32.mrf.mxu0
  %v2222 = vadd.f32 %v2081, %v2221
  %v2223 = vpop.f32.mrf.mxu0
  %v2224 = vpop.f32.mrf.mxu0
  %v2225 = vadd.f32 %v2081, %v2224
  %v2226 = vpop.f32.mrf.mxu0
  %2227 = vmatprep.mubr.bf16.mxu0 0
  %2228 = vmatmul.mubr.bf16.gmra.mxu0 %v2052
  %v2229 = vpop.f32.mrf.mxu0
  %v2230 = vadd.f32 %v2081, %v2229
  %v2231 = vpop.f32.mrf.mxu0
  %v2232 = vpop.f32.mrf.mxu0
  %v2233 = vadd.f32 %v2081, %v2232
  %v2234 = vpop.f32.mrf.mxu0
  %2235 = vmatprep.mubr.bf16.mxu0 0
  %2236 = vmatmul.mubr.bf16.gmra.mxu0 %v2053
  %v2237 = vpop.f32.mrf.mxu0
  %v2238 = vadd.f32 %v2081, %v2237
  %v2239 = vpop.f32.mrf.mxu0
  %v2240 = vpop.f32.mrf.mxu0
  %v2241 = vadd.f32 %v2081, %v2240
  %v2242 = vpop.f32.mrf.mxu0
  %2243 = vmatprep.mubr.bf16.mxu0 0
  %2244 = vmatmul.mubr.bf16.gmra.mxu0 %v2054
  %v2245 = vpop.f32.mrf.mxu0
  %v2246 = vadd.f32 %v2081, %v2245
  %v2247 = vpop.f32.mrf.mxu0
  %v2248 = vpop.f32.mrf.mxu0
  %v2249 = vadd.f32 %v2081, %v2248
  %v2250 = vpop.f32.mrf.mxu0
  %2251 = vmatprep.mubr.bf16.mxu0 0
  %2252 = vmatmul.mubr.bf16.gmra.mxu0 %v2055
  %v2253 = vpop.f32.mrf.mxu0
  %v2254 = vadd.f32 %v2081, %v2253
  %v2255 = vpop.f32.mrf.mxu0
  %v2256 = vpop.f32.mrf.mxu0
  %v2257 = vadd.f32 %v2081, %v2256
  %v2258 = vpop.f32.mrf.mxu0
  %2259 = vmatprep.mubr.bf16.mxu0 0
  %2260 = vmatmul.mubr.bf16.gmra.mxu0 %v2056
  %v2261 = vpop.f32.mrf.mxu0
  %v2262 = vadd.f32 %v2081, %v2261
  %v2263 = vpop.f32.mrf.mxu0
  %v2264 = vpop.f32.mrf.mxu0
  %v2265 = vadd.f32 %v2081, %v2264
  %v2266 = vpop.f32.mrf.mxu0
  %2267 = vmatprep.mubr.bf16.mxu0 0
  %2268 = vmatmul.mubr.bf16.gmra.mxu0 %v2057
  %v2269 = vpop.f32.mrf.mxu0
  %v2270 = vadd.f32 %v2081, %v2269
  %v2271 = vpop.f32.mrf.mxu0
  %v2272 = vpop.f32.mrf.mxu0
  %v2273 = vadd.f32 %v2081, %v2272
  %v2274 = vpop.f32.mrf.mxu0
  %2275 = vmatprep.mubr.bf16.mxu0 0
  %2276 = vmatmul.mubr.bf16.gmra.mxu0 %v2058
  %v2277 = vpop.f32.mrf.mxu0
  %v2278 = vadd.f32 %v2081, %v2277
  %v2279 = vpop.f32.mrf.mxu0
  %v2280 = vpop.f32.mrf.mxu0
  %v2281 = vadd.f32 %v2081, %v2280
  %v2282 = vpop.f32.mrf.mxu0
  %2283 = vmatprep.mubr.bf16.mxu0 0
  %2284 = vmatmul.mubr.bf16.gmra.mxu0 %v2059
  %v2285 = vpop.f32.mrf.mxu0
  %v2286 = vadd.f32 %v2081, %v2285
  %v2287 = vpop.f32.mrf.mxu0
  %v2288 = vpop.f32.mrf.mxu0
  %v2289 = vadd.f32 %v2081, %v2288
  %v2290 = vpop.f32.mrf.mxu0
  %2291 = vmatprep.mubr.bf16.mxu0 0
  %2292 = vmatmul.mubr.bf16.gmra.mxu0 %v2060
  %v2293 = vpop.f32.mrf.mxu0
  %v2294 = vadd.f32 %v2081, %v2293
  %v2295 = vpop.f32.mrf.mxu0
  %v2296 = vpop.f32.mrf.mxu0
  %v2297 = vadd.f32 %v2081, %v2296
  %v2298 = vpop.f32.mrf.mxu0
  %2299 = vmatprep.mubr.bf16.mxu0 0
  %2300 = vmatmul.mubr.bf16.gmra.mxu0 %v2061
  %v2301 = vpop.f32.mrf.mxu0
  %v2302 = vadd.f32 %v2081, %v2301
  %v2303 = vpop.f32.mrf.mxu0
  %v2304 = vpop.f32.mrf.mxu0
  %v2305 = vadd.f32 %v2081, %v2304
  %v2306 = vpop.f32.mrf.mxu0
  %2307 = vmatprep.mubr.bf16.mxu0 0
  %2308 = vmatmul.mubr.bf16.gmra.mxu0 %v2062
  %v2309 = vpop.f32.mrf.mxu0
  %v2310 = vadd.f32 %v2081, %v2309
  %v2311 = vpop.f32.mrf.mxu0
  %v2312 = vpop.f32.mrf.mxu0
  %v2313 = vadd.f32 %v2081, %v2312
  %v2314 = vpop.f32.mrf.mxu0
  %2315 = vmatprep.mubr.bf16.mxu0 0
  %2316 = vmatmul.mubr.bf16.gmra.mxu0 %v2063
  %v2317 = vpop.f32.mrf.mxu0
  %v2318 = vadd.f32 %v2081, %v2317
  %v2319 = vpop.f32.mrf.mxu0
  %v2320 = vpop.f32.mrf.mxu0
  %v2321 = vadd.f32 %v2081, %v2320
  %v2322 = vpop.f32.mrf.mxu0
  %2323 = vmatprep.mubr.bf16.mxu0 0
  %2324 = vmatmul.mubr.bf16.gmra.mxu0 %v2064
  %v2325 = vpop.f32.mrf.mxu0
  %v2326 = vadd.f32 %v2081, %v2325
  %v2327 = vpop.f32.mrf.mxu0
  %v2328 = vpop.f32.mrf.mxu0
  %v2329 = vadd.f32 %v2081, %v2328
  %v2330 = vpop.f32.mrf.mxu0
  %2331 = vmatprep.mubr.bf16.mxu0 0
  %2332 = vmatmul.mubr.bf16.gmra.mxu0 %v2065
  %v2333 = vpop.f32.mrf.mxu0
  %v2334 = vadd.f32 %v2081, %v2333
  %v2335 = vpop.f32.mrf.mxu0
  %v2336 = vpop.f32.mrf.mxu0
  %v2337 = vadd.f32 %v2081, %v2336
  %v2338 = vpop.f32.mrf.mxu0
  %2339 = vmatprep.mubr.bf16.mxu0 0
  %2340 = vmatmul.mubr.bf16.gmra.mxu0 %v2066
  %v2341 = vpop.f32.mrf.mxu0
  %v2342 = vadd.f32 %v2081, %v2341
  %v2343 = vpop.f32.mrf.mxu0
  %v2344 = vpop.f32.mrf.mxu0
  %v2345 = vadd.f32 %v2081, %v2344
  %v2346 = vpop.f32.mrf.mxu0
  %2347 = vmatprep.mubr.bf16.mxu0 0
  %2348 = vmatmul.mubr.bf16.gmra.mxu0 %v2067
  %v2349 = vpop.f32.mrf.mxu0
  %v2350 = vadd.f32 %v2081, %v2349
  %v2351 = vpop.f32.mrf.mxu0
  %v2352 = vpop.f32.mrf.mxu0
  %v2353 = vadd.f32 %v2081, %v2352
  %v2354 = vpop.f32.mrf.mxu0
  %2355 = vmatprep.mubr.bf16.mxu0 0
  %2356 = vmatmul.mubr.bf16.gmra.mxu0 %v2068
  %v2357 = vpop.f32.mrf.mxu0
  %v2358 = vadd.f32 %v2081, %v2357
  %v2359 = vpop.f32.mrf.mxu0
  %v2360 = vpop.f32.mrf.mxu0
  %v2361 = vadd.f32 %v2081, %v2360
  %v2362 = vpop.f32.mrf.mxu0
  %2363 = vmatprep.mubr.bf16.mxu0 0
  %2364 = vmatmul.mubr.bf16.gmra.mxu0 %v2069
  %v2365 = vpop.f32.mrf.mxu0
  %v2366 = vadd.f32 %v2081, %v2365
  %v2367 = vpop.f32.mrf.mxu0
  %v2368 = vpop.f32.mrf.mxu0
  %v2369 = vadd.f32 %v2081, %v2368
  %v2370 = vpop.f32.mrf.mxu0
  %2371 = vmatprep.mubr.bf16.mxu0 0
  %2372 = vmatmul.mubr.bf16.gmra.mxu0 %v2070
  %v2373 = vpop.f32.mrf.mxu0
  %v2374 = vadd.f32 %v2081, %v2373
  %v2375 = vpop.f32.mrf.mxu0
  %v2376 = vpop.f32.mrf.mxu0
  %v2377 = vadd.f32 %v2081, %v2376
  %v2378 = vpop.f32.mrf.mxu0
  %2379 = vmatprep.mubr.bf16.mxu0 0
  %2380 = vmatmul.mubr.bf16.gmra.mxu0 %v2071
  %v2381 = vpop.f32.mrf.mxu0
  %v2382 = vadd.f32 %v2081, %v2381
  %v2383 = vpop.f32.mrf.mxu0
  %v2384 = vpop.f32.mrf.mxu0
  %v2385 = vadd.f32 %v2081, %v2384
  %v2386 = vpop.f32.mrf.mxu0
  %2387 = vmatprep.mubr.bf16.mxu0 0
  %2388 = vmatmul.mubr.bf16.gmra.mxu0 %v2072
  %v2389 = vpop.f32.mrf.mxu0
  %v2390 = vadd.f32 %v2081, %v2389
  %v2391 = vpop.f32.mrf.mxu0
  %v2392 = vpop.f32.mrf.mxu0
  %v2393 = vadd.f32 %v2081, %v2392
  %v2394 = vpop.f32.mrf.mxu0
  %2395 = vmatprep.mubr.bf16.mxu0 0
  %2396 = vmatmul.mubr.bf16.gmra.mxu0 %v2073
  %v2397 = vpop.f32.mrf.mxu0
  %v2398 = vadd.f32 %v2081, %v2397
  %v2399 = vpop.f32.mrf.mxu0
  %v2400 = vpop.f32.mrf.mxu0
  %v2401 = vadd.f32 %v2081, %v2400
  %v2402 = vpop.f32.mrf.mxu0
  %2403 = vmatprep.mubr.bf16.mxu0 0
  %2404 = vmatmul.mubr.bf16.gmra.mxu0 %v2074
  %v2405 = vpop.f32.mrf.mxu0
  %v2406 = vadd.f32 %v2081, %v2405
  %v2407 = vpop.f32.mrf.mxu0
  %v2408 = vpop.f32.mrf.mxu0
  %v2409 = vadd.f32 %v2081, %v2408
  %v2410 = vpop.f32.mrf.mxu0
  %2411 = vmatprep.mubr.bf16.mxu0 0
  %2412 = vmatmul.mubr.bf16.gmra.mxu0 %v2075
  %v2413 = vpop.f32.mrf.mxu0
  %v2414 = vadd.f32 %v2081, %v2413
  %v2415 = vpop.f32.mrf.mxu0
  %v2416 = vpop.f32.mrf.mxu0
  %v2417 = vadd.f32 %v2081, %v2416
  %v2418 = vpop.f32.mrf.mxu0
  %2419 = vdwg.mxu0
  %v2420 = vld [vmem:[%s8] sm:$0x1]
  %v2421 = vld [vmem:[%s9] sm:$0x1]
  %v2422 = vsel %vm166, %v2166, 0.0
  %2423 = vadd.xlane.f32.xlu0 %v2422
  %v2424 = vpop.xlane.xlu0 %2423
  %v2425 = vsel %vm166, %v2169, 0.0
  %2426 = vadd.xlane.f32.xlu0 %v2425
  %v2427 = vpop.xlane.xlu0 %2426
  %v2428 = vsel %vm166, %v2174, 0.0
  %2429 = vadd.xlane.f32.xlu0 %v2428
  %v2430 = vpop.xlane.xlu0 %2429
  %v2431 = vsel %vm166, %v2177, 0.0
  %2432 = vadd.xlane.f32.xlu0 %v2431
  %v2433 = vpop.xlane.xlu0 %2432
  %v2434 = vsel %vm166, %v2182, 0.0
  %2435 = vadd.xlane.f32.xlu0 %v2434
  %v2436 = vpop.xlane.xlu0 %2435
  %v2437 = vsel %vm166, %v2185, 0.0
  %2438 = vadd.xlane.f32.xlu0 %v2437
  %v2439 = vpop.xlane.xlu0 %2438
  %v2440 = vsel %vm166, %v2190, 0.0
  %2441 = vadd.xlane.f32.xlu0 %v2440
  %v2442 = vpop.xlane.xlu0 %2441
  %v2443 = vsel %vm166, %v2193, 0.0
  %2444 = vadd.xlane.f32.xlu0 %v2443
  %v2445 = vpop.xlane.xlu0 %2444
  %v2446 = vsel %vm166, %v2198, 0.0
  %2447 = vadd.xlane.f32.xlu0 %v2446
  %v2448 = vpop.xlane.xlu0 %2447
  %v2449 = vsel %vm166, %v2201, 0.0
  %2450 = vadd.xlane.f32.xlu0 %v2449
  %v2451 = vpop.xlane.xlu0 %2450
  %v2452 = vsel %vm166, %v2206, 0.0
  %2453 = vadd.xlane.f32.xlu0 %v2452
  %v2454 = vpop.xlane.xlu0 %2453
  %v2455 = vsel %vm166, %v2209, 0.0
  %2456 = vadd.xlane.f32.xlu0 %v2455
  %v2457 = vpop.xlane.xlu0 %2456
  %v2458 = vsel %vm166, %v2214, 0.0
  %2459 = vadd.xlane.f32.xlu0 %v2458
  %v2460 = vpop.xlane.xlu0 %2459
  %v2461 = vsel %vm166, %v2217, 0.0
  %2462 = vadd.xlane.f32.xlu0 %v2461
  %v2463 = vpop.xlane.xlu0 %2462
  %v2464 = vsel %vm166, %v2222, 0.0
  %2465 = vadd.xlane.f32.xlu0 %v2464
  %v2466 = vpop.xlane.xlu0 %2465
  %v2467 = vsel %vm166, %v2225, 0.0
  %2468 = vadd.xlane.f32.xlu0 %v2467
  %v2469 = vpop.xlane.xlu0 %2468
  %v2470 = vsel %vm166, %v2230, 0.0
  %2471 = vadd.xlane.f32.xlu0 %v2470
  %v2472 = vpop.xlane.xlu0 %2471
  %v2473 = vsel %vm166, %v2233, 0.0
  %2474 = vadd.xlane.f32.xlu0 %v2473
  %v2475 = vpop.xlane.xlu0 %2474
  %v2476 = vsel %vm166, %v2238, 0.0
  %2477 = vadd.xlane.f32.xlu0 %v2476
  %v2478 = vpop.xlane.xlu0 %2477
  %v2479 = vsel %vm166, %v2241, 0.0
  %2480 = vadd.xlane.f32.xlu0 %v2479
  %v2481 = vpop.xlane.xlu0 %2480
  %v2482 = vsel %vm166, %v2246, 0.0
  %2483 = vadd.xlane.f32.xlu0 %v2482
  %v2484 = vpop.xlane.xlu0 %2483
  %v2485 = vsel %vm166, %v2249, 0.0
  %2486 = vadd.xlane.f32.xlu0 %v2485
  %v2487 = vpop.xlane.xlu0 %2486
  %v2488 = vsel %vm166, %v2254, 0.0
  %2489 = vadd.xlane.f32.xlu0 %v2488
  %v2490 = vpop.xlane.xlu0 %2489
  %v2491 = vsel %vm166, %v2257, 0.0
  %2492 = vadd.xlane.f32.xlu0 %v2491
  %v2493 = vpop.xlane.xlu0 %2492
  %v2494 = vsel %vm166, %v2262, 0.0
  %2495 = vadd.xlane.f32.xlu0 %v2494
  %v2496 = vpop.xlane.xlu0 %2495
  %v2497 = vsel %vm166, %v2265, 0.0
  %2498 = vadd.xlane.f32.xlu0 %v2497
  %v2499 = vpop.xlane.xlu0 %2498
  %v2500 = vsel %vm166, %v2270, 0.0
  %2501 = vadd.xlane.f32.xlu0 %v2500
  %v2502 = vpop.xlane.xlu0 %2501
  %v2503 = vsel %vm166, %v2273, 0.0
  %2504 = vadd.xlane.f32.xlu0 %v2503
  %v2505 = vpop.xlane.xlu0 %2504
  %v2506 = vsel %vm166, %v2278, 0.0
  %2507 = vadd.xlane.f32.xlu0 %v2506
  %v2508 = vpop.xlane.xlu0 %2507
  %v2509 = vsel %vm166, %v2281, 0.0
  %2510 = vadd.xlane.f32.xlu0 %v2509
  %v2511 = vpop.xlane.xlu0 %2510
  %v2512 = vsel %vm166, %v2286, 0.0
  %2513 = vadd.xlane.f32.xlu0 %v2512
  %v2514 = vpop.xlane.xlu0 %2513
  %v2515 = vsel %vm166, %v2289, 0.0
  %2516 = vadd.xlane.f32.xlu0 %v2515
  %v2517 = vpop.xlane.xlu0 %2516
  %v2518 = vsel %vm166, %v2294, 0.0
  %2519 = vadd.xlane.f32.xlu0 %v2518
  %v2520 = vpop.xlane.xlu0 %2519
  %v2521 = vsel %vm166, %v2297, 0.0
  %2522 = vadd.xlane.f32.xlu0 %v2521
  %v2523 = vpop.xlane.xlu0 %2522
  %v2524 = vsel %vm166, %v2302, 0.0
  %2525 = vadd.xlane.f32.xlu0 %v2524
  %v2526 = vpop.xlane.xlu0 %2525
  %v2527 = vsel %vm166, %v2305, 0.0
  %2528 = vadd.xlane.f32.xlu0 %v2527
  %v2529 = vpop.xlane.xlu0 %2528
  %v2530 = vsel %vm166, %v2310, 0.0
  %2531 = vadd.xlane.f32.xlu0 %v2530
  %v2532 = vpop.xlane.xlu0 %2531
  %v2533 = vsel %vm166, %v2313, 0.0
  %2534 = vadd.xlane.f32.xlu0 %v2533
  %v2535 = vpop.xlane.xlu0 %2534
  %v2536 = vsel %vm166, %v2318, 0.0
  %2537 = vadd.xlane.f32.xlu0 %v2536
  %v2538 = vpop.xlane.xlu0 %2537
  %v2539 = vsel %vm166, %v2321, 0.0
  %2540 = vadd.xlane.f32.xlu0 %v2539
  %v2541 = vpop.xlane.xlu0 %2540
  %v2542 = vsel %vm166, %v2326, 0.0
  %2543 = vadd.xlane.f32.xlu0 %v2542
  %v2544 = vpop.xlane.xlu0 %2543
  %v2545 = vsel %vm166, %v2329, 0.0
  %2546 = vadd.xlane.f32.xlu0 %v2545
  %v2547 = vpop.xlane.xlu0 %2546
  %v2548 = vsel %vm166, %v2334, 0.0
  %2549 = vadd.xlane.f32.xlu0 %v2548
  %v2550 = vpop.xlane.xlu0 %2549
  %v2551 = vsel %vm166, %v2337, 0.0
  %2552 = vadd.xlane.f32.xlu0 %v2551
  %v2553 = vpop.xlane.xlu0 %2552
  %v2554 = vsel %vm166, %v2342, 0.0
  %2555 = vadd.xlane.f32.xlu0 %v2554
  %v2556 = vpop.xlane.xlu0 %2555
  %v2557 = vsel %vm166, %v2345, 0.0
  %2558 = vadd.xlane.f32.xlu0 %v2557
  %v2559 = vpop.xlane.xlu0 %2558
  %v2560 = vsel %vm166, %v2350, 0.0
  %2561 = vadd.xlane.f32.xlu0 %v2560
  %v2562 = vpop.xlane.xlu0 %2561
  %v2563 = vsel %vm166, %v2353, 0.0
  %2564 = vadd.xlane.f32.xlu0 %v2563
  %v2565 = vpop.xlane.xlu0 %2564
  %v2566 = vsel %vm166, %v2358, 0.0
  %2567 = vadd.xlane.f32.xlu0 %v2566
  %v2568 = vpop.xlane.xlu0 %2567
  %v2569 = vsel %vm166, %v2361, 0.0
  %2570 = vadd.xlane.f32.xlu0 %v2569
  %v2571 = vpop.xlane.xlu0 %2570
  %v2572 = vsel %vm166, %v2366, 0.0
  %2573 = vadd.xlane.f32.xlu0 %v2572
  %v2574 = vpop.xlane.xlu0 %2573
  %v2575 = vsel %vm166, %v2369, 0.0
  %2576 = vadd.xlane.f32.xlu0 %v2575
  %v2577 = vpop.xlane.xlu0 %2576
  %v2578 = vsel %vm166, %v2374, 0.0
  %2579 = vadd.xlane.f32.xlu0 %v2578
  %v2580 = vpop.xlane.xlu0 %2579
  %v2581 = vsel %vm166, %v2377, 0.0
  %2582 = vadd.xlane.f32.xlu0 %v2581
  %v2583 = vpop.xlane.xlu0 %2582
  %v2584 = vsel %vm166, %v2382, 0.0
  %2585 = vadd.xlane.f32.xlu0 %v2584
  %v2586 = vpop.xlane.xlu0 %2585
  %v2587 = vsel %vm166, %v2385, 0.0
  %2588 = vadd.xlane.f32.xlu0 %v2587
  %v2589 = vpop.xlane.xlu0 %2588
  %v2590 = vsel %vm166, %v2390, 0.0
  %2591 = vadd.xlane.f32.xlu0 %v2590
  %v2592 = vpop.xlane.xlu0 %2591
  %v2593 = vsel %vm166, %v2393, 0.0
  %2594 = vadd.xlane.f32.xlu0 %v2593
  %v2595 = vpop.xlane.xlu0 %2594
  %v2596 = vsel %vm166, %v2398, 0.0
  %2597 = vadd.xlane.f32.xlu0 %v2596
  %v2598 = vpop.xlane.xlu0 %2597
  %v2599 = vsel %vm166, %v2401, 0.0
  %2600 = vadd.xlane.f32.xlu0 %v2599
  %v2601 = vpop.xlane.xlu0 %2600
  %v2602 = vsel %vm166, %v2406, 0.0
  %2603 = vadd.xlane.f32.xlu0 %v2602
  %v2604 = vpop.xlane.xlu0 %2603
  %v2605 = vsel %vm166, %v2409, 0.0
  %2606 = vadd.xlane.f32.xlu0 %v2605
  %v2607 = vpop.xlane.xlu0 %2606
  %v2608 = vsel %vm166, %v2414, 0.0
  %2609 = vadd.xlane.f32.xlu0 %v2608
  %v2610 = vpop.xlane.xlu0 %2609
  %v2611 = vsel %vm166, %v2417, 0.0
  %2612 = vadd.xlane.f32.xlu0 %v2611
  %v2613 = vpop.xlane.xlu0 %2612
  %v2614 = vmul.f32 %v2424, %v359
  %v2615 = vmul.f32 %v2427, %v359
  %v2616 = vmul.f32 %v2430, %v359
  %v2617 = vmul.f32 %v2433, %v359
  %v2618 = vmul.f32 %v2436, %v359
  %v2619 = vmul.f32 %v2439, %v359
  %v2620 = vmul.f32 %v2442, %v359
  %v2621 = vmul.f32 %v2445, %v359
  %v2622 = vmul.f32 %v2448, %v359
  %v2623 = vmul.f32 %v2451, %v359
  %v2624 = vmul.f32 %v2454, %v359
  %v2625 = vmul.f32 %v2457, %v359
  %v2626 = vmul.f32 %v2460, %v359
  %v2627 = vmul.f32 %v2463, %v359
  %v2628 = vmul.f32 %v2466, %v359
  %v2629 = vmul.f32 %v2469, %v359
  %v2630 = vmul.f32 %v2472, %v359
  %v2631 = vmul.f32 %v2475, %v359
  %v2632 = vmul.f32 %v2478, %v359
  %v2633 = vmul.f32 %v2481, %v359
  %v2634 = vmul.f32 %v2484, %v359
  %v2635 = vmul.f32 %v2487, %v359
  %v2636 = vmul.f32 %v2490, %v359
  %v2637 = vmul.f32 %v2493, %v359
  %v2638 = vmul.f32 %v2496, %v359
  %v2639 = vmul.f32 %v2499, %v359
  %v2640 = vmul.f32 %v2502, %v359
  %v2641 = vmul.f32 %v2505, %v359
  %v2642 = vmul.f32 %v2508, %v359
  %v2643 = vmul.f32 %v2511, %v359
  %v2644 = vmul.f32 %v2514, %v359
  %v2645 = vmul.f32 %v2517, %v359
  %v2646 = vmul.f32 %v2520, %v359
  %v2647 = vmul.f32 %v2523, %v359
  %v2648 = vmul.f32 %v2526, %v359
  %v2649 = vmul.f32 %v2529, %v359
  %v2650 = vmul.f32 %v2532, %v359
  %v2651 = vmul.f32 %v2535, %v359
  %v2652 = vmul.f32 %v2538, %v359
  %v2653 = vmul.f32 %v2541, %v359
  %v2654 = vmul.f32 %v2544, %v359
  %v2655 = vmul.f32 %v2547, %v359
  %v2656 = vmul.f32 %v2550, %v359
  %v2657 = vmul.f32 %v2553, %v359
  %v2658 = vmul.f32 %v2556, %v359
  %v2659 = vmul.f32 %v2559, %v359
  %v2660 = vmul.f32 %v2562, %v359
  %v2661 = vmul.f32 %v2565, %v359
  %v2662 = vmul.f32 %v2568, %v359
  %v2663 = vmul.f32 %v2571, %v359
  %v2664 = vmul.f32 %v2574, %v359
  %v2665 = vmul.f32 %v2577, %v359
  %v2666 = vmul.f32 %v2580, %v359
  %v2667 = vmul.f32 %v2583, %v359
  %v2668 = vmul.f32 %v2586, %v359
  %v2669 = vmul.f32 %v2589, %v359
  %v2670 = vmul.f32 %v2592, %v359
  %v2671 = vmul.f32 %v2595, %v359
  %v2672 = vmul.f32 %v2598, %v359
  %v2673 = vmul.f32 %v2601, %v359
  %v2674 = vmul.f32 %v2604, %v359
  %v2675 = vmul.f32 %v2607, %v359
  %v2676 = vmul.f32 %v2610, %v359
  %v2677 = vmul.f32 %v2613, %v359
  %v2678 = vsub.f32 %v2166, %v2614
  %v2679 = vsub.f32 %v2169, %v2615
  %v2680 = vsub.f32 %v2174, %v2616
  %v2681 = vsub.f32 %v2177, %v2617
  %v2682 = vsub.f32 %v2182, %v2618
  %v2683 = vsub.f32 %v2185, %v2619
  %v2684 = vsub.f32 %v2190, %v2620
  %v2685 = vsub.f32 %v2193, %v2621
  %v2686 = vsub.f32 %v2198, %v2622
  %v2687 = vsub.f32 %v2201, %v2623
  %v2688 = vsub.f32 %v2206, %v2624
  %v2689 = vsub.f32 %v2209, %v2625
  %v2690 = vsub.f32 %v2214, %v2626
  %v2691 = vsub.f32 %v2217, %v2627
  %v2692 = vsub.f32 %v2222, %v2628
  %v2693 = vsub.f32 %v2225, %v2629
  %v2694 = vsub.f32 %v2230, %v2630
  %v2695 = vsub.f32 %v2233, %v2631
  %v2696 = vsub.f32 %v2238, %v2632
  %v2697 = vsub.f32 %v2241, %v2633
  %v2698 = vsub.f32 %v2246, %v2634
  %v2699 = vsub.f32 %v2249, %v2635
  %v2700 = vsub.f32 %v2254, %v2636
  %v2701 = vsub.f32 %v2257, %v2637
  %v2702 = vsub.f32 %v2262, %v2638
  %v2703 = vsub.f32 %v2265, %v2639
  %v2704 = vsub.f32 %v2270, %v2640
  %v2705 = vsub.f32 %v2273, %v2641
  %v2706 = vsub.f32 %v2278, %v2642
  %v2707 = vsub.f32 %v2281, %v2643
  %v2708 = vsub.f32 %v2286, %v2644
  %v2709 = vsub.f32 %v2289, %v2645
  %v2710 = vsub.f32 %v2294, %v2646
  %v2711 = vsub.f32 %v2297, %v2647
  %v2712 = vsub.f32 %v2302, %v2648
  %v2713 = vsub.f32 %v2305, %v2649
  %v2714 = vsub.f32 %v2310, %v2650
  %v2715 = vsub.f32 %v2313, %v2651
  %v2716 = vsub.f32 %v2318, %v2652
  %v2717 = vsub.f32 %v2321, %v2653
  %v2718 = vsub.f32 %v2326, %v2654
  %v2719 = vsub.f32 %v2329, %v2655
  %v2720 = vsub.f32 %v2334, %v2656
  %v2721 = vsub.f32 %v2337, %v2657
  %v2722 = vsub.f32 %v2342, %v2658
  %v2723 = vsub.f32 %v2345, %v2659
  %v2724 = vsub.f32 %v2350, %v2660
  %v2725 = vsub.f32 %v2353, %v2661
  %v2726 = vsub.f32 %v2358, %v2662
  %v2727 = vsub.f32 %v2361, %v2663
  %v2728 = vsub.f32 %v2366, %v2664
  %v2729 = vsub.f32 %v2369, %v2665
  %v2730 = vsub.f32 %v2374, %v2666
  %v2731 = vsub.f32 %v2377, %v2667
  %v2732 = vsub.f32 %v2382, %v2668
  %v2733 = vsub.f32 %v2385, %v2669
  %v2734 = vsub.f32 %v2390, %v2670
  %v2735 = vsub.f32 %v2393, %v2671
  %v2736 = vsub.f32 %v2398, %v2672
  %v2737 = vsub.f32 %v2401, %v2673
  %v2738 = vsub.f32 %v2406, %v2674
  %v2739 = vsub.f32 %v2409, %v2675
  %v2740 = vsub.f32 %v2414, %v2676
  %v2741 = vsub.f32 %v2417, %v2677
  %v2742 = vmul.f32 %v2678, %v2678
  %v2743 = vmul.f32 %v2679, %v2679
  %v2744 = vmul.f32 %v2680, %v2680
  %v2745 = vmul.f32 %v2681, %v2681
  %v2746 = vmul.f32 %v2682, %v2682
  %v2747 = vmul.f32 %v2683, %v2683
  %v2748 = vmul.f32 %v2684, %v2684
  %v2749 = vmul.f32 %v2685, %v2685
  %v2750 = vmul.f32 %v2686, %v2686
  %v2751 = vmul.f32 %v2687, %v2687
  %v2752 = vmul.f32 %v2688, %v2688
  %v2753 = vmul.f32 %v2689, %v2689
  %v2754 = vmul.f32 %v2690, %v2690
  %v2755 = vmul.f32 %v2691, %v2691
  %v2756 = vmul.f32 %v2692, %v2692
  %v2757 = vmul.f32 %v2693, %v2693
  %v2758 = vmul.f32 %v2694, %v2694
  %v2759 = vmul.f32 %v2695, %v2695
  %v2760 = vmul.f32 %v2696, %v2696
  %v2761 = vmul.f32 %v2697, %v2697
  %v2762 = vmul.f32 %v2698, %v2698
  %v2763 = vmul.f32 %v2699, %v2699
  %v2764 = vmul.f32 %v2700, %v2700
  %v2765 = vmul.f32 %v2701, %v2701
  %v2766 = vmul.f32 %v2702, %v2702
  %v2767 = vmul.f32 %v2703, %v2703
  %v2768 = vmul.f32 %v2704, %v2704
  %v2769 = vmul.f32 %v2705, %v2705
  %v2770 = vmul.f32 %v2706, %v2706
  %v2771 = vmul.f32 %v2707, %v2707
  %v2772 = vmul.f32 %v2708, %v2708
  %v2773 = vmul.f32 %v2709, %v2709
  %v2774 = vmul.f32 %v2710, %v2710
  %v2775 = vmul.f32 %v2711, %v2711
  %v2776 = vmul.f32 %v2712, %v2712
  %v2777 = vmul.f32 %v2713, %v2713
  %v2778 = vmul.f32 %v2714, %v2714
  %v2779 = vmul.f32 %v2715, %v2715
  %v2780 = vmul.f32 %v2716, %v2716
  %v2781 = vmul.f32 %v2717, %v2717
  %v2782 = vmul.f32 %v2718, %v2718
  %v2783 = vmul.f32 %v2719, %v2719
  %v2784 = vmul.f32 %v2720, %v2720
  %v2785 = vmul.f32 %v2721, %v2721
  %v2786 = vmul.f32 %v2722, %v2722
  %v2787 = vmul.f32 %v2723, %v2723
  %v2788 = vmul.f32 %v2724, %v2724
  %v2789 = vmul.f32 %v2725, %v2725
  %v2790 = vmul.f32 %v2726, %v2726
  %v2791 = vmul.f32 %v2727, %v2727
  %v2792 = vmul.f32 %v2728, %v2728
  %v2793 = vmul.f32 %v2729, %v2729
  %v2794 = vmul.f32 %v2730, %v2730
  %v2795 = vmul.f32 %v2731, %v2731
  %v2796 = vmul.f32 %v2732, %v2732
  %v2797 = vmul.f32 %v2733, %v2733
  %v2798 = vmul.f32 %v2734, %v2734
  %v2799 = vmul.f32 %v2735, %v2735
  %v2800 = vmul.f32 %v2736, %v2736
  %v2801 = vmul.f32 %v2737, %v2737
  %v2802 = vmul.f32 %v2738, %v2738
  %v2803 = vmul.f32 %v2739, %v2739
  %v2804 = vmul.f32 %v2740, %v2740
  %v2805 = vmul.f32 %v2741, %v2741
  %v2806 = vsel %vm166, %v2742, 0.0
  %2807 = vadd.xlane.f32.xlu0 %v2806
  %v2808 = vpop.xlane.xlu0 %2807
  %v2809 = vsel %vm166, %v2743, 0.0
  %2810 = vadd.xlane.f32.xlu0 %v2809
  %v2811 = vpop.xlane.xlu0 %2810
  %v2812 = vsel %vm166, %v2744, 0.0
  %2813 = vadd.xlane.f32.xlu0 %v2812
  %v2814 = vpop.xlane.xlu0 %2813
  %v2815 = vsel %vm166, %v2745, 0.0
  %2816 = vadd.xlane.f32.xlu0 %v2815
  %v2817 = vpop.xlane.xlu0 %2816
  %v2818 = vsel %vm166, %v2746, 0.0
  %2819 = vadd.xlane.f32.xlu0 %v2818
  %v2820 = vpop.xlane.xlu0 %2819
  %v2821 = vsel %vm166, %v2747, 0.0
  %2822 = vadd.xlane.f32.xlu0 %v2821
  %v2823 = vpop.xlane.xlu0 %2822
  %v2824 = vsel %vm166, %v2748, 0.0
  %2825 = vadd.xlane.f32.xlu0 %v2824
  %v2826 = vpop.xlane.xlu0 %2825
  %v2827 = vsel %vm166, %v2749, 0.0
  %2828 = vadd.xlane.f32.xlu0 %v2827
  %v2829 = vpop.xlane.xlu0 %2828
  %v2830 = vsel %vm166, %v2750, 0.0
  %2831 = vadd.xlane.f32.xlu0 %v2830
  %v2832 = vpop.xlane.xlu0 %2831
  %v2833 = vsel %vm166, %v2751, 0.0
  %2834 = vadd.xlane.f32.xlu0 %v2833
  %v2835 = vpop.xlane.xlu0 %2834
  %v2836 = vsel %vm166, %v2752, 0.0
  %2837 = vadd.xlane.f32.xlu0 %v2836
  %v2838 = vpop.xlane.xlu0 %2837
  %v2839 = vsel %vm166, %v2753, 0.0
  %2840 = vadd.xlane.f32.xlu0 %v2839
  %v2841 = vpop.xlane.xlu0 %2840
  %v2842 = vsel %vm166, %v2754, 0.0
  %2843 = vadd.xlane.f32.xlu0 %v2842
  %v2844 = vpop.xlane.xlu0 %2843
  %v2845 = vsel %vm166, %v2755, 0.0
  %2846 = vadd.xlane.f32.xlu0 %v2845
  %v2847 = vpop.xlane.xlu0 %2846
  %v2848 = vsel %vm166, %v2756, 0.0
  %2849 = vadd.xlane.f32.xlu0 %v2848
  %v2850 = vpop.xlane.xlu0 %2849
  %v2851 = vsel %vm166, %v2757, 0.0
  %2852 = vadd.xlane.f32.xlu0 %v2851
  %v2853 = vpop.xlane.xlu0 %2852
  %v2854 = vsel %vm166, %v2758, 0.0
  %2855 = vadd.xlane.f32.xlu0 %v2854
  %v2856 = vpop.xlane.xlu0 %2855
  %v2857 = vsel %vm166, %v2759, 0.0
  %2858 = vadd.xlane.f32.xlu0 %v2857
  %v2859 = vpop.xlane.xlu0 %2858
  %v2860 = vsel %vm166, %v2760, 0.0
  %2861 = vadd.xlane.f32.xlu0 %v2860
  %v2862 = vpop.xlane.xlu0 %2861
  %v2863 = vsel %vm166, %v2761, 0.0
  %2864 = vadd.xlane.f32.xlu0 %v2863
  %v2865 = vpop.xlane.xlu0 %2864
  %v2866 = vsel %vm166, %v2762, 0.0
  %2867 = vadd.xlane.f32.xlu0 %v2866
  %v2868 = vpop.xlane.xlu0 %2867
  %v2869 = vsel %vm166, %v2763, 0.0
  %2870 = vadd.xlane.f32.xlu0 %v2869
  %v2871 = vpop.xlane.xlu0 %2870
  %v2872 = vsel %vm166, %v2764, 0.0
  %2873 = vadd.xlane.f32.xlu0 %v2872
  %v2874 = vpop.xlane.xlu0 %2873
  %v2875 = vsel %vm166, %v2765, 0.0
  %2876 = vadd.xlane.f32.xlu0 %v2875
  %v2877 = vpop.xlane.xlu0 %2876
  %v2878 = vsel %vm166, %v2766, 0.0
  %2879 = vadd.xlane.f32.xlu0 %v2878
  %v2880 = vpop.xlane.xlu0 %2879
  %v2881 = vsel %vm166, %v2767, 0.0
  %2882 = vadd.xlane.f32.xlu0 %v2881
  %v2883 = vpop.xlane.xlu0 %2882
  %v2884 = vsel %vm166, %v2768, 0.0
  %2885 = vadd.xlane.f32.xlu0 %v2884
  %v2886 = vpop.xlane.xlu0 %2885
  %v2887 = vsel %vm166, %v2769, 0.0
  %2888 = vadd.xlane.f32.xlu0 %v2887
  %v2889 = vpop.xlane.xlu0 %2888
  %v2890 = vsel %vm166, %v2770, 0.0
  %2891 = vadd.xlane.f32.xlu0 %v2890
  %v2892 = vpop.xlane.xlu0 %2891
  %v2893 = vsel %vm166, %v2771, 0.0
  %2894 = vadd.xlane.f32.xlu0 %v2893
  %v2895 = vpop.xlane.xlu0 %2894
  %v2896 = vsel %vm166, %v2772, 0.0
  %2897 = vadd.xlane.f32.xlu0 %v2896
  %v2898 = vpop.xlane.xlu0 %2897
  %v2899 = vsel %vm166, %v2773, 0.0
  %2900 = vadd.xlane.f32.xlu0 %v2899
  %v2901 = vpop.xlane.xlu0 %2900
  %v2902 = vsel %vm166, %v2774, 0.0
  %2903 = vadd.xlane.f32.xlu0 %v2902
  %v2904 = vpop.xlane.xlu0 %2903
  %v2905 = vsel %vm166, %v2775, 0.0
  %2906 = vadd.xlane.f32.xlu0 %v2905
  %v2907 = vpop.xlane.xlu0 %2906
  %v2908 = vsel %vm166, %v2776, 0.0
  %2909 = vadd.xlane.f32.xlu0 %v2908
  %v2910 = vpop.xlane.xlu0 %2909
  %v2911 = vsel %vm166, %v2777, 0.0
  %2912 = vadd.xlane.f32.xlu0 %v2911
  %v2913 = vpop.xlane.xlu0 %2912
  %v2914 = vsel %vm166, %v2778, 0.0
  %2915 = vadd.xlane.f32.xlu0 %v2914
  %v2916 = vpop.xlane.xlu0 %2915
  %v2917 = vsel %vm166, %v2779, 0.0
  %2918 = vadd.xlane.f32.xlu0 %v2917
  %v2919 = vpop.xlane.xlu0 %2918
  %v2920 = vsel %vm166, %v2780, 0.0
  %2921 = vadd.xlane.f32.xlu0 %v2920
  %v2922 = vpop.xlane.xlu0 %2921
  %v2923 = vsel %vm166, %v2781, 0.0
  %2924 = vadd.xlane.f32.xlu0 %v2923
  %v2925 = vpop.xlane.xlu0 %2924
  %v2926 = vsel %vm166, %v2782, 0.0
  %2927 = vadd.xlane.f32.xlu0 %v2926
  %v2928 = vpop.xlane.xlu0 %2927
  %v2929 = vsel %vm166, %v2783, 0.0
  %2930 = vadd.xlane.f32.xlu0 %v2929
  %v2931 = vpop.xlane.xlu0 %2930
  %v2932 = vsel %vm166, %v2784, 0.0
  %2933 = vadd.xlane.f32.xlu0 %v2932
  %v2934 = vpop.xlane.xlu0 %2933
  %v2935 = vsel %vm166, %v2785, 0.0
  %2936 = vadd.xlane.f32.xlu0 %v2935
  %v2937 = vpop.xlane.xlu0 %2936
  %v2938 = vsel %vm166, %v2786, 0.0
  %2939 = vadd.xlane.f32.xlu0 %v2938
  %v2940 = vpop.xlane.xlu0 %2939
  %v2941 = vsel %vm166, %v2787, 0.0
  %2942 = vadd.xlane.f32.xlu0 %v2941
  %v2943 = vpop.xlane.xlu0 %2942
  %v2944 = vsel %vm166, %v2788, 0.0
  %2945 = vadd.xlane.f32.xlu0 %v2944
  %v2946 = vpop.xlane.xlu0 %2945
  %v2947 = vsel %vm166, %v2789, 0.0
  %2948 = vadd.xlane.f32.xlu0 %v2947
  %v2949 = vpop.xlane.xlu0 %2948
  %v2950 = vsel %vm166, %v2790, 0.0
  %2951 = vadd.xlane.f32.xlu0 %v2950
  %v2952 = vpop.xlane.xlu0 %2951
  %v2953 = vsel %vm166, %v2791, 0.0
  %2954 = vadd.xlane.f32.xlu0 %v2953
  %v2955 = vpop.xlane.xlu0 %2954
  %v2956 = vsel %vm166, %v2792, 0.0
  %2957 = vadd.xlane.f32.xlu0 %v2956
  %v2958 = vpop.xlane.xlu0 %2957
  %v2959 = vsel %vm166, %v2793, 0.0
  %2960 = vadd.xlane.f32.xlu0 %v2959
  %v2961 = vpop.xlane.xlu0 %2960
  %v2962 = vsel %vm166, %v2794, 0.0
  %2963 = vadd.xlane.f32.xlu0 %v2962
  %v2964 = vpop.xlane.xlu0 %2963
  %v2965 = vsel %vm166, %v2795, 0.0
  %2966 = vadd.xlane.f32.xlu0 %v2965
  %v2967 = vpop.xlane.xlu0 %2966
  %v2968 = vsel %vm166, %v2796, 0.0
  %2969 = vadd.xlane.f32.xlu0 %v2968
  %v2970 = vpop.xlane.xlu0 %2969
  %v2971 = vsel %vm166, %v2797, 0.0
  %2972 = vadd.xlane.f32.xlu0 %v2971
  %v2973 = vpop.xlane.xlu0 %2972
  %v2974 = vsel %vm166, %v2798, 0.0
  %2975 = vadd.xlane.f32.xlu0 %v2974
  %v2976 = vpop.xlane.xlu0 %2975
  %v2977 = vsel %vm166, %v2799, 0.0
  %2978 = vadd.xlane.f32.xlu0 %v2977
  %v2979 = vpop.xlane.xlu0 %2978
  %v2980 = vsel %vm166, %v2800, 0.0
  %2981 = vadd.xlane.f32.xlu0 %v2980
  %v2982 = vpop.xlane.xlu0 %2981
  %v2983 = vsel %vm166, %v2801, 0.0
  %2984 = vadd.xlane.f32.xlu0 %v2983
  %v2985 = vpop.xlane.xlu0 %2984
  %v2986 = vsel %vm166, %v2802, 0.0
  %2987 = vadd.xlane.f32.xlu0 %v2986
  %v2988 = vpop.xlane.xlu0 %2987
  %v2989 = vsel %vm166, %v2803, 0.0
  %2990 = vadd.xlane.f32.xlu0 %v2989
  %v2991 = vpop.xlane.xlu0 %2990
  %v2992 = vsel %vm166, %v2804, 0.0
  %2993 = vadd.xlane.f32.xlu0 %v2992
  %v2994 = vpop.xlane.xlu0 %2993
  %v2995 = vsel %vm166, %v2805, 0.0
  %2996 = vadd.xlane.f32.xlu0 %v2995
  %v2997 = vpop.xlane.xlu0 %2996
  %v2998 = vmul.f32 %v2808, %v359
  %v2999 = vmul.f32 %v2811, %v359
  %v3000 = vmul.f32 %v2814, %v359
  %v3001 = vmul.f32 %v2817, %v359
  %v3002 = vmul.f32 %v2820, %v359
  %v3003 = vmul.f32 %v2823, %v359
  %v3004 = vmul.f32 %v2826, %v359
  %v3005 = vmul.f32 %v2829, %v359
  %v3006 = vmul.f32 %v2832, %v359
  %v3007 = vmul.f32 %v2835, %v359
  %v3008 = vmul.f32 %v2838, %v359
  %v3009 = vmul.f32 %v2841, %v359
  %v3010 = vmul.f32 %v2844, %v359
  %v3011 = vmul.f32 %v2847, %v359
  %v3012 = vmul.f32 %v2850, %v359
  %v3013 = vmul.f32 %v2853, %v359
  %v3014 = vmul.f32 %v2856, %v359
  %v3015 = vmul.f32 %v2859, %v359
  %v3016 = vmul.f32 %v2862, %v359
  %v3017 = vmul.f32 %v2865, %v359
  %v3018 = vmul.f32 %v2868, %v359
  %v3019 = vmul.f32 %v2871, %v359
  %v3020 = vmul.f32 %v2874, %v359
  %v3021 = vmul.f32 %v2877, %v359
  %v3022 = vmul.f32 %v2880, %v359
  %v3023 = vmul.f32 %v2883, %v359
  %v3024 = vmul.f32 %v2886, %v359
  %v3025 = vmul.f32 %v2889, %v359
  %v3026 = vmul.f32 %v2892, %v359
  %v3027 = vmul.f32 %v2895, %v359
  %v3028 = vmul.f32 %v2898, %v359
  %v3029 = vmul.f32 %v2901, %v359
  %v3030 = vmul.f32 %v2904, %v359
  %v3031 = vmul.f32 %v2907, %v359
  %v3032 = vmul.f32 %v2910, %v359
  %v3033 = vmul.f32 %v2913, %v359
  %v3034 = vmul.f32 %v2916, %v359
  %v3035 = vmul.f32 %v2919, %v359
  %v3036 = vmul.f32 %v2922, %v359
  %v3037 = vmul.f32 %v2925, %v359
  %v3038 = vmul.f32 %v2928, %v359
  %v3039 = vmul.f32 %v2931, %v359
  %v3040 = vmul.f32 %v2934, %v359
  %v3041 = vmul.f32 %v2937, %v359
  %v3042 = vmul.f32 %v2940, %v359
  %v3043 = vmul.f32 %v2943, %v359
  %v3044 = vmul.f32 %v2946, %v359
  %v3045 = vmul.f32 %v2949, %v359
  %v3046 = vmul.f32 %v2952, %v359
  %v3047 = vmul.f32 %v2955, %v359
  %v3048 = vmul.f32 %v2958, %v359
  %v3049 = vmul.f32 %v2961, %v359
  %v3050 = vmul.f32 %v2964, %v359
  %v3051 = vmul.f32 %v2967, %v359
  %v3052 = vmul.f32 %v2970, %v359
  %v3053 = vmul.f32 %v2973, %v359
  %v3054 = vmul.f32 %v2976, %v359
  %v3055 = vmul.f32 %v2979, %v359
  %v3056 = vmul.f32 %v2982, %v359
  %v3057 = vmul.f32 %v2985, %v359
  %v3058 = vmul.f32 %v2988, %v359
  %v3059 = vmul.f32 %v2991, %v359
  %v3060 = vmul.f32 %v2994, %v359
  %v3061 = vmul.f32 %v2997, %v359
  %v3062 = vadd.f32 %v2998, 1e-05
  %v3063 = vadd.f32 %v2999, 1e-05
  %v3064 = vadd.f32 %v3000, 1e-05
  %v3065 = vadd.f32 %v3001, 1e-05
  %v3066 = vadd.f32 %v3002, 1e-05
  %v3067 = vadd.f32 %v3003, 1e-05
  %v3068 = vadd.f32 %v3004, 1e-05
  %v3069 = vadd.f32 %v3005, 1e-05
  %v3070 = vadd.f32 %v3006, 1e-05
  %v3071 = vadd.f32 %v3007, 1e-05
  %v3072 = vadd.f32 %v3008, 1e-05
  %v3073 = vadd.f32 %v3009, 1e-05
  %v3074 = vadd.f32 %v3010, 1e-05
  %v3075 = vadd.f32 %v3011, 1e-05
  %v3076 = vadd.f32 %v3012, 1e-05
  %v3077 = vadd.f32 %v3013, 1e-05
  %v3078 = vadd.f32 %v3014, 1e-05
  %v3079 = vadd.f32 %v3015, 1e-05
  %v3080 = vadd.f32 %v3016, 1e-05
  %v3081 = vadd.f32 %v3017, 1e-05
  %v3082 = vadd.f32 %v3018, 1e-05
  %v3083 = vadd.f32 %v3019, 1e-05
  %v3084 = vadd.f32 %v3020, 1e-05
  %v3085 = vadd.f32 %v3021, 1e-05
  %v3086 = vadd.f32 %v3022, 1e-05
  %v3087 = vadd.f32 %v3023, 1e-05
  %v3088 = vadd.f32 %v3024, 1e-05
  %v3089 = vadd.f32 %v3025, 1e-05
  %v3090 = vadd.f32 %v3026, 1e-05
  %v3091 = vadd.f32 %v3027, 1e-05
  %v3092 = vadd.f32 %v3028, 1e-05
  %v3093 = vadd.f32 %v3029, 1e-05
  %v3094 = vadd.f32 %v3030, 1e-05
  %v3095 = vadd.f32 %v3031, 1e-05
  %v3096 = vadd.f32 %v3032, 1e-05
  %v3097 = vadd.f32 %v3033, 1e-05
  %v3098 = vadd.f32 %v3034, 1e-05
  %v3099 = vadd.f32 %v3035, 1e-05
  %v3100 = vadd.f32 %v3036, 1e-05
  %v3101 = vadd.f32 %v3037, 1e-05
  %v3102 = vadd.f32 %v3038, 1e-05
  %v3103 = vadd.f32 %v3039, 1e-05
  %v3104 = vadd.f32 %v3040, 1e-05
  %v3105 = vadd.f32 %v3041, 1e-05
  %v3106 = vadd.f32 %v3042, 1e-05
  %v3107 = vadd.f32 %v3043, 1e-05
  %v3108 = vadd.f32 %v3044, 1e-05
  %v3109 = vadd.f32 %v3045, 1e-05
  %v3110 = vadd.f32 %v3046, 1e-05
  %v3111 = vadd.f32 %v3047, 1e-05
  %v3112 = vadd.f32 %v3048, 1e-05
  %v3113 = vadd.f32 %v3049, 1e-05
  %v3114 = vadd.f32 %v3050, 1e-05
  %v3115 = vadd.f32 %v3051, 1e-05
  %v3116 = vadd.f32 %v3052, 1e-05
  %v3117 = vadd.f32 %v3053, 1e-05
  %v3118 = vadd.f32 %v3054, 1e-05
  %v3119 = vadd.f32 %v3055, 1e-05
  %v3120 = vadd.f32 %v3056, 1e-05
  %v3121 = vadd.f32 %v3057, 1e-05
  %v3122 = vadd.f32 %v3058, 1e-05
  %v3123 = vadd.f32 %v3059, 1e-05
  %v3124 = vadd.f32 %v3060, 1e-05
  %v3125 = vadd.f32 %v3061, 1e-05
  %v3126 = vrsqrt.pop %v3062
  %v3127 = vrsqrt.pop %v3063
  %v3128 = vrsqrt.pop %v3064
  %v3129 = vrsqrt.pop %v3065
  %v3130 = vrsqrt.pop %v3066
  %v3131 = vrsqrt.pop %v3067
  %v3132 = vrsqrt.pop %v3068
  %v3133 = vrsqrt.pop %v3069
  %v3134 = vrsqrt.pop %v3070
  %v3135 = vrsqrt.pop %v3071
  %v3136 = vrsqrt.pop %v3072
  %v3137 = vrsqrt.pop %v3073
  %v3138 = vrsqrt.pop %v3074
  %v3139 = vrsqrt.pop %v3075
  %v3140 = vrsqrt.pop %v3076
  %v3141 = vrsqrt.pop %v3077
  %v3142 = vrsqrt.pop %v3078
  %v3143 = vrsqrt.pop %v3079
  %v3144 = vrsqrt.pop %v3080
  %v3145 = vrsqrt.pop %v3081
  %v3146 = vrsqrt.pop %v3082
  %v3147 = vrsqrt.pop %v3083
  %v3148 = vrsqrt.pop %v3084
  %v3149 = vrsqrt.pop %v3085
  %v3150 = vrsqrt.pop %v3086
  %v3151 = vrsqrt.pop %v3087
  %v3152 = vrsqrt.pop %v3088
  %v3153 = vrsqrt.pop %v3089
  %v3154 = vrsqrt.pop %v3090
  %v3155 = vrsqrt.pop %v3091
  %v3156 = vrsqrt.pop %v3092
  %v3157 = vrsqrt.pop %v3093
  %v3158 = vrsqrt.pop %v3094
  %v3159 = vrsqrt.pop %v3095
  %v3160 = vrsqrt.pop %v3096
  %v3161 = vrsqrt.pop %v3097
  %v3162 = vrsqrt.pop %v3098
  %v3163 = vrsqrt.pop %v3099
  %v3164 = vrsqrt.pop %v3100
  %v3165 = vrsqrt.pop %v3101
  %v3166 = vrsqrt.pop %v3102
  %v3167 = vrsqrt.pop %v3103
  %v3168 = vrsqrt.pop %v3104
  %v3169 = vrsqrt.pop %v3105
  %v3170 = vrsqrt.pop %v3106
  %v3171 = vrsqrt.pop %v3107
  %v3172 = vrsqrt.pop %v3108
  %v3173 = vrsqrt.pop %v3109
  %v3174 = vrsqrt.pop %v3110
  %v3175 = vrsqrt.pop %v3111
  %v3176 = vrsqrt.pop %v3112
  %v3177 = vrsqrt.pop %v3113
  %v3178 = vrsqrt.pop %v3114
  %v3179 = vrsqrt.pop %v3115
  %v3180 = vrsqrt.pop %v3116
  %v3181 = vrsqrt.pop %v3117
  %v3182 = vrsqrt.pop %v3118
  %v3183 = vrsqrt.pop %v3119
  %v3184 = vrsqrt.pop %v3120
  %v3185 = vrsqrt.pop %v3121
  %v3186 = vrsqrt.pop %v3122
  %v3187 = vrsqrt.pop %v3123
  %v3188 = vrsqrt.pop %v3124
  %v3189 = vrsqrt.pop %v3125
  %v3190 = vmul.f32 %v2678, %v3126
  %v3191 = vmul.f32 %v2679, %v3127
  %v3192 = vmul.f32 %v2680, %v3128
  %v3193 = vmul.f32 %v2681, %v3129
  %v3194 = vmul.f32 %v2682, %v3130
  %v3195 = vmul.f32 %v2683, %v3131
  %v3196 = vmul.f32 %v2684, %v3132
  %v3197 = vmul.f32 %v2685, %v3133
  %v3198 = vmul.f32 %v2686, %v3134
  %v3199 = vmul.f32 %v2687, %v3135
  %v3200 = vmul.f32 %v2688, %v3136
  %v3201 = vmul.f32 %v2689, %v3137
  %v3202 = vmul.f32 %v2690, %v3138
  %v3203 = vmul.f32 %v2691, %v3139
  %v3204 = vmul.f32 %v2692, %v3140
  %v3205 = vmul.f32 %v2693, %v3141
  %v3206 = vmul.f32 %v2694, %v3142
  %v3207 = vmul.f32 %v2695, %v3143
  %v3208 = vmul.f32 %v2696, %v3144
  %v3209 = vmul.f32 %v2697, %v3145
  %v3210 = vmul.f32 %v2698, %v3146
  %v3211 = vmul.f32 %v2699, %v3147
  %v3212 = vmul.f32 %v2700, %v3148
  %v3213 = vmul.f32 %v2701, %v3149
  %v3214 = vmul.f32 %v2702, %v3150
  %v3215 = vmul.f32 %v2703, %v3151
  %v3216 = vmul.f32 %v2704, %v3152
  %v3217 = vmul.f32 %v2705, %v3153
  %v3218 = vmul.f32 %v2706, %v3154
  %v3219 = vmul.f32 %v2707, %v3155
  %v3220 = vmul.f32 %v2708, %v3156
  %v3221 = vmul.f32 %v2709, %v3157
  %v3222 = vmul.f32 %v2710, %v3158
  %v3223 = vmul.f32 %v2711, %v3159
  %v3224 = vmul.f32 %v2712, %v3160
  %v3225 = vmul.f32 %v2713, %v3161
  %v3226 = vmul.f32 %v2714, %v3162
  %v3227 = vmul.f32 %v2715, %v3163
  %v3228 = vmul.f32 %v2716, %v3164
  %v3229 = vmul.f32 %v2717, %v3165
  %v3230 = vmul.f32 %v2718, %v3166
  %v3231 = vmul.f32 %v2719, %v3167
  %v3232 = vmul.f32 %v2720, %v3168
  %v3233 = vmul.f32 %v2721, %v3169
  %v3234 = vmul.f32 %v2722, %v3170
  %v3235 = vmul.f32 %v2723, %v3171
  %v3236 = vmul.f32 %v2724, %v3172
  %v3237 = vmul.f32 %v2725, %v3173
  %v3238 = vmul.f32 %v2726, %v3174
  %v3239 = vmul.f32 %v2727, %v3175
  %v3240 = vmul.f32 %v2728, %v3176
  %v3241 = vmul.f32 %v2729, %v3177
  %v3242 = vmul.f32 %v2730, %v3178
  %v3243 = vmul.f32 %v2731, %v3179
  %v3244 = vmul.f32 %v2732, %v3180
  %v3245 = vmul.f32 %v2733, %v3181
  %v3246 = vmul.f32 %v2734, %v3182
  %v3247 = vmul.f32 %v2735, %v3183
  %v3248 = vmul.f32 %v2736, %v3184
  %v3249 = vmul.f32 %v2737, %v3185
  %v3250 = vmul.f32 %v2738, %v3186
  %v3251 = vmul.f32 %v2739, %v3187
  %v3252 = vmul.f32 %v2740, %v3188
  %v3253 = vmul.f32 %v2741, %v3189
  %v3255 = vlaneseq
  %v3256 = vshrl.u32 %v3255, 7
  %v3257 = vsub.s32 0, %v3256
  %v3258 = vrot.slane %v2420, %v3257
  %v3260 = vmul.f32 %v3190, %v3258
  %v3261 = vmul.f32 %v3191, %v3258
  %v3262 = vmul.f32 %v3192, %v3258
  %v3263 = vmul.f32 %v3193, %v3258
  %v3264 = vmul.f32 %v3194, %v3258
  %v3265 = vmul.f32 %v3195, %v3258
  %v3266 = vmul.f32 %v3196, %v3258
  %v3267 = vmul.f32 %v3197, %v3258
  %v3268 = vmul.f32 %v3198, %v3258
  %v3269 = vmul.f32 %v3199, %v3258
  %v3270 = vmul.f32 %v3200, %v3258
  %v3271 = vmul.f32 %v3201, %v3258
  %v3272 = vmul.f32 %v3202, %v3258
  %v3273 = vmul.f32 %v3203, %v3258
  %v3274 = vmul.f32 %v3204, %v3258
  %v3275 = vmul.f32 %v3205, %v3258
  %v3276 = vmul.f32 %v3206, %v3258
  %v3277 = vmul.f32 %v3207, %v3258
  %v3278 = vmul.f32 %v3208, %v3258
  %v3279 = vmul.f32 %v3209, %v3258
  %v3280 = vmul.f32 %v3210, %v3258
  %v3281 = vmul.f32 %v3211, %v3258
  %v3282 = vmul.f32 %v3212, %v3258
  %v3283 = vmul.f32 %v3213, %v3258
  %v3284 = vmul.f32 %v3214, %v3258
  %v3285 = vmul.f32 %v3215, %v3258
  %v3286 = vmul.f32 %v3216, %v3258
  %v3287 = vmul.f32 %v3217, %v3258
  %v3288 = vmul.f32 %v3218, %v3258
  %v3289 = vmul.f32 %v3219, %v3258
  %v3290 = vmul.f32 %v3220, %v3258
  %v3291 = vmul.f32 %v3221, %v3258
  %v3292 = vmul.f32 %v3222, %v3258
  %v3293 = vmul.f32 %v3223, %v3258
  %v3294 = vmul.f32 %v3224, %v3258
  %v3295 = vmul.f32 %v3225, %v3258
  %v3296 = vmul.f32 %v3226, %v3258
  %v3297 = vmul.f32 %v3227, %v3258
  %v3298 = vmul.f32 %v3228, %v3258
  %v3299 = vmul.f32 %v3229, %v3258
  %v3300 = vmul.f32 %v3230, %v3258
  %v3301 = vmul.f32 %v3231, %v3258
  %v3302 = vmul.f32 %v3232, %v3258
  %v3303 = vmul.f32 %v3233, %v3258
  %v3304 = vmul.f32 %v3234, %v3258
  %v3305 = vmul.f32 %v3235, %v3258
  %v3306 = vmul.f32 %v3236, %v3258
  %v3307 = vmul.f32 %v3237, %v3258
  %v3308 = vmul.f32 %v3238, %v3258
  %v3309 = vmul.f32 %v3239, %v3258
  %v3310 = vmul.f32 %v3240, %v3258
  %v3311 = vmul.f32 %v3241, %v3258
  %v3312 = vmul.f32 %v3242, %v3258
  %v3313 = vmul.f32 %v3243, %v3258
  %v3314 = vmul.f32 %v3244, %v3258
  %v3315 = vmul.f32 %v3245, %v3258
  %v3316 = vmul.f32 %v3246, %v3258
  %v3317 = vmul.f32 %v3247, %v3258
  %v3318 = vmul.f32 %v3248, %v3258
  %v3319 = vmul.f32 %v3249, %v3258
  %v3320 = vmul.f32 %v3250, %v3258
  %v3321 = vmul.f32 %v3251, %v3258
  %v3322 = vmul.f32 %v3252, %v3258
  %v3323 = vmul.f32 %v3253, %v3258
  %v3325 = vlaneseq
  %v3326 = vshrl.u32 %v3325, 7
  %v3327 = vsub.s32 0, %v3326
  %v3328 = vrot.slane %v2421, %v3327
  %v3330 = vadd.f32 %v3260, %v3328
  %v3331 = vadd.f32 %v3261, %v3328
  %v3332 = vadd.f32 %v3262, %v3328
  %v3333 = vadd.f32 %v3263, %v3328
  %v3334 = vadd.f32 %v3264, %v3328
  %v3335 = vadd.f32 %v3265, %v3328
  %v3336 = vadd.f32 %v3266, %v3328
  %v3337 = vadd.f32 %v3267, %v3328
  %v3338 = vadd.f32 %v3268, %v3328
  %v3339 = vadd.f32 %v3269, %v3328
  %v3340 = vadd.f32 %v3270, %v3328
  %v3341 = vadd.f32 %v3271, %v3328
  %v3342 = vadd.f32 %v3272, %v3328
  %v3343 = vadd.f32 %v3273, %v3328
  %v3344 = vadd.f32 %v3274, %v3328
  %v3345 = vadd.f32 %v3275, %v3328
  %v3346 = vadd.f32 %v3276, %v3328
  %v3347 = vadd.f32 %v3277, %v3328
  %v3348 = vadd.f32 %v3278, %v3328
  %v3349 = vadd.f32 %v3279, %v3328
  %v3350 = vadd.f32 %v3280, %v3328
  %v3351 = vadd.f32 %v3281, %v3328
  %v3352 = vadd.f32 %v3282, %v3328
  %v3353 = vadd.f32 %v3283, %v3328
  %v3354 = vadd.f32 %v3284, %v3328
  %v3355 = vadd.f32 %v3285, %v3328
  %v3356 = vadd.f32 %v3286, %v3328
  %v3357 = vadd.f32 %v3287, %v3328
  %v3358 = vadd.f32 %v3288, %v3328
  %v3359 = vadd.f32 %v3289, %v3328
  %v3360 = vadd.f32 %v3290, %v3328
  %v3361 = vadd.f32 %v3291, %v3328
  %v3362 = vadd.f32 %v3292, %v3328
  %v3363 = vadd.f32 %v3293, %v3328
  %v3364 = vadd.f32 %v3294, %v3328
  %v3365 = vadd.f32 %v3295, %v3328
  %v3366 = vadd.f32 %v3296, %v3328
  %v3367 = vadd.f32 %v3297, %v3328
  %v3368 = vadd.f32 %v3298, %v3328
  %v3369 = vadd.f32 %v3299, %v3328
  %v3370 = vadd.f32 %v3300, %v3328
  %v3371 = vadd.f32 %v3301, %v3328
  %v3372 = vadd.f32 %v3302, %v3328
  %v3373 = vadd.f32 %v3303, %v3328
  %v3374 = vadd.f32 %v3304, %v3328
  %v3375 = vadd.f32 %v3305, %v3328
  %v3376 = vadd.f32 %v3306, %v3328
  %v3377 = vadd.f32 %v3307, %v3328
  %v3378 = vadd.f32 %v3308, %v3328
  %v3379 = vadd.f32 %v3309, %v3328
  %v3380 = vadd.f32 %v3310, %v3328
  %v3381 = vadd.f32 %v3311, %v3328
  %v3382 = vadd.f32 %v3312, %v3328
  %v3383 = vadd.f32 %v3313, %v3328
  %v3384 = vadd.f32 %v3314, %v3328
  %v3385 = vadd.f32 %v3315, %v3328
  %v3386 = vadd.f32 %v3316, %v3328
  %v3387 = vadd.f32 %v3317, %v3328
  %v3388 = vadd.f32 %v3318, %v3328
  %v3389 = vadd.f32 %v3319, %v3328
  %v3390 = vadd.f32 %v3320, %v3328
  %v3391 = vadd.f32 %v3321, %v3328
  %v3392 = vadd.f32 %v3322, %v3328
  %v3393 = vadd.f32 %v3323, %v3328
  %v3394 = vadd.f32 %v1140, %v3330
  %v3395 = vadd.f32 %v1141, %v3331
  %v3396 = vadd.f32 %v1142, %v3332
  %v3397 = vadd.f32 %v1143, %v3333
  %v3398 = vadd.f32 %v1144, %v3334
  %v3399 = vadd.f32 %v1145, %v3335
  %v3400 = vadd.f32 %v1146, %v3336
  %v3401 = vadd.f32 %v1147, %v3337
  %v3402 = vadd.f32 %v1148, %v3338
  %v3403 = vadd.f32 %v1149, %v3339
  %v3404 = vadd.f32 %v1150, %v3340
  %v3405 = vadd.f32 %v1151, %v3341
  %v3406 = vadd.f32 %v1152, %v3342
  %v3407 = vadd.f32 %v1153, %v3343
  %v3408 = vadd.f32 %v1154, %v3344
  %v3409 = vadd.f32 %v1155, %v3345
  %v3410 = vadd.f32 %v1156, %v3346
  %v3411 = vadd.f32 %v1157, %v3347
  %v3412 = vadd.f32 %v1158, %v3348
  %v3413 = vadd.f32 %v1159, %v3349
  %v3414 = vadd.f32 %v1160, %v3350
  %v3415 = vadd.f32 %v1161, %v3351
  %v3416 = vadd.f32 %v1162, %v3352
  %v3417 = vadd.f32 %v1163, %v3353
  %v3418 = vadd.f32 %v1164, %v3354
  %v3419 = vadd.f32 %v1165, %v3355
  %v3420 = vadd.f32 %v1166, %v3356
  %v3421 = vadd.f32 %v1167, %v3357
  %v3422 = vadd.f32 %v1168, %v3358
  %v3423 = vadd.f32 %v1169, %v3359
  %v3424 = vadd.f32 %v1170, %v3360
  %v3425 = vadd.f32 %v1171, %v3361
  %v3426 = vadd.f32 %v1172, %v3362
  %v3427 = vadd.f32 %v1173, %v3363
  %v3428 = vadd.f32 %v1174, %v3364
  %v3429 = vadd.f32 %v1175, %v3365
  %v3430 = vadd.f32 %v1176, %v3366
  %v3431 = vadd.f32 %v1177, %v3367
  %v3432 = vadd.f32 %v1178, %v3368
  %v3433 = vadd.f32 %v1179, %v3369
  %v3434 = vadd.f32 %v1180, %v3370
  %v3435 = vadd.f32 %v1181, %v3371
  %v3436 = vadd.f32 %v1182, %v3372
  %v3437 = vadd.f32 %v1183, %v3373
  %v3438 = vadd.f32 %v1184, %v3374
  %v3439 = vadd.f32 %v1185, %v3375
  %v3440 = vadd.f32 %v1186, %v3376
  %v3441 = vadd.f32 %v1187, %v3377
  %v3442 = vadd.f32 %v1188, %v3378
  %v3443 = vadd.f32 %v1189, %v3379
  %v3444 = vadd.f32 %v1190, %v3380
  %v3445 = vadd.f32 %v1191, %v3381
  %v3446 = vadd.f32 %v1192, %v3382
  %v3447 = vadd.f32 %v1193, %v3383
  %v3448 = vadd.f32 %v1194, %v3384
  %v3449 = vadd.f32 %v1195, %v3385
  %v3450 = vadd.f32 %v1196, %v3386
  %v3451 = vadd.f32 %v1197, %v3387
  %v3452 = vadd.f32 %v1198, %v3388
  %v3453 = vadd.f32 %v1199, %v3389
  %v3454 = vadd.f32 %v1200, %v3390
  %v3455 = vadd.f32 %v1201, %v3391
  %v3456 = vadd.f32 %v1202, %v3392
  %v3457 = vadd.f32 %v1203, %v3393
  %3458 = vst.msk [vmem:[%s10] sm:$0xff] %vm166, %v3394
  %3459 = vst.msk [vmem:[%s10 + $0x8] sm:$0xff] %vm166, %v3395
  %3460 = vst.msk [vmem:[%s10 + $0x10] sm:$0xff] %vm166, %v3396
  %3461 = vst.msk [vmem:[%s10 + $0x18] sm:$0xff] %vm166, %v3397
  %3462 = vst.msk [vmem:[%s10 + $0x20] sm:$0xff] %vm166, %v3398
  %3463 = vst.msk [vmem:[%s10 + $0x28] sm:$0xff] %vm166, %v3399
  %3464 = vst.msk [vmem:[%s10 + $0x30] sm:$0xff] %vm166, %v3400
  %3465 = vst.msk [vmem:[%s10 + $0x38] sm:$0xff] %vm166, %v3401
  %3466 = vst.msk [vmem:[%s10 + $0x40] sm:$0xff] %vm166, %v3402
  %3467 = vst.msk [vmem:[%s10 + $0x48] sm:$0xff] %vm166, %v3403
  %3468 = vst.msk [vmem:[%s10 + $0x50] sm:$0xff] %vm166, %v3404
  %3469 = vst.msk [vmem:[%s10 + $0x58] sm:$0xff] %vm166, %v3405
  %3470 = vst.msk [vmem:[%s10 + $0x60] sm:$0xff] %vm166, %v3406
  %3471 = vst.msk [vmem:[%s10 + $0x68] sm:$0xff] %vm166, %v3407
  %3472 = vst.msk [vmem:[%s10 + $0x70] sm:$0xff] %vm166, %v3408
  %3473 = vst.msk [vmem:[%s10 + $0x78] sm:$0xff] %vm166, %v3409
  %3474 = vst.msk [vmem:[%s10 + $0x80] sm:$0xff] %vm166, %v3410
  %3475 = vst.msk [vmem:[%s10 + $0x88] sm:$0xff] %vm166, %v3411
  %3476 = vst.msk [vmem:[%s10 + $0x90] sm:$0xff] %vm166, %v3412
  %3477 = vst.msk [vmem:[%s10 + $0x98] sm:$0xff] %vm166, %v3413
  %3478 = vst.msk [vmem:[%s10 + $0xa0] sm:$0xff] %vm166, %v3414
  %3479 = vst.msk [vmem:[%s10 + $0xa8] sm:$0xff] %vm166, %v3415
  %3480 = vst.msk [vmem:[%s10 + $0xb0] sm:$0xff] %vm166, %v3416
  %3481 = vst.msk [vmem:[%s10 + $0xb8] sm:$0xff] %vm166, %v3417
  %3482 = vst.msk [vmem:[%s10 + $0xc0] sm:$0xff] %vm166, %v3418
  %3483 = vst.msk [vmem:[%s10 + $0xc8] sm:$0xff] %vm166, %v3419
  %3484 = vst.msk [vmem:[%s10 + $0xd0] sm:$0xff] %vm166, %v3420
  %3485 = vst.msk [vmem:[%s10 + $0xd8] sm:$0xff] %vm166, %v3421
  %3486 = vst.msk [vmem:[%s10 + $0xe0] sm:$0xff] %vm166, %v3422
  %3487 = vst.msk [vmem:[%s10 + $0xe8] sm:$0xff] %vm166, %v3423
  %3488 = vst.msk [vmem:[%s10 + $0xf0] sm:$0xff] %vm166, %v3424
  %3489 = vst.msk [vmem:[%s10 + $0xf8] sm:$0xff] %vm166, %v3425
  %3490 = vst.msk [vmem:[%s10 + $0x100] sm:$0xff] %vm166, %v3426
  %3491 = vst.msk [vmem:[%s10 + $0x108] sm:$0xff] %vm166, %v3427
  %3492 = vst.msk [vmem:[%s10 + $0x110] sm:$0xff] %vm166, %v3428
  %3493 = vst.msk [vmem:[%s10 + $0x118] sm:$0xff] %vm166, %v3429
  %3494 = vst.msk [vmem:[%s10 + $0x120] sm:$0xff] %vm166, %v3430
  %3495 = vst.msk [vmem:[%s10 + $0x128] sm:$0xff] %vm166, %v3431
  %3496 = vst.msk [vmem:[%s10 + $0x130] sm:$0xff] %vm166, %v3432
  %3497 = vst.msk [vmem:[%s10 + $0x138] sm:$0xff] %vm166, %v3433
  %3498 = vst.msk [vmem:[%s10 + $0x140] sm:$0xff] %vm166, %v3434
  %3499 = vst.msk [vmem:[%s10 + $0x148] sm:$0xff] %vm166, %v3435
  %3500 = vst.msk [vmem:[%s10 + $0x150] sm:$0xff] %vm166, %v3436
  %3501 = vst.msk [vmem:[%s10 + $0x158] sm:$0xff] %vm166, %v3437
  %3502 = vst.msk [vmem:[%s10 + $0x160] sm:$0xff] %vm166, %v3438
  %3503 = vst.msk [vmem:[%s10 + $0x168] sm:$0xff] %vm166, %v3439
  %3504 = vst.msk [vmem:[%s10 + $0x170] sm:$0xff] %vm166, %v3440
  %3505 = vst.msk [vmem:[%s10 + $0x178] sm:$0xff] %vm166, %v3441
  %3506 = vst.msk [vmem:[%s10 + $0x180] sm:$0xff] %vm166, %v3442
  %3507 = vst.msk [vmem:[%s10 + $0x188] sm:$0xff] %vm166, %v3443
  %3508 = vst.msk [vmem:[%s10 + $0x190] sm:$0xff] %vm166, %v3444
  %3509 = vst.msk [vmem:[%s10 + $0x198] sm:$0xff] %vm166, %v3445
  %3510 = vst.msk [vmem:[%s10 + $0x1a0] sm:$0xff] %vm166, %v3446
  %3511 = vst.msk [vmem:[%s10 + $0x1a8] sm:$0xff] %vm166, %v3447
  %3512 = vst.msk [vmem:[%s10 + $0x1b0] sm:$0xff] %vm166, %v3448
  %3513 = vst.msk [vmem:[%s10 + $0x1b8] sm:$0xff] %vm166, %v3449
  %3514 = vst.msk [vmem:[%s10 + $0x1c0] sm:$0xff] %vm166, %v3450
  %3515 = vst.msk [vmem:[%s10 + $0x1c8] sm:$0xff] %vm166, %v3451
  %3516 = vst.msk [vmem:[%s10 + $0x1d0] sm:$0xff] %vm166, %v3452
  %3517 = vst.msk [vmem:[%s10 + $0x1d8] sm:$0xff] %vm166, %v3453
  %3518 = vst.msk [vmem:[%s10 + $0x1e0] sm:$0xff] %vm166, %v3454
  %3519 = vst.msk [vmem:[%s10 + $0x1e8] sm:$0xff] %vm166, %v3455
  %3520 = vst.msk [vmem:[%s10 + $0x1f0] sm:$0xff] %vm166, %v3456
  %3521 = vst.msk [vmem:[%s10 + $0x1f8] sm:$0xff] %vm166, %v3457
  // Predicated region
  $region42: #{st2cspa_forward.6} parent=0 // pred_check
    _
  $region43: #{st2cspa_forward.6} parent=0 // pred_check_branch
    %3523 = sbr.rel (0) target = $region45
  $region44: #{st2cspa_forward.6} parent=0 // pred_region
    _
  $region45: #{st2cspa_forward.6} parent=0 // pred_fallthru
    _
  // Predicated region
  $region46: #{st2cspa_forward.6} parent=0 // pred_check
    _
  $region47: #{st2cspa_forward.6} parent=0 // pred_check_branch
    %3525 = sbr.rel (0) target = $region49
  $region48: #{st2cspa_forward.6} parent=0 // pred_region
    _
  $region49: #{st2cspa_forward.6} parent=0 // pred_fallthru
    _

</llo_original>
